<compile_context>
chip_gen: v7x
topology: tpu7x:2x2x1
jax: 0.10.0
libtpu: 0.0.40
codegen_flags: <defaults>
</compile_context>

<pallas_src>
import functools
import math

import numpy as np
import jax
import jax.numpy as jnp
from jax import lax
from jax.experimental import pallas as pl
from jax.experimental.pallas import tpu as pltpu

LN_EPS = 1e-5      # PyTorch nn.LayerNorm default
NEG_INF = -1e30    # additive key-mask value for padded rows
LANE = 128


def _round_up(x, m):
    return ((x + m - 1) // m) * m


def sinusoidal_pe(S, D):
    pos = np.arange(S, dtype=np.float32)[:, None]
    i = np.arange(0, D, 2, dtype=np.float32)[None, :]
    ang = pos / np.power(10000.0, i / D)
    pe = np.zeros((S, D), np.float32)
    pe[:, 0::2] = np.sin(ang)
    pe[:, 1::2] = np.cos(ang)
    return jnp.asarray(pe)


def _pack_cols(mats, align=LANE):
    """Concatenate 2-D arrays along the lane axis at `align`-aligned column offsets."""
    pieces, offs, off = [], [], 0
    for m in mats:
        offs.append(off)
        w = m.shape[-1]
        wp = _round_up(w, align)
        pieces.append(jnp.pad(m, ((0, 0), (0, wp - w))))
        off += wp
    return jnp.concatenate(pieces, axis=-1), tuple(offs)


def _pick_batch_tile(B, rows_per_example, rows_target=128):
    """Largest divisor of B with Bt*rows <= ~rows_target while keeping >=2 grid steps."""
    target = max(1, rows_target // max(rows_per_example, 1))
    best = 1
    for bt in range(1, B + 1):
        if B % bt == 0 and bt <= target and B // bt >= 2:
            best = bt
    return best


# ------------------------------- forward pass ----------------------------------

def multi_task_autoencoder_forward(params, src, subject_trajectory, *,
                                   seq_length, nhead, query_token_names):
    B, S, input_dim = src.shape
    subject_dim = subject_trajectory.shape[-1]
    D = params['subj_w'].shape[1]
    F = params['enc_layers'][0]['w1'].shape[1]
    H = nhead
    dh = D // H
    num_q = params['query_tokens'].shape[0]
    L_e = len(params['enc_layers'])
    L_d = len(params['dec_layers'])
    single_mem = (num_q == 1)

    # The decoder adds subject_embedded ([B, S, D]) to the target embedding, which
    # requires seq_length == S (this is how the reference module exercises it).
    assert seq_length == S, "single_step decode requires seq_length == src sequence length"

    in_tot = input_dim + subject_dim
    enc_len = num_q + S
    enc_pad = _round_up(enc_len, 8)              # sublane-aligned encoder sequence
    dec_pad = _round_up(seq_length, 8)           # sublane-aligned decoder sequence
    mq_pad = _round_up(num_q, 8)                 # sublane-aligned memory rows (<= enc_pad)
    out_pad = _round_up(input_dim, LANE)         # lane-dense reconstruction slab
    mem_pad = _round_up(D, LANE)                 # lane-dense memory slab
    Bt = _pick_batch_tile(B, enc_pad)
    n_steps = B // Bt

    # ---------------- host-side weight prep (tiny, runs once under XLA) ----------------
    pe_enc = sinusoidal_pe(S, D)
    pe_dec = sinusoidal_pe(seq_length, D)

    # combined input / combined embedding weight: one matmul produces
    #   [:, :D] = src @ enc_emb_w   (enc_emb_b folded into enc_base)
    #   [:, D:] = subj @ subj_w     (subj_b folded into enc_base / dec_base)
    comb_in = jnp.concatenate([src, subject_trajectory], axis=-1)
    comb_w = jnp.zeros((in_tot, 2 * D), jnp.float32)
    comb_w = comb_w.at[:input_dim, :D].set(params['enc_emb_w'])
    comb_w = comb_w.at[input_dim:, D:].set(params['subj_w'])

    rows = [params['query_tokens'],
            pe_enc + params['enc_emb_b'] + params['subj_b']]
    if enc_pad > enc_len:
        rows.append(jnp.zeros((enc_pad - enc_len, D), jnp.float32))
    enc_base = jnp.concatenate(rows, axis=0)                       # [enc_pad, D]

    # single_step_decode: decoder_input is all zeros, so its embedding == dec_emb_b.
    dec_rows = [pe_dec + params['dec_emb_b'] + params['subj_b']]
    if dec_pad > seq_length:
        dec_rows.append(jnp.zeros((dec_pad - seq_length, D), jnp.float32))
    dec_base = jnp.concatenate(dec_rows, axis=0)                   # [dec_pad, D]

    kb_w = _round_up(max(enc_pad, dec_pad, mq_pad), LANE)
    kb = np.zeros((3, kb_w), np.float32)
    kb[0, enc_len:enc_pad] = NEG_INF        # encoder padded keys
    kb[1, seq_length:dec_pad] = NEG_INF     # decoder padded keys
    kb[2, num_q:mq_pad] = NEG_INF           # cross-attention padded memory keys
    kbias = jnp.asarray(kb)

    out_wb = jnp.concatenate(
        [jnp.pad(params['out_w'], ((0, 0), (0, out_pad - input_dim))),
         jnp.pad(params['out_b'], ((0, 0), (0, out_pad - input_dim)))], axis=0)  # [D+1, out_pad]

    # per-layer weight slabs (lane-aligned sections, sliced statically in the kernel)
    enc_A, enc_B, enc_V = [], [], []
    for lp in params['enc_layers']:
        a, oa_e = _pack_cols([lp['wqkv'], lp['wo'], lp['w1']])
        v, ov_e = _pack_cols([lp['bqkv'], lp['bo'], lp['b1'], lp['b2'],
                              lp['ln1_g'], lp['ln1_b'], lp['ln2_g'], lp['ln2_b']])
        enc_A.append(a); enc_B.append(lp['w2']); enc_V.append(v)
    enc_matA, enc_matB, enc_vec = jnp.stack(enc_A), jnp.stack(enc_B), jnp.stack(enc_V)

    dec_A, dec_B, dec_V = [], [], []
    for lp in params['dec_layers']:
        if single_mem:
            c_mats = [lp['c_wqkv'][:, 2 * D:], lp['c_wo']]          # only Wv, Wo needed
            c_vecs = [lp['c_bqkv'][:, 2 * D:], lp['c_bo']]
        else:
            c_mats = [lp['c_wqkv'][:, :D], lp['c_wqkv'][:, D:], lp['c_wo']]
            c_vecs = [lp['c_bqkv'][:, :D], lp['c_bqkv'][:, D:], lp['c_bo']]
        a, oa_d = _pack_cols([lp['s_wqkv'], lp['s_wo']] + c_mats + [lp['w1']])
        v, ov_d = _pack_cols([lp['s_bqkv'], lp['s_bo']] + c_vecs +
                             [lp['b1'], lp['b2'],
                              lp['ln1_g'], lp['ln1_b'], lp['ln2_g'], lp['ln2_b'],
                              lp['ln3_g'], lp['ln3_b']])
        dec_A.append(a); dec_B.append(lp['w2']); dec_V.append(v)
    dec_matA, dec_matB, dec_vec = jnp.stack(dec_A), jnp.stack(dec_B), jnp.stack(dec_V)

    # teacher_forcing blend skipped (clip_embeddings=None); mask_memory_prob=0.0 skipped.
    # TODO(synk): random teacher-forcing / memory-masking branches (torch.rand) and the
    #             autoregressive decode mode are not translated.

    scale = 1.0 / math.sqrt(dh)

    # --------------------------------- fused kernel --------------------------------
    def kernel(comb_ref, combw_ref, encbase_ref, decbase_ref, kbias_ref, outwb_ref,
               e_matA, e_matB, e_vec, d_matA, d_matB, d_vec, mem_out, rec_out):
        f32 = jnp.float32

        def mm(a, b):
            return jnp.dot(a, b, preferred_element_type=f32)

        def layernorm(x, g, b):
            mu = jnp.mean(x, axis=-1, keepdims=True)
            var = jnp.mean(jnp.square(x - mu), axis=-1, keepdims=True)
            return (x - mu) * lax.rsqrt(var + LN_EPS) * g + b

        def softmax_last(s):
            s = s - jnp.max(s, axis=-1, keepdims=True)
            p = jnp.exp(s)
            return p * pl.reciprocal(jnp.sum(p, axis=-1, keepdims=True), approx=True)

        def self_attention(x_flat, rows, wqkv, bqkv, wo, bo, kb):
            """Packed-QKV multi-head self-attention on [Bt*rows, D] activations."""
            qkv = mm(x_flat, wqkv) + bqkv                       # one wide matmul (N=3D)
            qkv3 = qkv.reshape(Bt, rows, 3 * D)
            heads = []
            for h in range(H):
                q = qkv3[:, :, h * dh:(h + 1) * dh] * scale
                k = qkv3[:, :, D + h * dh:D + (h + 1) * dh]
                v = qkv3[:, :, 2 * D + h * dh:2 * D + (h + 1) * dh]
                s = jnp.einsum('bqe,bke->bqk', q, k, preferred_element_type=f32)
                if kb is not None:
                    s = s + kb
                p = softmax_last(s)
                heads.append(jnp.einsum('bqk,bke->bqe', p, v, preferred_element_type=f32))
            o = jnp.concatenate(heads, axis=-1).reshape(Bt * rows, D)
            return mm(o, wo) + bo                               # one wide out-proj matmul

        # ----- embeddings (subject projection + encoder embedding in one matmul) -----
        xin = comb_ref[...].reshape(Bt * S, in_tot)
        emb = mm(xin, combw_ref[...])                           # [Bt*S, 2D]
        subj_emb = emb[:, D:2 * D]
        src_rows = (emb[:, :D] + subj_emb).reshape(Bt, S, D)

        pieces = [jnp.zeros((Bt, num_q, D), f32), src_rows]
        if enc_pad > enc_len:
            pieces.append(jnp.zeros((Bt, enc_pad - enc_len, D), f32))
        x = (encbase_ref[...] + jnp.concatenate(pieces, axis=1)).reshape(Bt * enc_pad, D)

        enc_kb = None
        if enc_pad > enc_len:
            enc_kb = kbias_ref[0:1, :enc_pad].reshape(1, 1, enc_pad)

        # ----- encoder layers (post-norm TransformerEncoderLayer, ReLU FFN) -----
        # TODO(synk): static unroll is fine at L<=3; switch to lax.fori_loop over the
        #             stacked-layer axis for deep stacks.
        for l in range(L_e):
            A = lambda i, w: e_matA[l, :, oa_e[i]:oa_e[i] + w]
            V = lambda i, w: e_vec[l, :, ov_e[i]:ov_e[i] + w]
            wqkv, wo, w1 = A(0, 3 * D), A(1, D), A(2, F)
            w2 = e_matB[l]
            bqkv, bo, b1, b2 = V(0, 3 * D), V(1, D), V(2, F), V(3, D)
            g1, be1, g2, be2 = V(4, D), V(5, D), V(6, D), V(7, D)

            a = self_attention(x, enc_pad, wqkv, bqkv, wo, bo, enc_kb)
            h1 = layernorm(x + a, g1, be1)
            f = jnp.maximum(mm(h1, w1) + b1, 0.0)
            f = mm(f, w2) + b2
            x = layernorm(h1 + f, g2, be2)

        seq3 = x.reshape(Bt, enc_pad, D)

        # memory (query-token outputs), written as a lane-dense [Bt, num_q, 128] slab
        mem3 = seq3[:, :num_q, :]
        if mem_pad > D:
            mem3 = jnp.concatenate(
                [mem3, jnp.zeros((Bt, num_q, mem_pad - D), f32)], axis=-1)
        mem_out[...] = mem3.astype(mem_out.dtype)

        # sublane-aligned flat view of the rows containing the memory tokens
        memflat = seq3[:, :mq_pad, :].reshape(Bt * mq_pad, D)

        # ----- decoder (single_step_decode: zero decoder_input) -----
        subj3 = subj_emb.reshape(Bt, S, D)
        if dec_pad > S:
            subj3 = jnp.concatenate(
                [subj3, jnp.zeros((Bt, dec_pad - S, D), f32)], axis=1)
        x = (decbase_ref[...] + subj3).reshape(Bt * dec_pad, D)

        dec_kb = None
        if dec_pad > S:
            dec_kb = kbias_ref[1:2, :dec_pad].reshape(1, 1, dec_pad)
        cross_kb = None
        if (not single_mem) and mq_pad > num_q:
            cross_kb = kbias_ref[2:3, :mq_pad].reshape(1, 1, mq_pad)

        for l in range(L_d):
            A = lambda i, w: d_matA[l, :, oa_d[i]:oa_d[i] + w]
            V = lambda i, w: d_vec[l, :, ov_d[i]:ov_d[i] + w]
            s_wqkv, s_wo = A(0, 3 * D), A(1, D)
            s_bqkv, s_bo = V(0, 3 * D), V(1, D)
            w2 = d_matB[l]
            if single_mem:
                c_wv, c_wo, w1 = A(2, D), A(3, D), A(4, F)
                c_bv, c_bo, b1, b2 = V(2, D), V(3, D), V(4, F), V(5, D)
                g1, be1, g2, be2, g3, be3 = (V(6, D), V(7, D), V(8, D),
                                             V(9, D), V(10, D), V(11, D))
            else:
                c_wq, c_wkv, c_wo, w1 = A(2, D), A(3, 2 * D), A(4, D), A(5, F)
                c_bq, c_bkv, c_bo, b1, b2 = V(2, D), V(3, 2 * D), V(4, D), V(5, F), V(6, D)
                g1, be1, g2, be2, g3, be3 = (V(7, D), V(8, D), V(9, D),
                                             V(10, D), V(11, D), V(12, D))

            sa = self_attention(x, dec_pad, s_wqkv, s_bqkv, s_wo, s_bo, dec_kb)
            h1 = layernorm(x + sa, g1, be1)

            if single_mem:
                # softmax over a single memory key is identically 1:
                #   cross_attn = (mem @ Wv + bv) @ Wo + bo, broadcast over all positions
                v = mm(memflat, c_wv) + c_bv
                ca = mm(v, c_wo).reshape(Bt, mq_pad, D)[:, :1, :] + c_bo   # [Bt, 1, D]
                h2_in = (h1.reshape(Bt, dec_pad, D) + ca).reshape(Bt * dec_pad, D)
            else:
                q_all = mm(h1, c_wq) + c_bq                      # [Bt*dec_pad, D]
                kv = mm(memflat, c_wkv) + c_bkv                  # [Bt*mq_pad, 2D]
                q3 = q_all.reshape(Bt, dec_pad, D)
                kv3 = kv.reshape(Bt, mq_pad, 2 * D)
                heads = []
                for h in range(H):
                    qh = q3[:, :, h * dh:(h + 1) * dh] * scale
                    kh = kv3[:, :, h * dh:(h + 1) * dh]
                    vh = kv3[:, :, D + h * dh:D + (h + 1) * dh]
                    s = jnp.einsum('bqe,bke->bqk', qh, kh, preferred_element_type=f32)
                    if cross_kb is not None:
                        s = s + cross_kb
                    p = softmax_last(s)
                    heads.append(jnp.einsum('bqk,bke->bqe', p, vh,
                                            preferred_element_type=f32))
                cao = jnp.concatenate(heads, axis=-1).reshape(Bt * dec_pad, D)
                h2_in = h1 + mm(cao, c_wo) + c_bo

            h2 = layernorm(h2_in, g2, be2)
            f = jnp.maximum(mm(h2, w1) + b1, 0.0)
            f = mm(f, w2) + b2
            x = layernorm(h2 + f, g3, be3)

        # lane-dense reconstruction slab (out_w/out_b zero-padded to 128 lanes on host)
        rec = mm(x, outwb_ref[:D, :]) + outwb_ref[D:D + 1, :]
        rec_out[...] = rec.reshape(Bt, dec_pad, out_pad).astype(rec_out.dtype)

    # ------------------------------- pallas_call ---------------------------------
    weights = [comb_w, enc_base, dec_base, kbias, out_wb,
               enc_matA, enc_matB, enc_vec, dec_matA, dec_matB, dec_vec]

    def const_spec(arr):
        nd = arr.ndim
        return pl.BlockSpec(tuple(arr.shape), lambda b, _n=nd: (0,) * _n)

    mem_slab, rec_slab = pl.pallas_call(
        kernel,
        out_shape=(jax.ShapeDtypeStruct((B, num_q, mem_pad), jnp.float32),
                   jax.ShapeDtypeStruct((B, dec_pad, out_pad), jnp.float32)),
        grid=(n_steps,),
        in_specs=[pl.BlockSpec((Bt, S, in_tot), lambda b: (b, 0, 0))]
                 + [const_spec(w) for w in weights],
        out_specs=(pl.BlockSpec((Bt, num_q, mem_pad), lambda b: (b, 0, 0)),
                   pl.BlockSpec((Bt, dec_pad, out_pad), lambda b: (b, 0, 0))),
        compiler_params=pltpu.CompilerParams(dimension_semantics=("parallel",)),
    )(comb_in, *weights)

    memory = mem_slab[:, :, :D]
    reconstructed = rec_slab[:, :seq_length, :input_dim]
    out = {f'{name}_embedding': memory[:, i, :]
           for i, name in enumerate(query_token_names)}
    out['reconstructed'] = reconstructed
    return out


# ------------------------------ parameter setup --------------------------------

def init_params(seed, *, input_dim, subject_dim, latent_dim, nhead,
                num_encoder_layers, num_decoder_layers, dim_feedforward, num_query_tokens):
    key = jax.random.PRNGKey(seed)
    cnt = [0]

    def w(shape, scale=0.02):
        cnt[0] += 1
        return scale * jax.random.normal(jax.random.fold_in(key, cnt[0]), shape, jnp.float32)

    D = latent_dim
    zeros = lambda n: jnp.zeros((1, n), jnp.float32)
    ones = lambda n: jnp.ones((1, n), jnp.float32)

    p = {
        'subj_w': w((subject_dim, D)), 'subj_b': zeros(D),
        'enc_emb_w': w((input_dim, D)), 'enc_emb_b': zeros(D),
        'dec_emb_w': w((input_dim, D)), 'dec_emb_b': zeros(D),   # dec_emb_w unused: zero decoder input
        'out_w': w((D, input_dim)), 'out_b': zeros(input_dim),
        'query_tokens': w((num_query_tokens, D), 1.0),
    }

    def attn():
        return {'wqkv': w((D, 3 * D)), 'bqkv': zeros(3 * D), 'wo': w((D, D)), 'bo': zeros(D)}

    def ffn_lns(n_ln):
        d = {'w1': w((D, dim_feedforward)), 'b1': zeros(dim_feedforward),
             'w2': w((dim_feedforward, D)), 'b2': zeros(D)}
        for i in range(1, n_ln + 1):
            d[f'ln{i}_g'] = ones(D)
            d[f'ln{i}_b'] = zeros(D)
        return d

    enc_layers = []
    for _ in range(num_encoder_layers):
        lp = attn()
        lp.update(ffn_lns(2))
        enc_layers.append(lp)

    dec_layers = []
    for _ in range(num_decoder_layers):
        lp = {}
        lp.update({'s_' + k: v for k, v in attn().items()})
        lp.update({'c_' + k: v for k, v in attn().items()})
        lp.update(ffn_lns(3))
        dec_layers.append(lp)

    p['enc_layers'] = enc_layers
    p['dec_layers'] = dec_layers
    return p


# ----------------------- pure-JAX reference (for checking) ----------------------

def _reference_forward(params, src, subject_trajectory, *,
                       seq_length, nhead, query_token_names):
    B, S, input_dim = src.shape
    D = params['subj_w'].shape[1]
    dh = D // nhead

    def lin(x, w, b):
        return jnp.dot(x, w) + b

    def ln(x, g, b):
        mu = x.mean(-1, keepdims=True)
        var = ((x - mu) ** 2).mean(-1, keepdims=True)
        return (x - mu) / jnp.sqrt(var + LN_EPS) * g + b

    def mha(q_in, kv_in, wqkv, bqkv, wo, bo):
        q = jnp.einsum('bsd,de->bse', q_in, wqkv[:, :D]) + bqkv[:, :D]
        k = jnp.einsum('bsd,de->bse', kv_in, wqkv[:, D:2 * D]) + bqkv[:, D:2 * D]
        v = jnp.einsum('bsd,de->bse', kv_in, wqkv[:, 2 * D:]) + bqkv[:, 2 * D:]
        q = q.reshape(B, -1, nhead, dh).transpose(0, 2, 1, 3) / math.sqrt(dh)
        k = k.reshape(B, -1, nhead, dh).transpose(0, 2, 1, 3)
        v = v.reshape(B, -1, nhead, dh).transpose(0, 2, 1, 3)
        p = jax.nn.softmax(jnp.einsum('bhqe,bhke->bhqk', q, k), axis=-1)
        o = jnp.einsum('bhqk,bhke->bhqe', p, v).transpose(0, 2, 1, 3).reshape(B, -1, D)
        return jnp.einsum('bsd,de->bse', o, wo) + bo

    subj_emb = lin(subject_trajectory, params['subj_w'], params['subj_b'])
    src_emb = lin(src, params['enc_emb_w'], params['enc_emb_b']) + subj_emb + sinusoidal_pe(S, D)[None]
    num_q = params['query_tokens'].shape[0]
    seq = jnp.concatenate(
        [jnp.broadcast_to(params['query_tokens'][None], (B, num_q, D)), src_emb], axis=1)
    for lp in params['enc_layers']:
        a = mha(seq, seq, lp['wqkv'], lp['bqkv'], lp['wo'], lp['bo'])
        h1 = ln(seq + a, lp['ln1_g'], lp['ln1_b'])
        f = jnp.dot(jnp.maximum(jnp.dot(h1, lp['w1']) + lp['b1'], 0.0), lp['w2']) + lp['b2']
        seq = ln(h1 + f, lp['ln2_g'], lp['ln2_b'])
    memory = seq[:, :num_q, :]

    tgt = (lin(jnp.zeros((B, seq_length, input_dim), jnp.float32),
               params['dec_emb_w'], params['dec_emb_b'])
           + subj_emb + sinusoidal_pe(seq_length, D)[None])
    x = tgt
    for lp in params['dec_layers']:
        sa = mha(x, x, lp['s_wqkv'], lp['s_bqkv'], lp['s_wo'], lp['s_bo'])
        h1 = ln(x + sa, lp['ln1_g'], lp['ln1_b'])
        ca = mha(h1, memory, lp['c_wqkv'], lp['c_bqkv'], lp['c_wo'], lp['c_bo'])
        h2 = ln(h1 + ca, lp['ln2_g'], lp['ln2_b'])
        f = jnp.dot(jnp.maximum(jnp.dot(h2, lp['w1']) + lp['b1'], 0.0), lp['w2']) + lp['b2']
        x = ln(h2 + f, lp['ln3_g'], lp['ln3_b'])
    rec = lin(x, params['out_w'], params['out_b'])

    out = {f'{n}_embedding': memory[:, i, :] for i, n in enumerate(query_token_names)}
    out['reconstructed'] = rec
    return out


# ----------------------------------- main ---------------------------------------

if __name__ == "__main__":
    # small shapes consistent with the module's forward
    B, S = 2, 8
    input_dim, subject_dim = 7, 9
    latent_dim, nhead = 32, 4
    num_encoder_layers, num_decoder_layers = 2, 2
    dim_feedforward = 64
    seq_length = S
    query_token_names = ['cls']

    params = init_params(
        0, input_dim=input_dim, subject_dim=subject_dim, latent_dim=latent_dim,
        nhead=nhead, num_encoder_layers=num_encoder_layers,
        num_decoder_layers=num_decoder_layers, dim_feedforward=dim_feedforward,
        num_query_tokens=len(query_token_names))

    k1, k2 = jax.random.split(jax.random.PRNGKey(0))
    src = jax.random.normal(k1, (B, S, input_dim), jnp.float32)
    subject_trajectory = jax.random.normal(k2, (B, S, subject_dim), jnp.float32)

    run = jax.jit(functools.partial(
        multi_task_autoencoder_forward,
        seq_length=seq_length, nhead=nhead, query_token_names=query_token_names))
    out = run(params, src, subject_trajectory)
    jax.block_until_ready(out)

    assert out['cls_embedding'].shape == (B, latent_dim)
    assert out['reconstructed'].shape == (B, seq_length, input_dim)
    assert all(bool(jnp.all(jnp.isfinite(v))) for v in out.values())

    # numerical cross-check against a pure-JAX reference of the same forward pass
    ref = _reference_forward(params, src, subject_trajectory,
                             seq_length=seq_length, nhead=nhead,
                             query_token_names=query_token_names)
    for k in out:
        np.testing.assert_allclose(np.asarray(out[k]), np.asarray(ref[k]),
                                   rtol=5e-2, atol=5e-3)
    print("KERNEL_OK")
</pallas_src>

<mosaic_0001>
module attributes {stable_mosaic.version = 11 : i64} {
  func.func @kernel(%arg0: i32, %arg1: memref<1x8x16xf32, #tpu.memory_space<vmem>>, %arg2: memref<16x64xf32, #tpu.memory_space<vmem>>, %arg3: memref<16x32xf32, #tpu.memory_space<vmem>>, %arg4: memref<8x32xf32, #tpu.memory_space<vmem>>, %arg5: memref<3x128xf32, #tpu.memory_space<vmem>>, %arg6: memref<33x128xf32, #tpu.memory_space<vmem>>, %arg7: memref<2x32x384xf32, #tpu.memory_space<vmem>>, %arg8: memref<2x64x32xf32, #tpu.memory_space<vmem>>, %arg9: memref<2x1x1024xf32, #tpu.memory_space<vmem>>, %arg10: memref<2x32x640xf32, #tpu.memory_space<vmem>>, %arg11: memref<2x64x32xf32, #tpu.memory_space<vmem>>, %arg12: memref<2x1x1536xf32, #tpu.memory_space<vmem>>, %arg13: memref<1x1x128xf32, #tpu.memory_space<vmem>>, %arg14: memref<1x8x128xf32, #tpu.memory_space<vmem>>) attributes {dimension_semantics = [#tpu.dimension_semantics<parallel>], iteration_bounds = array<i64: 2>, scalar_prefetch = 0 : i64, scratch_operands = 0 : i64, tpu.core_type = #tpu.core_type<tc>, window_params = [{transform_indices = @transform_0, window_bounds = array<i64: 1, 8, 16>}, {pipeline_mode = #tpu.pipeline_mode<synchronous>, transform_indices = @transform_1, window_bounds = array<i64: 16, 64>}, {pipeline_mode = #tpu.pipeline_mode<synchronous>, transform_indices = @transform_2, window_bounds = array<i64: 16, 32>}, {pipeline_mode = #tpu.pipeline_mode<synchronous>, transform_indices = @transform_3, window_bounds = array<i64: 8, 32>}, {pipeline_mode = #tpu.pipeline_mode<synchronous>, transform_indices = @transform_4, window_bounds = array<i64: 3, 128>}, {pipeline_mode = #tpu.pipeline_mode<synchronous>, transform_indices = @transform_5, window_bounds = array<i64: 33, 128>}, {pipeline_mode = #tpu.pipeline_mode<synchronous>, transform_indices = @transform_6, window_bounds = array<i64: 2, 32, 384>}, {pipeline_mode = #tpu.pipeline_mode<synchronous>, transform_indices = @transform_7, window_bounds = array<i64: 2, 64, 32>}, {pipeline_mode = #tpu.pipeline_mode<synchronous>, transform_indices = @transform_8, window_bounds = array<i64: 2, 1, 1024>}, {pipeline_mode = #tpu.pipeline_mode<synchronous>, transform_indices = @transform_9, window_bounds = array<i64: 2, 32, 640>}, {pipeline_mode = #tpu.pipeline_mode<synchronous>, transform_indices = @transform_10, window_bounds = array<i64: 2, 64, 32>}, {pipeline_mode = #tpu.pipeline_mode<synchronous>, transform_indices = @transform_11, window_bounds = array<i64: 2, 1, 1536>}, {transform_indices = @transform_12, window_bounds = array<i64: 1, 1, 128>}, {transform_indices = @transform_13, window_bounds = array<i64: 1, 8, 128>}]} {
    %c0 = arith.constant 0 : index
    %c0_0 = arith.constant 0 : index
    %c0_1 = arith.constant 0 : index
    %0 = vector.load %arg1[%c0, %c0_0, %c0_1] : memref<1x8x16xf32, #tpu.memory_space<vmem>>, vector<1x8x16xf32>
    %1 = vector.shape_cast %0 : vector<1x8x16xf32> to vector<8x16xf32>
    %c0_2 = arith.constant 0 : index
    %c0_3 = arith.constant 0 : index
    %2 = vector.load %arg2[%c0_2, %c0_3] : memref<16x64xf32, #tpu.memory_space<vmem>>, vector<16x64xf32>
    %cst = arith.constant dense<0.000000e+00> : vector<8x64xf32>
    %3 = tpu.matmul %1, %2, %cst {dimension_numbers = #tpu.dot_dimension_numbers<[1], [0], [0], [1], [0, 0, 1, 1], [], []>} : vector<8x16xf32>, vector<16x64xf32>, vector<8x64xf32> -> vector<8x64xf32>
    %4 = vector.extract_strided_slice %3 {offsets = [0, 32], sizes = [8, 32], strides = [1, 1]} : vector<8x64xf32> to vector<8x32xf32>
    %5 = vector.extract_strided_slice %3 {offsets = [0, 0], sizes = [8, 32], strides = [1, 1]} : vector<8x64xf32> to vector<8x32xf32>
    %6 = arith.addf %5, %4 : vector<8x32xf32>
    %7 = vector.shape_cast %6 : vector<8x32xf32> to vector<1x8x32xf32>
    %cst_4 = arith.constant 0.000000e+00 : f32
    %8 = vector.broadcast %cst_4 : f32 to vector<1x1x32xf32>
    %cst_5 = arith.constant 0.000000e+00 : f32
    %9 = vector.broadcast %cst_5 : f32 to vector<1x7x32xf32>
    %c0_6 = arith.constant 0 : index
    %c0_7 = arith.constant 0 : index
    %10 = vector.load %arg3[%c0_6, %c0_7] : memref<16x32xf32, #tpu.memory_space<vmem>>, vector<16x32xf32>
    %11 = tpu.concatenate %8, %7, %9 in 1 : vector<1x1x32xf32>, vector<1x8x32xf32>, vector<1x7x32xf32> -> vector<1x16x32xf32>
    %12 = vector.shape_cast %10 : vector<16x32xf32> to vector<1x16x32xf32>
    %13 = arith.addf %12, %11 : vector<1x16x32xf32>
    %14 = vector.shape_cast %13 : vector<1x16x32xf32> to vector<16x32xf32>
    %c0_8 = arith.constant 0 : index
    %c0_9 = arith.constant 0 : index
    %15 = vector.load %arg5[%c0_8, %c0_9] : memref<3x128xf32, #tpu.memory_space<vmem>>, vector<1x16xf32>
    %16 = vector.shape_cast %15 : vector<1x16xf32> to vector<1x1x16xf32>
    %c0_10 = arith.constant 0 : index
    %c0_11 = arith.constant 0 : index
    %c0_12 = arith.constant 0 : index
    %17 = vector.load %arg7[%c0_10, %c0_11, %c0_12] : memref<2x32x384xf32, #tpu.memory_space<vmem>>, vector<1x32x96xf32>
    %18 = vector.shape_cast %17 : vector<1x32x96xf32> to vector<32x96xf32>
    %c0_13 = arith.constant 0 : index
    %c0_14 = arith.constant 0 : index
    %c128 = arith.constant 128 : index
    %19 = vector.load %arg7[%c0_13, %c0_14, %c128] : memref<2x32x384xf32, #tpu.memory_space<vmem>>, vector<1x32x32xf32>
    %20 = vector.shape_cast %19 : vector<1x32x32xf32> to vector<32x32xf32>
    %c0_15 = arith.constant 0 : index
    %c0_16 = arith.constant 0 : index
    %c256 = arith.constant 256 : index
    %21 = vector.load %arg7[%c0_15, %c0_16, %c256] : memref<2x32x384xf32, #tpu.memory_space<vmem>>, vector<1x32x64xf32>
    %22 = vector.shape_cast %21 : vector<1x32x64xf32> to vector<32x64xf32>
    %c0_17 = arith.constant 0 : index
    %c0_18 = arith.constant 0 : index
    %c0_19 = arith.constant 0 : index
    %23 = vector.load %arg8[%c0_17, %c0_18, %c0_19] : memref<2x64x32xf32, #tpu.memory_space<vmem>>, vector<1x64x32xf32>
    %24 = vector.shape_cast %23 : vector<1x64x32xf32> to vector<64x32xf32>
    %c0_20 = arith.constant 0 : index
    %c0_21 = arith.constant 0 : index
    %c0_22 = arith.constant 0 : index
    %25 = vector.load %arg9[%c0_20, %c0_21, %c0_22] : memref<2x1x1024xf32, #tpu.memory_space<vmem>>, vector<1x1x96xf32>
    %26 = vector.shape_cast %25 : vector<1x1x96xf32> to vector<1x96xf32>
    %c0_23 = arith.constant 0 : index
    %c0_24 = arith.constant 0 : index
    %c128_25 = arith.constant 128 : index
    %27 = vector.load %arg9[%c0_23, %c0_24, %c128_25] : memref<2x1x1024xf32, #tpu.memory_space<vmem>>, vector<1x1x32xf32>
    %28 = vector.shape_cast %27 : vector<1x1x32xf32> to vector<1x32xf32>
    %c0_26 = arith.constant 0 : index
    %c0_27 = arith.constant 0 : index
    %c256_28 = arith.constant 256 : index
    %29 = vector.load %arg9[%c0_26, %c0_27, %c256_28] : memref<2x1x1024xf32, #tpu.memory_space<vmem>>, vector<1x1x64xf32>
    %30 = vector.shape_cast %29 : vector<1x1x64xf32> to vector<1x64xf32>
    %c0_29 = arith.constant 0 : index
    %c0_30 = arith.constant 0 : index
    %c384 = arith.constant 384 : index
    %31 = vector.load %arg9[%c0_29, %c0_30, %c384] : memref<2x1x1024xf32, #tpu.memory_space<vmem>>, vector<1x1x32xf32>
    %32 = vector.shape_cast %31 : vector<1x1x32xf32> to vector<1x32xf32>
    %c0_31 = arith.constant 0 : index
    %c0_32 = arith.constant 0 : index
    %c512 = arith.constant 512 : index
    %33 = vector.load %arg9[%c0_31, %c0_32, %c512] : memref<2x1x1024xf32, #tpu.memory_space<vmem>>, vector<1x1x32xf32>
    %34 = vector.shape_cast %33 : vector<1x1x32xf32> to vector<1x32xf32>
    %c0_33 = arith.constant 0 : index
    %c0_34 = arith.constant 0 : index
    %c640 = arith.constant 640 : index
    %35 = vector.load %arg9[%c0_33, %c0_34, %c640] : memref<2x1x1024xf32, #tpu.memory_space<vmem>>, vector<1x1x32xf32>
    %36 = vector.shape_cast %35 : vector<1x1x32xf32> to vector<1x32xf32>
    %c0_35 = arith.constant 0 : index
    %c0_36 = arith.constant 0 : index
    %c768 = arith.constant 768 : index
    %37 = vector.load %arg9[%c0_35, %c0_36, %c768] : memref<2x1x1024xf32, #tpu.memory_space<vmem>>, vector<1x1x32xf32>
    %38 = vector.shape_cast %37 : vector<1x1x32xf32> to vector<1x32xf32>
    %c0_37 = arith.constant 0 : index
    %c0_38 = arith.constant 0 : index
    %c896 = arith.constant 896 : index
    %39 = vector.load %arg9[%c0_37, %c0_38, %c896] : memref<2x1x1024xf32, #tpu.memory_space<vmem>>, vector<1x1x32xf32>
    %40 = vector.shape_cast %39 : vector<1x1x32xf32> to vector<1x32xf32>
    %cst_39 = arith.constant dense<0.000000e+00> : vector<16x96xf32>
    %41 = tpu.matmul %14, %18, %cst_39 {dimension_numbers = #tpu.dot_dimension_numbers<[1], [0], [0], [1], [0, 0, 1, 1], [], []>} : vector<16x32xf32>, vector<32x96xf32>, vector<16x96xf32> -> vector<16x96xf32>
    %42 = vector.broadcast %26 : vector<1x96xf32> to vector<16x96xf32>
    %43 = arith.addf %41, %42 : vector<16x96xf32>
    %44 = vector.shape_cast %43 : vector<16x96xf32> to vector<1x16x96xf32>
    %45 = vector.extract_strided_slice %44 {offsets = [0, 0, 0], sizes = [1, 16, 8], strides = [1, 1, 1]} : vector<1x16x96xf32> to vector<1x16x8xf32>
    %cst_40 = arith.constant 0.353553385 : f32
    %46 = vector.broadcast %cst_40 : f32 to vector<1x16x8xf32>
    %47 = arith.mulf %45, %46 : vector<1x16x8xf32>
    %48 = vector.extract_strided_slice %44 {offsets = [0, 0, 32], sizes = [1, 16, 8], strides = [1, 1, 1]} : vector<1x16x96xf32> to vector<1x16x8xf32>
    %49 = vector.extract_strided_slice %44 {offsets = [0, 0, 64], sizes = [1, 16, 8], strides = [1, 1, 1]} : vector<1x16x96xf32> to vector<1x16x8xf32>
    "tpu.trace_start"() <{level = 10 : i32, message = "bqe,bke->bqk"}> : () -> ()
    %cst_41 = arith.constant dense<0.000000e+00> : vector<1x16x16xf32>
    %50 = tpu.matmul %47, %48, %cst_41 {dimension_numbers = #tpu.dot_dimension_numbers<[2], [2], [1], [1], [0, 0, 0, 1, 1, 1], [0], [0]>} : vector<1x16x8xf32>, vector<1x16x8xf32>, vector<1x16x16xf32> -> vector<1x16x16xf32>
    "tpu.trace_stop"() : () -> ()
    %51 = vector.broadcast %16 : vector<1x1x16xf32> to vector<1x16x16xf32>
    %52 = arith.addf %50, %51 : vector<1x16x16xf32>
    %cst_42 = arith.constant dense<0xFF800000> : vector<1x16xf32>
    %53 = vector.multi_reduction <maximumf>, %52, %cst_42 [2] : vector<1x16x16xf32> to vector<1x16xf32>
    %54 = vector.shape_cast %53 : vector<1x16xf32> to vector<1x16x1xf32>
    %55 = vector.broadcast %54 : vector<1x16x1xf32> to vector<1x16x16xf32>
    %56 = arith.subf %52, %55 : vector<1x16x16xf32>
    %57 = math.exp %56 : vector<1x16x16xf32>
    %cst_43 = arith.constant dense<0.000000e+00> : vector<1x16xf32>
    %58 = vector.multi_reduction <add>, %57, %cst_43 [2] : vector<1x16x16xf32> to vector<1x16xf32>
    %59 = vector.shape_cast %58 : vector<1x16xf32> to vector<1x16x1xf32>
    %60 = tpu.reciprocal %59 {approx = true} : vector<1x16x1xf32> -> vector<1x16x1xf32>
    %61 = vector.broadcast %60 : vector<1x16x1xf32> to vector<1x16x16xf32>
    %62 = arith.mulf %57, %61 : vector<1x16x16xf32>
    "tpu.trace_start"() <{level = 10 : i32, message = "bqk,bke->bqe"}> : () -> ()
    %cst_44 = arith.constant dense<0.000000e+00> : vector<1x16x8xf32>
    %63 = tpu.matmul %62, %49, %cst_44 {dimension_numbers = #tpu.dot_dimension_numbers<[2], [1], [1], [2], [0, 0, 0, 1, 1, 2], [0], [0]>} : vector<1x16x16xf32>, vector<1x16x8xf32>, vector<1x16x8xf32> -> vector<1x16x8xf32>
    "tpu.trace_stop"() : () -> ()
    %64 = vector.extract_strided_slice %44 {offsets = [0, 0, 8], sizes = [1, 16, 8], strides = [1, 1, 1]} : vector<1x16x96xf32> to vector<1x16x8xf32>
    %cst_45 = arith.constant 0.353553385 : f32
    %65 = vector.broadcast %cst_45 : f32 to vector<1x16x8xf32>
    %66 = arith.mulf %64, %65 : vector<1x16x8xf32>
    %67 = vector.extract_strided_slice %44 {offsets = [0, 0, 40], sizes = [1, 16, 8], strides = [1, 1, 1]} : vector<1x16x96xf32> to vector<1x16x8xf32>
    %68 = vector.extract_strided_slice %44 {offsets = [0, 0, 72], sizes = [1, 16, 8], strides = [1, 1, 1]} : vector<1x16x96xf32> to vector<1x16x8xf32>
    "tpu.trace_start"() <{level = 10 : i32, message = "bqe,bke->bqk"}> : () -> ()
    %cst_46 = arith.constant dense<0.000000e+00> : vector<1x16x16xf32>
    %69 = tpu.matmul %66, %67, %cst_46 {dimension_numbers = #tpu.dot_dimension_numbers<[2], [2], [1], [1], [0, 0, 0, 1, 1, 1], [0], [0]>} : vector<1x16x8xf32>, vector<1x16x8xf32>, vector<1x16x16xf32> -> vector<1x16x16xf32>
    "tpu.trace_stop"() : () -> ()
    %70 = vector.broadcast %16 : vector<1x1x16xf32> to vector<1x16x16xf32>
    %71 = arith.addf %69, %70 : vector<1x16x16xf32>
    %cst_47 = arith.constant dense<0xFF800000> : vector<1x16xf32>
    %72 = vector.multi_reduction <maximumf>, %71, %cst_47 [2] : vector<1x16x16xf32> to vector<1x16xf32>
    %73 = vector.shape_cast %72 : vector<1x16xf32> to vector<1x16x1xf32>
    %74 = vector.broadcast %73 : vector<1x16x1xf32> to vector<1x16x16xf32>
    %75 = arith.subf %71, %74 : vector<1x16x16xf32>
    %76 = math.exp %75 : vector<1x16x16xf32>
    %cst_48 = arith.constant dense<0.000000e+00> : vector<1x16xf32>
    %77 = vector.multi_reduction <add>, %76, %cst_48 [2] : vector<1x16x16xf32> to vector<1x16xf32>
    %78 = vector.shape_cast %77 : vector<1x16xf32> to vector<1x16x1xf32>
    %79 = tpu.reciprocal %78 {approx = true} : vector<1x16x1xf32> -> vector<1x16x1xf32>
    %80 = vector.broadcast %79 : vector<1x16x1xf32> to vector<1x16x16xf32>
    %81 = arith.mulf %76, %80 : vector<1x16x16xf32>
    "tpu.trace_start"() <{level = 10 : i32, message = "bqk,bke->bqe"}> : () -> ()
    %cst_49 = arith.constant dense<0.000000e+00> : vector<1x16x8xf32>
    %82 = tpu.matmul %81, %68, %cst_49 {dimension_numbers = #tpu.dot_dimension_numbers<[2], [1], [1], [2], [0, 0, 0, 1, 1, 2], [0], [0]>} : vector<1x16x16xf32>, vector<1x16x8xf32>, vector<1x16x8xf32> -> vector<1x16x8xf32>
    "tpu.trace_stop"() : () -> ()
    %83 = vector.extract_strided_slice %44 {offsets = [0, 0, 16], sizes = [1, 16, 8], strides = [1, 1, 1]} : vector<1x16x96xf32> to vector<1x16x8xf32>
    %cst_50 = arith.constant 0.353553385 : f32
    %84 = vector.broadcast %cst_50 : f32 to vector<1x16x8xf32>
    %85 = arith.mulf %83, %84 : vector<1x16x8xf32>
    %86 = vector.extract_strided_slice %44 {offsets = [0, 0, 48], sizes = [1, 16, 8], strides = [1, 1, 1]} : vector<1x16x96xf32> to vector<1x16x8xf32>
    %87 = vector.extract_strided_slice %44 {offsets = [0, 0, 80], sizes = [1, 16, 8], strides = [1, 1, 1]} : vector<1x16x96xf32> to vector<1x16x8xf32>
    "tpu.trace_start"() <{level = 10 : i32, message = "bqe,bke->bqk"}> : () -> ()
    %cst_51 = arith.constant dense<0.000000e+00> : vector<1x16x16xf32>
    %88 = tpu.matmul %85, %86, %cst_51 {dimension_numbers = #tpu.dot_dimension_numbers<[2], [2], [1], [1], [0, 0, 0, 1, 1, 1], [0], [0]>} : vector<1x16x8xf32>, vector<1x16x8xf32>, vector<1x16x16xf32> -> vector<1x16x16xf32>
    "tpu.trace_stop"() : () -> ()
    %89 = vector.broadcast %16 : vector<1x1x16xf32> to vector<1x16x16xf32>
    %90 = arith.addf %88, %89 : vector<1x16x16xf32>
    %cst_52 = arith.constant dense<0xFF800000> : vector<1x16xf32>
    %91 = vector.multi_reduction <maximumf>, %90, %cst_52 [2] : vector<1x16x16xf32> to vector<1x16xf32>
    %92 = vector.shape_cast %91 : vector<1x16xf32> to vector<1x16x1xf32>
    %93 = vector.broadcast %92 : vector<1x16x1xf32> to vector<1x16x16xf32>
    %94 = arith.subf %90, %93 : vector<1x16x16xf32>
    %95 = math.exp %94 : vector<1x16x16xf32>
    %cst_53 = arith.constant dense<0.000000e+00> : vector<1x16xf32>
    %96 = vector.multi_reduction <add>, %95, %cst_53 [2] : vector<1x16x16xf32> to vector<1x16xf32>
    %97 = vector.shape_cast %96 : vector<1x16xf32> to vector<1x16x1xf32>
    %98 = tpu.reciprocal %97 {approx = true} : vector<1x16x1xf32> -> vector<1x16x1xf32>
    %99 = vector.broadcast %98 : vector<1x16x1xf32> to vector<1x16x16xf32>
    %100 = arith.mulf %95, %99 : vector<1x16x16xf32>
    "tpu.trace_start"() <{level = 10 : i32, message = "bqk,bke->bqe"}> : () -> ()
    %cst_54 = arith.constant dense<0.000000e+00> : vector<1x16x8xf32>
    %101 = tpu.matmul %100, %87, %cst_54 {dimension_numbers = #tpu.dot_dimension_numbers<[2], [1], [1], [2], [0, 0, 0, 1, 1, 2], [0], [0]>} : vector<1x16x16xf32>, vector<1x16x8xf32>, vector<1x16x8xf32> -> vector<1x16x8xf32>
    "tpu.trace_stop"() : () -> ()
    %102 = vector.extract_strided_slice %44 {offsets = [0, 0, 24], sizes = [1, 16, 8], strides = [1, 1, 1]} : vector<1x16x96xf32> to vector<1x16x8xf32>
    %cst_55 = arith.constant 0.353553385 : f32
    %103 = vector.broadcast %cst_55 : f32 to vector<1x16x8xf32>
    %104 = arith.mulf %102, %103 : vector<1x16x8xf32>
    %105 = vector.extract_strided_slice %44 {offsets = [0, 0, 56], sizes = [1, 16, 8], strides = [1, 1, 1]} : vector<1x16x96xf32> to vector<1x16x8xf32>
    %106 = vector.extract_strided_slice %44 {offsets = [0, 0, 88], sizes = [1, 16, 8], strides = [1, 1, 1]} : vector<1x16x96xf32> to vector<1x16x8xf32>
    "tpu.trace_start"() <{level = 10 : i32, message = "bqe,bke->bqk"}> : () -> ()
    %cst_56 = arith.constant dense<0.000000e+00> : vector<1x16x16xf32>
    %107 = tpu.matmul %104, %105, %cst_56 {dimension_numbers = #tpu.dot_dimension_numbers<[2], [2], [1], [1], [0, 0, 0, 1, 1, 1], [0], [0]>} : vector<1x16x8xf32>, vector<1x16x8xf32>, vector<1x16x16xf32> -> vector<1x16x16xf32>
    "tpu.trace_stop"() : () -> ()
    %108 = vector.broadcast %16 : vector<1x1x16xf32> to vector<1x16x16xf32>
    %109 = arith.addf %107, %108 : vector<1x16x16xf32>
    %cst_57 = arith.constant dense<0xFF800000> : vector<1x16xf32>
    %110 = vector.multi_reduction <maximumf>, %109, %cst_57 [2] : vector<1x16x16xf32> to vector<1x16xf32>
    %111 = vector.shape_cast %110 : vector<1x16xf32> to vector<1x16x1xf32>
    %112 = vector.broadcast %111 : vector<1x16x1xf32> to vector<1x16x16xf32>
    %113 = arith.subf %109, %112 : vector<1x16x16xf32>
    %114 = math.exp %113 : vector<1x16x16xf32>
    %cst_58 = arith.constant dense<0.000000e+00> : vector<1x16xf32>
    %115 = vector.multi_reduction <add>, %114, %cst_58 [2] : vector<1x16x16xf32> to vector<1x16xf32>
    %116 = vector.shape_cast %115 : vector<1x16xf32> to vector<1x16x1xf32>
    %117 = tpu.reciprocal %116 {approx = true} : vector<1x16x1xf32> -> vector<1x16x1xf32>
    %118 = vector.broadcast %117 : vector<1x16x1xf32> to vector<1x16x16xf32>
    %119 = arith.mulf %114, %118 : vector<1x16x16xf32>
    "tpu.trace_start"() <{level = 10 : i32, message = "bqk,bke->bqe"}> : () -> ()
    %cst_59 = arith.constant dense<0.000000e+00> : vector<1x16x8xf32>
    %120 = tpu.matmul %119, %106, %cst_59 {dimension_numbers = #tpu.dot_dimension_numbers<[2], [1], [1], [2], [0, 0, 0, 1, 1, 2], [0], [0]>} : vector<1x16x16xf32>, vector<1x16x8xf32>, vector<1x16x8xf32> -> vector<1x16x8xf32>
    "tpu.trace_stop"() : () -> ()
    %121 = tpu.concatenate %63, %82, %101, %120 in 2 : vector<1x16x8xf32>, vector<1x16x8xf32>, vector<1x16x8xf32>, vector<1x16x8xf32> -> vector<1x16x32xf32>
    %122 = vector.shape_cast %121 : vector<1x16x32xf32> to vector<16x32xf32>
    %cst_60 = arith.constant dense<0.000000e+00> : vector<16x32xf32>
    %123 = tpu.matmul %122, %20, %cst_60 {dimension_numbers = #tpu.dot_dimension_numbers<[1], [0], [0], [1], [0, 0, 1, 1], [], []>} : vector<16x32xf32>, vector<32x32xf32>, vector<16x32xf32> -> vector<16x32xf32>
    %124 = vector.broadcast %28 : vector<1x32xf32> to vector<16x32xf32>
    %125 = arith.addf %123, %124 : vector<16x32xf32>
    %126 = arith.addf %14, %125 : vector<16x32xf32>
    %cst_61 = arith.constant dense<0.000000e+00> : vector<16xf32>
    %127 = vector.multi_reduction <add>, %126, %cst_61 [1] : vector<16x32xf32> to vector<16xf32>
    %128 = vector.shape_cast %127 : vector<16xf32> to vector<16x1xf32>
    %cst_62 = arith.constant 3.200000e+01 : f32
    %129 = vector.broadcast %cst_62 : f32 to vector<16x1xf32>
    %130 = arith.divf %128, %129 : vector<16x1xf32>
    %131 = vector.broadcast %130 : vector<16x1xf32> to vector<16x32xf32>
    %132 = arith.subf %126, %131 : vector<16x32xf32>
    %133 = arith.mulf %132, %132 : vector<16x32xf32>
    %cst_63 = arith.constant dense<0.000000e+00> : vector<16xf32>
    %134 = vector.multi_reduction <add>, %133, %cst_63 [1] : vector<16x32xf32> to vector<16xf32>
    %135 = vector.shape_cast %134 : vector<16xf32> to vector<16x1xf32>
    %cst_64 = arith.constant 3.200000e+01 : f32
    %136 = vector.broadcast %cst_64 : f32 to vector<16x1xf32>
    %137 = arith.divf %135, %136 : vector<16x1xf32>
    %138 = vector.broadcast %130 : vector<16x1xf32> to vector<16x32xf32>
    %139 = arith.subf %126, %138 : vector<16x32xf32>
    %cst_65 = arith.constant 9.99999974E-6 : f32
    %140 = vector.broadcast %cst_65 : f32 to vector<16x1xf32>
    %141 = arith.addf %137, %140 : vector<16x1xf32>
    %142 = math.rsqrt %141 : vector<16x1xf32>
    %143 = vector.broadcast %142 : vector<16x1xf32> to vector<16x32xf32>
    %144 = arith.mulf %139, %143 : vector<16x32xf32>
    %145 = vector.broadcast %34 : vector<1x32xf32> to vector<16x32xf32>
    %146 = arith.mulf %144, %145 : vector<16x32xf32>
    %147 = vector.broadcast %36 : vector<1x32xf32> to vector<16x32xf32>
    %148 = arith.addf %146, %147 : vector<16x32xf32>
    %cst_66 = arith.constant dense<0.000000e+00> : vector<16x64xf32>
    %149 = tpu.matmul %148, %22, %cst_66 {dimension_numbers = #tpu.dot_dimension_numbers<[1], [0], [0], [1], [0, 0, 1, 1], [], []>} : vector<16x32xf32>, vector<32x64xf32>, vector<16x64xf32> -> vector<16x64xf32>
    %150 = vector.broadcast %30 : vector<1x64xf32> to vector<16x64xf32>
    %151 = arith.addf %149, %150 : vector<16x64xf32>
    %cst_67 = arith.constant 0.000000e+00 : f32
    %152 = vector.broadcast %cst_67 : f32 to vector<16x64xf32>
    %153 = arith.maximumf %151, %152 : vector<16x64xf32>
    %cst_68 = arith.constant dense<0.000000e+00> : vector<16x32xf32>
    %154 = tpu.matmul %153, %24, %cst_68 {dimension_numbers = #tpu.dot_dimension_numbers<[1], [0], [0], [1], [0, 0, 1, 1], [], []>} : vector<16x64xf32>, vector<64x32xf32>, vector<16x32xf32> -> vector<16x32xf32>
    %155 = vector.broadcast %32 : vector<1x32xf32> to vector<16x32xf32>
    %156 = arith.addf %154, %155 : vector<16x32xf32>
    %157 = arith.addf %148, %156 : vector<16x32xf32>
    %cst_69 = arith.constant dense<0.000000e+00> : vector<16xf32>
    %158 = vector.multi_reduction <add>, %157, %cst_69 [1] : vector<16x32xf32> to vector<16xf32>
    %159 = vector.shape_cast %158 : vector<16xf32> to vector<16x1xf32>
    %cst_70 = arith.constant 3.200000e+01 : f32
    %160 = vector.broadcast %cst_70 : f32 to vector<16x1xf32>
    %161 = arith.divf %159, %160 : vector<16x1xf32>
    %162 = vector.broadcast %161 : vector<16x1xf32> to vector<16x32xf32>
    %163 = arith.subf %157, %162 : vector<16x32xf32>
    %164 = arith.mulf %163, %163 : vector<16x32xf32>
    %cst_71 = arith.constant dense<0.000000e+00> : vector<16xf32>
    %165 = vector.multi_reduction <add>, %164, %cst_71 [1] : vector<16x32xf32> to vector<16xf32>
    %166 = vector.shape_cast %165 : vector<16xf32> to vector<16x1xf32>
    %cst_72 = arith.constant 3.200000e+01 : f32
    %167 = vector.broadcast %cst_72 : f32 to vector<16x1xf32>
    %168 = arith.divf %166, %167 : vector<16x1xf32>
    %169 = vector.broadcast %161 : vector<16x1xf32> to vector<16x32xf32>
    %170 = arith.subf %157, %169 : vector<16x32xf32>
    %cst_73 = arith.constant 9.99999974E-6 : f32
    %171 = vector.broadcast %cst_73 : f32 to vector<16x1xf32>
    %172 = arith.addf %168, %171 : vector<16x1xf32>
    %173 = math.rsqrt %172 : vector<16x1xf32>
    %174 = vector.broadcast %173 : vector<16x1xf32> to vector<16x32xf32>
    %175 = arith.mulf %170, %174 : vector<16x32xf32>
    %176 = vector.broadcast %38 : vector<1x32xf32> to vector<16x32xf32>
    %177 = arith.mulf %175, %176 : vector<16x32xf32>
    %178 = vector.broadcast %40 : vector<1x32xf32> to vector<16x32xf32>
    %179 = arith.addf %177, %178 : vector<16x32xf32>
    %c1 = arith.constant 1 : index
    %c0_74 = arith.constant 0 : index
    %c0_75 = arith.constant 0 : index
    %180 = vector.load %arg7[%c1, %c0_74, %c0_75] : memref<2x32x384xf32, #tpu.memory_space<vmem>>, vector<1x32x96xf32>
    %181 = vector.shape_cast %180 : vector<1x32x96xf32> to vector<32x96xf32>
    %c1_76 = arith.constant 1 : index
    %c0_77 = arith.constant 0 : index
    %c128_78 = arith.constant 128 : index
    %182 = vector.load %arg7[%c1_76, %c0_77, %c128_78] : memref<2x32x384xf32, #tpu.memory_space<vmem>>, vector<1x32x32xf32>
    %183 = vector.shape_cast %182 : vector<1x32x32xf32> to vector<32x32xf32>
    %c1_79 = arith.constant 1 : index
    %c0_80 = arith.constant 0 : index
    %c256_81 = arith.constant 256 : index
    %184 = vector.load %arg7[%c1_79, %c0_80, %c256_81] : memref<2x32x384xf32, #tpu.memory_space<vmem>>, vector<1x32x64xf32>
    %185 = vector.shape_cast %184 : vector<1x32x64xf32> to vector<32x64xf32>
    %c1_82 = arith.constant 1 : index
    %c0_83 = arith.constant 0 : index
    %c0_84 = arith.constant 0 : index
    %186 = vector.load %arg8[%c1_82, %c0_83, %c0_84] : memref<2x64x32xf32, #tpu.memory_space<vmem>>, vector<1x64x32xf32>
    %187 = vector.shape_cast %186 : vector<1x64x32xf32> to vector<64x32xf32>
    %c1_85 = arith.constant 1 : index
    %c0_86 = arith.constant 0 : index
    %c0_87 = arith.constant 0 : index
    %188 = vector.load %arg9[%c1_85, %c0_86, %c0_87] : memref<2x1x1024xf32, #tpu.memory_space<vmem>>, vector<1x1x96xf32>
    %189 = vector.shape_cast %188 : vector<1x1x96xf32> to vector<1x96xf32>
    %c1_88 = arith.constant 1 : index
    %c0_89 = arith.constant 0 : index
    %c128_90 = arith.constant 128 : index
    %190 = vector.load %arg9[%c1_88, %c0_89, %c128_90] : memref<2x1x1024xf32, #tpu.memory_space<vmem>>, vector<1x1x32xf32>
    %191 = vector.shape_cast %190 : vector<1x1x32xf32> to vector<1x32xf32>
    %c1_91 = arith.constant 1 : index
    %c0_92 = arith.constant 0 : index
    %c256_93 = arith.constant 256 : index
    %192 = vector.load %arg9[%c1_91, %c0_92, %c256_93] : memref<2x1x1024xf32, #tpu.memory_space<vmem>>, vector<1x1x64xf32>
    %193 = vector.shape_cast %192 : vector<1x1x64xf32> to vector<1x64xf32>
    %c1_94 = arith.constant 1 : index
    %c0_95 = arith.constant 0 : index
    %c384_96 = arith.constant 384 : index
    %194 = vector.load %arg9[%c1_94, %c0_95, %c384_96] : memref<2x1x1024xf32, #tpu.memory_space<vmem>>, vector<1x1x32xf32>
    %195 = vector.shape_cast %194 : vector<1x1x32xf32> to vector<1x32xf32>
    %c1_97 = arith.constant 1 : index
    %c0_98 = arith.constant 0 : index
    %c512_99 = arith.constant 512 : index
    %196 = vector.load %arg9[%c1_97, %c0_98, %c512_99] : memref<2x1x1024xf32, #tpu.memory_space<vmem>>, vector<1x1x32xf32>
    %197 = vector.shape_cast %196 : vector<1x1x32xf32> to vector<1x32xf32>
    %c1_100 = arith.constant 1 : index
    %c0_101 = arith.constant 0 : index
    %c640_102 = arith.constant 640 : index
    %198 = vector.load %arg9[%c1_100, %c0_101, %c640_102] : memref<2x1x1024xf32, #tpu.memory_space<vmem>>, vector<1x1x32xf32>
    %199 = vector.shape_cast %198 : vector<1x1x32xf32> to vector<1x32xf32>
    %c1_103 = arith.constant 1 : index
    %c0_104 = arith.constant 0 : index
    %c768_105 = arith.constant 768 : index
    %200 = vector.load %arg9[%c1_103, %c0_104, %c768_105] : memref<2x1x1024xf32, #tpu.memory_space<vmem>>, vector<1x1x32xf32>
    %201 = vector.shape_cast %200 : vector<1x1x32xf32> to vector<1x32xf32>
    %c1_106 = arith.constant 1 : index
    %c0_107 = arith.constant 0 : index
    %c896_108 = arith.constant 896 : index
    %202 = vector.load %arg9[%c1_106, %c0_107, %c896_108] : memref<2x1x1024xf32, #tpu.memory_space<vmem>>, vector<1x1x32xf32>
    %203 = vector.shape_cast %202 : vector<1x1x32xf32> to vector<1x32xf32>
    %cst_109 = arith.constant dense<0.000000e+00> : vector<16x96xf32>
    %204 = tpu.matmul %179, %181, %cst_109 {dimension_numbers = #tpu.dot_dimension_numbers<[1], [0], [0], [1], [0, 0, 1, 1], [], []>} : vector<16x32xf32>, vector<32x96xf32>, vector<16x96xf32> -> vector<16x96xf32>
    %205 = vector.broadcast %189 : vector<1x96xf32> to vector<16x96xf32>
    %206 = arith.addf %204, %205 : vector<16x96xf32>
    %207 = vector.shape_cast %206 : vector<16x96xf32> to vector<1x16x96xf32>
    %208 = vector.extract_strided_slice %207 {offsets = [0, 0, 0], sizes = [1, 16, 8], strides = [1, 1, 1]} : vector<1x16x96xf32> to vector<1x16x8xf32>
    %cst_110 = arith.constant 0.353553385 : f32
    %209 = vector.broadcast %cst_110 : f32 to vector<1x16x8xf32>
    %210 = arith.mulf %208, %209 : vector<1x16x8xf32>
    %211 = vector.extract_strided_slice %207 {offsets = [0, 0, 32], sizes = [1, 16, 8], strides = [1, 1, 1]} : vector<1x16x96xf32> to vector<1x16x8xf32>
    %212 = vector.extract_strided_slice %207 {offsets = [0, 0, 64], sizes = [1, 16, 8], strides = [1, 1, 1]} : vector<1x16x96xf32> to vector<1x16x8xf32>
    "tpu.trace_start"() <{level = 10 : i32, message = "bqe,bke->bqk"}> : () -> ()
    %cst_111 = arith.constant dense<0.000000e+00> : vector<1x16x16xf32>
    %213 = tpu.matmul %210, %211, %cst_111 {dimension_numbers = #tpu.dot_dimension_numbers<[2], [2], [1], [1], [0, 0, 0, 1, 1, 1], [0], [0]>} : vector<1x16x8xf32>, vector<1x16x8xf32>, vector<1x16x16xf32> -> vector<1x16x16xf32>
    "tpu.trace_stop"() : () -> ()
    %214 = vector.broadcast %16 : vector<1x1x16xf32> to vector<1x16x16xf32>
    %215 = arith.addf %213, %214 : vector<1x16x16xf32>
    %cst_112 = arith.constant dense<0xFF800000> : vector<1x16xf32>
    %216 = vector.multi_reduction <maximumf>, %215, %cst_112 [2] : vector<1x16x16xf32> to vector<1x16xf32>
    %217 = vector.shape_cast %216 : vector<1x16xf32> to vector<1x16x1xf32>
    %218 = vector.broadcast %217 : vector<1x16x1xf32> to vector<1x16x16xf32>
    %219 = arith.subf %215, %218 : vector<1x16x16xf32>
    %220 = math.exp %219 : vector<1x16x16xf32>
    %cst_113 = arith.constant dense<0.000000e+00> : vector<1x16xf32>
    %221 = vector.multi_reduction <add>, %220, %cst_113 [2] : vector<1x16x16xf32> to vector<1x16xf32>
    %222 = vector.shape_cast %221 : vector<1x16xf32> to vector<1x16x1xf32>
    %223 = tpu.reciprocal %222 {approx = true} : vector<1x16x1xf32> -> vector<1x16x1xf32>
    %224 = vector.broadcast %223 : vector<1x16x1xf32> to vector<1x16x16xf32>
    %225 = arith.mulf %220, %224 : vector<1x16x16xf32>
    "tpu.trace_start"() <{level = 10 : i32, message = "bqk,bke->bqe"}> : () -> ()
    %cst_114 = arith.constant dense<0.000000e+00> : vector<1x16x8xf32>
    %226 = tpu.matmul %225, %212, %cst_114 {dimension_numbers = #tpu.dot_dimension_numbers<[2], [1], [1], [2], [0, 0, 0, 1, 1, 2], [0], [0]>} : vector<1x16x16xf32>, vector<1x16x8xf32>, vector<1x16x8xf32> -> vector<1x16x8xf32>
    "tpu.trace_stop"() : () -> ()
    %227 = vector.extract_strided_slice %207 {offsets = [0, 0, 8], sizes = [1, 16, 8], strides = [1, 1, 1]} : vector<1x16x96xf32> to vector<1x16x8xf32>
    %cst_115 = arith.constant 0.353553385 : f32
    %228 = vector.broadcast %cst_115 : f32 to vector<1x16x8xf32>
    %229 = arith.mulf %227, %228 : vector<1x16x8xf32>
    %230 = vector.extract_strided_slice %207 {offsets = [0, 0, 40], sizes = [1, 16, 8], strides = [1, 1, 1]} : vector<1x16x96xf32> to vector<1x16x8xf32>
    %231 = vector.extract_strided_slice %207 {offsets = [0, 0, 72], sizes = [1, 16, 8], strides = [1, 1, 1]} : vector<1x16x96xf32> to vector<1x16x8xf32>
    "tpu.trace_start"() <{level = 10 : i32, message = "bqe,bke->bqk"}> : () -> ()
    %cst_116 = arith.constant dense<0.000000e+00> : vector<1x16x16xf32>
    %232 = tpu.matmul %229, %230, %cst_116 {dimension_numbers = #tpu.dot_dimension_numbers<[2], [2], [1], [1], [0, 0, 0, 1, 1, 1], [0], [0]>} : vector<1x16x8xf32>, vector<1x16x8xf32>, vector<1x16x16xf32> -> vector<1x16x16xf32>
    "tpu.trace_stop"() : () -> ()
    %233 = vector.broadcast %16 : vector<1x1x16xf32> to vector<1x16x16xf32>
    %234 = arith.addf %232, %233 : vector<1x16x16xf32>
    %cst_117 = arith.constant dense<0xFF800000> : vector<1x16xf32>
    %235 = vector.multi_reduction <maximumf>, %234, %cst_117 [2] : vector<1x16x16xf32> to vector<1x16xf32>
    %236 = vector.shape_cast %235 : vector<1x16xf32> to vector<1x16x1xf32>
    %237 = vector.broadcast %236 : vector<1x16x1xf32> to vector<1x16x16xf32>
    %238 = arith.subf %234, %237 : vector<1x16x16xf32>
    %239 = math.exp %238 : vector<1x16x16xf32>
    %cst_118 = arith.constant dense<0.000000e+00> : vector<1x16xf32>
    %240 = vector.multi_reduction <add>, %239, %cst_118 [2] : vector<1x16x16xf32> to vector<1x16xf32>
    %241 = vector.shape_cast %240 : vector<1x16xf32> to vector<1x16x1xf32>
    %242 = tpu.reciprocal %241 {approx = true} : vector<1x16x1xf32> -> vector<1x16x1xf32>
    %243 = vector.broadcast %242 : vector<1x16x1xf32> to vector<1x16x16xf32>
    %244 = arith.mulf %239, %243 : vector<1x16x16xf32>
    "tpu.trace_start"() <{level = 10 : i32, message = "bqk,bke->bqe"}> : () -> ()
    %cst_119 = arith.constant dense<0.000000e+00> : vector<1x16x8xf32>
    %245 = tpu.matmul %244, %231, %cst_119 {dimension_numbers = #tpu.dot_dimension_numbers<[2], [1], [1], [2], [0, 0, 0, 1, 1, 2], [0], [0]>} : vector<1x16x16xf32>, vector<1x16x8xf32>, vector<1x16x8xf32> -> vector<1x16x8xf32>
    "tpu.trace_stop"() : () -> ()
    %246 = vector.extract_strided_slice %207 {offsets = [0, 0, 16], sizes = [1, 16, 8], strides = [1, 1, 1]} : vector<1x16x96xf32> to vector<1x16x8xf32>
    %cst_120 = arith.constant 0.353553385 : f32
    %247 = vector.broadcast %cst_120 : f32 to vector<1x16x8xf32>
    %248 = arith.mulf %246, %247 : vector<1x16x8xf32>
    %249 = vector.extract_strided_slice %207 {offsets = [0, 0, 48], sizes = [1, 16, 8], strides = [1, 1, 1]} : vector<1x16x96xf32> to vector<1x16x8xf32>
    %250 = vector.extract_strided_slice %207 {offsets = [0, 0, 80], sizes = [1, 16, 8], strides = [1, 1, 1]} : vector<1x16x96xf32> to vector<1x16x8xf32>
    "tpu.trace_start"() <{level = 10 : i32, message = "bqe,bke->bqk"}> : () -> ()
    %cst_121 = arith.constant dense<0.000000e+00> : vector<1x16x16xf32>
    %251 = tpu.matmul %248, %249, %cst_121 {dimension_numbers = #tpu.dot_dimension_numbers<[2], [2], [1], [1], [0, 0, 0, 1, 1, 1], [0], [0]>} : vector<1x16x8xf32>, vector<1x16x8xf32>, vector<1x16x16xf32> -> vector<1x16x16xf32>
    "tpu.trace_stop"() : () -> ()
    %252 = vector.broadcast %16 : vector<1x1x16xf32> to vector<1x16x16xf32>
    %253 = arith.addf %251, %252 : vector<1x16x16xf32>
    %cst_122 = arith.constant dense<0xFF800000> : vector<1x16xf32>
    %254 = vector.multi_reduction <maximumf>, %253, %cst_122 [2] : vector<1x16x16xf32> to vector<1x16xf32>
    %255 = vector.shape_cast %254 : vector<1x16xf32> to vector<1x16x1xf32>
    %256 = vector.broadcast %255 : vector<1x16x1xf32> to vector<1x16x16xf32>
    %257 = arith.subf %253, %256 : vector<1x16x16xf32>
    %258 = math.exp %257 : vector<1x16x16xf32>
    %cst_123 = arith.constant dense<0.000000e+00> : vector<1x16xf32>
    %259 = vector.multi_reduction <add>, %258, %cst_123 [2] : vector<1x16x16xf32> to vector<1x16xf32>
    %260 = vector.shape_cast %259 : vector<1x16xf32> to vector<1x16x1xf32>
    %261 = tpu.reciprocal %260 {approx = true} : vector<1x16x1xf32> -> vector<1x16x1xf32>
    %262 = vector.broadcast %261 : vector<1x16x1xf32> to vector<1x16x16xf32>
    %263 = arith.mulf %258, %262 : vector<1x16x16xf32>
    "tpu.trace_start"() <{level = 10 : i32, message = "bqk,bke->bqe"}> : () -> ()
    %cst_124 = arith.constant dense<0.000000e+00> : vector<1x16x8xf32>
    %264 = tpu.matmul %263, %250, %cst_124 {dimension_numbers = #tpu.dot_dimension_numbers<[2], [1], [1], [2], [0, 0, 0, 1, 1, 2], [0], [0]>} : vector<1x16x16xf32>, vector<1x16x8xf32>, vector<1x16x8xf32> -> vector<1x16x8xf32>
    "tpu.trace_stop"() : () -> ()
    %265 = vector.extract_strided_slice %207 {offsets = [0, 0, 24], sizes = [1, 16, 8], strides = [1, 1, 1]} : vector<1x16x96xf32> to vector<1x16x8xf32>
    %cst_125 = arith.constant 0.353553385 : f32
    %266 = vector.broadcast %cst_125 : f32 to vector<1x16x8xf32>
    %267 = arith.mulf %265, %266 : vector<1x16x8xf32>
    %268 = vector.extract_strided_slice %207 {offsets = [0, 0, 56], sizes = [1, 16, 8], strides = [1, 1, 1]} : vector<1x16x96xf32> to vector<1x16x8xf32>
    %269 = vector.extract_strided_slice %207 {offsets = [0, 0, 88], sizes = [1, 16, 8], strides = [1, 1, 1]} : vector<1x16x96xf32> to vector<1x16x8xf32>
    "tpu.trace_start"() <{level = 10 : i32, message = "bqe,bke->bqk"}> : () -> ()
    %cst_126 = arith.constant dense<0.000000e+00> : vector<1x16x16xf32>
    %270 = tpu.matmul %267, %268, %cst_126 {dimension_numbers = #tpu.dot_dimension_numbers<[2], [2], [1], [1], [0, 0, 0, 1, 1, 1], [0], [0]>} : vector<1x16x8xf32>, vector<1x16x8xf32>, vector<1x16x16xf32> -> vector<1x16x16xf32>
    "tpu.trace_stop"() : () -> ()
    %271 = vector.broadcast %16 : vector<1x1x16xf32> to vector<1x16x16xf32>
    %272 = arith.addf %270, %271 : vector<1x16x16xf32>
    %cst_127 = arith.constant dense<0xFF800000> : vector<1x16xf32>
    %273 = vector.multi_reduction <maximumf>, %272, %cst_127 [2] : vector<1x16x16xf32> to vector<1x16xf32>
    %274 = vector.shape_cast %273 : vector<1x16xf32> to vector<1x16x1xf32>
    %275 = vector.broadcast %274 : vector<1x16x1xf32> to vector<1x16x16xf32>
    %276 = arith.subf %272, %275 : vector<1x16x16xf32>
    %277 = math.exp %276 : vector<1x16x16xf32>
    %cst_128 = arith.constant dense<0.000000e+00> : vector<1x16xf32>
    %278 = vector.multi_reduction <add>, %277, %cst_128 [2] : vector<1x16x16xf32> to vector<1x16xf32>
    %279 = vector.shape_cast %278 : vector<1x16xf32> to vector<1x16x1xf32>
    %280 = tpu.reciprocal %279 {approx = true} : vector<1x16x1xf32> -> vector<1x16x1xf32>
    %281 = vector.broadcast %280 : vector<1x16x1xf32> to vector<1x16x16xf32>
    %282 = arith.mulf %277, %281 : vector<1x16x16xf32>
    "tpu.trace_start"() <{level = 10 : i32, message = "bqk,bke->bqe"}> : () -> ()
    %cst_129 = arith.constant dense<0.000000e+00> : vector<1x16x8xf32>
    %283 = tpu.matmul %282, %269, %cst_129 {dimension_numbers = #tpu.dot_dimension_numbers<[2], [1], [1], [2], [0, 0, 0, 1, 1, 2], [0], [0]>} : vector<1x16x16xf32>, vector<1x16x8xf32>, vector<1x16x8xf32> -> vector<1x16x8xf32>
    "tpu.trace_stop"() : () -> ()
    %284 = tpu.concatenate %226, %245, %264, %283 in 2 : vector<1x16x8xf32>, vector<1x16x8xf32>, vector<1x16x8xf32>, vector<1x16x8xf32> -> vector<1x16x32xf32>
    %285 = vector.shape_cast %284 : vector<1x16x32xf32> to vector<16x32xf32>
    %cst_130 = arith.constant dense<0.000000e+00> : vector<16x32xf32>
    %286 = tpu.matmul %285, %183, %cst_130 {dimension_numbers = #tpu.dot_dimension_numbers<[1], [0], [0], [1], [0, 0, 1, 1], [], []>} : vector<16x32xf32>, vector<32x32xf32>, vector<16x32xf32> -> vector<16x32xf32>
    %287 = vector.broadcast %191 : vector<1x32xf32> to vector<16x32xf32>
    %288 = arith.addf %286, %287 : vector<16x32xf32>
    %289 = arith.addf %179, %288 : vector<16x32xf32>
    %cst_131 = arith.constant dense<0.000000e+00> : vector<16xf32>
    %290 = vector.multi_reduction <add>, %289, %cst_131 [1] : vector<16x32xf32> to vector<16xf32>
    %291 = vector.shape_cast %290 : vector<16xf32> to vector<16x1xf32>
    %cst_132 = arith.constant 3.200000e+01 : f32
    %292 = vector.broadcast %cst_132 : f32 to vector<16x1xf32>
    %293 = arith.divf %291, %292 : vector<16x1xf32>
    %294 = vector.broadcast %293 : vector<16x1xf32> to vector<16x32xf32>
    %295 = arith.subf %289, %294 : vector<16x32xf32>
    %296 = arith.mulf %295, %295 : vector<16x32xf32>
    %cst_133 = arith.constant dense<0.000000e+00> : vector<16xf32>
    %297 = vector.multi_reduction <add>, %296, %cst_133 [1] : vector<16x32xf32> to vector<16xf32>
    %298 = vector.shape_cast %297 : vector<16xf32> to vector<16x1xf32>
    %cst_134 = arith.constant 3.200000e+01 : f32
    %299 = vector.broadcast %cst_134 : f32 to vector<16x1xf32>
    %300 = arith.divf %298, %299 : vector<16x1xf32>
    %301 = vector.broadcast %293 : vector<16x1xf32> to vector<16x32xf32>
    %302 = arith.subf %289, %301 : vector<16x32xf32>
    %cst_135 = arith.constant 9.99999974E-6 : f32
    %303 = vector.broadcast %cst_135 : f32 to vector<16x1xf32>
    %304 = arith.addf %300, %303 : vector<16x1xf32>
    %305 = math.rsqrt %304 : vector<16x1xf32>
    %306 = vector.broadcast %305 : vector<16x1xf32> to vector<16x32xf32>
    %307 = arith.mulf %302, %306 : vector<16x32xf32>
    %308 = vector.broadcast %197 : vector<1x32xf32> to vector<16x32xf32>
    %309 = arith.mulf %307, %308 : vector<16x32xf32>
    %310 = vector.broadcast %199 : vector<1x32xf32> to vector<16x32xf32>
    %311 = arith.addf %309, %310 : vector<16x32xf32>
    %cst_136 = arith.constant dense<0.000000e+00> : vector<16x64xf32>
    %312 = tpu.matmul %311, %185, %cst_136 {dimension_numbers = #tpu.dot_dimension_numbers<[1], [0], [0], [1], [0, 0, 1, 1], [], []>} : vector<16x32xf32>, vector<32x64xf32>, vector<16x64xf32> -> vector<16x64xf32>
    %313 = vector.broadcast %193 : vector<1x64xf32> to vector<16x64xf32>
    %314 = arith.addf %312, %313 : vector<16x64xf32>
    %cst_137 = arith.constant 0.000000e+00 : f32
    %315 = vector.broadcast %cst_137 : f32 to vector<16x64xf32>
    %316 = arith.maximumf %314, %315 : vector<16x64xf32>
    %cst_138 = arith.constant dense<0.000000e+00> : vector<16x32xf32>
    %317 = tpu.matmul %316, %187, %cst_138 {dimension_numbers = #tpu.dot_dimension_numbers<[1], [0], [0], [1], [0, 0, 1, 1], [], []>} : vector<16x64xf32>, vector<64x32xf32>, vector<16x32xf32> -> vector<16x32xf32>
    %318 = vector.broadcast %195 : vector<1x32xf32> to vector<16x32xf32>
    %319 = arith.addf %317, %318 : vector<16x32xf32>
    %320 = arith.addf %311, %319 : vector<16x32xf32>
    %cst_139 = arith.constant dense<0.000000e+00> : vector<16xf32>
    %321 = vector.multi_reduction <add>, %320, %cst_139 [1] : vector<16x32xf32> to vector<16xf32>
    %322 = vector.shape_cast %321 : vector<16xf32> to vector<16x1xf32>
    %cst_140 = arith.constant 3.200000e+01 : f32
    %323 = vector.broadcast %cst_140 : f32 to vector<16x1xf32>
    %324 = arith.divf %322, %323 : vector<16x1xf32>
    %325 = vector.broadcast %324 : vector<16x1xf32> to vector<16x32xf32>
    %326 = arith.subf %320, %325 : vector<16x32xf32>
    %327 = arith.mulf %326, %326 : vector<16x32xf32>
    %cst_141 = arith.constant dense<0.000000e+00> : vector<16xf32>
    %328 = vector.multi_reduction <add>, %327, %cst_141 [1] : vector<16x32xf32> to vector<16xf32>
    %329 = vector.shape_cast %328 : vector<16xf32> to vector<16x1xf32>
    %cst_142 = arith.constant 3.200000e+01 : f32
    %330 = vector.broadcast %cst_142 : f32 to vector<16x1xf32>
    %331 = arith.divf %329, %330 : vector<16x1xf32>
    %332 = vector.broadcast %324 : vector<16x1xf32> to vector<16x32xf32>
    %333 = arith.subf %320, %332 : vector<16x32xf32>
    %cst_143 = arith.constant 9.99999974E-6 : f32
    %334 = vector.broadcast %cst_143 : f32 to vector<16x1xf32>
    %335 = arith.addf %331, %334 : vector<16x1xf32>
    %336 = math.rsqrt %335 : vector<16x1xf32>
    %337 = vector.broadcast %336 : vector<16x1xf32> to vector<16x32xf32>
    %338 = arith.mulf %333, %337 : vector<16x32xf32>
    %339 = vector.broadcast %201 : vector<1x32xf32> to vector<16x32xf32>
    %340 = arith.mulf %338, %339 : vector<16x32xf32>
    %341 = vector.broadcast %203 : vector<1x32xf32> to vector<16x32xf32>
    %342 = arith.addf %340, %341 : vector<16x32xf32>
    %343 = vector.shape_cast %342 : vector<16x32xf32> to vector<1x16x32xf32>
    %344 = vector.extract_strided_slice %343 {offsets = [0, 0, 0], sizes = [1, 1, 32], strides = [1, 1, 1]} : vector<1x16x32xf32> to vector<1x1x32xf32>
    %cst_144 = arith.constant 0.000000e+00 : f32
    %345 = vector.broadcast %cst_144 : f32 to vector<1x1x96xf32>
    %346 = tpu.concatenate %344, %345 in 2 : vector<1x1x32xf32>, vector<1x1x96xf32> -> vector<1x1x128xf32>
    %c0_145 = arith.constant 0 : index
    %c0_146 = arith.constant 0 : index
    %c0_147 = arith.constant 0 : index
    %347 = vector.load %arg13[%c0_145, %c0_146, %c0_147] : memref<1x1x128xf32, #tpu.memory_space<vmem>>, vector<1x1x128xf32>
    tpu.vector_store %arg13[%c0_145, %c0_146, %c0_147], %346 {strides = array<i32>} : memref<1x1x128xf32, #tpu.memory_space<vmem>>, vector<1x1x128xf32>,
    %348 = vector.extract_strided_slice %343 {offsets = [0, 0, 0], sizes = [1, 8, 32], strides = [1, 1, 1]} : vector<1x16x32xf32> to vector<1x8x32xf32>
    %349 = vector.shape_cast %348 : vector<1x8x32xf32> to vector<8x32xf32>
    %350 = vector.shape_cast %4 : vector<8x32xf32> to vector<1x8x32xf32>
    %c0_148 = arith.constant 0 : index
    %c0_149 = arith.constant 0 : index
    %351 = vector.load %arg4[%c0_148, %c0_149] : memref<8x32xf32, #tpu.memory_space<vmem>>, vector<8x32xf32>
    %352 = vector.shape_cast %351 : vector<8x32xf32> to vector<1x8x32xf32>
    %353 = arith.addf %352, %350 : vector<1x8x32xf32>
    %354 = vector.shape_cast %353 : vector<1x8x32xf32> to vector<8x32xf32>
    %c0_150 = arith.constant 0 : index
    %c0_151 = arith.constant 0 : index
    %c0_152 = arith.constant 0 : index
    %355 = vector.load %arg10[%c0_150, %c0_151, %c0_152] : memref<2x32x640xf32, #tpu.memory_space<vmem>>, vector<1x32x96xf32>
    %356 = vector.shape_cast %355 : vector<1x32x96xf32> to vector<32x96xf32>
    %c0_153 = arith.constant 0 : index
    %c0_154 = arith.constant 0 : index
    %c128_155 = arith.constant 128 : index
    %357 = vector.load %arg10[%c0_153, %c0_154, %c128_155] : memref<2x32x640xf32, #tpu.memory_space<vmem>>, vector<1x32x32xf32>
    %358 = vector.shape_cast %357 : vector<1x32x32xf32> to vector<32x32xf32>
    %c0_156 = arith.constant 0 : index
    %c0_157 = arith.constant 0 : index
    %c0_158 = arith.constant 0 : index
    %359 = vector.load %arg12[%c0_156, %c0_157, %c0_158] : memref<2x1x1536xf32, #tpu.memory_space<vmem>>, vector<1x1x96xf32>
    %360 = vector.shape_cast %359 : vector<1x1x96xf32> to vector<1x96xf32>
    %c0_159 = arith.constant 0 : index
    %c0_160 = arith.constant 0 : index
    %c128_161 = arith.constant 128 : index
    %361 = vector.load %arg12[%c0_159, %c0_160, %c128_161] : memref<2x1x1536xf32, #tpu.memory_space<vmem>>, vector<1x1x32xf32>
    %362 = vector.shape_cast %361 : vector<1x1x32xf32> to vector<1x32xf32>
    %c0_162 = arith.constant 0 : index
    %c0_163 = arith.constant 0 : index
    %c0_164 = arith.constant 0 : index
    %363 = vector.load %arg11[%c0_162, %c0_163, %c0_164] : memref<2x64x32xf32, #tpu.memory_space<vmem>>, vector<1x64x32xf32>
    %364 = vector.shape_cast %363 : vector<1x64x32xf32> to vector<64x32xf32>
    %c0_165 = arith.constant 0 : index
    %c0_166 = arith.constant 0 : index
    %c256_167 = arith.constant 256 : index
    %365 = vector.load %arg10[%c0_165, %c0_166, %c256_167] : memref<2x32x640xf32, #tpu.memory_space<vmem>>, vector<1x32x32xf32>
    %366 = vector.shape_cast %365 : vector<1x32x32xf32> to vector<32x32xf32>
    %c0_168 = arith.constant 0 : index
    %c0_169 = arith.constant 0 : index
    %c384_170 = arith.constant 384 : index
    %367 = vector.load %arg10[%c0_168, %c0_169, %c384_170] : memref<2x32x640xf32, #tpu.memory_space<vmem>>, vector<1x32x32xf32>
    %368 = vector.shape_cast %367 : vector<1x32x32xf32> to vector<32x32xf32>
    %c0_171 = arith.constant 0 : index
    %c0_172 = arith.constant 0 : index
    %c512_173 = arith.constant 512 : index
    %369 = vector.load %arg10[%c0_171, %c0_172, %c512_173] : memref<2x32x640xf32, #tpu.memory_space<vmem>>, vector<1x32x64xf32>
    %370 = vector.shape_cast %369 : vector<1x32x64xf32> to vector<32x64xf32>
    %c0_174 = arith.constant 0 : index
    %c0_175 = arith.constant 0 : index
    %c256_176 = arith.constant 256 : index
    %371 = vector.load %arg12[%c0_174, %c0_175, %c256_176] : memref<2x1x1536xf32, #tpu.memory_space<vmem>>, vector<1x1x32xf32>
    %372 = vector.shape_cast %371 : vector<1x1x32xf32> to vector<1x32xf32>
    %c0_177 = arith.constant 0 : index
    %c0_178 = arith.constant 0 : index
    %c384_179 = arith.constant 384 : index
    %373 = vector.load %arg12[%c0_177, %c0_178, %c384_179] : memref<2x1x1536xf32, #tpu.memory_space<vmem>>, vector<1x1x32xf32>
    %374 = vector.shape_cast %373 : vector<1x1x32xf32> to vector<1x32xf32>
    %c0_180 = arith.constant 0 : index
    %c0_181 = arith.constant 0 : index
    %c512_182 = arith.constant 512 : index
    %375 = vector.load %arg12[%c0_180, %c0_181, %c512_182] : memref<2x1x1536xf32, #tpu.memory_space<vmem>>, vector<1x1x64xf32>
    %376 = vector.shape_cast %375 : vector<1x1x64xf32> to vector<1x64xf32>
    %c0_183 = arith.constant 0 : index
    %c0_184 = arith.constant 0 : index
    %c640_185 = arith.constant 640 : index
    %377 = vector.load %arg12[%c0_183, %c0_184, %c640_185] : memref<2x1x1536xf32, #tpu.memory_space<vmem>>, vector<1x1x32xf32>
    %378 = vector.shape_cast %377 : vector<1x1x32xf32> to vector<1x32xf32>
    %c0_186 = arith.constant 0 : index
    %c0_187 = arith.constant 0 : index
    %c768_188 = arith.constant 768 : index
    %379 = vector.load %arg12[%c0_186, %c0_187, %c768_188] : memref<2x1x1536xf32, #tpu.memory_space<vmem>>, vector<1x1x32xf32>
    %380 = vector.shape_cast %379 : vector<1x1x32xf32> to vector<1x32xf32>
    %c0_189 = arith.constant 0 : index
    %c0_190 = arith.constant 0 : index
    %c896_191 = arith.constant 896 : index
    %381 = vector.load %arg12[%c0_189, %c0_190, %c896_191] : memref<2x1x1536xf32, #tpu.memory_space<vmem>>, vector<1x1x32xf32>
    %382 = vector.shape_cast %381 : vector<1x1x32xf32> to vector<1x32xf32>
    %c0_192 = arith.constant 0 : index
    %c0_193 = arith.constant 0 : index
    %c1024 = arith.constant 1024 : index
    %383 = vector.load %arg12[%c0_192, %c0_193, %c1024] : memref<2x1x1536xf32, #tpu.memory_space<vmem>>, vector<1x1x32xf32>
    %384 = vector.shape_cast %383 : vector<1x1x32xf32> to vector<1x32xf32>
    %c0_194 = arith.constant 0 : index
    %c0_195 = arith.constant 0 : index
    %c1152 = arith.constant 1152 : index
    %385 = vector.load %arg12[%c0_194, %c0_195, %c1152] : memref<2x1x1536xf32, #tpu.memory_space<vmem>>, vector<1x1x32xf32>
    %386 = vector.shape_cast %385 : vector<1x1x32xf32> to vector<1x32xf32>
    %c0_196 = arith.constant 0 : index
    %c0_197 = arith.constant 0 : index
    %c1280 = arith.constant 1280 : index
    %387 = vector.load %arg12[%c0_196, %c0_197, %c1280] : memref<2x1x1536xf32, #tpu.memory_space<vmem>>, vector<1x1x32xf32>
    %388 = vector.shape_cast %387 : vector<1x1x32xf32> to vector<1x32xf32>
    %c0_198 = arith.constant 0 : index
    %c0_199 = arith.constant 0 : index
    %c1408 = arith.constant 1408 : index
    %389 = vector.load %arg12[%c0_198, %c0_199, %c1408] : memref<2x1x1536xf32, #tpu.memory_space<vmem>>, vector<1x1x32xf32>
    %390 = vector.shape_cast %389 : vector<1x1x32xf32> to vector<1x32xf32>
    %cst_200 = arith.constant dense<0.000000e+00> : vector<8x96xf32>
    %391 = tpu.matmul %354, %356, %cst_200 {dimension_numbers = #tpu.dot_dimension_numbers<[1], [0], [0], [1], [0, 0, 1, 1], [], []>} : vector<8x32xf32>, vector<32x96xf32>, vector<8x96xf32> -> vector<8x96xf32>
    %392 = vector.broadcast %360 : vector<1x96xf32> to vector<8x96xf32>
    %393 = arith.addf %391, %392 : vector<8x96xf32>
    %394 = vector.shape_cast %393 : vector<8x96xf32> to vector<1x8x96xf32>
    %395 = vector.extract_strided_slice %394 {offsets = [0, 0, 0], sizes = [1, 8, 8], strides = [1, 1, 1]} : vector<1x8x96xf32> to vector<1x8x8xf32>
    %cst_201 = arith.constant 0.353553385 : f32
    %396 = vector.broadcast %cst_201 : f32 to vector<1x8x8xf32>
    %397 = arith.mulf %395, %396 : vector<1x8x8xf32>
    %398 = vector.extract_strided_slice %394 {offsets = [0, 0, 32], sizes = [1, 8, 8], strides = [1, 1, 1]} : vector<1x8x96xf32> to vector<1x8x8xf32>
    %399 = vector.extract_strided_slice %394 {offsets = [0, 0, 64], sizes = [1, 8, 8], strides = [1, 1, 1]} : vector<1x8x96xf32> to vector<1x8x8xf32>
    "tpu.trace_start"() <{level = 10 : i32, message = "bqe,bke->bqk"}> : () -> ()
    %cst_202 = arith.constant dense<0.000000e+00> : vector<1x8x8xf32>
    %400 = tpu.matmul %397, %398, %cst_202 {dimension_numbers = #tpu.dot_dimension_numbers<[2], [2], [1], [1], [0, 0, 0, 1, 1, 1], [0], [0]>} : vector<1x8x8xf32>, vector<1x8x8xf32>, vector<1x8x8xf32> -> vector<1x8x8xf32>
    "tpu.trace_stop"() : () -> ()
    %cst_203 = arith.constant dense<0xFF800000> : vector<1x8xf32>
    %401 = vector.multi_reduction <maximumf>, %400, %cst_203 [2] : vector<1x8x8xf32> to vector<1x8xf32>
    %402 = vector.shape_cast %401 : vector<1x8xf32> to vector<1x8x1xf32>
    %403 = vector.broadcast %402 : vector<1x8x1xf32> to vector<1x8x8xf32>
    %404 = arith.subf %400, %403 : vector<1x8x8xf32>
    %405 = math.exp %404 : vector<1x8x8xf32>
    %cst_204 = arith.constant dense<0.000000e+00> : vector<1x8xf32>
    %406 = vector.multi_reduction <add>, %405, %cst_204 [2] : vector<1x8x8xf32> to vector<1x8xf32>
    %407 = vector.shape_cast %406 : vector<1x8xf32> to vector<1x8x1xf32>
    %408 = tpu.reciprocal %407 {approx = true} : vector<1x8x1xf32> -> vector<1x8x1xf32>
    %409 = vector.broadcast %408 : vector<1x8x1xf32> to vector<1x8x8xf32>
    %410 = arith.mulf %405, %409 : vector<1x8x8xf32>
    "tpu.trace_start"() <{level = 10 : i32, message = "bqk,bke->bqe"}> : () -> ()
    %cst_205 = arith.constant dense<0.000000e+00> : vector<1x8x8xf32>
    %411 = tpu.matmul %410, %399, %cst_205 {dimension_numbers = #tpu.dot_dimension_numbers<[2], [1], [1], [2], [0, 0, 0, 1, 1, 2], [0], [0]>} : vector<1x8x8xf32>, vector<1x8x8xf32>, vector<1x8x8xf32> -> vector<1x8x8xf32>
    "tpu.trace_stop"() : () -> ()
    %412 = vector.extract_strided_slice %394 {offsets = [0, 0, 8], sizes = [1, 8, 8], strides = [1, 1, 1]} : vector<1x8x96xf32> to vector<1x8x8xf32>
    %cst_206 = arith.constant 0.353553385 : f32
    %413 = vector.broadcast %cst_206 : f32 to vector<1x8x8xf32>
    %414 = arith.mulf %412, %413 : vector<1x8x8xf32>
    %415 = vector.extract_strided_slice %394 {offsets = [0, 0, 40], sizes = [1, 8, 8], strides = [1, 1, 1]} : vector<1x8x96xf32> to vector<1x8x8xf32>
    %416 = vector.extract_strided_slice %394 {offsets = [0, 0, 72], sizes = [1, 8, 8], strides = [1, 1, 1]} : vector<1x8x96xf32> to vector<1x8x8xf32>
    "tpu.trace_start"() <{level = 10 : i32, message = "bqe,bke->bqk"}> : () -> ()
    %cst_207 = arith.constant dense<0.000000e+00> : vector<1x8x8xf32>
    %417 = tpu.matmul %414, %415, %cst_207 {dimension_numbers = #tpu.dot_dimension_numbers<[2], [2], [1], [1], [0, 0, 0, 1, 1, 1], [0], [0]>} : vector<1x8x8xf32>, vector<1x8x8xf32>, vector<1x8x8xf32> -> vector<1x8x8xf32>
    "tpu.trace_stop"() : () -> ()
    %cst_208 = arith.constant dense<0xFF800000> : vector<1x8xf32>
    %418 = vector.multi_reduction <maximumf>, %417, %cst_208 [2] : vector<1x8x8xf32> to vector<1x8xf32>
    %419 = vector.shape_cast %418 : vector<1x8xf32> to vector<1x8x1xf32>
    %420 = vector.broadcast %419 : vector<1x8x1xf32> to vector<1x8x8xf32>
    %421 = arith.subf %417, %420 : vector<1x8x8xf32>
    %422 = math.exp %421 : vector<1x8x8xf32>
    %cst_209 = arith.constant dense<0.000000e+00> : vector<1x8xf32>
    %423 = vector.multi_reduction <add>, %422, %cst_209 [2] : vector<1x8x8xf32> to vector<1x8xf32>
    %424 = vector.shape_cast %423 : vector<1x8xf32> to vector<1x8x1xf32>
    %425 = tpu.reciprocal %424 {approx = true} : vector<1x8x1xf32> -> vector<1x8x1xf32>
    %426 = vector.broadcast %425 : vector<1x8x1xf32> to vector<1x8x8xf32>
    %427 = arith.mulf %422, %426 : vector<1x8x8xf32>
    "tpu.trace_start"() <{level = 10 : i32, message = "bqk,bke->bqe"}> : () -> ()
    %cst_210 = arith.constant dense<0.000000e+00> : vector<1x8x8xf32>
    %428 = tpu.matmul %427, %416, %cst_210 {dimension_numbers = #tpu.dot_dimension_numbers<[2], [1], [1], [2], [0, 0, 0, 1, 1, 2], [0], [0]>} : vector<1x8x8xf32>, vector<1x8x8xf32>, vector<1x8x8xf32> -> vector<1x8x8xf32>
    "tpu.trace_stop"() : () -> ()
    %429 = vector.extract_strided_slice %394 {offsets = [0, 0, 16], sizes = [1, 8, 8], strides = [1, 1, 1]} : vector<1x8x96xf32> to vector<1x8x8xf32>
    %cst_211 = arith.constant 0.353553385 : f32
    %430 = vector.broadcast %cst_211 : f32 to vector<1x8x8xf32>
    %431 = arith.mulf %429, %430 : vector<1x8x8xf32>
    %432 = vector.extract_strided_slice %394 {offsets = [0, 0, 48], sizes = [1, 8, 8], strides = [1, 1, 1]} : vector<1x8x96xf32> to vector<1x8x8xf32>
    %433 = vector.extract_strided_slice %394 {offsets = [0, 0, 80], sizes = [1, 8, 8], strides = [1, 1, 1]} : vector<1x8x96xf32> to vector<1x8x8xf32>
    "tpu.trace_start"() <{level = 10 : i32, message = "bqe,bke->bqk"}> : () -> ()
    %cst_212 = arith.constant dense<0.000000e+00> : vector<1x8x8xf32>
    %434 = tpu.matmul %431, %432, %cst_212 {dimension_numbers = #tpu.dot_dimension_numbers<[2], [2], [1], [1], [0, 0, 0, 1, 1, 1], [0], [0]>} : vector<1x8x8xf32>, vector<1x8x8xf32>, vector<1x8x8xf32> -> vector<1x8x8xf32>
    "tpu.trace_stop"() : () -> ()
    %cst_213 = arith.constant dense<0xFF800000> : vector<1x8xf32>
    %435 = vector.multi_reduction <maximumf>, %434, %cst_213 [2] : vector<1x8x8xf32> to vector<1x8xf32>
    %436 = vector.shape_cast %435 : vector<1x8xf32> to vector<1x8x1xf32>
    %437 = vector.broadcast %436 : vector<1x8x1xf32> to vector<1x8x8xf32>
    %438 = arith.subf %434, %437 : vector<1x8x8xf32>
    %439 = math.exp %438 : vector<1x8x8xf32>
    %cst_214 = arith.constant dense<0.000000e+00> : vector<1x8xf32>
    %440 = vector.multi_reduction <add>, %439, %cst_214 [2] : vector<1x8x8xf32> to vector<1x8xf32>
    %441 = vector.shape_cast %440 : vector<1x8xf32> to vector<1x8x1xf32>
    %442 = tpu.reciprocal %441 {approx = true} : vector<1x8x1xf32> -> vector<1x8x1xf32>
    %443 = vector.broadcast %442 : vector<1x8x1xf32> to vector<1x8x8xf32>
    %444 = arith.mulf %439, %443 : vector<1x8x8xf32>
    "tpu.trace_start"() <{level = 10 : i32, message = "bqk,bke->bqe"}> : () -> ()
    %cst_215 = arith.constant dense<0.000000e+00> : vector<1x8x8xf32>
    %445 = tpu.matmul %444, %433, %cst_215 {dimension_numbers = #tpu.dot_dimension_numbers<[2], [1], [1], [2], [0, 0, 0, 1, 1, 2], [0], [0]>} : vector<1x8x8xf32>, vector<1x8x8xf32>, vector<1x8x8xf32> -> vector<1x8x8xf32>
    "tpu.trace_stop"() : () -> ()
    %446 = vector.extract_strided_slice %394 {offsets = [0, 0, 24], sizes = [1, 8, 8], strides = [1, 1, 1]} : vector<1x8x96xf32> to vector<1x8x8xf32>
    %cst_216 = arith.constant 0.353553385 : f32
    %447 = vector.broadcast %cst_216 : f32 to vector<1x8x8xf32>
    %448 = arith.mulf %446, %447 : vector<1x8x8xf32>
    %449 = vector.extract_strided_slice %394 {offsets = [0, 0, 56], sizes = [1, 8, 8], strides = [1, 1, 1]} : vector<1x8x96xf32> to vector<1x8x8xf32>
    %450 = vector.extract_strided_slice %394 {offsets = [0, 0, 88], sizes = [1, 8, 8], strides = [1, 1, 1]} : vector<1x8x96xf32> to vector<1x8x8xf32>
    "tpu.trace_start"() <{level = 10 : i32, message = "bqe,bke->bqk"}> : () -> ()
    %cst_217 = arith.constant dense<0.000000e+00> : vector<1x8x8xf32>
    %451 = tpu.matmul %448, %449, %cst_217 {dimension_numbers = #tpu.dot_dimension_numbers<[2], [2], [1], [1], [0, 0, 0, 1, 1, 1], [0], [0]>} : vector<1x8x8xf32>, vector<1x8x8xf32>, vector<1x8x8xf32> -> vector<1x8x8xf32>
    "tpu.trace_stop"() : () -> ()
    %cst_218 = arith.constant dense<0xFF800000> : vector<1x8xf32>
    %452 = vector.multi_reduction <maximumf>, %451, %cst_218 [2] : vector<1x8x8xf32> to vector<1x8xf32>
    %453 = vector.shape_cast %452 : vector<1x8xf32> to vector<1x8x1xf32>
    %454 = vector.broadcast %453 : vector<1x8x1xf32> to vector<1x8x8xf32>
    %455 = arith.subf %451, %454 : vector<1x8x8xf32>
    %456 = math.exp %455 : vector<1x8x8xf32>
    %cst_219 = arith.constant dense<0.000000e+00> : vector<1x8xf32>
    %457 = vector.multi_reduction <add>, %456, %cst_219 [2] : vector<1x8x8xf32> to vector<1x8xf32>
    %458 = vector.shape_cast %457 : vector<1x8xf32> to vector<1x8x1xf32>
    %459 = tpu.reciprocal %458 {approx = true} : vector<1x8x1xf32> -> vector<1x8x1xf32>
    %460 = vector.broadcast %459 : vector<1x8x1xf32> to vector<1x8x8xf32>
    %461 = arith.mulf %456, %460 : vector<1x8x8xf32>
    "tpu.trace_start"() <{level = 10 : i32, message = "bqk,bke->bqe"}> : () -> ()
    %cst_220 = arith.constant dense<0.000000e+00> : vector<1x8x8xf32>
    %462 = tpu.matmul %461, %450, %cst_220 {dimension_numbers = #tpu.dot_dimension_numbers<[2], [1], [1], [2], [0, 0, 0, 1, 1, 2], [0], [0]>} : vector<1x8x8xf32>, vector<1x8x8xf32>, vector<1x8x8xf32> -> vector<1x8x8xf32>
    "tpu.trace_stop"() : () -> ()
    %463 = tpu.concatenate %411, %428, %445, %462 in 2 : vector<1x8x8xf32>, vector<1x8x8xf32>, vector<1x8x8xf32>, vector<1x8x8xf32> -> vector<1x8x32xf32>
    %464 = vector.shape_cast %463 : vector<1x8x32xf32> to vector<8x32xf32>
    %cst_221 = arith.constant dense<0.000000e+00> : vector<8x32xf32>
    %465 = tpu.matmul %464, %358, %cst_221 {dimension_numbers = #tpu.dot_dimension_numbers<[1], [0], [0], [1], [0, 0, 1, 1], [], []>} : vector<8x32xf32>, vector<32x32xf32>, vector<8x32xf32> -> vector<8x32xf32>
    %466 = vector.broadcast %362 : vector<1x32xf32> to vector<8x32xf32>
    %467 = arith.addf %465, %466 : vector<8x32xf32>
    %468 = arith.addf %354, %467 : vector<8x32xf32>
    %cst_222 = arith.constant dense<0.000000e+00> : vector<8xf32>
    %469 = vector.multi_reduction <add>, %468, %cst_222 [1] : vector<8x32xf32> to vector<8xf32>
    %470 = vector.shape_cast %469 : vector<8xf32> to vector<8x1xf32>
    %cst_223 = arith.constant 3.200000e+01 : f32
    %471 = vector.broadcast %cst_223 : f32 to vector<8x1xf32>
    %472 = arith.divf %470, %471 : vector<8x1xf32>
    %473 = vector.broadcast %472 : vector<8x1xf32> to vector<8x32xf32>
    %474 = arith.subf %468, %473 : vector<8x32xf32>
    %475 = arith.mulf %474, %474 : vector<8x32xf32>
    %cst_224 = arith.constant dense<0.000000e+00> : vector<8xf32>
    %476 = vector.multi_reduction <add>, %475, %cst_224 [1] : vector<8x32xf32> to vector<8xf32>
    %477 = vector.shape_cast %476 : vector<8xf32> to vector<8x1xf32>
    %cst_225 = arith.constant 3.200000e+01 : f32
    %478 = vector.broadcast %cst_225 : f32 to vector<8x1xf32>
    %479 = arith.divf %477, %478 : vector<8x1xf32>
    %480 = vector.broadcast %472 : vector<8x1xf32> to vector<8x32xf32>
    %481 = arith.subf %468, %480 : vector<8x32xf32>
    %cst_226 = arith.constant 9.99999974E-6 : f32
    %482 = vector.broadcast %cst_226 : f32 to vector<8x1xf32>
    %483 = arith.addf %479, %482 : vector<8x1xf32>
    %484 = math.rsqrt %483 : vector<8x1xf32>
    %485 = vector.broadcast %484 : vector<8x1xf32> to vector<8x32xf32>
    %486 = arith.mulf %481, %485 : vector<8x32xf32>
    %487 = vector.broadcast %380 : vector<1x32xf32> to vector<8x32xf32>
    %488 = arith.mulf %486, %487 : vector<8x32xf32>
    %489 = vector.broadcast %382 : vector<1x32xf32> to vector<8x32xf32>
    %490 = arith.addf %488, %489 : vector<8x32xf32>
    %cst_227 = arith.constant dense<0.000000e+00> : vector<8x32xf32>
    %491 = tpu.matmul %349, %366, %cst_227 {dimension_numbers = #tpu.dot_dimension_numbers<[1], [0], [0], [1], [0, 0, 1, 1], [], []>} : vector<8x32xf32>, vector<32x32xf32>, vector<8x32xf32> -> vector<8x32xf32>
    %492 = vector.broadcast %372 : vector<1x32xf32> to vector<8x32xf32>
    %493 = arith.addf %491, %492 : vector<8x32xf32>
    %cst_228 = arith.constant dense<0.000000e+00> : vector<8x32xf32>
    %494 = tpu.matmul %493, %368, %cst_228 {dimension_numbers = #tpu.dot_dimension_numbers<[1], [0], [0], [1], [0, 0, 1, 1], [], []>} : vector<8x32xf32>, vector<32x32xf32>, vector<8x32xf32> -> vector<8x32xf32>
    %495 = vector.shape_cast %494 : vector<8x32xf32> to vector<1x8x32xf32>
    %496 = vector.extract_strided_slice %495 {offsets = [0, 0, 0], sizes = [1, 1, 32], strides = [1, 1, 1]} : vector<1x8x32xf32> to vector<1x1x32xf32>
    %497 = vector.shape_cast %374 : vector<1x32xf32> to vector<1x1x32xf32>
    %498 = arith.addf %496, %497 : vector<1x1x32xf32>
    %499 = vector.shape_cast %490 : vector<8x32xf32> to vector<1x8x32xf32>
    %500 = vector.broadcast %498 : vector<1x1x32xf32> to vector<1x8x32xf32>
    %501 = arith.addf %499, %500 : vector<1x8x32xf32>
    %502 = vector.shape_cast %501 : vector<1x8x32xf32> to vector<8x32xf32>
    %cst_229 = arith.constant dense<0.000000e+00> : vector<8xf32>
    %503 = vector.multi_reduction <add>, %502, %cst_229 [1] : vector<8x32xf32> to vector<8xf32>
    %504 = vector.shape_cast %503 : vector<8xf32> to vector<8x1xf32>
    %cst_230 = arith.constant 3.200000e+01 : f32
    %505 = vector.broadcast %cst_230 : f32 to vector<8x1xf32>
    %506 = arith.divf %504, %505 : vector<8x1xf32>
    %507 = vector.broadcast %506 : vector<8x1xf32> to vector<8x32xf32>
    %508 = arith.subf %502, %507 : vector<8x32xf32>
    %509 = arith.mulf %508, %508 : vector<8x32xf32>
    %cst_231 = arith.constant dense<0.000000e+00> : vector<8xf32>
    %510 = vector.multi_reduction <add>, %509, %cst_231 [1] : vector<8x32xf32> to vector<8xf32>
    %511 = vector.shape_cast %510 : vector<8xf32> to vector<8x1xf32>
    %cst_232 = arith.constant 3.200000e+01 : f32
    %512 = vector.broadcast %cst_232 : f32 to vector<8x1xf32>
    %513 = arith.divf %511, %512 : vector<8x1xf32>
    %514 = vector.broadcast %506 : vector<8x1xf32> to vector<8x32xf32>
    %515 = arith.subf %502, %514 : vector<8x32xf32>
    %cst_233 = arith.constant 9.99999974E-6 : f32
    %516 = vector.broadcast %cst_233 : f32 to vector<8x1xf32>
    %517 = arith.addf %513, %516 : vector<8x1xf32>
    %518 = math.rsqrt %517 : vector<8x1xf32>
    %519 = vector.broadcast %518 : vector<8x1xf32> to vector<8x32xf32>
    %520 = arith.mulf %515, %519 : vector<8x32xf32>
    %521 = vector.broadcast %384 : vector<1x32xf32> to vector<8x32xf32>
    %522 = arith.mulf %520, %521 : vector<8x32xf32>
    %523 = vector.broadcast %386 : vector<1x32xf32> to vector<8x32xf32>
    %524 = arith.addf %522, %523 : vector<8x32xf32>
    %cst_234 = arith.constant dense<0.000000e+00> : vector<8x64xf32>
    %525 = tpu.matmul %524, %370, %cst_234 {dimension_numbers = #tpu.dot_dimension_numbers<[1], [0], [0], [1], [0, 0, 1, 1], [], []>} : vector<8x32xf32>, vector<32x64xf32>, vector<8x64xf32> -> vector<8x64xf32>
    %526 = vector.broadcast %376 : vector<1x64xf32> to vector<8x64xf32>
    %527 = arith.addf %525, %526 : vector<8x64xf32>
    %cst_235 = arith.constant 0.000000e+00 : f32
    %528 = vector.broadcast %cst_235 : f32 to vector<8x64xf32>
    %529 = arith.maximumf %527, %528 : vector<8x64xf32>
    %cst_236 = arith.constant dense<0.000000e+00> : vector<8x32xf32>
    %530 = tpu.matmul %529, %364, %cst_236 {dimension_numbers = #tpu.dot_dimension_numbers<[1], [0], [0], [1], [0, 0, 1, 1], [], []>} : vector<8x64xf32>, vector<64x32xf32>, vector<8x32xf32> -> vector<8x32xf32>
    %531 = vector.broadcast %378 : vector<1x32xf32> to vector<8x32xf32>
    %532 = arith.addf %530, %531 : vector<8x32xf32>
    %533 = arith.addf %524, %532 : vector<8x32xf32>
    %cst_237 = arith.constant dense<0.000000e+00> : vector<8xf32>
    %534 = vector.multi_reduction <add>, %533, %cst_237 [1] : vector<8x32xf32> to vector<8xf32>
    %535 = vector.shape_cast %534 : vector<8xf32> to vector<8x1xf32>
    %cst_238 = arith.constant 3.200000e+01 : f32
    %536 = vector.broadcast %cst_238 : f32 to vector<8x1xf32>
    %537 = arith.divf %535, %536 : vector<8x1xf32>
    %538 = vector.broadcast %537 : vector<8x1xf32> to vector<8x32xf32>
    %539 = arith.subf %533, %538 : vector<8x32xf32>
    %540 = arith.mulf %539, %539 : vector<8x32xf32>
    %cst_239 = arith.constant dense<0.000000e+00> : vector<8xf32>
    %541 = vector.multi_reduction <add>, %540, %cst_239 [1] : vector<8x32xf32> to vector<8xf32>
    %542 = vector.shape_cast %541 : vector<8xf32> to vector<8x1xf32>
    %cst_240 = arith.constant 3.200000e+01 : f32
    %543 = vector.broadcast %cst_240 : f32 to vector<8x1xf32>
    %544 = arith.divf %542, %543 : vector<8x1xf32>
    %545 = vector.broadcast %537 : vector<8x1xf32> to vector<8x32xf32>
    %546 = arith.subf %533, %545 : vector<8x32xf32>
    %cst_241 = arith.constant 9.99999974E-6 : f32
    %547 = vector.broadcast %cst_241 : f32 to vector<8x1xf32>
    %548 = arith.addf %544, %547 : vector<8x1xf32>
    %549 = math.rsqrt %548 : vector<8x1xf32>
    %550 = vector.broadcast %549 : vector<8x1xf32> to vector<8x32xf32>
    %551 = arith.mulf %546, %550 : vector<8x32xf32>
    %552 = vector.broadcast %388 : vector<1x32xf32> to vector<8x32xf32>
    %553 = arith.mulf %551, %552 : vector<8x32xf32>
    %554 = vector.broadcast %390 : vector<1x32xf32> to vector<8x32xf32>
    %555 = arith.addf %553, %554 : vector<8x32xf32>
    %c1_242 = arith.constant 1 : index
    %c0_243 = arith.constant 0 : index
    %c0_244 = arith.constant 0 : index
    %556 = vector.load %arg10[%c1_242, %c0_243, %c0_244] : memref<2x32x640xf32, #tpu.memory_space<vmem>>, vector<1x32x96xf32>
    %557 = vector.shape_cast %556 : vector<1x32x96xf32> to vector<32x96xf32>
    %c1_245 = arith.constant 1 : index
    %c0_246 = arith.constant 0 : index
    %c128_247 = arith.constant 128 : index
    %558 = vector.load %arg10[%c1_245, %c0_246, %c128_247] : memref<2x32x640xf32, #tpu.memory_space<vmem>>, vector<1x32x32xf32>
    %559 = vector.shape_cast %558 : vector<1x32x32xf32> to vector<32x32xf32>
    %c1_248 = arith.constant 1 : index
    %c0_249 = arith.constant 0 : index
    %c0_250 = arith.constant 0 : index
    %560 = vector.load %arg12[%c1_248, %c0_249, %c0_250] : memref<2x1x1536xf32, #tpu.memory_space<vmem>>, vector<1x1x96xf32>
    %561 = vector.shape_cast %560 : vector<1x1x96xf32> to vector<1x96xf32>
    %c1_251 = arith.constant 1 : index
    %c0_252 = arith.constant 0 : index
    %c128_253 = arith.constant 128 : index
    %562 = vector.load %arg12[%c1_251, %c0_252, %c128_253] : memref<2x1x1536xf32, #tpu.memory_space<vmem>>, vector<1x1x32xf32>
    %563 = vector.shape_cast %562 : vector<1x1x32xf32> to vector<1x32xf32>
    %c1_254 = arith.constant 1 : index
    %c0_255 = arith.constant 0 : index
    %c0_256 = arith.constant 0 : index
    %564 = vector.load %arg11[%c1_254, %c0_255, %c0_256] : memref<2x64x32xf32, #tpu.memory_space<vmem>>, vector<1x64x32xf32>
    %565 = vector.shape_cast %564 : vector<1x64x32xf32> to vector<64x32xf32>
    %c1_257 = arith.constant 1 : index
    %c0_258 = arith.constant 0 : index
    %c256_259 = arith.constant 256 : index
    %566 = vector.load %arg10[%c1_257, %c0_258, %c256_259] : memref<2x32x640xf32, #tpu.memory_space<vmem>>, vector<1x32x32xf32>
    %567 = vector.shape_cast %566 : vector<1x32x32xf32> to vector<32x32xf32>
    %c1_260 = arith.constant 1 : index
    %c0_261 = arith.constant 0 : index
    %c384_262 = arith.constant 384 : index
    %568 = vector.load %arg10[%c1_260, %c0_261, %c384_262] : memref<2x32x640xf32, #tpu.memory_space<vmem>>, vector<1x32x32xf32>
    %569 = vector.shape_cast %568 : vector<1x32x32xf32> to vector<32x32xf32>
    %c1_263 = arith.constant 1 : index
    %c0_264 = arith.constant 0 : index
    %c512_265 = arith.constant 512 : index
    %570 = vector.load %arg10[%c1_263, %c0_264, %c512_265] : memref<2x32x640xf32, #tpu.memory_space<vmem>>, vector<1x32x64xf32>
    %571 = vector.shape_cast %570 : vector<1x32x64xf32> to vector<32x64xf32>
    %c1_266 = arith.constant 1 : index
    %c0_267 = arith.constant 0 : index
    %c256_268 = arith.constant 256 : index
    %572 = vector.load %arg12[%c1_266, %c0_267, %c256_268] : memref<2x1x1536xf32, #tpu.memory_space<vmem>>, vector<1x1x32xf32>
    %573 = vector.shape_cast %572 : vector<1x1x32xf32> to vector<1x32xf32>
    %c1_269 = arith.constant 1 : index
    %c0_270 = arith.constant 0 : index
    %c384_271 = arith.constant 384 : index
    %574 = vector.load %arg12[%c1_269, %c0_270, %c384_271] : memref<2x1x1536xf32, #tpu.memory_space<vmem>>, vector<1x1x32xf32>
    %575 = vector.shape_cast %574 : vector<1x1x32xf32> to vector<1x32xf32>
    %c1_272 = arith.constant 1 : index
    %c0_273 = arith.constant 0 : index
    %c512_274 = arith.constant 512 : index
    %576 = vector.load %arg12[%c1_272, %c0_273, %c512_274] : memref<2x1x1536xf32, #tpu.memory_space<vmem>>, vector<1x1x64xf32>
    %577 = vector.shape_cast %576 : vector<1x1x64xf32> to vector<1x64xf32>
    %c1_275 = arith.constant 1 : index
    %c0_276 = arith.constant 0 : index
    %c640_277 = arith.constant 640 : index
    %578 = vector.load %arg12[%c1_275, %c0_276, %c640_277] : memref<2x1x1536xf32, #tpu.memory_space<vmem>>, vector<1x1x32xf32>
    %579 = vector.shape_cast %578 : vector<1x1x32xf32> to vector<1x32xf32>
    %c1_278 = arith.constant 1 : index
    %c0_279 = arith.constant 0 : index
    %c768_280 = arith.constant 768 : index
    %580 = vector.load %arg12[%c1_278, %c0_279, %c768_280] : memref<2x1x1536xf32, #tpu.memory_space<vmem>>, vector<1x1x32xf32>
    %581 = vector.shape_cast %580 : vector<1x1x32xf32> to vector<1x32xf32>
    %c1_281 = arith.constant 1 : index
    %c0_282 = arith.constant 0 : index
    %c896_283 = arith.constant 896 : index
    %582 = vector.load %arg12[%c1_281, %c0_282, %c896_283] : memref<2x1x1536xf32, #tpu.memory_space<vmem>>, vector<1x1x32xf32>
    %583 = vector.shape_cast %582 : vector<1x1x32xf32> to vector<1x32xf32>
    %c1_284 = arith.constant 1 : index
    %c0_285 = arith.constant 0 : index
    %c1024_286 = arith.constant 1024 : index
    %584 = vector.load %arg12[%c1_284, %c0_285, %c1024_286] : memref<2x1x1536xf32, #tpu.memory_space<vmem>>, vector<1x1x32xf32>
    %585 = vector.shape_cast %584 : vector<1x1x32xf32> to vector<1x32xf32>
    %c1_287 = arith.constant 1 : index
    %c0_288 = arith.constant 0 : index
    %c1152_289 = arith.constant 1152 : index
    %586 = vector.load %arg12[%c1_287, %c0_288, %c1152_289] : memref<2x1x1536xf32, #tpu.memory_space<vmem>>, vector<1x1x32xf32>
    %587 = vector.shape_cast %586 : vector<1x1x32xf32> to vector<1x32xf32>
    %c1_290 = arith.constant 1 : index
    %c0_291 = arith.constant 0 : index
    %c1280_292 = arith.constant 1280 : index
    %588 = vector.load %arg12[%c1_290, %c0_291, %c1280_292] : memref<2x1x1536xf32, #tpu.memory_space<vmem>>, vector<1x1x32xf32>
    %589 = vector.shape_cast %588 : vector<1x1x32xf32> to vector<1x32xf32>
    %c1_293 = arith.constant 1 : index
    %c0_294 = arith.constant 0 : index
    %c1408_295 = arith.constant 1408 : index
    %590 = vector.load %arg12[%c1_293, %c0_294, %c1408_295] : memref<2x1x1536xf32, #tpu.memory_space<vmem>>, vector<1x1x32xf32>
    %591 = vector.shape_cast %590 : vector<1x1x32xf32> to vector<1x32xf32>
    %cst_296 = arith.constant dense<0.000000e+00> : vector<8x96xf32>
    %592 = tpu.matmul %555, %557, %cst_296 {dimension_numbers = #tpu.dot_dimension_numbers<[1], [0], [0], [1], [0, 0, 1, 1], [], []>} : vector<8x32xf32>, vector<32x96xf32>, vector<8x96xf32> -> vector<8x96xf32>
    %593 = vector.broadcast %561 : vector<1x96xf32> to vector<8x96xf32>
    %594 = arith.addf %592, %593 : vector<8x96xf32>
    %595 = vector.shape_cast %594 : vector<8x96xf32> to vector<1x8x96xf32>
    %596 = vector.extract_strided_slice %595 {offsets = [0, 0, 0], sizes = [1, 8, 8], strides = [1, 1, 1]} : vector<1x8x96xf32> to vector<1x8x8xf32>
    %cst_297 = arith.constant 0.353553385 : f32
    %597 = vector.broadcast %cst_297 : f32 to vector<1x8x8xf32>
    %598 = arith.mulf %596, %597 : vector<1x8x8xf32>
    %599 = vector.extract_strided_slice %595 {offsets = [0, 0, 32], sizes = [1, 8, 8], strides = [1, 1, 1]} : vector<1x8x96xf32> to vector<1x8x8xf32>
    %600 = vector.extract_strided_slice %595 {offsets = [0, 0, 64], sizes = [1, 8, 8], strides = [1, 1, 1]} : vector<1x8x96xf32> to vector<1x8x8xf32>
    "tpu.trace_start"() <{level = 10 : i32, message = "bqe,bke->bqk"}> : () -> ()
    %cst_298 = arith.constant dense<0.000000e+00> : vector<1x8x8xf32>
    %601 = tpu.matmul %598, %599, %cst_298 {dimension_numbers = #tpu.dot_dimension_numbers<[2], [2], [1], [1], [0, 0, 0, 1, 1, 1], [0], [0]>} : vector<1x8x8xf32>, vector<1x8x8xf32>, vector<1x8x8xf32> -> vector<1x8x8xf32>
    "tpu.trace_stop"() : () -> ()
    %cst_299 = arith.constant dense<0xFF800000> : vector<1x8xf32>
    %602 = vector.multi_reduction <maximumf>, %601, %cst_299 [2] : vector<1x8x8xf32> to vector<1x8xf32>
    %603 = vector.shape_cast %602 : vector<1x8xf32> to vector<1x8x1xf32>
    %604 = vector.broadcast %603 : vector<1x8x1xf32> to vector<1x8x8xf32>
    %605 = arith.subf %601, %604 : vector<1x8x8xf32>
    %606 = math.exp %605 : vector<1x8x8xf32>
    %cst_300 = arith.constant dense<0.000000e+00> : vector<1x8xf32>
    %607 = vector.multi_reduction <add>, %606, %cst_300 [2] : vector<1x8x8xf32> to vector<1x8xf32>
    %608 = vector.shape_cast %607 : vector<1x8xf32> to vector<1x8x1xf32>
    %609 = tpu.reciprocal %608 {approx = true} : vector<1x8x1xf32> -> vector<1x8x1xf32>
    %610 = vector.broadcast %609 : vector<1x8x1xf32> to vector<1x8x8xf32>
    %611 = arith.mulf %606, %610 : vector<1x8x8xf32>
    "tpu.trace_start"() <{level = 10 : i32, message = "bqk,bke->bqe"}> : () -> ()
    %cst_301 = arith.constant dense<0.000000e+00> : vector<1x8x8xf32>
    %612 = tpu.matmul %611, %600, %cst_301 {dimension_numbers = #tpu.dot_dimension_numbers<[2], [1], [1], [2], [0, 0, 0, 1, 1, 2], [0], [0]>} : vector<1x8x8xf32>, vector<1x8x8xf32>, vector<1x8x8xf32> -> vector<1x8x8xf32>
    "tpu.trace_stop"() : () -> ()
    %613 = vector.extract_strided_slice %595 {offsets = [0, 0, 8], sizes = [1, 8, 8], strides = [1, 1, 1]} : vector<1x8x96xf32> to vector<1x8x8xf32>
    %cst_302 = arith.constant 0.353553385 : f32
    %614 = vector.broadcast %cst_302 : f32 to vector<1x8x8xf32>
    %615 = arith.mulf %613, %614 : vector<1x8x8xf32>
    %616 = vector.extract_strided_slice %595 {offsets = [0, 0, 40], sizes = [1, 8, 8], strides = [1, 1, 1]} : vector<1x8x96xf32> to vector<1x8x8xf32>
    %617 = vector.extract_strided_slice %595 {offsets = [0, 0, 72], sizes = [1, 8, 8], strides = [1, 1, 1]} : vector<1x8x96xf32> to vector<1x8x8xf32>
    "tpu.trace_start"() <{level = 10 : i32, message = "bqe,bke->bqk"}> : () -> ()
    %cst_303 = arith.constant dense<0.000000e+00> : vector<1x8x8xf32>
    %618 = tpu.matmul %615, %616, %cst_303 {dimension_numbers = #tpu.dot_dimension_numbers<[2], [2], [1], [1], [0, 0, 0, 1, 1, 1], [0], [0]>} : vector<1x8x8xf32>, vector<1x8x8xf32>, vector<1x8x8xf32> -> vector<1x8x8xf32>
    "tpu.trace_stop"() : () -> ()
    %cst_304 = arith.constant dense<0xFF800000> : vector<1x8xf32>
    %619 = vector.multi_reduction <maximumf>, %618, %cst_304 [2] : vector<1x8x8xf32> to vector<1x8xf32>
    %620 = vector.shape_cast %619 : vector<1x8xf32> to vector<1x8x1xf32>
    %621 = vector.broadcast %620 : vector<1x8x1xf32> to vector<1x8x8xf32>
    %622 = arith.subf %618, %621 : vector<1x8x8xf32>
    %623 = math.exp %622 : vector<1x8x8xf32>
    %cst_305 = arith.constant dense<0.000000e+00> : vector<1x8xf32>
    %624 = vector.multi_reduction <add>, %623, %cst_305 [2] : vector<1x8x8xf32> to vector<1x8xf32>
    %625 = vector.shape_cast %624 : vector<1x8xf32> to vector<1x8x1xf32>
    %626 = tpu.reciprocal %625 {approx = true} : vector<1x8x1xf32> -> vector<1x8x1xf32>
    %627 = vector.broadcast %626 : vector<1x8x1xf32> to vector<1x8x8xf32>
    %628 = arith.mulf %623, %627 : vector<1x8x8xf32>
    "tpu.trace_start"() <{level = 10 : i32, message = "bqk,bke->bqe"}> : () -> ()
    %cst_306 = arith.constant dense<0.000000e+00> : vector<1x8x8xf32>
    %629 = tpu.matmul %628, %617, %cst_306 {dimension_numbers = #tpu.dot_dimension_numbers<[2], [1], [1], [2], [0, 0, 0, 1, 1, 2], [0], [0]>} : vector<1x8x8xf32>, vector<1x8x8xf32>, vector<1x8x8xf32> -> vector<1x8x8xf32>
    "tpu.trace_stop"() : () -> ()
    %630 = vector.extract_strided_slice %595 {offsets = [0, 0, 16], sizes = [1, 8, 8], strides = [1, 1, 1]} : vector<1x8x96xf32> to vector<1x8x8xf32>
    %cst_307 = arith.constant 0.353553385 : f32
    %631 = vector.broadcast %cst_307 : f32 to vector<1x8x8xf32>
    %632 = arith.mulf %630, %631 : vector<1x8x8xf32>
    %633 = vector.extract_strided_slice %595 {offsets = [0, 0, 48], sizes = [1, 8, 8], strides = [1, 1, 1]} : vector<1x8x96xf32> to vector<1x8x8xf32>
    %634 = vector.extract_strided_slice %595 {offsets = [0, 0, 80], sizes = [1, 8, 8], strides = [1, 1, 1]} : vector<1x8x96xf32> to vector<1x8x8xf32>
    "tpu.trace_start"() <{level = 10 : i32, message = "bqe,bke->bqk"}> : () -> ()
    %cst_308 = arith.constant dense<0.000000e+00> : vector<1x8x8xf32>
    %635 = tpu.matmul %632, %633, %cst_308 {dimension_numbers = #tpu.dot_dimension_numbers<[2], [2], [1], [1], [0, 0, 0, 1, 1, 1], [0], [0]>} : vector<1x8x8xf32>, vector<1x8x8xf32>, vector<1x8x8xf32> -> vector<1x8x8xf32>
    "tpu.trace_stop"() : () -> ()
    %cst_309 = arith.constant dense<0xFF800000> : vector<1x8xf32>
    %636 = vector.multi_reduction <maximumf>, %635, %cst_309 [2] : vector<1x8x8xf32> to vector<1x8xf32>
    %637 = vector.shape_cast %636 : vector<1x8xf32> to vector<1x8x1xf32>
    %638 = vector.broadcast %637 : vector<1x8x1xf32> to vector<1x8x8xf32>
    %639 = arith.subf %635, %638 : vector<1x8x8xf32>
    %640 = math.exp %639 : vector<1x8x8xf32>
    %cst_310 = arith.constant dense<0.000000e+00> : vector<1x8xf32>
    %641 = vector.multi_reduction <add>, %640, %cst_310 [2] : vector<1x8x8xf32> to vector<1x8xf32>
    %642 = vector.shape_cast %641 : vector<1x8xf32> to vector<1x8x1xf32>
    %643 = tpu.reciprocal %642 {approx = true} : vector<1x8x1xf32> -> vector<1x8x1xf32>
    %644 = vector.broadcast %643 : vector<1x8x1xf32> to vector<1x8x8xf32>
    %645 = arith.mulf %640, %644 : vector<1x8x8xf32>
    "tpu.trace_start"() <{level = 10 : i32, message = "bqk,bke->bqe"}> : () -> ()
    %cst_311 = arith.constant dense<0.000000e+00> : vector<1x8x8xf32>
    %646 = tpu.matmul %645, %634, %cst_311 {dimension_numbers = #tpu.dot_dimension_numbers<[2], [1], [1], [2], [0, 0, 0, 1, 1, 2], [0], [0]>} : vector<1x8x8xf32>, vector<1x8x8xf32>, vector<1x8x8xf32> -> vector<1x8x8xf32>
    "tpu.trace_stop"() : () -> ()
    %647 = vector.extract_strided_slice %595 {offsets = [0, 0, 24], sizes = [1, 8, 8], strides = [1, 1, 1]} : vector<1x8x96xf32> to vector<1x8x8xf32>
    %cst_312 = arith.constant 0.353553385 : f32
    %648 = vector.broadcast %cst_312 : f32 to vector<1x8x8xf32>
    %649 = arith.mulf %647, %648 : vector<1x8x8xf32>
    %650 = vector.extract_strided_slice %595 {offsets = [0, 0, 56], sizes = [1, 8, 8], strides = [1, 1, 1]} : vector<1x8x96xf32> to vector<1x8x8xf32>
    %651 = vector.extract_strided_slice %595 {offsets = [0, 0, 88], sizes = [1, 8, 8], strides = [1, 1, 1]} : vector<1x8x96xf32> to vector<1x8x8xf32>
    "tpu.trace_start"() <{level = 10 : i32, message = "bqe,bke->bqk"}> : () -> ()
    %cst_313 = arith.constant dense<0.000000e+00> : vector<1x8x8xf32>
    %652 = tpu.matmul %649, %650, %cst_313 {dimension_numbers = #tpu.dot_dimension_numbers<[2], [2], [1], [1], [0, 0, 0, 1, 1, 1], [0], [0]>} : vector<1x8x8xf32>, vector<1x8x8xf32>, vector<1x8x8xf32> -> vector<1x8x8xf32>
    "tpu.trace_stop"() : () -> ()
    %cst_314 = arith.constant dense<0xFF800000> : vector<1x8xf32>
    %653 = vector.multi_reduction <maximumf>, %652, %cst_314 [2] : vector<1x8x8xf32> to vector<1x8xf32>
    %654 = vector.shape_cast %653 : vector<1x8xf32> to vector<1x8x1xf32>
    %655 = vector.broadcast %654 : vector<1x8x1xf32> to vector<1x8x8xf32>
    %656 = arith.subf %652, %655 : vector<1x8x8xf32>
    %657 = math.exp %656 : vector<1x8x8xf32>
    %cst_315 = arith.constant dense<0.000000e+00> : vector<1x8xf32>
    %658 = vector.multi_reduction <add>, %657, %cst_315 [2] : vector<1x8x8xf32> to vector<1x8xf32>
    %659 = vector.shape_cast %658 : vector<1x8xf32> to vector<1x8x1xf32>
    %660 = tpu.reciprocal %659 {approx = true} : vector<1x8x1xf32> -> vector<1x8x1xf32>
    %661 = vector.broadcast %660 : vector<1x8x1xf32> to vector<1x8x8xf32>
    %662 = arith.mulf %657, %661 : vector<1x8x8xf32>
    "tpu.trace_start"() <{level = 10 : i32, message = "bqk,bke->bqe"}> : () -> ()
    %cst_316 = arith.constant dense<0.000000e+00> : vector<1x8x8xf32>
    %663 = tpu.matmul %662, %651, %cst_316 {dimension_numbers = #tpu.dot_dimension_numbers<[2], [1], [1], [2], [0, 0, 0, 1, 1, 2], [0], [0]>} : vector<1x8x8xf32>, vector<1x8x8xf32>, vector<1x8x8xf32> -> vector<1x8x8xf32>
    "tpu.trace_stop"() : () -> ()
    %664 = tpu.concatenate %612, %629, %646, %663 in 2 : vector<1x8x8xf32>, vector<1x8x8xf32>, vector<1x8x8xf32>, vector<1x8x8xf32> -> vector<1x8x32xf32>
    %665 = vector.shape_cast %664 : vector<1x8x32xf32> to vector<8x32xf32>
    %cst_317 = arith.constant dense<0.000000e+00> : vector<8x32xf32>
    %666 = tpu.matmul %665, %559, %cst_317 {dimension_numbers = #tpu.dot_dimension_numbers<[1], [0], [0], [1], [0, 0, 1, 1], [], []>} : vector<8x32xf32>, vector<32x32xf32>, vector<8x32xf32> -> vector<8x32xf32>
    %667 = vector.broadcast %563 : vector<1x32xf32> to vector<8x32xf32>
    %668 = arith.addf %666, %667 : vector<8x32xf32>
    %669 = arith.addf %555, %668 : vector<8x32xf32>
    %cst_318 = arith.constant dense<0.000000e+00> : vector<8xf32>
    %670 = vector.multi_reduction <add>, %669, %cst_318 [1] : vector<8x32xf32> to vector<8xf32>
    %671 = vector.shape_cast %670 : vector<8xf32> to vector<8x1xf32>
    %cst_319 = arith.constant 3.200000e+01 : f32
    %672 = vector.broadcast %cst_319 : f32 to vector<8x1xf32>
    %673 = arith.divf %671, %672 : vector<8x1xf32>
    %674 = vector.broadcast %673 : vector<8x1xf32> to vector<8x32xf32>
    %675 = arith.subf %669, %674 : vector<8x32xf32>
    %676 = arith.mulf %675, %675 : vector<8x32xf32>
    %cst_320 = arith.constant dense<0.000000e+00> : vector<8xf32>
    %677 = vector.multi_reduction <add>, %676, %cst_320 [1] : vector<8x32xf32> to vector<8xf32>
    %678 = vector.shape_cast %677 : vector<8xf32> to vector<8x1xf32>
    %cst_321 = arith.constant 3.200000e+01 : f32
    %679 = vector.broadcast %cst_321 : f32 to vector<8x1xf32>
    %680 = arith.divf %678, %679 : vector<8x1xf32>
    %681 = vector.broadcast %673 : vector<8x1xf32> to vector<8x32xf32>
    %682 = arith.subf %669, %681 : vector<8x32xf32>
    %cst_322 = arith.constant 9.99999974E-6 : f32
    %683 = vector.broadcast %cst_322 : f32 to vector<8x1xf32>
    %684 = arith.addf %680, %683 : vector<8x1xf32>
    %685 = math.rsqrt %684 : vector<8x1xf32>
    %686 = vector.broadcast %685 : vector<8x1xf32> to vector<8x32xf32>
    %687 = arith.mulf %682, %686 : vector<8x32xf32>
    %688 = vector.broadcast %581 : vector<1x32xf32> to vector<8x32xf32>
    %689 = arith.mulf %687, %688 : vector<8x32xf32>
    %690 = vector.broadcast %583 : vector<1x32xf32> to vector<8x32xf32>
    %691 = arith.addf %689, %690 : vector<8x32xf32>
    %cst_323 = arith.constant dense<0.000000e+00> : vector<8x32xf32>
    %692 = tpu.matmul %349, %567, %cst_323 {dimension_numbers = #tpu.dot_dimension_numbers<[1], [0], [0], [1], [0, 0, 1, 1], [], []>} : vector<8x32xf32>, vector<32x32xf32>, vector<8x32xf32> -> vector<8x32xf32>
    %693 = vector.broadcast %573 : vector<1x32xf32> to vector<8x32xf32>
    %694 = arith.addf %692, %693 : vector<8x32xf32>
    %cst_324 = arith.constant dense<0.000000e+00> : vector<8x32xf32>
    %695 = tpu.matmul %694, %569, %cst_324 {dimension_numbers = #tpu.dot_dimension_numbers<[1], [0], [0], [1], [0, 0, 1, 1], [], []>} : vector<8x32xf32>, vector<32x32xf32>, vector<8x32xf32> -> vector<8x32xf32>
    %696 = vector.shape_cast %695 : vector<8x32xf32> to vector<1x8x32xf32>
    %697 = vector.extract_strided_slice %696 {offsets = [0, 0, 0], sizes = [1, 1, 32], strides = [1, 1, 1]} : vector<1x8x32xf32> to vector<1x1x32xf32>
    %698 = vector.shape_cast %575 : vector<1x32xf32> to vector<1x1x32xf32>
    %699 = arith.addf %697, %698 : vector<1x1x32xf32>
    %700 = vector.shape_cast %691 : vector<8x32xf32> to vector<1x8x32xf32>
    %701 = vector.broadcast %699 : vector<1x1x32xf32> to vector<1x8x32xf32>
    %702 = arith.addf %700, %701 : vector<1x8x32xf32>
    %703 = vector.shape_cast %702 : vector<1x8x32xf32> to vector<8x32xf32>
    %cst_325 = arith.constant dense<0.000000e+00> : vector<8xf32>
    %704 = vector.multi_reduction <add>, %703, %cst_325 [1] : vector<8x32xf32> to vector<8xf32>
    %705 = vector.shape_cast %704 : vector<8xf32> to vector<8x1xf32>
    %cst_326 = arith.constant 3.200000e+01 : f32
    %706 = vector.broadcast %cst_326 : f32 to vector<8x1xf32>
    %707 = arith.divf %705, %706 : vector<8x1xf32>
    %708 = vector.broadcast %707 : vector<8x1xf32> to vector<8x32xf32>
    %709 = arith.subf %703, %708 : vector<8x32xf32>
    %710 = arith.mulf %709, %709 : vector<8x32xf32>
    %cst_327 = arith.constant dense<0.000000e+00> : vector<8xf32>
    %711 = vector.multi_reduction <add>, %710, %cst_327 [1] : vector<8x32xf32> to vector<8xf32>
    %712 = vector.shape_cast %711 : vector<8xf32> to vector<8x1xf32>
    %cst_328 = arith.constant 3.200000e+01 : f32
    %713 = vector.broadcast %cst_328 : f32 to vector<8x1xf32>
    %714 = arith.divf %712, %713 : vector<8x1xf32>
    %715 = vector.broadcast %707 : vector<8x1xf32> to vector<8x32xf32>
    %716 = arith.subf %703, %715 : vector<8x32xf32>
    %cst_329 = arith.constant 9.99999974E-6 : f32
    %717 = vector.broadcast %cst_329 : f32 to vector<8x1xf32>
    %718 = arith.addf %714, %717 : vector<8x1xf32>
    %719 = math.rsqrt %718 : vector<8x1xf32>
    %720 = vector.broadcast %719 : vector<8x1xf32> to vector<8x32xf32>
    %721 = arith.mulf %716, %720 : vector<8x32xf32>
    %722 = vector.broadcast %585 : vector<1x32xf32> to vector<8x32xf32>
    %723 = arith.mulf %721, %722 : vector<8x32xf32>
    %724 = vector.broadcast %587 : vector<1x32xf32> to vector<8x32xf32>
    %725 = arith.addf %723, %724 : vector<8x32xf32>
    %cst_330 = arith.constant dense<0.000000e+00> : vector<8x64xf32>
    %726 = tpu.matmul %725, %571, %cst_330 {dimension_numbers = #tpu.dot_dimension_numbers<[1], [0], [0], [1], [0, 0, 1, 1], [], []>} : vector<8x32xf32>, vector<32x64xf32>, vector<8x64xf32> -> vector<8x64xf32>
    %727 = vector.broadcast %577 : vector<1x64xf32> to vector<8x64xf32>
    %728 = arith.addf %726, %727 : vector<8x64xf32>
    %cst_331 = arith.constant 0.000000e+00 : f32
    %729 = vector.broadcast %cst_331 : f32 to vector<8x64xf32>
    %730 = arith.maximumf %728, %729 : vector<8x64xf32>
    %cst_332 = arith.constant dense<0.000000e+00> : vector<8x32xf32>
    %731 = tpu.matmul %730, %565, %cst_332 {dimension_numbers = #tpu.dot_dimension_numbers<[1], [0], [0], [1], [0, 0, 1, 1], [], []>} : vector<8x64xf32>, vector<64x32xf32>, vector<8x32xf32> -> vector<8x32xf32>
    %732 = vector.broadcast %579 : vector<1x32xf32> to vector<8x32xf32>
    %733 = arith.addf %731, %732 : vector<8x32xf32>
    %734 = arith.addf %725, %733 : vector<8x32xf32>
    %cst_333 = arith.constant dense<0.000000e+00> : vector<8xf32>
    %735 = vector.multi_reduction <add>, %734, %cst_333 [1] : vector<8x32xf32> to vector<8xf32>
    %736 = vector.shape_cast %735 : vector<8xf32> to vector<8x1xf32>
    %cst_334 = arith.constant 3.200000e+01 : f32
    %737 = vector.broadcast %cst_334 : f32 to vector<8x1xf32>
    %738 = arith.divf %736, %737 : vector<8x1xf32>
    %739 = vector.broadcast %738 : vector<8x1xf32> to vector<8x32xf32>
    %740 = arith.subf %734, %739 : vector<8x32xf32>
    %741 = arith.mulf %740, %740 : vector<8x32xf32>
    %cst_335 = arith.constant dense<0.000000e+00> : vector<8xf32>
    %742 = vector.multi_reduction <add>, %741, %cst_335 [1] : vector<8x32xf32> to vector<8xf32>
    %743 = vector.shape_cast %742 : vector<8xf32> to vector<8x1xf32>
    %cst_336 = arith.constant 3.200000e+01 : f32
    %744 = vector.broadcast %cst_336 : f32 to vector<8x1xf32>
    %745 = arith.divf %743, %744 : vector<8x1xf32>
    %746 = vector.broadcast %738 : vector<8x1xf32> to vector<8x32xf32>
    %747 = arith.subf %734, %746 : vector<8x32xf32>
    %cst_337 = arith.constant 9.99999974E-6 : f32
    %748 = vector.broadcast %cst_337 : f32 to vector<8x1xf32>
    %749 = arith.addf %745, %748 : vector<8x1xf32>
    %750 = math.rsqrt %749 : vector<8x1xf32>
    %751 = vector.broadcast %750 : vector<8x1xf32> to vector<8x32xf32>
    %752 = arith.mulf %747, %751 : vector<8x32xf32>
    %753 = vector.broadcast %589 : vector<1x32xf32> to vector<8x32xf32>
    %754 = arith.mulf %752, %753 : vector<8x32xf32>
    %755 = vector.broadcast %591 : vector<1x32xf32> to vector<8x32xf32>
    %756 = arith.addf %754, %755 : vector<8x32xf32>
    %c0_338 = arith.constant 0 : index
    %c0_339 = arith.constant 0 : index
    %757 = vector.load %arg6[%c0_338, %c0_339] : memref<33x128xf32, #tpu.memory_space<vmem>>, vector<32x128xf32>
    %cst_340 = arith.constant dense<0.000000e+00> : vector<8x128xf32>
    %758 = tpu.matmul %756, %757, %cst_340 {dimension_numbers = #tpu.dot_dimension_numbers<[1], [0], [0], [1], [0, 0, 1, 1], [], []>} : vector<8x32xf32>, vector<32x128xf32>, vector<8x128xf32> -> vector<8x128xf32>
    %c32 = arith.constant 32 : index
    %c0_341 = arith.constant 0 : index
    %759 = vector.load %arg6[%c32, %c0_341] : memref<33x128xf32, #tpu.memory_space<vmem>>, vector<1x128xf32>
    %760 = vector.broadcast %759 : vector<1x128xf32> to vector<8x128xf32>
    %761 = arith.addf %758, %760 : vector<8x128xf32>
    %762 = vector.shape_cast %761 : vector<8x128xf32> to vector<1x8x128xf32>
    %c0_342 = arith.constant 0 : index
    %c0_343 = arith.constant 0 : index
    %c0_344 = arith.constant 0 : index
    %763 = vector.load %arg14[%c0_342, %c0_343, %c0_344] : memref<1x8x128xf32, #tpu.memory_space<vmem>>, vector<1x8x128xf32>
    tpu.vector_store %arg14[%c0_342, %c0_343, %c0_344], %762 {strides = array<i32>} : memref<1x8x128xf32, #tpu.memory_space<vmem>>, vector<1x8x128xf32>,
    return
  }
  func.func @transform_0(%arg0: i32) -> (i32, i32, i32) {
    %c0_i32 = arith.constant 0 : i32
    %c0_i32_0 = arith.constant 0 : i32
    %c0_i32_1 = arith.constant 0 : i32
    return %arg0, %c0_i32, %c0_i32_0 : i32, i32, i32
  }
  func.func @transform_1(%arg0: i32) -> (i32, i32) {
    %c0_i32 = arith.constant 0 : i32
    %c0_i32_0 = arith.constant 0 : i32
    %c0_i32_1 = arith.constant 0 : i32
    return %c0_i32, %c0_i32_0 : i32, i32
  }
  func.func @transform_2(%arg0: i32) -> (i32, i32) {
    %c0_i32 = arith.constant 0 : i32
    %c0_i32_0 = arith.constant 0 : i32
    %c0_i32_1 = arith.constant 0 : i32
    return %c0_i32, %c0_i32_0 : i32, i32
  }
  func.func @transform_3(%arg0: i32) -> (i32, i32) {
    %c0_i32 = arith.constant 0 : i32
    %c0_i32_0 = arith.constant 0 : i32
    %c0_i32_1 = arith.constant 0 : i32
    return %c0_i32, %c0_i32_0 : i32, i32
  }
  func.func @transform_4(%arg0: i32) -> (i32, i32) {
    %c0_i32 = arith.constant 0 : i32
    %c0_i32_0 = arith.constant 0 : i32
    %c0_i32_1 = arith.constant 0 : i32
    return %c0_i32, %c0_i32_0 : i32, i32
  }
  func.func @transform_5(%arg0: i32) -> (i32, i32) {
    %c0_i32 = arith.constant 0 : i32
    %c0_i32_0 = arith.constant 0 : i32
    %c0_i32_1 = arith.constant 0 : i32
    return %c0_i32, %c0_i32_0 : i32, i32
  }
  func.func @transform_6(%arg0: i32) -> (i32, i32, i32) {
    %c0_i32 = arith.constant 0 : i32
    %c0_i32_0 = arith.constant 0 : i32
    %c0_i32_1 = arith.constant 0 : i32
    %c0_i32_2 = arith.constant 0 : i32
    return %c0_i32, %c0_i32_0, %c0_i32_1 : i32, i32, i32
  }
  func.func @transform_7(%arg0: i32) -> (i32, i32, i32) {
    %c0_i32 = arith.constant 0 : i32
    %c0_i32_0 = arith.constant 0 : i32
    %c0_i32_1 = arith.constant 0 : i32
    %c0_i32_2 = arith.constant 0 : i32
    return %c0_i32, %c0_i32_0, %c0_i32_1 : i32, i32, i32
  }
  func.func @transform_8(%arg0: i32) -> (i32, i32, i32) {
    %c0_i32 = arith.constant 0 : i32
    %c0_i32_0 = arith.constant 0 : i32
    %c0_i32_1 = arith.constant 0 : i32
    %c0_i32_2 = arith.constant 0 : i32
    return %c0_i32, %c0_i32_0, %c0_i32_1 : i32, i32, i32
  }
  func.func @transform_9(%arg0: i32) -> (i32, i32, i32) {
    %c0_i32 = arith.constant 0 : i32
    %c0_i32_0 = arith.constant 0 : i32
    %c0_i32_1 = arith.constant 0 : i32
    %c0_i32_2 = arith.constant 0 : i32
    return %c0_i32, %c0_i32_0, %c0_i32_1 : i32, i32, i32
  }
  func.func @transform_10(%arg0: i32) -> (i32, i32, i32) {
    %c0_i32 = arith.constant 0 : i32
    %c0_i32_0 = arith.constant 0 : i32
    %c0_i32_1 = arith.constant 0 : i32
    %c0_i32_2 = arith.constant 0 : i32
    return %c0_i32, %c0_i32_0, %c0_i32_1 : i32, i32, i32
  }
  func.func @transform_11(%arg0: i32) -> (i32, i32, i32) {
    %c0_i32 = arith.constant 0 : i32
    %c0_i32_0 = arith.constant 0 : i32
    %c0_i32_1 = arith.constant 0 : i32
    %c0_i32_2 = arith.constant 0 : i32
    return %c0_i32, %c0_i32_0, %c0_i32_1 : i32, i32, i32
  }
  func.func @transform_12(%arg0: i32) -> (i32, i32, i32) {
    %c0_i32 = arith.constant 0 : i32
    %c0_i32_0 = arith.constant 0 : i32
    %c0_i32_1 = arith.constant 0 : i32
    return %arg0, %c0_i32, %c0_i32_0 : i32, i32, i32
  }
  func.func @transform_13(%arg0: i32) -> (i32, i32, i32) {
    %c0_i32 = arith.constant 0 : i32
    %c0_i32_0 = arith.constant 0 : i32
    %c0_i32_1 = arith.constant 0 : i32
    return %arg0, %c0_i32, %c0_i32_0 : i32, i32, i32
  }
}

</mosaic_0001>

<llo_original>
// kernel: multi_task_autoencoder_forward.1
$region0: #{multi_task_autoencoder_forward.1}
  #allocation0 [shape = 'u32[]', space=smem, size = 0x4, offset = 0x4, fixed_abs, tag = 'smem constant byte address 0x4 - core index']
  #allocation1 [shape = 'u32[144,128]{1,0:T(1,128)}', space=vmem, size = 0x12000, scoped, tag = 'internal scratch']
  %s0 = inlined_call_operand.vmem [shape: f32[2,8,16], index: 0, kind: input, shape index: {}]
  %s1 = inlined_call_operand.vmem [shape: f32[16,64], index: 1, kind: input, shape index: {}]
  %s2 = inlined_call_operand.vmem [shape: f32[16,32], index: 2, kind: input, shape index: {}]
  %s3 = inlined_call_operand.vmem [shape: f32[8,32], index: 3, kind: input, shape index: {}]
  %s4 = inlined_call_operand.vmem [shape: f32[3,128], index: 4, kind: input, shape index: {}]
  %s5 = inlined_call_operand.vmem [shape: f32[33,128], index: 5, kind: input, shape index: {}]
  %s6 = inlined_call_operand.vmem [shape: f32[2,32,384], index: 6, kind: input, shape index: {}]
  %s7 = inlined_call_operand.vmem [shape: f32[2,64,32], index: 7, kind: input, shape index: {}]
  %s8 = inlined_call_operand.vmem [shape: f32[2,1,1024], index: 8, kind: input, shape index: {}]
  %s9 = inlined_call_operand.vmem [shape: f32[2,32,640], index: 9, kind: input, shape index: {}]
  %s10 = inlined_call_operand.vmem [shape: f32[2,64,32], index: 10, kind: input, shape index: {}]
  %s11 = inlined_call_operand.vmem [shape: f32[2,1,1536], index: 11, kind: input, shape index: {}]
  %s12 = inlined_call_operand.hbm [shape: f32[2,1,128], index: 12, kind: output, shape index: {0}]
  %s13 = inlined_call_operand.vmem [shape: f32[2,8,128], index: 13, kind: output, shape index: {1}]
  %14 = xla_tuple %s12, %s13
  %s15 = sld [smem:[#allocation0]]
  $region89: #{multi_task_autoencoder_forward.1} parent=0
    _
  %s17 = ssub.s32 1, %s15
  %s18 = scalar_select 0, %s17, %s15
  $region1: #{multi_task_autoencoder_forward.1} parent=0
    #allocation2 [shape = 'u8[1024]{0}', space=vmem, size = 0x400, scoped, tag = 'output window, operand 0']
    #allocation3 [shape = 's32[2]{0}', space=sflag, size = 0x8, scoped, tag = 'scoped memory for multi_task_autoencoder_forward.1']
    %19 = vsyncpa [#allocation3], 0
    %s20 = scalar_lea.sflag [#allocation3], 1
    %21 = vsyncpa %s20, 0
    loop: start=0, step=1, limit=4
    $region2: #{multi_task_autoencoder_forward.1} parent=1 // loop_pre_header
      _
    $region3: #{multi_task_autoencoder_forward.1} parent=1 // loop_header
      %s23 = sphi 0, %s27
      %p24 = scmp.ge.s32.totalorder %s23, 4
      %s33 = sphi 0, %s35
      %s36 = sphi 0, %s33
      %s37 = sphi 0, %s36
      %s53 = sphi 0, %s37
      %s57 = sphi 0, %s57
      %s59 = sphi 0, %s57
      %s60 = sphi 0, %s59
      %s74 = sphi 0, %s60
      %s78 = sphi 0, %s78
      %s80 = sphi 0, %s78
      %s81 = sphi 0, %s80
      %s95 = sphi 0, %s81
      %s99 = sphi 0, %s99
      %s101 = sphi 0, %s99
      %s102 = sphi 0, %s101
      %s116 = sphi 0, %s102
      %s120 = sphi 0, %s120
      %s122 = sphi 0, %s120
      %s123 = sphi 0, %s122
      %s137 = sphi 0, %s123
      %s141 = sphi 0, %s141
      %s143 = sphi 0, %s141
      %s144 = sphi 0, %s143
      %s158 = sphi 0, %s144
      %s162 = sphi 0, %s162
      %s164 = sphi 0, %s162
      %s165 = sphi 0, %s164
      %s179 = sphi 0, %s165
      %s183 = sphi 0, %s183
      %s185 = sphi 0, %s183
      %s186 = sphi 0, %s185
      %s200 = sphi 0, %s186
      %s204 = sphi 0, %s204
      %s206 = sphi 0, %s204
      %s207 = sphi 0, %s206
      %s221 = sphi 0, %s207
      %s225 = sphi 0, %s225
      %s227 = sphi 0, %s225
      %s228 = sphi 0, %s227
      %s242 = sphi 0, %s228
      %s246 = sphi 0, %s246
      %s248 = sphi 0, %s246
      %s249 = sphi 0, %s248
      %s263 = sphi 0, %s249
      %s267 = sphi 0, %s267
      %s269 = sphi 0, %s267
      %s270 = sphi 0, %s269
      %s284 = sphi 0, %s270
      %s290 = sphi 0, %s292
      %s293 = sphi 0, %s290
      %s294 = sphi 0, %s293
      %s310 = sphi 0, %s294
      %s316 = sphi 0, %s318
      %s319 = sphi 0, %s316
      %s320 = sphi 0, %s319
      %s336 = sphi 0, %s320
    $region4: #{multi_task_autoencoder_forward.1} parent=1 // loop_header_branch
      %26 = sbr.rel (%p24) target = $region8
    $region5: #{multi_task_autoencoder_forward.1} parent=1 // loop_body
      %s28 = ssub.s32 %s23, 1
      %s29 = ssub.s32 %s23, 2
      %s30 = sadd.s32 %s23, 1
      %s31 = ssub.s32 %s23, %s30
      %p32 = scmp.eq.s32.totalorder %s31, 0
      %s34 = sadd.s32 %s33, 1
      %s35 = scalar_select %p32, %s33, %s34
      %p38 = pneg %p32
      %p39 = scmp.eq.s32.totalorder %s23, 1
      %p40 = por %p38, %p39
      %p41 = scmp.ne.s32.totalorder %s33, %s36
      %p42 = scmp.eq.s32.totalorder %s23, 0
      %p43 = por %p41, %p42
      %p44 = scmp.ne.s32.totalorder %s33, %s36
      %p45 = scmp.eq.s32.totalorder %s28, 1
      %p46 = por %p44, %p45
      %p47 = scmp.ne.s32.totalorder %s36, %s37
      %p48 = scmp.eq.s32.totalorder %s28, 0
      %p49 = por %p47, %p48
      %p50 = scmp.ne.s32.totalorder %s36, %s37
      %p51 = scmp.eq.s32.totalorder %s29, 1
      %p52 = por %p50, %p51
      %p54 = scmp.ne.s32.totalorder %s37, %s53
      %p55 = scmp.eq.s32.totalorder %s29, 0
      %p56 = por %p54, %p55
      %s58 = sadd.s32 %s57, 1
      %p61 = scmp.eq.s32.totalorder %s23, 1
      %p62 = scmp.ne.s32.totalorder %s57, %s59
      %p63 = scmp.eq.s32.totalorder %s23, 0
      %p64 = por %p62, %p63
      %p65 = scmp.ne.s32.totalorder %s57, %s59
      %p66 = scmp.eq.s32.totalorder %s28, 1
      %p67 = por %p65, %p66
      %p68 = scmp.ne.s32.totalorder %s59, %s60
      %p69 = scmp.eq.s32.totalorder %s28, 0
      %p70 = por %p68, %p69
      %p71 = scmp.ne.s32.totalorder %s59, %s60
      %p72 = scmp.eq.s32.totalorder %s29, 1
      %p73 = por %p71, %p72
      %p75 = scmp.ne.s32.totalorder %s60, %s74
      %p76 = scmp.eq.s32.totalorder %s29, 0
      %p77 = por %p75, %p76
      %s79 = sadd.s32 %s78, 1
      %p82 = scmp.eq.s32.totalorder %s23, 1
      %p83 = scmp.ne.s32.totalorder %s78, %s80
      %p84 = scmp.eq.s32.totalorder %s23, 0
      %p85 = por %p83, %p84
      %p86 = scmp.ne.s32.totalorder %s78, %s80
      %p87 = scmp.eq.s32.totalorder %s28, 1
      %p88 = por %p86, %p87
      %p89 = scmp.ne.s32.totalorder %s80, %s81
      %p90 = scmp.eq.s32.totalorder %s28, 0
      %p91 = por %p89, %p90
      %p92 = scmp.ne.s32.totalorder %s80, %s81
      %p93 = scmp.eq.s32.totalorder %s29, 1
      %p94 = por %p92, %p93
      %p96 = scmp.ne.s32.totalorder %s81, %s95
      %p97 = scmp.eq.s32.totalorder %s29, 0
      %p98 = por %p96, %p97
      %s100 = sadd.s32 %s99, 1
      %p103 = scmp.eq.s32.totalorder %s23, 1
      %p104 = scmp.ne.s32.totalorder %s99, %s101
      %p105 = scmp.eq.s32.totalorder %s23, 0
      %p106 = por %p104, %p105
      %p107 = scmp.ne.s32.totalorder %s99, %s101
      %p108 = scmp.eq.s32.totalorder %s28, 1
      %p109 = por %p107, %p108
      %p110 = scmp.ne.s32.totalorder %s101, %s102
      %p111 = scmp.eq.s32.totalorder %s28, 0
      %p112 = por %p110, %p111
      %p113 = scmp.ne.s32.totalorder %s101, %s102
      %p114 = scmp.eq.s32.totalorder %s29, 1
      %p115 = por %p113, %p114
      %p117 = scmp.ne.s32.totalorder %s102, %s116
      %p118 = scmp.eq.s32.totalorder %s29, 0
      %p119 = por %p117, %p118
      %s121 = sadd.s32 %s120, 1
      %p124 = scmp.eq.s32.totalorder %s23, 1
      %p125 = scmp.ne.s32.totalorder %s120, %s122
      %p126 = scmp.eq.s32.totalorder %s23, 0
      %p127 = por %p125, %p126
      %p128 = scmp.ne.s32.totalorder %s120, %s122
      %p129 = scmp.eq.s32.totalorder %s28, 1
      %p130 = por %p128, %p129
      %p131 = scmp.ne.s32.totalorder %s122, %s123
      %p132 = scmp.eq.s32.totalorder %s28, 0
      %p133 = por %p131, %p132
      %p134 = scmp.ne.s32.totalorder %s122, %s123
      %p135 = scmp.eq.s32.totalorder %s29, 1
      %p136 = por %p134, %p135
      %p138 = scmp.ne.s32.totalorder %s123, %s137
      %p139 = scmp.eq.s32.totalorder %s29, 0
      %p140 = por %p138, %p139
      %s142 = sadd.s32 %s141, 1
      %p145 = scmp.eq.s32.totalorder %s23, 1
      %p146 = scmp.ne.s32.totalorder %s141, %s143
      %p147 = scmp.eq.s32.totalorder %s23, 0
      %p148 = por %p146, %p147
      %p149 = scmp.ne.s32.totalorder %s141, %s143
      %p150 = scmp.eq.s32.totalorder %s28, 1
      %p151 = por %p149, %p150
      %p152 = scmp.ne.s32.totalorder %s143, %s144
      %p153 = scmp.eq.s32.totalorder %s28, 0
      %p154 = por %p152, %p153
      %p155 = scmp.ne.s32.totalorder %s143, %s144
      %p156 = scmp.eq.s32.totalorder %s29, 1
      %p157 = por %p155, %p156
      %p159 = scmp.ne.s32.totalorder %s144, %s158
      %p160 = scmp.eq.s32.totalorder %s29, 0
      %p161 = por %p159, %p160
      %s163 = sadd.s32 %s162, 1
      %p166 = scmp.eq.s32.totalorder %s23, 1
      %p167 = scmp.ne.s32.totalorder %s162, %s164
      %p168 = scmp.eq.s32.totalorder %s23, 0
      %p169 = por %p167, %p168
      %p170 = scmp.ne.s32.totalorder %s162, %s164
      %p171 = scmp.eq.s32.totalorder %s28, 1
      %p172 = por %p170, %p171
      %p173 = scmp.ne.s32.totalorder %s164, %s165
      %p174 = scmp.eq.s32.totalorder %s28, 0
      %p175 = por %p173, %p174
      %p176 = scmp.ne.s32.totalorder %s164, %s165
      %p177 = scmp.eq.s32.totalorder %s29, 1
      %p178 = por %p176, %p177
      %p180 = scmp.ne.s32.totalorder %s165, %s179
      %p181 = scmp.eq.s32.totalorder %s29, 0
      %p182 = por %p180, %p181
      %s184 = sadd.s32 %s183, 1
      %p187 = scmp.eq.s32.totalorder %s23, 1
      %p188 = scmp.ne.s32.totalorder %s183, %s185
      %p189 = scmp.eq.s32.totalorder %s23, 0
      %p190 = por %p188, %p189
      %p191 = scmp.ne.s32.totalorder %s183, %s185
      %p192 = scmp.eq.s32.totalorder %s28, 1
      %p193 = por %p191, %p192
      %p194 = scmp.ne.s32.totalorder %s185, %s186
      %p195 = scmp.eq.s32.totalorder %s28, 0
      %p196 = por %p194, %p195
      %p197 = scmp.ne.s32.totalorder %s185, %s186
      %p198 = scmp.eq.s32.totalorder %s29, 1
      %p199 = por %p197, %p198
      %p201 = scmp.ne.s32.totalorder %s186, %s200
      %p202 = scmp.eq.s32.totalorder %s29, 0
      %p203 = por %p201, %p202
      %s205 = sadd.s32 %s204, 1
      %p208 = scmp.eq.s32.totalorder %s23, 1
      %p209 = scmp.ne.s32.totalorder %s204, %s206
      %p210 = scmp.eq.s32.totalorder %s23, 0
      %p211 = por %p209, %p210
      %p212 = scmp.ne.s32.totalorder %s204, %s206
      %p213 = scmp.eq.s32.totalorder %s28, 1
      %p214 = por %p212, %p213
      %p215 = scmp.ne.s32.totalorder %s206, %s207
      %p216 = scmp.eq.s32.totalorder %s28, 0
      %p217 = por %p215, %p216
      %p218 = scmp.ne.s32.totalorder %s206, %s207
      %p219 = scmp.eq.s32.totalorder %s29, 1
      %p220 = por %p218, %p219
      %p222 = scmp.ne.s32.totalorder %s207, %s221
      %p223 = scmp.eq.s32.totalorder %s29, 0
      %p224 = por %p222, %p223
      %s226 = sadd.s32 %s225, 1
      %p229 = scmp.eq.s32.totalorder %s23, 1
      %p230 = scmp.ne.s32.totalorder %s225, %s227
      %p231 = scmp.eq.s32.totalorder %s23, 0
      %p232 = por %p230, %p231
      %p233 = scmp.ne.s32.totalorder %s225, %s227
      %p234 = scmp.eq.s32.totalorder %s28, 1
      %p235 = por %p233, %p234
      %p236 = scmp.ne.s32.totalorder %s227, %s228
      %p237 = scmp.eq.s32.totalorder %s28, 0
      %p238 = por %p236, %p237
      %p239 = scmp.ne.s32.totalorder %s227, %s228
      %p240 = scmp.eq.s32.totalorder %s29, 1
      %p241 = por %p239, %p240
      %p243 = scmp.ne.s32.totalorder %s228, %s242
      %p244 = scmp.eq.s32.totalorder %s29, 0
      %p245 = por %p243, %p244
      %s247 = sadd.s32 %s246, 1
      %p250 = scmp.eq.s32.totalorder %s23, 1
      %p251 = scmp.ne.s32.totalorder %s246, %s248
      %p252 = scmp.eq.s32.totalorder %s23, 0
      %p253 = por %p251, %p252
      %p254 = scmp.ne.s32.totalorder %s246, %s248
      %p255 = scmp.eq.s32.totalorder %s28, 1
      %p256 = por %p254, %p255
      %p257 = scmp.ne.s32.totalorder %s248, %s249
      %p258 = scmp.eq.s32.totalorder %s28, 0
      %p259 = por %p257, %p258
      %p260 = scmp.ne.s32.totalorder %s248, %s249
      %p261 = scmp.eq.s32.totalorder %s29, 1
      %p262 = por %p260, %p261
      %p264 = scmp.ne.s32.totalorder %s249, %s263
      %p265 = scmp.eq.s32.totalorder %s29, 0
      %p266 = por %p264, %p265
      %s268 = sadd.s32 %s267, 1
      %p271 = scmp.eq.s32.totalorder %s23, 1
      %p272 = scmp.ne.s32.totalorder %s267, %s269
      %p273 = scmp.eq.s32.totalorder %s23, 0
      %p274 = por %p272, %p273
      %p275 = scmp.ne.s32.totalorder %s267, %s269
      %p276 = scmp.eq.s32.totalorder %s28, 1
      %p277 = por %p275, %p276
      %p278 = scmp.ne.s32.totalorder %s269, %s270
      %p279 = scmp.eq.s32.totalorder %s28, 0
      %p280 = por %p278, %p279
      %p281 = scmp.ne.s32.totalorder %s269, %s270
      %p282 = scmp.eq.s32.totalorder %s29, 1
      %p283 = por %p281, %p282
      %p285 = scmp.ne.s32.totalorder %s270, %s284
      %p286 = scmp.eq.s32.totalorder %s29, 0
      %p287 = por %p285, %p286
      %s288 = ssub.s32 %s23, %s30
      %p289 = scmp.eq.s32.totalorder %s288, 0
      %s291 = sadd.s32 %s290, 1
      %s292 = scalar_select %p289, %s290, %s291
      %p295 = pneg %p289
      %p296 = scmp.eq.s32.totalorder %s23, 1
      %p297 = por %p295, %p296
      %p298 = scmp.ne.s32.totalorder %s290, %s293
      %p299 = scmp.eq.s32.totalorder %s23, 0
      %p300 = por %p298, %p299
      %p301 = scmp.ne.s32.totalorder %s290, %s293
      %p302 = scmp.eq.s32.totalorder %s28, 1
      %p303 = por %p301, %p302
      %p304 = scmp.ne.s32.totalorder %s293, %s294
      %p305 = scmp.eq.s32.totalorder %s28, 0
      %p306 = por %p304, %p305
      %p307 = scmp.ne.s32.totalorder %s293, %s294
      %p308 = scmp.eq.s32.totalorder %s29, 1
      %p309 = por %p307, %p308
      %p311 = scmp.ne.s32.totalorder %s294, %s310
      %p312 = scmp.eq.s32.totalorder %s29, 0
      %p313 = por %p311, %p312
      %s314 = ssub.s32 %s23, %s30
      %p315 = scmp.eq.s32.totalorder %s314, 0
      %s317 = sadd.s32 %s316, 1
      %s318 = scalar_select %p315, %s316, %s317
      %p321 = pneg %p315
      %p322 = scmp.eq.s32.totalorder %s23, 1
      %p323 = por %p321, %p322
      %p324 = scmp.ne.s32.totalorder %s316, %s319
      %p325 = scmp.eq.s32.totalorder %s23, 0
      %p326 = por %p324, %p325
      %p327 = scmp.ne.s32.totalorder %s316, %s319
      %p328 = scmp.eq.s32.totalorder %s28, 1
      %p329 = por %p327, %p328
      %p330 = scmp.ne.s32.totalorder %s319, %s320
      %p331 = scmp.eq.s32.totalorder %s28, 0
      %p332 = por %p330, %p331
      %p333 = scmp.ne.s32.totalorder %s319, %s320
      %p334 = scmp.eq.s32.totalorder %s29, 1
      %p335 = por %p333, %p334
      %p337 = scmp.ne.s32.totalorder %s320, %s336
      %p338 = scmp.eq.s32.totalorder %s29, 0
      %p339 = por %p337, %p338
      %p340 = scmp.le.s32.totalorder 1, %s23
      %p341 = scmp.lt.s32.totalorder %s23, 3
      %p342 = pnand %p340, %p341
      %p343 = pneg %p342
      // Predicated region
      $region9: #{multi_task_autoencoder_forward.1} parent=5 // pred_check
        _
      $region10: #{multi_task_autoencoder_forward.1} parent=5 // pred_check_branch
        %345 = sbr.rel (%p342) target = $region12
      $region11: #{multi_task_autoencoder_forward.1} parent=5 // pred_region
        %s346 = ssub.s32 %s23, 1
        // Predicated region
        $region13: #{multi_task_autoencoder_forward.1} parent=11 // pred_check
          %p347 = pneg %p70
        $region14: #{multi_task_autoencoder_forward.1} parent=11 // pred_check_branch
          %349 = sbr.rel (%p347) target = $region16
        $region15: #{multi_task_autoencoder_forward.1} parent=11 // pred_region
          _
        $region16: #{multi_task_autoencoder_forward.1} parent=11 // pred_fallthru
          _
        // Predicated region
        $region17: #{multi_task_autoencoder_forward.1} parent=11 // pred_check
          %p350 = pneg %p91
        $region18: #{multi_task_autoencoder_forward.1} parent=11 // pred_check_branch
          %352 = sbr.rel (%p350) target = $region20
        $region19: #{multi_task_autoencoder_forward.1} parent=11 // pred_region
          _
        $region20: #{multi_task_autoencoder_forward.1} parent=11 // pred_fallthru
          _
        // Predicated region
        $region21: #{multi_task_autoencoder_forward.1} parent=11 // pred_check
          %p353 = pneg %p112
        $region22: #{multi_task_autoencoder_forward.1} parent=11 // pred_check_branch
          %355 = sbr.rel (%p353) target = $region24
        $region23: #{multi_task_autoencoder_forward.1} parent=11 // pred_region
          _
        $region24: #{multi_task_autoencoder_forward.1} parent=11 // pred_fallthru
          _
        // Predicated region
        $region25: #{multi_task_autoencoder_forward.1} parent=11 // pred_check
          %p356 = pneg %p133
        $region26: #{multi_task_autoencoder_forward.1} parent=11 // pred_check_branch
          %358 = sbr.rel (%p356) target = $region28
        $region27: #{multi_task_autoencoder_forward.1} parent=11 // pred_region
          _
        $region28: #{multi_task_autoencoder_forward.1} parent=11 // pred_fallthru
          _
        // Predicated region
        $region29: #{multi_task_autoencoder_forward.1} parent=11 // pred_check
          %p359 = pneg %p154
        $region30: #{multi_task_autoencoder_forward.1} parent=11 // pred_check_branch
          %361 = sbr.rel (%p359) target = $region32
        $region31: #{multi_task_autoencoder_forward.1} parent=11 // pred_region
          _
        $region32: #{multi_task_autoencoder_forward.1} parent=11 // pred_fallthru
          _
        // Predicated region
        $region33: #{multi_task_autoencoder_forward.1} parent=11 // pred_check
          %p362 = pneg %p175
        $region34: #{multi_task_autoencoder_forward.1} parent=11 // pred_check_branch
          %364 = sbr.rel (%p362) target = $region36
        $region35: #{multi_task_autoencoder_forward.1} parent=11 // pred_region
          _
        $region36: #{multi_task_autoencoder_forward.1} parent=11 // pred_fallthru
          _
        // Predicated region
        $region37: #{multi_task_autoencoder_forward.1} parent=11 // pred_check
          %p365 = pneg %p196
        $region38: #{multi_task_autoencoder_forward.1} parent=11 // pred_check_branch
          %367 = sbr.rel (%p365) target = $region40
        $region39: #{multi_task_autoencoder_forward.1} parent=11 // pred_region
          _
        $region40: #{multi_task_autoencoder_forward.1} parent=11 // pred_fallthru
          _
        // Predicated region
        $region41: #{multi_task_autoencoder_forward.1} parent=11 // pred_check
          %p368 = pneg %p217
        $region42: #{multi_task_autoencoder_forward.1} parent=11 // pred_check_branch
          %370 = sbr.rel (%p368) target = $region44
        $region43: #{multi_task_autoencoder_forward.1} parent=11 // pred_region
          _
        $region44: #{multi_task_autoencoder_forward.1} parent=11 // pred_fallthru
          _
        // Predicated region
        $region45: #{multi_task_autoencoder_forward.1} parent=11 // pred_check
          %p371 = pneg %p238
        $region46: #{multi_task_autoencoder_forward.1} parent=11 // pred_check_branch
          %373 = sbr.rel (%p371) target = $region48
        $region47: #{multi_task_autoencoder_forward.1} parent=11 // pred_region
          _
        $region48: #{multi_task_autoencoder_forward.1} parent=11 // pred_fallthru
          _
        // Predicated region
        $region49: #{multi_task_autoencoder_forward.1} parent=11 // pred_check
          %p374 = pneg %p259
        $region50: #{multi_task_autoencoder_forward.1} parent=11 // pred_check_branch
          %376 = sbr.rel (%p374) target = $region52
        $region51: #{multi_task_autoencoder_forward.1} parent=11 // pred_region
          _
        $region52: #{multi_task_autoencoder_forward.1} parent=11 // pred_fallthru
          _
        // Predicated region
        $region53: #{multi_task_autoencoder_forward.1} parent=11 // pred_check
          %p377 = pneg %p280
        $region54: #{multi_task_autoencoder_forward.1} parent=11 // pred_check_branch
          %379 = sbr.rel (%p377) target = $region56
        $region55: #{multi_task_autoencoder_forward.1} parent=11 // pred_region
          _
        $region56: #{multi_task_autoencoder_forward.1} parent=11 // pred_fallthru
          _
      $region12: #{multi_task_autoencoder_forward.1} parent=5 // pred_fallthru
        _
      %p380 = scmp.lt.s32.totalorder %s23, 2
      // Predicated region
      $region57: #{multi_task_autoencoder_forward.1} parent=5 // pred_check
        %p381 = pneg %p380
      $region58: #{multi_task_autoencoder_forward.1} parent=5 // pred_check_branch
        %383 = sbr.rel (%p381) target = $region60
      $region59: #{multi_task_autoencoder_forward.1} parent=5 // pred_region
        // Predicated region
        $region61: #{multi_task_autoencoder_forward.1} parent=59 // pred_check
          %p384 = pneg %p43
        $region62: #{multi_task_autoencoder_forward.1} parent=59 // pred_check_branch
          %386 = sbr.rel (%p384) target = $region64
        $region63: #{multi_task_autoencoder_forward.1} parent=59 // pred_region
          %p387 = scmp.lt.s32.totalorder %s23, 1
          %s388 = scalar_select %p387, %s23, 1
          %s389 = smul.addr %s388, 8
          %s390 = scalar_lea.vmem %s0, %s389
        $region64: #{multi_task_autoencoder_forward.1} parent=59 // pred_fallthru
          _
      $region60: #{multi_task_autoencoder_forward.1} parent=5 // pred_fallthru
        _
      %p391 = scmp.le.s32.totalorder 1, %s23
      %p392 = scmp.lt.s32.totalorder %s23, 3
      %p393 = pnand %p391, %p392
      %p394 = pneg %p393
      // Predicated region
      $region65: #{multi_task_autoencoder_forward.1} parent=5 // pred_check
        _
      $region66: #{multi_task_autoencoder_forward.1} parent=5 // pred_check_branch
        %396 = sbr.rel (%p393) target = $region68
      $region67: #{multi_task_autoencoder_forward.1} parent=5 // pred_region
        %s397 = ssub.s32 %s23, 1
        %p398 = scmp.lt.s32.totalorder %s28, 1
        %s399 = scalar_select %p398, %s28, 1
        %s400 = smul.addr %s399, 8
        %s401 = scalar_lea.vmem %s0, %s400
        %p402 = pneg %p49
        %p403 = pneg %p46
        %p404 = pneg %p70
        %p405 = pneg %p67
        %p406 = pneg %p91
        %p407 = pneg %p88
        %p408 = pneg %p112
        %p409 = pneg %p109
        %p410 = pneg %p133
        %p411 = pneg %p130
        %p412 = pneg %p154
        %p413 = pneg %p151
        %p414 = pneg %p175
        %p415 = pneg %p172
        %p416 = pneg %p196
        %p417 = pneg %p193
        %p418 = pneg %p217
        %p419 = pneg %p214
        %p420 = pneg %p238
        %p421 = pneg %p235
        %p422 = pneg %p259
        %p423 = pneg %p256
        %p424 = pneg %p280
        %p425 = pneg %p277
        %p426 = pneg %p306
        %p427 = pneg %p303
        %s428 = sand.u32 %s293, 1
        %s429 = scalar_lea.sflag [#allocation3], %s428
        %s430 = sand.u32 %s293, 1
        %s431 = scalar_lea.vmem [#allocation2], %s430
        %p432 = pneg %p332
        %p433 = pneg %p329
        %p434 = scmp.lt.s32.totalorder %s28, 1
        %s435 = scalar_select %p434, %s28, 1
        %s436 = smul.addr %s435, 8
        %s437 = scalar_lea.vmem %s13, %s436
        %p438 = scmp.lt.s32.totalorder %s28, 1
        %s439 = scalar_select %p438, %s28, 1
        %s440 = smul.addr %s439, 8
        %s441 = scalar_lea.vmem %s0, %s440
        %p442 = scmp.lt.s32.totalorder %s28, 1
        %s443 = scalar_select %p442, %s28, 1
        %s444 = smul.addr %s443, 8
        %s445 = scalar_lea.vmem %s13, %s444
        %v446 = vld [vmem:[%s441] sm:$0xff]
        %v447 = vld [vmem:[%s1] sm:$0xff]
        %v448 = vld [vmem:[%s1 + $0x8] sm:$0xff]
        %vm449 = vcmask 130048
        %v451 = vsel %vm449, %v446, 0
        %453 = vmatprep.subr.mxu0 0.0
        %454 = vmatpush1.msra.mxu0 %v447
        %455 = vmatprep.subr.mxu0 0.0
        %456 = vmatpush1.msra.mxu0 %v448
        %457 = vmatprep.subr.mxu0 0.0
        %458 = vmatpush1.msra.mxu0 0.0
        %459 = vmatprep.subr.mxu0 0.0
        %460 = vmatpush1.msra.mxu0 0.0
        %461 = vmatprep.subr.mxu0 0.0
        %462 = vmatpush1.msra.mxu0 0.0
        %463 = vmatprep.subr.mxu0 0.0
        %464 = vmatpush1.msra.mxu0 0.0
        %465 = vmatprep.subr.mxu0 0.0
        %466 = vmatpush1.msra.mxu0 0.0
        %467 = vmatprep.subr.mxu0 0.0
        %468 = vmatpush1.msra.mxu0 0.0
        %469 = vmatprep.subr.mxu0 0.0
        %470 = vmatpush1.msra.mxu0 0.0
        %471 = vmatprep.subr.mxu0 0.0
        %472 = vmatpush1.msra.mxu0 0.0
        %473 = vmatprep.subr.mxu0 0.0
        %474 = vmatpush1.msra.mxu0 0.0
        %475 = vmatprep.subr.mxu0 0.0
        %476 = vmatpush1.msra.mxu0 0.0
        %477 = vmatprep.subr.mxu0 0.0
        %478 = vmatpush1.msra.mxu0 0.0
        %479 = vmatprep.subr.mxu0 0.0
        %480 = vmatpush1.msra.mxu0 0.0
        %481 = vmatprep.subr.mxu0 0.0
        %482 = vmatpush1.msra.mxu0 0.0
        %483 = vmatprep.subr.mxu0 0.0
        %484 = vmatpush1.msra.mxu0 0.0
        %485 = vmatprep.subr.mxu0 0.0
        %486 = vmatpush1.msra.mxu0 0.0
        %487 = vmatprep.subr.mxu0 0.0
        %488 = vmatpush1.msra.mxu0 0.0
        %489 = vmatprep.subr.mxu0 0.0
        %490 = vmatpush1.msra.mxu0 0.0
        %491 = vmatprep.subr.mxu0 0.0
        %492 = vmatpush1.msra.mxu0 0.0
        %493 = vmatprep.subr.mxu0 0.0
        %494 = vmatpush1.msra.mxu0 0.0
        %495 = vmatprep.subr.mxu0 0.0
        %496 = vmatpush1.msra.mxu0 0.0
        %497 = vmatprep.subr.mxu0 0.0
        %498 = vmatpush1.msra.mxu0 0.0
        %499 = vmatprep.subr.mxu0 0.0
        %500 = vmatpush1.msra.mxu0 0.0
        %501 = vmatprep.subr.mxu0 0.0
        %502 = vmatpush1.msra.mxu0 0.0
        %503 = vmatprep.subr.mxu0 0.0
        %504 = vmatpush1.msra.mxu0 0.0
        %505 = vmatprep.subr.mxu0 0.0
        %506 = vmatpush1.msra.mxu0 0.0
        %507 = vmatprep.subr.mxu0 0.0
        %508 = vmatpush1.msra.mxu0 0.0
        %509 = vmatprep.subr.mxu0 0.0
        %510 = vmatpush1.msra.mxu0 0.0
        %511 = vmatprep.subr.mxu0 0.0
        %512 = vmatpush1.msra.mxu0 0.0
        %513 = vmatprep.subr.mxu0 0.0
        %514 = vmatpush1.msra.mxu0 0.0
        %515 = vmatprep.subr.mxu0 0.0
        %516 = vmatpush1.msra.mxu0 0.0
        %517 = vmatprep.mubr.f32.mxu0 0.0
        %518 = vmatmul.mubr.f32.gmra.mrb[0].mxu0 %v451
        %v519 = vpop.f32.mrb[0].mxu0
        %v520 = vadd.f32 0.0, %v519
        %v521 = vpop.f32.mrb[0].mxu0
        %522 = vdwg.mxu0
        %524 = vrot.lane.b32.xlu0 %v520, 96
        %v525 = vpop.permute.xlu0 %524
        %v527 = vadd.f32 %v520, %v525
        %v528 = vld [vmem:[%s2] sm:$0xff]
        %v529 = vld [vmem:[%s2 + $0x8] sm:$0xff]
        %v531 = vrot.slane %v527, 7
        %vm533 = vcmask 1040384
        %v534 = vsel %vm533, 0.0, %v531
        %v535 = vsel %vm533, %v531, 0.0
        %v536 = vadd.f32 %v528, %v534
        %v537 = vadd.f32 %v529, %v535
        %v538 = vld [vmem:[%s4] sm:$0x1]
        %v539 = vld [vmem:[%s6] sm:$0xff]
        %v540 = vld [vmem:[%s6 + $0x18] sm:$0xff]
        %v541 = vld [vmem:[%s6 + $0x30] sm:$0xff]
        %v542 = vld [vmem:[%s6 + $0x48] sm:$0xff]
        %v543 = vld [vmem:[%s6 + $0x8] sm:$0xff]
        %v544 = vld [vmem:[%s6 + $0x20] sm:$0xff]
        %v545 = vld [vmem:[%s6 + $0x38] sm:$0xff]
        %v546 = vld [vmem:[%s6 + $0x50] sm:$0xff]
        %v547 = vld [vmem:[%s6 + $0x10] sm:$0xff]
        %v548 = vld [vmem:[%s6 + $0x28] sm:$0xff]
        %v549 = vld [vmem:[%s6 + $0x40] sm:$0xff]
        %v550 = vld [vmem:[%s6 + $0x58] sm:$0xff]
        %v551 = vld [vmem:[%s7] sm:$0xff]
        %v552 = vld [vmem:[%s7 + $0x8] sm:$0xff]
        %v553 = vld [vmem:[%s7 + $0x10] sm:$0xff]
        %v554 = vld [vmem:[%s7 + $0x18] sm:$0xff]
        %v555 = vld [vmem:[%s7 + $0x20] sm:$0xff]
        %v556 = vld [vmem:[%s7 + $0x28] sm:$0xff]
        %v557 = vld [vmem:[%s7 + $0x30] sm:$0xff]
        %v558 = vld [vmem:[%s7 + $0x38] sm:$0xff]
        %v559 = vld [vmem:[%s8] sm:$0x1]
        %v560 = vld [vmem:[%s8 + $0x1] sm:$0x1]
        %v561 = vld [vmem:[%s8 + $0x2] sm:$0x1]
        %v562 = vld [vmem:[%s8 + $0x3] sm:$0x1]
        %v563 = vld [vmem:[%s8 + $0x4] sm:$0x1]
        %v564 = vld [vmem:[%s8 + $0x5] sm:$0x1]
        %v565 = vld [vmem:[%s8 + $0x6] sm:$0x1]
        %v566 = vld [vmem:[%s8 + $0x7] sm:$0x1]
        %v568 = vlaneseq
        %v569 = vshrl.u32 %v568, 7
        %v570 = vsub.s32 0, %v569
        %v571 = vrot.slane %v559, %v570
        %vm573 = vcmask 261120
        %v575 = vsel %vm573, %v536, 0
        %v578 = vsel %vm573, %v537, 0
        %580 = vmatprep.subr.mxu0 0.0
        %581 = vmatpush1.msra.mxu0 %v539
        %582 = vmatprep.subr.mxu0 0.0
        %583 = vmatpush1.msra.mxu0 %v540
        %584 = vmatprep.subr.mxu0 0.0
        %585 = vmatpush1.msra.mxu0 %v541
        %586 = vmatprep.subr.mxu0 0.0
        %587 = vmatpush1.msra.mxu0 %v542
        %588 = vmatprep.subr.mxu0 0.0
        %589 = vmatpush1.msra.mxu0 0.0
        %590 = vmatprep.subr.mxu0 0.0
        %591 = vmatpush1.msra.mxu0 0.0
        %592 = vmatprep.subr.mxu0 0.0
        %593 = vmatpush1.msra.mxu0 0.0
        %594 = vmatprep.subr.mxu0 0.0
        %595 = vmatpush1.msra.mxu0 0.0
        %596 = vmatprep.subr.mxu0 0.0
        %597 = vmatpush1.msra.mxu0 0.0
        %598 = vmatprep.subr.mxu0 0.0
        %599 = vmatpush1.msra.mxu0 0.0
        %600 = vmatprep.subr.mxu0 0.0
        %601 = vmatpush1.msra.mxu0 0.0
        %602 = vmatprep.subr.mxu0 0.0
        %603 = vmatpush1.msra.mxu0 0.0
        %604 = vmatprep.subr.mxu0 0.0
        %605 = vmatpush1.msra.mxu0 0.0
        %606 = vmatprep.subr.mxu0 0.0
        %607 = vmatpush1.msra.mxu0 0.0
        %608 = vmatprep.subr.mxu0 0.0
        %609 = vmatpush1.msra.mxu0 0.0
        %610 = vmatprep.subr.mxu0 0.0
        %611 = vmatpush1.msra.mxu0 0.0
        %612 = vmatprep.subr.mxu0 0.0
        %613 = vmatpush1.msra.mxu0 0.0
        %614 = vmatprep.subr.mxu0 0.0
        %615 = vmatpush1.msra.mxu0 0.0
        %616 = vmatprep.subr.mxu0 0.0
        %617 = vmatpush1.msra.mxu0 0.0
        %618 = vmatprep.subr.mxu0 0.0
        %619 = vmatpush1.msra.mxu0 0.0
        %620 = vmatprep.subr.mxu0 0.0
        %621 = vmatpush1.msra.mxu0 0.0
        %622 = vmatprep.subr.mxu0 0.0
        %623 = vmatpush1.msra.mxu0 0.0
        %624 = vmatprep.subr.mxu0 0.0
        %625 = vmatpush1.msra.mxu0 0.0
        %626 = vmatprep.subr.mxu0 0.0
        %627 = vmatpush1.msra.mxu0 0.0
        %628 = vmatprep.subr.mxu0 0.0
        %629 = vmatpush1.msra.mxu0 0.0
        %630 = vmatprep.subr.mxu0 0.0
        %631 = vmatpush1.msra.mxu0 0.0
        %632 = vmatprep.subr.mxu0 0.0
        %633 = vmatpush1.msra.mxu0 0.0
        %634 = vmatprep.subr.mxu0 0.0
        %635 = vmatpush1.msra.mxu0 0.0
        %636 = vmatprep.subr.mxu0 0.0
        %637 = vmatpush1.msra.mxu0 0.0
        %638 = vmatprep.subr.mxu0 0.0
        %639 = vmatpush1.msra.mxu0 0.0
        %640 = vmatprep.subr.mxu0 0.0
        %641 = vmatpush1.msra.mxu0 0.0
        %642 = vmatprep.subr.mxu0 0.0
        %643 = vmatpush1.msra.mxu0 0.0
        %644 = vmatprep.mubr.f32.mxu0 0.0
        %645 = vmatmul.mubr.f32.gmra.mrb[0].mxu0 %v575
        %v646 = vpop.f32.mrb[0].mxu0
        %v647 = vadd.f32 %v571, %v646
        %v648 = vpop.f32.mrb[0].mxu0
        %649 = vmatprep.mubr.f32.mxu0 0.0
        %650 = vmatmul.mubr.f32.gmra.mrb[0].mxu0 %v578
        %v651 = vpop.f32.mrb[0].mxu0
        %v652 = vadd.f32 %v571, %v651
        %v653 = vpop.f32.mrb[0].mxu0
        %654 = vdwg.mxu0
        %v655 = vmul.f32 %v647, 0.35355338
        %v656 = vmul.f32 %v652, 0.35355338
        %v657 = vlaneseq
        %v658 = vshrl.u32 %v657, 7
        %v659 = vsub.s32 0, %v658
        %v660 = vrot.slane %v538, %v659
        %663 = vrot.lane.b32.xlu0 %v647, 96
        %v664 = vpop.permute.xlu0 %663
        %665 = vrot.lane.b32.xlu0 %v652, 96
        %v666 = vpop.permute.xlu0 %665
        %vm667 = vcmask 64512
        %v669 = vsel %vm667, %v655, 0
        %v672 = vsel %vm667, %v656, 0
        %v674 = vsel %vm667, %v664, 0
        %v676 = vsel %vm667, %v666, 0
        %678 = vmatprep.subr.mxu0 0.0
        %679 = vmatpush1.xpose.msra.mxu0 %v674
        %680 = vmatprep.subr.mxu0 0.0
        %681 = vmatpush1.xpose.msra.mxu0 %v676
        %682 = vmatprep.subr.mxu0 0.0
        %683 = vmatpush1.xpose.msra.mxu0 0.0
        %684 = vmatprep.subr.mxu0 0.0
        %685 = vmatpush1.xpose.msra.mxu0 0.0
        %686 = vmatprep.subr.mxu0 0.0
        %687 = vmatpush1.xpose.msra.mxu0 0.0
        %688 = vmatprep.subr.mxu0 0.0
        %689 = vmatpush1.xpose.msra.mxu0 0.0
        %690 = vmatprep.subr.mxu0 0.0
        %691 = vmatpush1.xpose.msra.mxu0 0.0
        %692 = vmatprep.subr.mxu0 0.0
        %693 = vmatpush1.xpose.msra.mxu0 0.0
        %694 = vmatprep.subr.mxu0 0.0
        %695 = vmatpush1.xpose.msra.mxu0 0.0
        %696 = vmatprep.subr.mxu0 0.0
        %697 = vmatpush1.xpose.msra.mxu0 0.0
        %698 = vmatprep.subr.mxu0 0.0
        %699 = vmatpush1.xpose.msra.mxu0 0.0
        %700 = vmatprep.subr.mxu0 0.0
        %701 = vmatpush1.xpose.msra.mxu0 0.0
        %702 = vmatprep.subr.mxu0 0.0
        %703 = vmatpush1.xpose.msra.mxu0 0.0
        %704 = vmatprep.subr.mxu0 0.0
        %705 = vmatpush1.xpose.msra.mxu0 0.0
        %706 = vmatprep.subr.mxu0 0.0
        %707 = vmatpush1.xpose.msra.mxu0 0.0
        %708 = vmatprep.subr.mxu0 0.0
        %709 = vmatpush1.xpose.msra.mxu0 0.0
        %710 = vmatprep.subr.mxu0 0.0
        %711 = vmatpush1.xpose.msra.mxu0 0.0
        %712 = vmatprep.subr.mxu0 0.0
        %713 = vmatpush1.xpose.msra.mxu0 0.0
        %714 = vmatprep.subr.mxu0 0.0
        %715 = vmatpush1.xpose.msra.mxu0 0.0
        %716 = vmatprep.subr.mxu0 0.0
        %717 = vmatpush1.xpose.msra.mxu0 0.0
        %718 = vmatprep.subr.mxu0 0.0
        %719 = vmatpush1.xpose.msra.mxu0 0.0
        %720 = vmatprep.subr.mxu0 0.0
        %721 = vmatpush1.xpose.msra.mxu0 0.0
        %722 = vmatprep.subr.mxu0 0.0
        %723 = vmatpush1.xpose.msra.mxu0 0.0
        %724 = vmatprep.subr.mxu0 0.0
        %725 = vmatpush1.xpose.msra.mxu0 0.0
        %726 = vmatprep.subr.mxu0 0.0
        %727 = vmatpush1.xpose.msra.mxu0 0.0
        %728 = vmatprep.subr.mxu0 0.0
        %729 = vmatpush1.xpose.msra.mxu0 0.0
        %730 = vmatprep.subr.mxu0 0.0
        %731 = vmatpush1.xpose.msra.mxu0 0.0
        %732 = vmatprep.subr.mxu0 0.0
        %733 = vmatpush1.xpose.msra.mxu0 0.0
        %734 = vmatprep.subr.mxu0 0.0
        %735 = vmatpush1.xpose.msra.mxu0 0.0
        %736 = vmatprep.subr.mxu0 0.0
        %737 = vmatpush1.xpose.msra.mxu0 0.0
        %738 = vmatprep.subr.mxu0 0.0
        %739 = vmatpush1.xpose.msra.mxu0 0.0
        %740 = vmatprep.subr.mxu0 0.0
        %741 = vmatpush1.xpose.msra.mxu0 0.0
        %742 = vmatprep.mubr.f32.mxu0 0.0
        %743 = vmatmul.mubr.f32.gmra.mrb[0].mxu0 %v669
        %v744 = vpop.f32.mrb[0].mxu0
        %v745 = vadd.f32 %v660, %v744
        %v746 = vpop.f32.mrb[0].mxu0
        %747 = vmatprep.mubr.f32.mxu0 0.0
        %748 = vmatmul.mubr.f32.gmra.mrb[0].mxu0 %v672
        %v749 = vpop.f32.mrb[0].mxu0
        %v750 = vadd.f32 %v660, %v749
        %v751 = vpop.f32.mrb[0].mxu0
        %752 = vdwg.mxu0
        %v753 = vsel %vm449, %v745, -inf
        %754 = vmax.xlane.f32.xlu0 %v753
        %v755 = vpop.xlane.xlu0 %754
        %v756 = vsel %vm449, %v750, -inf
        %757 = vmax.xlane.f32.xlu0 %v756
        %v758 = vpop.xlane.xlu0 %757
        %v759 = vsub.f32 %v745, %v755
        %v760 = vsub.f32 %v750, %v758
        %v761 = vmul.f32 %v759, 1.442695
        %v762 = vpow.pop %v761
        %v763 = vmul.f32 %v760, 1.442695
        %v764 = vpow.pop %v763
        %v765 = vsel %vm449, %v762, 0.0
        %766 = vadd.xlane.f32.xlu0 %v765
        %v767 = vpop.xlane.xlu0 %766
        %v768 = vsel %vm449, %v764, 0.0
        %769 = vadd.xlane.f32.xlu0 %v768
        %v770 = vpop.xlane.xlu0 %769
        %v771 = vrcp.pop %v767
        %v772 = vrcp.pop %v770
        %v773 = vmul.f32 %v762, %v771
        %v774 = vmul.f32 %v764, %v772
        %775 = vrot.lane.b32.xlu0 %v647, 64
        %v776 = vpop.permute.xlu0 %775
        %777 = vrot.lane.b32.xlu0 %v652, 64
        %v778 = vpop.permute.xlu0 %777
        %v782 = vsel %vm449, %v773, 0
        %v785 = vsel %vm449, %v774, 0
        %787 = vmatprep.subr.mxu0 0.0
        %788 = vmatpush1.msra.mxu0 %v776
        %789 = vmatprep.subr.mxu0 0.0
        %790 = vmatpush1.msra.mxu0 %v778
        %791 = vmatprep.subr.mxu0 0.0
        %792 = vmatpush1.msra.mxu0 0.0
        %793 = vmatprep.subr.mxu0 0.0
        %794 = vmatpush1.msra.mxu0 0.0
        %795 = vmatprep.subr.mxu0 0.0
        %796 = vmatpush1.msra.mxu0 0.0
        %797 = vmatprep.subr.mxu0 0.0
        %798 = vmatpush1.msra.mxu0 0.0
        %799 = vmatprep.subr.mxu0 0.0
        %800 = vmatpush1.msra.mxu0 0.0
        %801 = vmatprep.subr.mxu0 0.0
        %802 = vmatpush1.msra.mxu0 0.0
        %803 = vmatprep.subr.mxu0 0.0
        %804 = vmatpush1.msra.mxu0 0.0
        %805 = vmatprep.subr.mxu0 0.0
        %806 = vmatpush1.msra.mxu0 0.0
        %807 = vmatprep.subr.mxu0 0.0
        %808 = vmatpush1.msra.mxu0 0.0
        %809 = vmatprep.subr.mxu0 0.0
        %810 = vmatpush1.msra.mxu0 0.0
        %811 = vmatprep.subr.mxu0 0.0
        %812 = vmatpush1.msra.mxu0 0.0
        %813 = vmatprep.subr.mxu0 0.0
        %814 = vmatpush1.msra.mxu0 0.0
        %815 = vmatprep.subr.mxu0 0.0
        %816 = vmatpush1.msra.mxu0 0.0
        %817 = vmatprep.subr.mxu0 0.0
        %818 = vmatpush1.msra.mxu0 0.0
        %819 = vmatprep.subr.mxu0 0.0
        %820 = vmatpush1.msra.mxu0 0.0
        %821 = vmatprep.subr.mxu0 0.0
        %822 = vmatpush1.msra.mxu0 0.0
        %823 = vmatprep.subr.mxu0 0.0
        %824 = vmatpush1.msra.mxu0 0.0
        %825 = vmatprep.subr.mxu0 0.0
        %826 = vmatpush1.msra.mxu0 0.0
        %827 = vmatprep.subr.mxu0 0.0
        %828 = vmatpush1.msra.mxu0 0.0
        %829 = vmatprep.subr.mxu0 0.0
        %830 = vmatpush1.msra.mxu0 0.0
        %831 = vmatprep.subr.mxu0 0.0
        %832 = vmatpush1.msra.mxu0 0.0
        %833 = vmatprep.subr.mxu0 0.0
        %834 = vmatpush1.msra.mxu0 0.0
        %835 = vmatprep.subr.mxu0 0.0
        %836 = vmatpush1.msra.mxu0 0.0
        %837 = vmatprep.subr.mxu0 0.0
        %838 = vmatpush1.msra.mxu0 0.0
        %839 = vmatprep.subr.mxu0 0.0
        %840 = vmatpush1.msra.mxu0 0.0
        %841 = vmatprep.subr.mxu0 0.0
        %842 = vmatpush1.msra.mxu0 0.0
        %843 = vmatprep.subr.mxu0 0.0
        %844 = vmatpush1.msra.mxu0 0.0
        %845 = vmatprep.subr.mxu0 0.0
        %846 = vmatpush1.msra.mxu0 0.0
        %847 = vmatprep.subr.mxu0 0.0
        %848 = vmatpush1.msra.mxu0 0.0
        %849 = vmatprep.subr.mxu0 0.0
        %850 = vmatpush1.msra.mxu0 0.0
        %851 = vmatprep.mubr.f32.mxu0 0.0
        %852 = vmatmul.mubr.f32.gmra.mrb[0].mxu0 %v782
        %v853 = vpop.f32.mrb[0].mxu0
        %v854 = vadd.f32 0.0, %v853
        %v855 = vpop.f32.mrb[0].mxu0
        %856 = vmatprep.mubr.f32.mxu0 0.0
        %857 = vmatmul.mubr.f32.gmra.mrb[0].mxu0 %v785
        %v858 = vpop.f32.mrb[0].mxu0
        %v859 = vadd.f32 0.0, %v858
        %v860 = vpop.f32.mrb[0].mxu0
        %861 = vdwg.mxu0
        %862 = vrot.lane.b32.xlu0 %v655, 120
        %v863 = vpop.permute.xlu0 %862
        %864 = vrot.lane.b32.xlu0 %v656, 120
        %v865 = vpop.permute.xlu0 %864
        %866 = vrot.lane.b32.xlu0 %v647, 88
        %v867 = vpop.permute.xlu0 %866
        %868 = vrot.lane.b32.xlu0 %v652, 88
        %v869 = vpop.permute.xlu0 %868
        %v870 = vsel %vm667, %v863, 0
        %v872 = vsel %vm667, %v865, 0
        %v874 = vsel %vm667, %v867, 0
        %v876 = vsel %vm667, %v869, 0
        %878 = vmatprep.subr.mxu0 0.0
        %879 = vmatpush1.xpose.msra.mxu0 %v874
        %880 = vmatprep.subr.mxu0 0.0
        %881 = vmatpush1.xpose.msra.mxu0 %v876
        %882 = vmatprep.subr.mxu0 0.0
        %883 = vmatpush1.xpose.msra.mxu0 0.0
        %884 = vmatprep.subr.mxu0 0.0
        %885 = vmatpush1.xpose.msra.mxu0 0.0
        %886 = vmatprep.subr.mxu0 0.0
        %887 = vmatpush1.xpose.msra.mxu0 0.0
        %888 = vmatprep.subr.mxu0 0.0
        %889 = vmatpush1.xpose.msra.mxu0 0.0
        %890 = vmatprep.subr.mxu0 0.0
        %891 = vmatpush1.xpose.msra.mxu0 0.0
        %892 = vmatprep.subr.mxu0 0.0
        %893 = vmatpush1.xpose.msra.mxu0 0.0
        %894 = vmatprep.subr.mxu0 0.0
        %895 = vmatpush1.xpose.msra.mxu0 0.0
        %896 = vmatprep.subr.mxu0 0.0
        %897 = vmatpush1.xpose.msra.mxu0 0.0
        %898 = vmatprep.subr.mxu0 0.0
        %899 = vmatpush1.xpose.msra.mxu0 0.0
        %900 = vmatprep.subr.mxu0 0.0
        %901 = vmatpush1.xpose.msra.mxu0 0.0
        %902 = vmatprep.subr.mxu0 0.0
        %903 = vmatpush1.xpose.msra.mxu0 0.0
        %904 = vmatprep.subr.mxu0 0.0
        %905 = vmatpush1.xpose.msra.mxu0 0.0
        %906 = vmatprep.subr.mxu0 0.0
        %907 = vmatpush1.xpose.msra.mxu0 0.0
        %908 = vmatprep.subr.mxu0 0.0
        %909 = vmatpush1.xpose.msra.mxu0 0.0
        %910 = vmatprep.subr.mxu0 0.0
        %911 = vmatpush1.xpose.msra.mxu0 0.0
        %912 = vmatprep.subr.mxu0 0.0
        %913 = vmatpush1.xpose.msra.mxu0 0.0
        %914 = vmatprep.subr.mxu0 0.0
        %915 = vmatpush1.xpose.msra.mxu0 0.0
        %916 = vmatprep.subr.mxu0 0.0
        %917 = vmatpush1.xpose.msra.mxu0 0.0
        %918 = vmatprep.subr.mxu0 0.0
        %919 = vmatpush1.xpose.msra.mxu0 0.0
        %920 = vmatprep.subr.mxu0 0.0
        %921 = vmatpush1.xpose.msra.mxu0 0.0
        %922 = vmatprep.subr.mxu0 0.0
        %923 = vmatpush1.xpose.msra.mxu0 0.0
        %924 = vmatprep.subr.mxu0 0.0
        %925 = vmatpush1.xpose.msra.mxu0 0.0
        %926 = vmatprep.subr.mxu0 0.0
        %927 = vmatpush1.xpose.msra.mxu0 0.0
        %928 = vmatprep.subr.mxu0 0.0
        %929 = vmatpush1.xpose.msra.mxu0 0.0
        %930 = vmatprep.subr.mxu0 0.0
        %931 = vmatpush1.xpose.msra.mxu0 0.0
        %932 = vmatprep.subr.mxu0 0.0
        %933 = vmatpush1.xpose.msra.mxu0 0.0
        %934 = vmatprep.subr.mxu0 0.0
        %935 = vmatpush1.xpose.msra.mxu0 0.0
        %936 = vmatprep.subr.mxu0 0.0
        %937 = vmatpush1.xpose.msra.mxu0 0.0
        %938 = vmatprep.subr.mxu0 0.0
        %939 = vmatpush1.xpose.msra.mxu0 0.0
        %940 = vmatprep.subr.mxu0 0.0
        %941 = vmatpush1.xpose.msra.mxu0 0.0
        %942 = vmatprep.mubr.f32.mxu0 0.0
        %943 = vmatmul.mubr.f32.gmra.mrb[0].mxu0 %v870
        %v944 = vpop.f32.mrb[0].mxu0
        %v945 = vadd.f32 %v660, %v944
        %v946 = vpop.f32.mrb[0].mxu0
        %947 = vmatprep.mubr.f32.mxu0 0.0
        %948 = vmatmul.mubr.f32.gmra.mrb[0].mxu0 %v872
        %v949 = vpop.f32.mrb[0].mxu0
        %v950 = vadd.f32 %v660, %v949
        %v951 = vpop.f32.mrb[0].mxu0
        %952 = vdwg.mxu0
        %v953 = vsel %vm449, %v945, -inf
        %954 = vmax.xlane.f32.xlu0 %v953
        %v955 = vpop.xlane.xlu0 %954
        %v956 = vsel %vm449, %v950, -inf
        %957 = vmax.xlane.f32.xlu0 %v956
        %v958 = vpop.xlane.xlu0 %957
        %v959 = vsub.f32 %v945, %v955
        %v960 = vsub.f32 %v950, %v958
        %v961 = vmul.f32 %v959, 1.442695
        %v962 = vpow.pop %v961
        %v963 = vmul.f32 %v960, 1.442695
        %v964 = vpow.pop %v963
        %v965 = vsel %vm449, %v962, 0.0
        %966 = vadd.xlane.f32.xlu0 %v965
        %v967 = vpop.xlane.xlu0 %966
        %v968 = vsel %vm449, %v964, 0.0
        %969 = vadd.xlane.f32.xlu0 %v968
        %v970 = vpop.xlane.xlu0 %969
        %v971 = vrcp.pop %v967
        %v972 = vrcp.pop %v970
        %v973 = vmul.f32 %v962, %v971
        %v974 = vmul.f32 %v964, %v972
        %975 = vrot.lane.b32.xlu0 %v647, 56
        %v976 = vpop.permute.xlu0 %975
        %977 = vrot.lane.b32.xlu0 %v652, 56
        %v978 = vpop.permute.xlu0 %977
        %v982 = vsel %vm449, %v973, 0
        %v985 = vsel %vm449, %v974, 0
        %987 = vmatprep.subr.mxu0 0.0
        %988 = vmatpush1.msra.mxu0 %v976
        %989 = vmatprep.subr.mxu0 0.0
        %990 = vmatpush1.msra.mxu0 %v978
        %991 = vmatprep.subr.mxu0 0.0
        %992 = vmatpush1.msra.mxu0 0.0
        %993 = vmatprep.subr.mxu0 0.0
        %994 = vmatpush1.msra.mxu0 0.0
        %995 = vmatprep.subr.mxu0 0.0
        %996 = vmatpush1.msra.mxu0 0.0
        %997 = vmatprep.subr.mxu0 0.0
        %998 = vmatpush1.msra.mxu0 0.0
        %999 = vmatprep.subr.mxu0 0.0
        %1000 = vmatpush1.msra.mxu0 0.0
        %1001 = vmatprep.subr.mxu0 0.0
        %1002 = vmatpush1.msra.mxu0 0.0
        %1003 = vmatprep.subr.mxu0 0.0
        %1004 = vmatpush1.msra.mxu0 0.0
        %1005 = vmatprep.subr.mxu0 0.0
        %1006 = vmatpush1.msra.mxu0 0.0
        %1007 = vmatprep.subr.mxu0 0.0
        %1008 = vmatpush1.msra.mxu0 0.0
        %1009 = vmatprep.subr.mxu0 0.0
        %1010 = vmatpush1.msra.mxu0 0.0
        %1011 = vmatprep.subr.mxu0 0.0
        %1012 = vmatpush1.msra.mxu0 0.0
        %1013 = vmatprep.subr.mxu0 0.0
        %1014 = vmatpush1.msra.mxu0 0.0
        %1015 = vmatprep.subr.mxu0 0.0
        %1016 = vmatpush1.msra.mxu0 0.0
        %1017 = vmatprep.subr.mxu0 0.0
        %1018 = vmatpush1.msra.mxu0 0.0
        %1019 = vmatprep.subr.mxu0 0.0
        %1020 = vmatpush1.msra.mxu0 0.0
        %1021 = vmatprep.subr.mxu0 0.0
        %1022 = vmatpush1.msra.mxu0 0.0
        %1023 = vmatprep.subr.mxu0 0.0
        %1024 = vmatpush1.msra.mxu0 0.0
        %1025 = vmatprep.subr.mxu0 0.0
        %1026 = vmatpush1.msra.mxu0 0.0
        %1027 = vmatprep.subr.mxu0 0.0
        %1028 = vmatpush1.msra.mxu0 0.0
        %1029 = vmatprep.subr.mxu0 0.0
        %1030 = vmatpush1.msra.mxu0 0.0
        %1031 = vmatprep.subr.mxu0 0.0
        %1032 = vmatpush1.msra.mxu0 0.0
        %1033 = vmatprep.subr.mxu0 0.0
        %1034 = vmatpush1.msra.mxu0 0.0
        %1035 = vmatprep.subr.mxu0 0.0
        %1036 = vmatpush1.msra.mxu0 0.0
        %1037 = vmatprep.subr.mxu0 0.0
        %1038 = vmatpush1.msra.mxu0 0.0
        %1039 = vmatprep.subr.mxu0 0.0
        %1040 = vmatpush1.msra.mxu0 0.0
        %1041 = vmatprep.subr.mxu0 0.0
        %1042 = vmatpush1.msra.mxu0 0.0
        %1043 = vmatprep.subr.mxu0 0.0
        %1044 = vmatpush1.msra.mxu0 0.0
        %1045 = vmatprep.subr.mxu0 0.0
        %1046 = vmatpush1.msra.mxu0 0.0
        %1047 = vmatprep.subr.mxu0 0.0
        %1048 = vmatpush1.msra.mxu0 0.0
        %1049 = vmatprep.subr.mxu0 0.0
        %1050 = vmatpush1.msra.mxu0 0.0
        %1051 = vmatprep.mubr.f32.mxu0 0.0
        %1052 = vmatmul.mubr.f32.gmra.mrb[0].mxu0 %v982
        %v1053 = vpop.f32.mrb[0].mxu0
        %v1054 = vadd.f32 0.0, %v1053
        %v1055 = vpop.f32.mrb[0].mxu0
        %1056 = vmatprep.mubr.f32.mxu0 0.0
        %1057 = vmatmul.mubr.f32.gmra.mrb[0].mxu0 %v985
        %v1058 = vpop.f32.mrb[0].mxu0
        %v1059 = vadd.f32 0.0, %v1058
        %v1060 = vpop.f32.mrb[0].mxu0
        %1061 = vdwg.mxu0
        %1062 = vrot.lane.b32.xlu0 %v655, 112
        %v1063 = vpop.permute.xlu0 %1062
        %1064 = vrot.lane.b32.xlu0 %v656, 112
        %v1065 = vpop.permute.xlu0 %1064
        %1066 = vrot.lane.b32.xlu0 %v647, 80
        %v1067 = vpop.permute.xlu0 %1066
        %1068 = vrot.lane.b32.xlu0 %v652, 80
        %v1069 = vpop.permute.xlu0 %1068
        %v1070 = vsel %vm667, %v1063, 0
        %v1072 = vsel %vm667, %v1065, 0
        %v1074 = vsel %vm667, %v1067, 0
        %v1076 = vsel %vm667, %v1069, 0
        %1078 = vmatprep.subr.mxu0 0.0
        %1079 = vmatpush1.xpose.msra.mxu0 %v1074
        %1080 = vmatprep.subr.mxu0 0.0
        %1081 = vmatpush1.xpose.msra.mxu0 %v1076
        %1082 = vmatprep.subr.mxu0 0.0
        %1083 = vmatpush1.xpose.msra.mxu0 0.0
        %1084 = vmatprep.subr.mxu0 0.0
        %1085 = vmatpush1.xpose.msra.mxu0 0.0
        %1086 = vmatprep.subr.mxu0 0.0
        %1087 = vmatpush1.xpose.msra.mxu0 0.0
        %1088 = vmatprep.subr.mxu0 0.0
        %1089 = vmatpush1.xpose.msra.mxu0 0.0
        %1090 = vmatprep.subr.mxu0 0.0
        %1091 = vmatpush1.xpose.msra.mxu0 0.0
        %1092 = vmatprep.subr.mxu0 0.0
        %1093 = vmatpush1.xpose.msra.mxu0 0.0
        %1094 = vmatprep.subr.mxu0 0.0
        %1095 = vmatpush1.xpose.msra.mxu0 0.0
        %1096 = vmatprep.subr.mxu0 0.0
        %1097 = vmatpush1.xpose.msra.mxu0 0.0
        %1098 = vmatprep.subr.mxu0 0.0
        %1099 = vmatpush1.xpose.msra.mxu0 0.0
        %1100 = vmatprep.subr.mxu0 0.0
        %1101 = vmatpush1.xpose.msra.mxu0 0.0
        %1102 = vmatprep.subr.mxu0 0.0
        %1103 = vmatpush1.xpose.msra.mxu0 0.0
        %1104 = vmatprep.subr.mxu0 0.0
        %1105 = vmatpush1.xpose.msra.mxu0 0.0
        %1106 = vmatprep.subr.mxu0 0.0
        %1107 = vmatpush1.xpose.msra.mxu0 0.0
        %1108 = vmatprep.subr.mxu0 0.0
        %1109 = vmatpush1.xpose.msra.mxu0 0.0
        %1110 = vmatprep.subr.mxu0 0.0
        %1111 = vmatpush1.xpose.msra.mxu0 0.0
        %1112 = vmatprep.subr.mxu0 0.0
        %1113 = vmatpush1.xpose.msra.mxu0 0.0
        %1114 = vmatprep.subr.mxu0 0.0
        %1115 = vmatpush1.xpose.msra.mxu0 0.0
        %1116 = vmatprep.subr.mxu0 0.0
        %1117 = vmatpush1.xpose.msra.mxu0 0.0
        %1118 = vmatprep.subr.mxu0 0.0
        %1119 = vmatpush1.xpose.msra.mxu0 0.0
        %1120 = vmatprep.subr.mxu0 0.0
        %1121 = vmatpush1.xpose.msra.mxu0 0.0
        %1122 = vmatprep.subr.mxu0 0.0
        %1123 = vmatpush1.xpose.msra.mxu0 0.0
        %1124 = vmatprep.subr.mxu0 0.0
        %1125 = vmatpush1.xpose.msra.mxu0 0.0
        %1126 = vmatprep.subr.mxu0 0.0
        %1127 = vmatpush1.xpose.msra.mxu0 0.0
        %1128 = vmatprep.subr.mxu0 0.0
        %1129 = vmatpush1.xpose.msra.mxu0 0.0
        %1130 = vmatprep.subr.mxu0 0.0
        %1131 = vmatpush1.xpose.msra.mxu0 0.0
        %1132 = vmatprep.subr.mxu0 0.0
        %1133 = vmatpush1.xpose.msra.mxu0 0.0
        %1134 = vmatprep.subr.mxu0 0.0
        %1135 = vmatpush1.xpose.msra.mxu0 0.0
        %1136 = vmatprep.subr.mxu0 0.0
        %1137 = vmatpush1.xpose.msra.mxu0 0.0
        %1138 = vmatprep.subr.mxu0 0.0
        %1139 = vmatpush1.xpose.msra.mxu0 0.0
        %1140 = vmatprep.subr.mxu0 0.0
        %1141 = vmatpush1.xpose.msra.mxu0 0.0
        %1142 = vmatprep.mubr.f32.mxu0 0.0
        %1143 = vmatmul.mubr.f32.gmra.mrb[0].mxu0 %v1070
        %v1144 = vpop.f32.mrb[0].mxu0
        %v1145 = vadd.f32 %v660, %v1144
        %v1146 = vpop.f32.mrb[0].mxu0
        %1147 = vmatprep.mubr.f32.mxu0 0.0
        %1148 = vmatmul.mubr.f32.gmra.mrb[0].mxu0 %v1072
        %v1149 = vpop.f32.mrb[0].mxu0
        %v1150 = vadd.f32 %v660, %v1149
        %v1151 = vpop.f32.mrb[0].mxu0
        %1152 = vdwg.mxu0
        %v1153 = vsel %vm449, %v1145, -inf
        %1154 = vmax.xlane.f32.xlu0 %v1153
        %v1155 = vpop.xlane.xlu0 %1154
        %v1156 = vsel %vm449, %v1150, -inf
        %1157 = vmax.xlane.f32.xlu0 %v1156
        %v1158 = vpop.xlane.xlu0 %1157
        %v1159 = vsub.f32 %v1145, %v1155
        %v1160 = vsub.f32 %v1150, %v1158
        %v1161 = vmul.f32 %v1159, 1.442695
        %v1162 = vpow.pop %v1161
        %v1163 = vmul.f32 %v1160, 1.442695
        %v1164 = vpow.pop %v1163
        %v1165 = vsel %vm449, %v1162, 0.0
        %1166 = vadd.xlane.f32.xlu0 %v1165
        %v1167 = vpop.xlane.xlu0 %1166
        %v1168 = vsel %vm449, %v1164, 0.0
        %1169 = vadd.xlane.f32.xlu0 %v1168
        %v1170 = vpop.xlane.xlu0 %1169
        %v1171 = vrcp.pop %v1167
        %v1172 = vrcp.pop %v1170
        %v1173 = vmul.f32 %v1162, %v1171
        %v1174 = vmul.f32 %v1164, %v1172
        %1175 = vrot.lane.b32.xlu0 %v647, 48
        %v1176 = vpop.permute.xlu0 %1175
        %1177 = vrot.lane.b32.xlu0 %v652, 48
        %v1178 = vpop.permute.xlu0 %1177
        %v1182 = vsel %vm449, %v1173, 0
        %v1185 = vsel %vm449, %v1174, 0
        %1187 = vmatprep.subr.mxu0 0.0
        %1188 = vmatpush1.msra.mxu0 %v1176
        %1189 = vmatprep.subr.mxu0 0.0
        %1190 = vmatpush1.msra.mxu0 %v1178
        %1191 = vmatprep.subr.mxu0 0.0
        %1192 = vmatpush1.msra.mxu0 0.0
        %1193 = vmatprep.subr.mxu0 0.0
        %1194 = vmatpush1.msra.mxu0 0.0
        %1195 = vmatprep.subr.mxu0 0.0
        %1196 = vmatpush1.msra.mxu0 0.0
        %1197 = vmatprep.subr.mxu0 0.0
        %1198 = vmatpush1.msra.mxu0 0.0
        %1199 = vmatprep.subr.mxu0 0.0
        %1200 = vmatpush1.msra.mxu0 0.0
        %1201 = vmatprep.subr.mxu0 0.0
        %1202 = vmatpush1.msra.mxu0 0.0
        %1203 = vmatprep.subr.mxu0 0.0
        %1204 = vmatpush1.msra.mxu0 0.0
        %1205 = vmatprep.subr.mxu0 0.0
        %1206 = vmatpush1.msra.mxu0 0.0
        %1207 = vmatprep.subr.mxu0 0.0
        %1208 = vmatpush1.msra.mxu0 0.0
        %1209 = vmatprep.subr.mxu0 0.0
        %1210 = vmatpush1.msra.mxu0 0.0
        %1211 = vmatprep.subr.mxu0 0.0
        %1212 = vmatpush1.msra.mxu0 0.0
        %1213 = vmatprep.subr.mxu0 0.0
        %1214 = vmatpush1.msra.mxu0 0.0
        %1215 = vmatprep.subr.mxu0 0.0
        %1216 = vmatpush1.msra.mxu0 0.0
        %1217 = vmatprep.subr.mxu0 0.0
        %1218 = vmatpush1.msra.mxu0 0.0
        %1219 = vmatprep.subr.mxu0 0.0
        %1220 = vmatpush1.msra.mxu0 0.0
        %1221 = vmatprep.subr.mxu0 0.0
        %1222 = vmatpush1.msra.mxu0 0.0
        %1223 = vmatprep.subr.mxu0 0.0
        %1224 = vmatpush1.msra.mxu0 0.0
        %1225 = vmatprep.subr.mxu0 0.0
        %1226 = vmatpush1.msra.mxu0 0.0
        %1227 = vmatprep.subr.mxu0 0.0
        %1228 = vmatpush1.msra.mxu0 0.0
        %1229 = vmatprep.subr.mxu0 0.0
        %1230 = vmatpush1.msra.mxu0 0.0
        %1231 = vmatprep.subr.mxu0 0.0
        %1232 = vmatpush1.msra.mxu0 0.0
        %1233 = vmatprep.subr.mxu0 0.0
        %1234 = vmatpush1.msra.mxu0 0.0
        %1235 = vmatprep.subr.mxu0 0.0
        %1236 = vmatpush1.msra.mxu0 0.0
        %1237 = vmatprep.subr.mxu0 0.0
        %1238 = vmatpush1.msra.mxu0 0.0
        %1239 = vmatprep.subr.mxu0 0.0
        %1240 = vmatpush1.msra.mxu0 0.0
        %1241 = vmatprep.subr.mxu0 0.0
        %1242 = vmatpush1.msra.mxu0 0.0
        %1243 = vmatprep.subr.mxu0 0.0
        %1244 = vmatpush1.msra.mxu0 0.0
        %1245 = vmatprep.subr.mxu0 0.0
        %1246 = vmatpush1.msra.mxu0 0.0
        %1247 = vmatprep.subr.mxu0 0.0
        %1248 = vmatpush1.msra.mxu0 0.0
        %1249 = vmatprep.subr.mxu0 0.0
        %1250 = vmatpush1.msra.mxu0 0.0
        %1251 = vmatprep.mubr.f32.mxu0 0.0
        %1252 = vmatmul.mubr.f32.gmra.mrb[0].mxu0 %v1182
        %v1253 = vpop.f32.mrb[0].mxu0
        %v1254 = vadd.f32 0.0, %v1253
        %v1255 = vpop.f32.mrb[0].mxu0
        %1256 = vmatprep.mubr.f32.mxu0 0.0
        %1257 = vmatmul.mubr.f32.gmra.mrb[0].mxu0 %v1185
        %v1258 = vpop.f32.mrb[0].mxu0
        %v1259 = vadd.f32 0.0, %v1258
        %v1260 = vpop.f32.mrb[0].mxu0
        %1261 = vdwg.mxu0
        %1262 = vrot.lane.b32.xlu0 %v655, 104
        %v1263 = vpop.permute.xlu0 %1262
        %1264 = vrot.lane.b32.xlu0 %v656, 104
        %v1265 = vpop.permute.xlu0 %1264
        %1266 = vrot.lane.b32.xlu0 %v647, 72
        %v1267 = vpop.permute.xlu0 %1266
        %1268 = vrot.lane.b32.xlu0 %v652, 72
        %v1269 = vpop.permute.xlu0 %1268
        %v1270 = vsel %vm667, %v1263, 0
        %v1272 = vsel %vm667, %v1265, 0
        %v1274 = vsel %vm667, %v1267, 0
        %v1276 = vsel %vm667, %v1269, 0
        %1278 = vmatprep.subr.mxu0 0.0
        %1279 = vmatpush1.xpose.msra.mxu0 %v1274
        %1280 = vmatprep.subr.mxu0 0.0
        %1281 = vmatpush1.xpose.msra.mxu0 %v1276
        %1282 = vmatprep.subr.mxu0 0.0
        %1283 = vmatpush1.xpose.msra.mxu0 0.0
        %1284 = vmatprep.subr.mxu0 0.0
        %1285 = vmatpush1.xpose.msra.mxu0 0.0
        %1286 = vmatprep.subr.mxu0 0.0
        %1287 = vmatpush1.xpose.msra.mxu0 0.0
        %1288 = vmatprep.subr.mxu0 0.0
        %1289 = vmatpush1.xpose.msra.mxu0 0.0
        %1290 = vmatprep.subr.mxu0 0.0
        %1291 = vmatpush1.xpose.msra.mxu0 0.0
        %1292 = vmatprep.subr.mxu0 0.0
        %1293 = vmatpush1.xpose.msra.mxu0 0.0
        %1294 = vmatprep.subr.mxu0 0.0
        %1295 = vmatpush1.xpose.msra.mxu0 0.0
        %1296 = vmatprep.subr.mxu0 0.0
        %1297 = vmatpush1.xpose.msra.mxu0 0.0
        %1298 = vmatprep.subr.mxu0 0.0
        %1299 = vmatpush1.xpose.msra.mxu0 0.0
        %1300 = vmatprep.subr.mxu0 0.0
        %1301 = vmatpush1.xpose.msra.mxu0 0.0
        %1302 = vmatprep.subr.mxu0 0.0
        %1303 = vmatpush1.xpose.msra.mxu0 0.0
        %1304 = vmatprep.subr.mxu0 0.0
        %1305 = vmatpush1.xpose.msra.mxu0 0.0
        %1306 = vmatprep.subr.mxu0 0.0
        %1307 = vmatpush1.xpose.msra.mxu0 0.0
        %1308 = vmatprep.subr.mxu0 0.0
        %1309 = vmatpush1.xpose.msra.mxu0 0.0
        %1310 = vmatprep.subr.mxu0 0.0
        %1311 = vmatpush1.xpose.msra.mxu0 0.0
        %1312 = vmatprep.subr.mxu0 0.0
        %1313 = vmatpush1.xpose.msra.mxu0 0.0
        %1314 = vmatprep.subr.mxu0 0.0
        %1315 = vmatpush1.xpose.msra.mxu0 0.0
        %1316 = vmatprep.subr.mxu0 0.0
        %1317 = vmatpush1.xpose.msra.mxu0 0.0
        %1318 = vmatprep.subr.mxu0 0.0
        %1319 = vmatpush1.xpose.msra.mxu0 0.0
        %1320 = vmatprep.subr.mxu0 0.0
        %1321 = vmatpush1.xpose.msra.mxu0 0.0
        %1322 = vmatprep.subr.mxu0 0.0
        %1323 = vmatpush1.xpose.msra.mxu0 0.0
        %1324 = vmatprep.subr.mxu0 0.0
        %1325 = vmatpush1.xpose.msra.mxu0 0.0
        %1326 = vmatprep.subr.mxu0 0.0
        %1327 = vmatpush1.xpose.msra.mxu0 0.0
        %1328 = vmatprep.subr.mxu0 0.0
        %1329 = vmatpush1.xpose.msra.mxu0 0.0
        %1330 = vmatprep.subr.mxu0 0.0
        %1331 = vmatpush1.xpose.msra.mxu0 0.0
        %1332 = vmatprep.subr.mxu0 0.0
        %1333 = vmatpush1.xpose.msra.mxu0 0.0
        %1334 = vmatprep.subr.mxu0 0.0
        %1335 = vmatpush1.xpose.msra.mxu0 0.0
        %1336 = vmatprep.subr.mxu0 0.0
        %1337 = vmatpush1.xpose.msra.mxu0 0.0
        %1338 = vmatprep.subr.mxu0 0.0
        %1339 = vmatpush1.xpose.msra.mxu0 0.0
        %1340 = vmatprep.subr.mxu0 0.0
        %1341 = vmatpush1.xpose.msra.mxu0 0.0
        %1342 = vmatprep.mubr.f32.mxu0 0.0
        %1343 = vmatmul.mubr.f32.gmra.mrb[0].mxu0 %v1270
        %v1344 = vpop.f32.mrb[0].mxu0
        %v1345 = vadd.f32 %v660, %v1344
        %v1346 = vpop.f32.mrb[0].mxu0
        %1347 = vmatprep.mubr.f32.mxu0 0.0
        %1348 = vmatmul.mubr.f32.gmra.mrb[0].mxu0 %v1272
        %v1349 = vpop.f32.mrb[0].mxu0
        %v1350 = vadd.f32 %v660, %v1349
        %v1351 = vpop.f32.mrb[0].mxu0
        %1352 = vdwg.mxu0
        %v1353 = vsel %vm449, %v1345, -inf
        %1354 = vmax.xlane.f32.xlu0 %v1353
        %v1355 = vpop.xlane.xlu0 %1354
        %v1356 = vsel %vm449, %v1350, -inf
        %1357 = vmax.xlane.f32.xlu0 %v1356
        %v1358 = vpop.xlane.xlu0 %1357
        %v1359 = vsub.f32 %v1345, %v1355
        %v1360 = vsub.f32 %v1350, %v1358
        %v1361 = vmul.f32 %v1359, 1.442695
        %v1362 = vpow.pop %v1361
        %v1363 = vmul.f32 %v1360, 1.442695
        %v1364 = vpow.pop %v1363
        %v1365 = vsel %vm449, %v1362, 0.0
        %1366 = vadd.xlane.f32.xlu0 %v1365
        %v1367 = vpop.xlane.xlu0 %1366
        %v1368 = vsel %vm449, %v1364, 0.0
        %1369 = vadd.xlane.f32.xlu0 %v1368
        %v1370 = vpop.xlane.xlu0 %1369
        %v1371 = vrcp.pop %v1367
        %v1372 = vrcp.pop %v1370
        %v1373 = vmul.f32 %v1362, %v1371
        %v1374 = vmul.f32 %v1364, %v1372
        %1375 = vrot.lane.b32.xlu0 %v647, 40
        %v1376 = vpop.permute.xlu0 %1375
        %1377 = vrot.lane.b32.xlu0 %v652, 40
        %v1378 = vpop.permute.xlu0 %1377
        %v1382 = vsel %vm449, %v1373, 0
        %v1385 = vsel %vm449, %v1374, 0
        %1387 = vmatprep.subr.mxu0 0.0
        %1388 = vmatpush1.msra.mxu0 %v1376
        %1389 = vmatprep.subr.mxu0 0.0
        %1390 = vmatpush1.msra.mxu0 %v1378
        %1391 = vmatprep.subr.mxu0 0.0
        %1392 = vmatpush1.msra.mxu0 0.0
        %1393 = vmatprep.subr.mxu0 0.0
        %1394 = vmatpush1.msra.mxu0 0.0
        %1395 = vmatprep.subr.mxu0 0.0
        %1396 = vmatpush1.msra.mxu0 0.0
        %1397 = vmatprep.subr.mxu0 0.0
        %1398 = vmatpush1.msra.mxu0 0.0
        %1399 = vmatprep.subr.mxu0 0.0
        %1400 = vmatpush1.msra.mxu0 0.0
        %1401 = vmatprep.subr.mxu0 0.0
        %1402 = vmatpush1.msra.mxu0 0.0
        %1403 = vmatprep.subr.mxu0 0.0
        %1404 = vmatpush1.msra.mxu0 0.0
        %1405 = vmatprep.subr.mxu0 0.0
        %1406 = vmatpush1.msra.mxu0 0.0
        %1407 = vmatprep.subr.mxu0 0.0
        %1408 = vmatpush1.msra.mxu0 0.0
        %1409 = vmatprep.subr.mxu0 0.0
        %1410 = vmatpush1.msra.mxu0 0.0
        %1411 = vmatprep.subr.mxu0 0.0
        %1412 = vmatpush1.msra.mxu0 0.0
        %1413 = vmatprep.subr.mxu0 0.0
        %1414 = vmatpush1.msra.mxu0 0.0
        %1415 = vmatprep.subr.mxu0 0.0
        %1416 = vmatpush1.msra.mxu0 0.0
        %1417 = vmatprep.subr.mxu0 0.0
        %1418 = vmatpush1.msra.mxu0 0.0
        %1419 = vmatprep.subr.mxu0 0.0
        %1420 = vmatpush1.msra.mxu0 0.0
        %1421 = vmatprep.subr.mxu0 0.0
        %1422 = vmatpush1.msra.mxu0 0.0
        %1423 = vmatprep.subr.mxu0 0.0
        %1424 = vmatpush1.msra.mxu0 0.0
        %1425 = vmatprep.subr.mxu0 0.0
        %1426 = vmatpush1.msra.mxu0 0.0
        %1427 = vmatprep.subr.mxu0 0.0
        %1428 = vmatpush1.msra.mxu0 0.0
        %1429 = vmatprep.subr.mxu0 0.0
        %1430 = vmatpush1.msra.mxu0 0.0
        %1431 = vmatprep.subr.mxu0 0.0
        %1432 = vmatpush1.msra.mxu0 0.0
        %1433 = vmatprep.subr.mxu0 0.0
        %1434 = vmatpush1.msra.mxu0 0.0
        %1435 = vmatprep.subr.mxu0 0.0
        %1436 = vmatpush1.msra.mxu0 0.0
        %1437 = vmatprep.subr.mxu0 0.0
        %1438 = vmatpush1.msra.mxu0 0.0
        %1439 = vmatprep.subr.mxu0 0.0
        %1440 = vmatpush1.msra.mxu0 0.0
        %1441 = vmatprep.subr.mxu0 0.0
        %1442 = vmatpush1.msra.mxu0 0.0
        %1443 = vmatprep.subr.mxu0 0.0
        %1444 = vmatpush1.msra.mxu0 0.0
        %1445 = vmatprep.subr.mxu0 0.0
        %1446 = vmatpush1.msra.mxu0 0.0
        %1447 = vmatprep.subr.mxu0 0.0
        %1448 = vmatpush1.msra.mxu0 0.0
        %1449 = vmatprep.subr.mxu0 0.0
        %1450 = vmatpush1.msra.mxu0 0.0
        %1451 = vmatprep.mubr.f32.mxu0 0.0
        %1452 = vmatmul.mubr.f32.gmra.mrb[0].mxu0 %v1382
        %v1453 = vpop.f32.mrb[0].mxu0
        %v1454 = vadd.f32 0.0, %v1453
        %v1455 = vpop.f32.mrb[0].mxu0
        %1456 = vmatprep.mubr.f32.mxu0 0.0
        %1457 = vmatmul.mubr.f32.gmra.mrb[0].mxu0 %v1385
        %v1458 = vpop.f32.mrb[0].mxu0
        %v1459 = vadd.f32 0.0, %v1458
        %v1460 = vpop.f32.mrb[0].mxu0
        %1461 = vdwg.mxu0
        %1464 = vrot.lane.b32.xlu0 %v1054, 8
        %v1465 = vpop.permute.xlu0 %1464
        %1466 = vrot.lane.b32.xlu0 %v1059, 8
        %v1467 = vpop.permute.xlu0 %1466
        %1472 = vrot.lane.b32.xlu0 %v1254, 16
        %v1473 = vpop.permute.xlu0 %1472
        %1474 = vrot.lane.b32.xlu0 %v1259, 16
        %v1475 = vpop.permute.xlu0 %1474
        %1480 = vrot.lane.b32.xlu0 %v1454, 24
        %v1481 = vpop.permute.xlu0 %1480
        %1482 = vrot.lane.b32.xlu0 %v1459, 24
        %v1483 = vpop.permute.xlu0 %1482
        %v1486 = vsel %vm667, %v854, %v1465
        %v1487 = vsel %vm667, %v859, %v1467
        %v1488 = vsel %vm449, %v1486, %v1473
        %v1489 = vsel %vm449, %v1487, %v1475
        %vm1490 = vcmask 195584
        %v1491 = vsel %vm1490, %v1488, %v1481
        %v1492 = vsel %vm1490, %v1489, %v1483
        %v1494 = vlaneseq
        %v1495 = vshrl.u32 %v1494, 7
        %v1496 = vsub.s32 0, %v1495
        %v1497 = vrot.slane %v560, %v1496
        %v1500 = vsel %vm573, %v1491, 0
        %v1503 = vsel %vm573, %v1492, 0
        %1505 = vmatprep.subr.mxu0 0.0
        %1506 = vmatpush1.msra.mxu0 %v543
        %1507 = vmatprep.subr.mxu0 0.0
        %1508 = vmatpush1.msra.mxu0 %v544
        %1509 = vmatprep.subr.mxu0 0.0
        %1510 = vmatpush1.msra.mxu0 %v545
        %1511 = vmatprep.subr.mxu0 0.0
        %1512 = vmatpush1.msra.mxu0 %v546
        %1513 = vmatprep.subr.mxu0 0.0
        %1514 = vmatpush1.msra.mxu0 0.0
        %1515 = vmatprep.subr.mxu0 0.0
        %1516 = vmatpush1.msra.mxu0 0.0
        %1517 = vmatprep.subr.mxu0 0.0
        %1518 = vmatpush1.msra.mxu0 0.0
        %1519 = vmatprep.subr.mxu0 0.0
        %1520 = vmatpush1.msra.mxu0 0.0
        %1521 = vmatprep.subr.mxu0 0.0
        %1522 = vmatpush1.msra.mxu0 0.0
        %1523 = vmatprep.subr.mxu0 0.0
        %1524 = vmatpush1.msra.mxu0 0.0
        %1525 = vmatprep.subr.mxu0 0.0
        %1526 = vmatpush1.msra.mxu0 0.0
        %1527 = vmatprep.subr.mxu0 0.0
        %1528 = vmatpush1.msra.mxu0 0.0
        %1529 = vmatprep.subr.mxu0 0.0
        %1530 = vmatpush1.msra.mxu0 0.0
        %1531 = vmatprep.subr.mxu0 0.0
        %1532 = vmatpush1.msra.mxu0 0.0
        %1533 = vmatprep.subr.mxu0 0.0
        %1534 = vmatpush1.msra.mxu0 0.0
        %1535 = vmatprep.subr.mxu0 0.0
        %1536 = vmatpush1.msra.mxu0 0.0
        %1537 = vmatprep.subr.mxu0 0.0
        %1538 = vmatpush1.msra.mxu0 0.0
        %1539 = vmatprep.subr.mxu0 0.0
        %1540 = vmatpush1.msra.mxu0 0.0
        %1541 = vmatprep.subr.mxu0 0.0
        %1542 = vmatpush1.msra.mxu0 0.0
        %1543 = vmatprep.subr.mxu0 0.0
        %1544 = vmatpush1.msra.mxu0 0.0
        %1545 = vmatprep.subr.mxu0 0.0
        %1546 = vmatpush1.msra.mxu0 0.0
        %1547 = vmatprep.subr.mxu0 0.0
        %1548 = vmatpush1.msra.mxu0 0.0
        %1549 = vmatprep.subr.mxu0 0.0
        %1550 = vmatpush1.msra.mxu0 0.0
        %1551 = vmatprep.subr.mxu0 0.0
        %1552 = vmatpush1.msra.mxu0 0.0
        %1553 = vmatprep.subr.mxu0 0.0
        %1554 = vmatpush1.msra.mxu0 0.0
        %1555 = vmatprep.subr.mxu0 0.0
        %1556 = vmatpush1.msra.mxu0 0.0
        %1557 = vmatprep.subr.mxu0 0.0
        %1558 = vmatpush1.msra.mxu0 0.0
        %1559 = vmatprep.subr.mxu0 0.0
        %1560 = vmatpush1.msra.mxu0 0.0
        %1561 = vmatprep.subr.mxu0 0.0
        %1562 = vmatpush1.msra.mxu0 0.0
        %1563 = vmatprep.subr.mxu0 0.0
        %1564 = vmatpush1.msra.mxu0 0.0
        %1565 = vmatprep.subr.mxu0 0.0
        %1566 = vmatpush1.msra.mxu0 0.0
        %1567 = vmatprep.subr.mxu0 0.0
        %1568 = vmatpush1.msra.mxu0 0.0
        %1569 = vmatprep.mubr.f32.mxu0 0.0
        %1570 = vmatmul.mubr.f32.gmra.mrb[0].mxu0 %v1500
        %v1571 = vpop.f32.mrb[0].mxu0
        %v1572 = vadd.f32 %v1497, %v1571
        %v1573 = vpop.f32.mrb[0].mxu0
        %1574 = vmatprep.mubr.f32.mxu0 0.0
        %1575 = vmatmul.mubr.f32.gmra.mrb[0].mxu0 %v1503
        %v1576 = vpop.f32.mrb[0].mxu0
        %v1577 = vadd.f32 %v1497, %v1576
        %v1578 = vpop.f32.mrb[0].mxu0
        %1579 = vdwg.mxu0
        %v1580 = vadd.f32 %v536, %v1572
        %v1581 = vadd.f32 %v537, %v1577
        %v1582 = vsel %vm573, %v1580, 0.0
        %1583 = vadd.xlane.f32.xlu0 %v1582
        %v1584 = vpop.xlane.xlu0 %1583
        %v1585 = vsel %vm573, %v1581, 0.0
        %1586 = vadd.xlane.f32.xlu0 %v1585
        %v1587 = vpop.xlane.xlu0 %1586
        %v1588 = vrcp.pop 32.0
        %v1589 = vmul.f32 %v1584, %v1588
        %v1590 = vmul.f32 %v1587, %v1588
        %v1591 = vsub.f32 %v1580, %v1589
        %v1592 = vsub.f32 %v1581, %v1590
        %v1593 = vmul.f32 %v1591, %v1591
        %v1594 = vmul.f32 %v1592, %v1592
        %v1595 = vsel %vm573, %v1593, 0.0
        %1596 = vadd.xlane.f32.xlu0 %v1595
        %v1597 = vpop.xlane.xlu0 %1596
        %v1598 = vsel %vm573, %v1594, 0.0
        %1599 = vadd.xlane.f32.xlu0 %v1598
        %v1600 = vpop.xlane.xlu0 %1599
        %v1601 = vmul.f32 %v1597, %v1588
        %v1602 = vmul.f32 %v1600, %v1588
        %v1603 = vadd.f32 %v1601, 1e-05
        %v1604 = vadd.f32 %v1602, 1e-05
        %v1605 = vrsqrt.pop %v1603
        %v1606 = vrsqrt.pop %v1604
        %v1607 = vmul.f32 %v1591, %v1605
        %v1608 = vmul.f32 %v1592, %v1606
        %v1610 = vlaneseq
        %v1611 = vshrl.u32 %v1610, 7
        %v1612 = vsub.s32 0, %v1611
        %v1613 = vrot.slane %v563, %v1612
        %v1615 = vmul.f32 %v1607, %v1613
        %v1616 = vmul.f32 %v1608, %v1613
        %v1618 = vlaneseq
        %v1619 = vshrl.u32 %v1618, 7
        %v1620 = vsub.s32 0, %v1619
        %v1621 = vrot.slane %v564, %v1620
        %v1623 = vadd.f32 %v1615, %v1621
        %v1624 = vadd.f32 %v1616, %v1621
        %v1626 = vlaneseq
        %v1627 = vshrl.u32 %v1626, 7
        %v1628 = vsub.s32 0, %v1627
        %v1629 = vrot.slane %v561, %v1628
        %v1632 = vsel %vm573, %v1623, 0
        %v1635 = vsel %vm573, %v1624, 0
        %1637 = vmatprep.subr.mxu0 0.0
        %1638 = vmatpush1.msra.mxu0 %v547
        %1639 = vmatprep.subr.mxu0 0.0
        %1640 = vmatpush1.msra.mxu0 %v548
        %1641 = vmatprep.subr.mxu0 0.0
        %1642 = vmatpush1.msra.mxu0 %v549
        %1643 = vmatprep.subr.mxu0 0.0
        %1644 = vmatpush1.msra.mxu0 %v550
        %1645 = vmatprep.subr.mxu0 0.0
        %1646 = vmatpush1.msra.mxu0 0.0
        %1647 = vmatprep.subr.mxu0 0.0
        %1648 = vmatpush1.msra.mxu0 0.0
        %1649 = vmatprep.subr.mxu0 0.0
        %1650 = vmatpush1.msra.mxu0 0.0
        %1651 = vmatprep.subr.mxu0 0.0
        %1652 = vmatpush1.msra.mxu0 0.0
        %1653 = vmatprep.subr.mxu0 0.0
        %1654 = vmatpush1.msra.mxu0 0.0
        %1655 = vmatprep.subr.mxu0 0.0
        %1656 = vmatpush1.msra.mxu0 0.0
        %1657 = vmatprep.subr.mxu0 0.0
        %1658 = vmatpush1.msra.mxu0 0.0
        %1659 = vmatprep.subr.mxu0 0.0
        %1660 = vmatpush1.msra.mxu0 0.0
        %1661 = vmatprep.subr.mxu0 0.0
        %1662 = vmatpush1.msra.mxu0 0.0
        %1663 = vmatprep.subr.mxu0 0.0
        %1664 = vmatpush1.msra.mxu0 0.0
        %1665 = vmatprep.subr.mxu0 0.0
        %1666 = vmatpush1.msra.mxu0 0.0
        %1667 = vmatprep.subr.mxu0 0.0
        %1668 = vmatpush1.msra.mxu0 0.0
        %1669 = vmatprep.subr.mxu0 0.0
        %1670 = vmatpush1.msra.mxu0 0.0
        %1671 = vmatprep.subr.mxu0 0.0
        %1672 = vmatpush1.msra.mxu0 0.0
        %1673 = vmatprep.subr.mxu0 0.0
        %1674 = vmatpush1.msra.mxu0 0.0
        %1675 = vmatprep.subr.mxu0 0.0
        %1676 = vmatpush1.msra.mxu0 0.0
        %1677 = vmatprep.subr.mxu0 0.0
        %1678 = vmatpush1.msra.mxu0 0.0
        %1679 = vmatprep.subr.mxu0 0.0
        %1680 = vmatpush1.msra.mxu0 0.0
        %1681 = vmatprep.subr.mxu0 0.0
        %1682 = vmatpush1.msra.mxu0 0.0
        %1683 = vmatprep.subr.mxu0 0.0
        %1684 = vmatpush1.msra.mxu0 0.0
        %1685 = vmatprep.subr.mxu0 0.0
        %1686 = vmatpush1.msra.mxu0 0.0
        %1687 = vmatprep.subr.mxu0 0.0
        %1688 = vmatpush1.msra.mxu0 0.0
        %1689 = vmatprep.subr.mxu0 0.0
        %1690 = vmatpush1.msra.mxu0 0.0
        %1691 = vmatprep.subr.mxu0 0.0
        %1692 = vmatpush1.msra.mxu0 0.0
        %1693 = vmatprep.subr.mxu0 0.0
        %1694 = vmatpush1.msra.mxu0 0.0
        %1695 = vmatprep.subr.mxu0 0.0
        %1696 = vmatpush1.msra.mxu0 0.0
        %1697 = vmatprep.subr.mxu0 0.0
        %1698 = vmatpush1.msra.mxu0 0.0
        %1699 = vmatprep.subr.mxu0 0.0
        %1700 = vmatpush1.msra.mxu0 0.0
        %1701 = vmatprep.mubr.f32.mxu0 0.0
        %1702 = vmatmul.mubr.f32.gmra.mrb[0].mxu0 %v1632
        %v1703 = vpop.f32.mrb[0].mxu0
        %v1704 = vadd.f32 %v1629, %v1703
        %v1705 = vpop.f32.mrb[0].mxu0
        %1706 = vmatprep.mubr.f32.mxu0 0.0
        %1707 = vmatmul.mubr.f32.gmra.mrb[0].mxu0 %v1635
        %v1708 = vpop.f32.mrb[0].mxu0
        %v1709 = vadd.f32 %v1629, %v1708
        %v1710 = vpop.f32.mrb[0].mxu0
        %1711 = vdwg.mxu0
        %v1712 = vmax.f32 %v1704, 0.0
        %v1713 = vmax.f32 %v1709, 0.0
        %v1715 = vlaneseq
        %v1716 = vshrl.u32 %v1715, 7
        %v1717 = vsub.s32 0, %v1716
        %v1718 = vrot.slane %v562, %v1717
        %vm1720 = vcmask 523264
        %v1722 = vsel %vm1720, %v1712, 0
        %v1725 = vsel %vm1720, %v1713, 0
        %1727 = vmatprep.subr.mxu0 0.0
        %1728 = vmatpush1.msra.mxu0 %v551
        %1729 = vmatprep.subr.mxu0 0.0
        %1730 = vmatpush1.msra.mxu0 %v552
        %1731 = vmatprep.subr.mxu0 0.0
        %1732 = vmatpush1.msra.mxu0 %v553
        %1733 = vmatprep.subr.mxu0 0.0
        %1734 = vmatpush1.msra.mxu0 %v554
        %1735 = vmatprep.subr.mxu0 0.0
        %1736 = vmatpush1.msra.mxu0 %v555
        %1737 = vmatprep.subr.mxu0 0.0
        %1738 = vmatpush1.msra.mxu0 %v556
        %1739 = vmatprep.subr.mxu0 0.0
        %1740 = vmatpush1.msra.mxu0 %v557
        %1741 = vmatprep.subr.mxu0 0.0
        %1742 = vmatpush1.msra.mxu0 %v558
        %1743 = vmatprep.subr.mxu0 0.0
        %1744 = vmatpush1.msra.mxu0 0.0
        %1745 = vmatprep.subr.mxu0 0.0
        %1746 = vmatpush1.msra.mxu0 0.0
        %1747 = vmatprep.subr.mxu0 0.0
        %1748 = vmatpush1.msra.mxu0 0.0
        %1749 = vmatprep.subr.mxu0 0.0
        %1750 = vmatpush1.msra.mxu0 0.0
        %1751 = vmatprep.subr.mxu0 0.0
        %1752 = vmatpush1.msra.mxu0 0.0
        %1753 = vmatprep.subr.mxu0 0.0
        %1754 = vmatpush1.msra.mxu0 0.0
        %1755 = vmatprep.subr.mxu0 0.0
        %1756 = vmatpush1.msra.mxu0 0.0
        %1757 = vmatprep.subr.mxu0 0.0
        %1758 = vmatpush1.msra.mxu0 0.0
        %1759 = vmatprep.subr.mxu0 0.0
        %1760 = vmatpush1.msra.mxu0 0.0
        %1761 = vmatprep.subr.mxu0 0.0
        %1762 = vmatpush1.msra.mxu0 0.0
        %1763 = vmatprep.subr.mxu0 0.0
        %1764 = vmatpush1.msra.mxu0 0.0
        %1765 = vmatprep.subr.mxu0 0.0
        %1766 = vmatpush1.msra.mxu0 0.0
        %1767 = vmatprep.subr.mxu0 0.0
        %1768 = vmatpush1.msra.mxu0 0.0
        %1769 = vmatprep.subr.mxu0 0.0
        %1770 = vmatpush1.msra.mxu0 0.0
        %1771 = vmatprep.subr.mxu0 0.0
        %1772 = vmatpush1.msra.mxu0 0.0
        %1773 = vmatprep.subr.mxu0 0.0
        %1774 = vmatpush1.msra.mxu0 0.0
        %1775 = vmatprep.subr.mxu0 0.0
        %1776 = vmatpush1.msra.mxu0 0.0
        %1777 = vmatprep.subr.mxu0 0.0
        %1778 = vmatpush1.msra.mxu0 0.0
        %1779 = vmatprep.subr.mxu0 0.0
        %1780 = vmatpush1.msra.mxu0 0.0
        %1781 = vmatprep.subr.mxu0 0.0
        %1782 = vmatpush1.msra.mxu0 0.0
        %1783 = vmatprep.subr.mxu0 0.0
        %1784 = vmatpush1.msra.mxu0 0.0
        %1785 = vmatprep.subr.mxu0 0.0
        %1786 = vmatpush1.msra.mxu0 0.0
        %1787 = vmatprep.subr.mxu0 0.0
        %1788 = vmatpush1.msra.mxu0 0.0
        %1789 = vmatprep.subr.mxu0 0.0
        %1790 = vmatpush1.msra.mxu0 0.0
        %1791 = vmatprep.mubr.f32.mxu0 0.0
        %1792 = vmatmul.mubr.f32.gmra.mrb[0].mxu0 %v1722
        %v1793 = vpop.f32.mrb[0].mxu0
        %v1794 = vadd.f32 %v1718, %v1793
        %v1795 = vpop.f32.mrb[0].mxu0
        %1796 = vmatprep.mubr.f32.mxu0 0.0
        %1797 = vmatmul.mubr.f32.gmra.mrb[0].mxu0 %v1725
        %v1798 = vpop.f32.mrb[0].mxu0
        %v1799 = vadd.f32 %v1718, %v1798
        %v1800 = vpop.f32.mrb[0].mxu0
        %1801 = vdwg.mxu0
        %v1802 = vadd.f32 %v1623, %v1794
        %v1803 = vadd.f32 %v1624, %v1799
        %v1804 = vsel %vm573, %v1802, 0.0
        %1805 = vadd.xlane.f32.xlu0 %v1804
        %v1806 = vpop.xlane.xlu0 %1805
        %v1807 = vsel %vm573, %v1803, 0.0
        %1808 = vadd.xlane.f32.xlu0 %v1807
        %v1809 = vpop.xlane.xlu0 %1808
        %v1810 = vmul.f32 %v1806, %v1588
        %v1811 = vmul.f32 %v1809, %v1588
        %v1812 = vsub.f32 %v1802, %v1810
        %v1813 = vsub.f32 %v1803, %v1811
        %v1814 = vmul.f32 %v1812, %v1812
        %v1815 = vmul.f32 %v1813, %v1813
        %v1816 = vsel %vm573, %v1814, 0.0
        %1817 = vadd.xlane.f32.xlu0 %v1816
        %v1818 = vpop.xlane.xlu0 %1817
        %v1819 = vsel %vm573, %v1815, 0.0
        %1820 = vadd.xlane.f32.xlu0 %v1819
        %v1821 = vpop.xlane.xlu0 %1820
        %v1822 = vmul.f32 %v1818, %v1588
        %v1823 = vmul.f32 %v1821, %v1588
        %v1824 = vadd.f32 %v1822, 1e-05
        %v1825 = vadd.f32 %v1823, 1e-05
        %v1826 = vrsqrt.pop %v1824
        %v1827 = vrsqrt.pop %v1825
        %v1828 = vmul.f32 %v1812, %v1826
        %v1829 = vmul.f32 %v1813, %v1827
        %v1831 = vlaneseq
        %v1832 = vshrl.u32 %v1831, 7
        %v1833 = vsub.s32 0, %v1832
        %v1834 = vrot.slane %v565, %v1833
        %v1836 = vmul.f32 %v1828, %v1834
        %v1837 = vmul.f32 %v1829, %v1834
        %v1839 = vlaneseq
        %v1840 = vshrl.u32 %v1839, 7
        %v1841 = vsub.s32 0, %v1840
        %v1842 = vrot.slane %v566, %v1841
        %v1844 = vadd.f32 %v1836, %v1842
        %v1845 = vadd.f32 %v1837, %v1842
        %s1846 = scalar_lea.vmem %s6, 96
        %v1847 = vld [vmem:[%s1846] sm:$0xff]
        %v1848 = vld [vmem:[%s1846 + $0x18] sm:$0xff]
        %v1849 = vld [vmem:[%s1846 + $0x30] sm:$0xff]
        %v1850 = vld [vmem:[%s1846 + $0x48] sm:$0xff]
        %v1851 = vld [vmem:[%s1846 + $0x8] sm:$0xff]
        %v1852 = vld [vmem:[%s1846 + $0x20] sm:$0xff]
        %v1853 = vld [vmem:[%s1846 + $0x38] sm:$0xff]
        %v1854 = vld [vmem:[%s1846 + $0x50] sm:$0xff]
        %v1855 = vld [vmem:[%s1846 + $0x10] sm:$0xff]
        %v1856 = vld [vmem:[%s1846 + $0x28] sm:$0xff]
        %v1857 = vld [vmem:[%s1846 + $0x40] sm:$0xff]
        %v1858 = vld [vmem:[%s1846 + $0x58] sm:$0xff]
        %s1859 = scalar_lea.vmem %s7, 64
        %v1860 = vld [vmem:[%s1859] sm:$0xff]
        %v1861 = vld [vmem:[%s1859 + $0x8] sm:$0xff]
        %v1862 = vld [vmem:[%s1859 + $0x10] sm:$0xff]
        %v1863 = vld [vmem:[%s1859 + $0x18] sm:$0xff]
        %v1864 = vld [vmem:[%s1859 + $0x20] sm:$0xff]
        %v1865 = vld [vmem:[%s1859 + $0x28] sm:$0xff]
        %v1866 = vld [vmem:[%s1859 + $0x30] sm:$0xff]
        %v1867 = vld [vmem:[%s1859 + $0x38] sm:$0xff]
        %s1868 = scalar_lea.vmem %s8, 8
        %v1869 = vld [vmem:[%s1868] sm:$0x1]
        %v1870 = vld [vmem:[%s1868 + $0x1] sm:$0x1]
        %v1871 = vld [vmem:[%s1868 + $0x2] sm:$0x1]
        %v1872 = vld [vmem:[%s1868 + $0x3] sm:$0x1]
        %v1873 = vld [vmem:[%s1868 + $0x4] sm:$0x1]
        %v1874 = vld [vmem:[%s1868 + $0x5] sm:$0x1]
        %v1875 = vld [vmem:[%s1868 + $0x6] sm:$0x1]
        %v1876 = vld [vmem:[%s1868 + $0x7] sm:$0x1]
        %v1878 = vlaneseq
        %v1879 = vshrl.u32 %v1878, 7
        %v1880 = vsub.s32 0, %v1879
        %v1881 = vrot.slane %v1869, %v1880
        %v1884 = vsel %vm573, %v1844, 0
        %v1887 = vsel %vm573, %v1845, 0
        %1889 = vmatprep.subr.mxu0 0.0
        %1890 = vmatpush1.msra.mxu0 %v1847
        %1891 = vmatprep.subr.mxu0 0.0
        %1892 = vmatpush1.msra.mxu0 %v1848
        %1893 = vmatprep.subr.mxu0 0.0
        %1894 = vmatpush1.msra.mxu0 %v1849
        %1895 = vmatprep.subr.mxu0 0.0
        %1896 = vmatpush1.msra.mxu0 %v1850
        %1897 = vmatprep.subr.mxu0 0.0
        %1898 = vmatpush1.msra.mxu0 0.0
        %1899 = vmatprep.subr.mxu0 0.0
        %1900 = vmatpush1.msra.mxu0 0.0
        %1901 = vmatprep.subr.mxu0 0.0
        %1902 = vmatpush1.msra.mxu0 0.0
        %1903 = vmatprep.subr.mxu0 0.0
        %1904 = vmatpush1.msra.mxu0 0.0
        %1905 = vmatprep.subr.mxu0 0.0
        %1906 = vmatpush1.msra.mxu0 0.0
        %1907 = vmatprep.subr.mxu0 0.0
        %1908 = vmatpush1.msra.mxu0 0.0
        %1909 = vmatprep.subr.mxu0 0.0
        %1910 = vmatpush1.msra.mxu0 0.0
        %1911 = vmatprep.subr.mxu0 0.0
        %1912 = vmatpush1.msra.mxu0 0.0
        %1913 = vmatprep.subr.mxu0 0.0
        %1914 = vmatpush1.msra.mxu0 0.0
        %1915 = vmatprep.subr.mxu0 0.0
        %1916 = vmatpush1.msra.mxu0 0.0
        %1917 = vmatprep.subr.mxu0 0.0
        %1918 = vmatpush1.msra.mxu0 0.0
        %1919 = vmatprep.subr.mxu0 0.0
        %1920 = vmatpush1.msra.mxu0 0.0
        %1921 = vmatprep.subr.mxu0 0.0
        %1922 = vmatpush1.msra.mxu0 0.0
        %1923 = vmatprep.subr.mxu0 0.0
        %1924 = vmatpush1.msra.mxu0 0.0
        %1925 = vmatprep.subr.mxu0 0.0
        %1926 = vmatpush1.msra.mxu0 0.0
        %1927 = vmatprep.subr.mxu0 0.0
        %1928 = vmatpush1.msra.mxu0 0.0
        %1929 = vmatprep.subr.mxu0 0.0
        %1930 = vmatpush1.msra.mxu0 0.0
        %1931 = vmatprep.subr.mxu0 0.0
        %1932 = vmatpush1.msra.mxu0 0.0
        %1933 = vmatprep.subr.mxu0 0.0
        %1934 = vmatpush1.msra.mxu0 0.0
        %1935 = vmatprep.subr.mxu0 0.0
        %1936 = vmatpush1.msra.mxu0 0.0
        %1937 = vmatprep.subr.mxu0 0.0
        %1938 = vmatpush1.msra.mxu0 0.0
        %1939 = vmatprep.subr.mxu0 0.0
        %1940 = vmatpush1.msra.mxu0 0.0
        %1941 = vmatprep.subr.mxu0 0.0
        %1942 = vmatpush1.msra.mxu0 0.0
        %1943 = vmatprep.subr.mxu0 0.0
        %1944 = vmatpush1.msra.mxu0 0.0
        %1945 = vmatprep.subr.mxu0 0.0
        %1946 = vmatpush1.msra.mxu0 0.0
        %1947 = vmatprep.subr.mxu0 0.0
        %1948 = vmatpush1.msra.mxu0 0.0
        %1949 = vmatprep.subr.mxu0 0.0
        %1950 = vmatpush1.msra.mxu0 0.0
        %1951 = vmatprep.subr.mxu0 0.0
        %1952 = vmatpush1.msra.mxu0 0.0
        %1953 = vmatprep.mubr.f32.mxu0 0.0
        %1954 = vmatmul.mubr.f32.gmra.mrb[0].mxu0 %v1884
        %v1955 = vpop.f32.mrb[0].mxu0
        %v1956 = vadd.f32 %v1881, %v1955
        %v1957 = vpop.f32.mrb[0].mxu0
        %1958 = vmatprep.mubr.f32.mxu0 0.0
        %1959 = vmatmul.mubr.f32.gmra.mrb[0].mxu0 %v1887
        %v1960 = vpop.f32.mrb[0].mxu0
        %v1961 = vadd.f32 %v1881, %v1960
        %v1962 = vpop.f32.mrb[0].mxu0
        %1963 = vdwg.mxu0
        %v1964 = vmul.f32 %v1956, 0.35355338
        %v1965 = vmul.f32 %v1961, 0.35355338
        %1968 = vrot.lane.b32.xlu0 %v1956, 96
        %v1969 = vpop.permute.xlu0 %1968
        %1970 = vrot.lane.b32.xlu0 %v1961, 96
        %v1971 = vpop.permute.xlu0 %1970
        %v1973 = vsel %vm667, %v1964, 0
        %v1976 = vsel %vm667, %v1965, 0
        %v1978 = vsel %vm667, %v1969, 0
        %v1980 = vsel %vm667, %v1971, 0
        %1982 = vmatprep.subr.mxu0 0.0
        %1983 = vmatpush1.xpose.msra.mxu0 %v1978
        %1984 = vmatprep.subr.mxu0 0.0
        %1985 = vmatpush1.xpose.msra.mxu0 %v1980
        %1986 = vmatprep.subr.mxu0 0.0
        %1987 = vmatpush1.xpose.msra.mxu0 0.0
        %1988 = vmatprep.subr.mxu0 0.0
        %1989 = vmatpush1.xpose.msra.mxu0 0.0
        %1990 = vmatprep.subr.mxu0 0.0
        %1991 = vmatpush1.xpose.msra.mxu0 0.0
        %1992 = vmatprep.subr.mxu0 0.0
        %1993 = vmatpush1.xpose.msra.mxu0 0.0
        %1994 = vmatprep.subr.mxu0 0.0
        %1995 = vmatpush1.xpose.msra.mxu0 0.0
        %1996 = vmatprep.subr.mxu0 0.0
        %1997 = vmatpush1.xpose.msra.mxu0 0.0
        %1998 = vmatprep.subr.mxu0 0.0
        %1999 = vmatpush1.xpose.msra.mxu0 0.0
        %2000 = vmatprep.subr.mxu0 0.0
        %2001 = vmatpush1.xpose.msra.mxu0 0.0
        %2002 = vmatprep.subr.mxu0 0.0
        %2003 = vmatpush1.xpose.msra.mxu0 0.0
        %2004 = vmatprep.subr.mxu0 0.0
        %2005 = vmatpush1.xpose.msra.mxu0 0.0
        %2006 = vmatprep.subr.mxu0 0.0
        %2007 = vmatpush1.xpose.msra.mxu0 0.0
        %2008 = vmatprep.subr.mxu0 0.0
        %2009 = vmatpush1.xpose.msra.mxu0 0.0
        %2010 = vmatprep.subr.mxu0 0.0
        %2011 = vmatpush1.xpose.msra.mxu0 0.0
        %2012 = vmatprep.subr.mxu0 0.0
        %2013 = vmatpush1.xpose.msra.mxu0 0.0
        %2014 = vmatprep.subr.mxu0 0.0
        %2015 = vmatpush1.xpose.msra.mxu0 0.0
        %2016 = vmatprep.subr.mxu0 0.0
        %2017 = vmatpush1.xpose.msra.mxu0 0.0
        %2018 = vmatprep.subr.mxu0 0.0
        %2019 = vmatpush1.xpose.msra.mxu0 0.0
        %2020 = vmatprep.subr.mxu0 0.0
        %2021 = vmatpush1.xpose.msra.mxu0 0.0
        %2022 = vmatprep.subr.mxu0 0.0
        %2023 = vmatpush1.xpose.msra.mxu0 0.0
        %2024 = vmatprep.subr.mxu0 0.0
        %2025 = vmatpush1.xpose.msra.mxu0 0.0
        %2026 = vmatprep.subr.mxu0 0.0
        %2027 = vmatpush1.xpose.msra.mxu0 0.0
        %2028 = vmatprep.subr.mxu0 0.0
        %2029 = vmatpush1.xpose.msra.mxu0 0.0
        %2030 = vmatprep.subr.mxu0 0.0
        %2031 = vmatpush1.xpose.msra.mxu0 0.0
        %2032 = vmatprep.subr.mxu0 0.0
        %2033 = vmatpush1.xpose.msra.mxu0 0.0
        %2034 = vmatprep.subr.mxu0 0.0
        %2035 = vmatpush1.xpose.msra.mxu0 0.0
        %2036 = vmatprep.subr.mxu0 0.0
        %2037 = vmatpush1.xpose.msra.mxu0 0.0
        %2038 = vmatprep.subr.mxu0 0.0
        %2039 = vmatpush1.xpose.msra.mxu0 0.0
        %2040 = vmatprep.subr.mxu0 0.0
        %2041 = vmatpush1.xpose.msra.mxu0 0.0
        %2042 = vmatprep.subr.mxu0 0.0
        %2043 = vmatpush1.xpose.msra.mxu0 0.0
        %2044 = vmatprep.subr.mxu0 0.0
        %2045 = vmatpush1.xpose.msra.mxu0 0.0
        %2046 = vmatprep.mubr.f32.mxu0 0.0
        %2047 = vmatmul.mubr.f32.gmra.mrb[0].mxu0 %v1973
        %v2048 = vpop.f32.mrb[0].mxu0
        %v2049 = vadd.f32 %v660, %v2048
        %v2050 = vpop.f32.mrb[0].mxu0
        %2051 = vmatprep.mubr.f32.mxu0 0.0
        %2052 = vmatmul.mubr.f32.gmra.mrb[0].mxu0 %v1976
        %v2053 = vpop.f32.mrb[0].mxu0
        %v2054 = vadd.f32 %v660, %v2053
        %v2055 = vpop.f32.mrb[0].mxu0
        %2056 = vdwg.mxu0
        %v2057 = vsel %vm449, %v2049, -inf
        %2058 = vmax.xlane.f32.xlu0 %v2057
        %v2059 = vpop.xlane.xlu0 %2058
        %v2060 = vsel %vm449, %v2054, -inf
        %2061 = vmax.xlane.f32.xlu0 %v2060
        %v2062 = vpop.xlane.xlu0 %2061
        %v2063 = vsub.f32 %v2049, %v2059
        %v2064 = vsub.f32 %v2054, %v2062
        %v2065 = vmul.f32 %v2063, 1.442695
        %v2066 = vpow.pop %v2065
        %v2067 = vmul.f32 %v2064, 1.442695
        %v2068 = vpow.pop %v2067
        %v2069 = vsel %vm449, %v2066, 0.0
        %2070 = vadd.xlane.f32.xlu0 %v2069
        %v2071 = vpop.xlane.xlu0 %2070
        %v2072 = vsel %vm449, %v2068, 0.0
        %2073 = vadd.xlane.f32.xlu0 %v2072
        %v2074 = vpop.xlane.xlu0 %2073
        %v2075 = vrcp.pop %v2071
        %v2076 = vrcp.pop %v2074
        %v2077 = vmul.f32 %v2066, %v2075
        %v2078 = vmul.f32 %v2068, %v2076
        %2079 = vrot.lane.b32.xlu0 %v1956, 64
        %v2080 = vpop.permute.xlu0 %2079
        %2081 = vrot.lane.b32.xlu0 %v1961, 64
        %v2082 = vpop.permute.xlu0 %2081
        %v2086 = vsel %vm449, %v2077, 0
        %v2089 = vsel %vm449, %v2078, 0
        %2091 = vmatprep.subr.mxu0 0.0
        %2092 = vmatpush1.msra.mxu0 %v2080
        %2093 = vmatprep.subr.mxu0 0.0
        %2094 = vmatpush1.msra.mxu0 %v2082
        %2095 = vmatprep.subr.mxu0 0.0
        %2096 = vmatpush1.msra.mxu0 0.0
        %2097 = vmatprep.subr.mxu0 0.0
        %2098 = vmatpush1.msra.mxu0 0.0
        %2099 = vmatprep.subr.mxu0 0.0
        %2100 = vmatpush1.msra.mxu0 0.0
        %2101 = vmatprep.subr.mxu0 0.0
        %2102 = vmatpush1.msra.mxu0 0.0
        %2103 = vmatprep.subr.mxu0 0.0
        %2104 = vmatpush1.msra.mxu0 0.0
        %2105 = vmatprep.subr.mxu0 0.0
        %2106 = vmatpush1.msra.mxu0 0.0
        %2107 = vmatprep.subr.mxu0 0.0
        %2108 = vmatpush1.msra.mxu0 0.0
        %2109 = vmatprep.subr.mxu0 0.0
        %2110 = vmatpush1.msra.mxu0 0.0
        %2111 = vmatprep.subr.mxu0 0.0
        %2112 = vmatpush1.msra.mxu0 0.0
        %2113 = vmatprep.subr.mxu0 0.0
        %2114 = vmatpush1.msra.mxu0 0.0
        %2115 = vmatprep.subr.mxu0 0.0
        %2116 = vmatpush1.msra.mxu0 0.0
        %2117 = vmatprep.subr.mxu0 0.0
        %2118 = vmatpush1.msra.mxu0 0.0
        %2119 = vmatprep.subr.mxu0 0.0
        %2120 = vmatpush1.msra.mxu0 0.0
        %2121 = vmatprep.subr.mxu0 0.0
        %2122 = vmatpush1.msra.mxu0 0.0
        %2123 = vmatprep.subr.mxu0 0.0
        %2124 = vmatpush1.msra.mxu0 0.0
        %2125 = vmatprep.subr.mxu0 0.0
        %2126 = vmatpush1.msra.mxu0 0.0
        %2127 = vmatprep.subr.mxu0 0.0
        %2128 = vmatpush1.msra.mxu0 0.0
        %2129 = vmatprep.subr.mxu0 0.0
        %2130 = vmatpush1.msra.mxu0 0.0
        %2131 = vmatprep.subr.mxu0 0.0
        %2132 = vmatpush1.msra.mxu0 0.0
        %2133 = vmatprep.subr.mxu0 0.0
        %2134 = vmatpush1.msra.mxu0 0.0
        %2135 = vmatprep.subr.mxu0 0.0
        %2136 = vmatpush1.msra.mxu0 0.0
        %2137 = vmatprep.subr.mxu0 0.0
        %2138 = vmatpush1.msra.mxu0 0.0
        %2139 = vmatprep.subr.mxu0 0.0
        %2140 = vmatpush1.msra.mxu0 0.0
        %2141 = vmatprep.subr.mxu0 0.0
        %2142 = vmatpush1.msra.mxu0 0.0
        %2143 = vmatprep.subr.mxu0 0.0
        %2144 = vmatpush1.msra.mxu0 0.0
        %2145 = vmatprep.subr.mxu0 0.0
        %2146 = vmatpush1.msra.mxu0 0.0
        %2147 = vmatprep.subr.mxu0 0.0
        %2148 = vmatpush1.msra.mxu0 0.0
        %2149 = vmatprep.subr.mxu0 0.0
        %2150 = vmatpush1.msra.mxu0 0.0
        %2151 = vmatprep.subr.mxu0 0.0
        %2152 = vmatpush1.msra.mxu0 0.0
        %2153 = vmatprep.subr.mxu0 0.0
        %2154 = vmatpush1.msra.mxu0 0.0
        %2155 = vmatprep.mubr.f32.mxu0 0.0
        %2156 = vmatmul.mubr.f32.gmra.mrb[0].mxu0 %v2086
        %v2157 = vpop.f32.mrb[0].mxu0
        %v2158 = vadd.f32 0.0, %v2157
        %v2159 = vpop.f32.mrb[0].mxu0
        %2160 = vmatprep.mubr.f32.mxu0 0.0
        %2161 = vmatmul.mubr.f32.gmra.mrb[0].mxu0 %v2089
        %v2162 = vpop.f32.mrb[0].mxu0
        %v2163 = vadd.f32 0.0, %v2162
        %v2164 = vpop.f32.mrb[0].mxu0
        %2165 = vdwg.mxu0
        %2166 = vrot.lane.b32.xlu0 %v1964, 120
        %v2167 = vpop.permute.xlu0 %2166
        %2168 = vrot.lane.b32.xlu0 %v1965, 120
        %v2169 = vpop.permute.xlu0 %2168
        %2170 = vrot.lane.b32.xlu0 %v1956, 88
        %v2171 = vpop.permute.xlu0 %2170
        %2172 = vrot.lane.b32.xlu0 %v1961, 88
        %v2173 = vpop.permute.xlu0 %2172
        %v2174 = vsel %vm667, %v2167, 0
        %v2176 = vsel %vm667, %v2169, 0
        %v2178 = vsel %vm667, %v2171, 0
        %v2180 = vsel %vm667, %v2173, 0
        %2182 = vmatprep.subr.mxu0 0.0
        %2183 = vmatpush1.xpose.msra.mxu0 %v2178
        %2184 = vmatprep.subr.mxu0 0.0
        %2185 = vmatpush1.xpose.msra.mxu0 %v2180
        %2186 = vmatprep.subr.mxu0 0.0
        %2187 = vmatpush1.xpose.msra.mxu0 0.0
        %2188 = vmatprep.subr.mxu0 0.0
        %2189 = vmatpush1.xpose.msra.mxu0 0.0
        %2190 = vmatprep.subr.mxu0 0.0
        %2191 = vmatpush1.xpose.msra.mxu0 0.0
        %2192 = vmatprep.subr.mxu0 0.0
        %2193 = vmatpush1.xpose.msra.mxu0 0.0
        %2194 = vmatprep.subr.mxu0 0.0
        %2195 = vmatpush1.xpose.msra.mxu0 0.0
        %2196 = vmatprep.subr.mxu0 0.0
        %2197 = vmatpush1.xpose.msra.mxu0 0.0
        %2198 = vmatprep.subr.mxu0 0.0
        %2199 = vmatpush1.xpose.msra.mxu0 0.0
        %2200 = vmatprep.subr.mxu0 0.0
        %2201 = vmatpush1.xpose.msra.mxu0 0.0
        %2202 = vmatprep.subr.mxu0 0.0
        %2203 = vmatpush1.xpose.msra.mxu0 0.0
        %2204 = vmatprep.subr.mxu0 0.0
        %2205 = vmatpush1.xpose.msra.mxu0 0.0
        %2206 = vmatprep.subr.mxu0 0.0
        %2207 = vmatpush1.xpose.msra.mxu0 0.0
        %2208 = vmatprep.subr.mxu0 0.0
        %2209 = vmatpush1.xpose.msra.mxu0 0.0
        %2210 = vmatprep.subr.mxu0 0.0
        %2211 = vmatpush1.xpose.msra.mxu0 0.0
        %2212 = vmatprep.subr.mxu0 0.0
        %2213 = vmatpush1.xpose.msra.mxu0 0.0
        %2214 = vmatprep.subr.mxu0 0.0
        %2215 = vmatpush1.xpose.msra.mxu0 0.0
        %2216 = vmatprep.subr.mxu0 0.0
        %2217 = vmatpush1.xpose.msra.mxu0 0.0
        %2218 = vmatprep.subr.mxu0 0.0
        %2219 = vmatpush1.xpose.msra.mxu0 0.0
        %2220 = vmatprep.subr.mxu0 0.0
        %2221 = vmatpush1.xpose.msra.mxu0 0.0
        %2222 = vmatprep.subr.mxu0 0.0
        %2223 = vmatpush1.xpose.msra.mxu0 0.0
        %2224 = vmatprep.subr.mxu0 0.0
        %2225 = vmatpush1.xpose.msra.mxu0 0.0
        %2226 = vmatprep.subr.mxu0 0.0
        %2227 = vmatpush1.xpose.msra.mxu0 0.0
        %2228 = vmatprep.subr.mxu0 0.0
        %2229 = vmatpush1.xpose.msra.mxu0 0.0
        %2230 = vmatprep.subr.mxu0 0.0
        %2231 = vmatpush1.xpose.msra.mxu0 0.0
        %2232 = vmatprep.subr.mxu0 0.0
        %2233 = vmatpush1.xpose.msra.mxu0 0.0
        %2234 = vmatprep.subr.mxu0 0.0
        %2235 = vmatpush1.xpose.msra.mxu0 0.0
        %2236 = vmatprep.subr.mxu0 0.0
        %2237 = vmatpush1.xpose.msra.mxu0 0.0
        %2238 = vmatprep.subr.mxu0 0.0
        %2239 = vmatpush1.xpose.msra.mxu0 0.0
        %2240 = vmatprep.subr.mxu0 0.0
        %2241 = vmatpush1.xpose.msra.mxu0 0.0
        %2242 = vmatprep.subr.mxu0 0.0
        %2243 = vmatpush1.xpose.msra.mxu0 0.0
        %2244 = vmatprep.subr.mxu0 0.0
        %2245 = vmatpush1.xpose.msra.mxu0 0.0
        %2246 = vmatprep.mubr.f32.mxu0 0.0
        %2247 = vmatmul.mubr.f32.gmra.mrb[0].mxu0 %v2174
        %v2248 = vpop.f32.mrb[0].mxu0
        %v2249 = vadd.f32 %v660, %v2248
        %v2250 = vpop.f32.mrb[0].mxu0
        %2251 = vmatprep.mubr.f32.mxu0 0.0
        %2252 = vmatmul.mubr.f32.gmra.mrb[0].mxu0 %v2176
        %v2253 = vpop.f32.mrb[0].mxu0
        %v2254 = vadd.f32 %v660, %v2253
        %v2255 = vpop.f32.mrb[0].mxu0
        %2256 = vdwg.mxu0
        %v2257 = vsel %vm449, %v2249, -inf
        %2258 = vmax.xlane.f32.xlu0 %v2257
        %v2259 = vpop.xlane.xlu0 %2258
        %v2260 = vsel %vm449, %v2254, -inf
        %2261 = vmax.xlane.f32.xlu0 %v2260
        %v2262 = vpop.xlane.xlu0 %2261
        %v2263 = vsub.f32 %v2249, %v2259
        %v2264 = vsub.f32 %v2254, %v2262
        %v2265 = vmul.f32 %v2263, 1.442695
        %v2266 = vpow.pop %v2265
        %v2267 = vmul.f32 %v2264, 1.442695
        %v2268 = vpow.pop %v2267
        %v2269 = vsel %vm449, %v2266, 0.0
        %2270 = vadd.xlane.f32.xlu0 %v2269
        %v2271 = vpop.xlane.xlu0 %2270
        %v2272 = vsel %vm449, %v2268, 0.0
        %2273 = vadd.xlane.f32.xlu0 %v2272
        %v2274 = vpop.xlane.xlu0 %2273
        %v2275 = vrcp.pop %v2271
        %v2276 = vrcp.pop %v2274
        %v2277 = vmul.f32 %v2266, %v2275
        %v2278 = vmul.f32 %v2268, %v2276
        %2279 = vrot.lane.b32.xlu0 %v1956, 56
        %v2280 = vpop.permute.xlu0 %2279
        %2281 = vrot.lane.b32.xlu0 %v1961, 56
        %v2282 = vpop.permute.xlu0 %2281
        %v2286 = vsel %vm449, %v2277, 0
        %v2289 = vsel %vm449, %v2278, 0
        %2291 = vmatprep.subr.mxu0 0.0
        %2292 = vmatpush1.msra.mxu0 %v2280
        %2293 = vmatprep.subr.mxu0 0.0
        %2294 = vmatpush1.msra.mxu0 %v2282
        %2295 = vmatprep.subr.mxu0 0.0
        %2296 = vmatpush1.msra.mxu0 0.0
        %2297 = vmatprep.subr.mxu0 0.0
        %2298 = vmatpush1.msra.mxu0 0.0
        %2299 = vmatprep.subr.mxu0 0.0
        %2300 = vmatpush1.msra.mxu0 0.0
        %2301 = vmatprep.subr.mxu0 0.0
        %2302 = vmatpush1.msra.mxu0 0.0
        %2303 = vmatprep.subr.mxu0 0.0
        %2304 = vmatpush1.msra.mxu0 0.0
        %2305 = vmatprep.subr.mxu0 0.0
        %2306 = vmatpush1.msra.mxu0 0.0
        %2307 = vmatprep.subr.mxu0 0.0
        %2308 = vmatpush1.msra.mxu0 0.0
        %2309 = vmatprep.subr.mxu0 0.0
        %2310 = vmatpush1.msra.mxu0 0.0
        %2311 = vmatprep.subr.mxu0 0.0
        %2312 = vmatpush1.msra.mxu0 0.0
        %2313 = vmatprep.subr.mxu0 0.0
        %2314 = vmatpush1.msra.mxu0 0.0
        %2315 = vmatprep.subr.mxu0 0.0
        %2316 = vmatpush1.msra.mxu0 0.0
        %2317 = vmatprep.subr.mxu0 0.0
        %2318 = vmatpush1.msra.mxu0 0.0
        %2319 = vmatprep.subr.mxu0 0.0
        %2320 = vmatpush1.msra.mxu0 0.0
        %2321 = vmatprep.subr.mxu0 0.0
        %2322 = vmatpush1.msra.mxu0 0.0
        %2323 = vmatprep.subr.mxu0 0.0
        %2324 = vmatpush1.msra.mxu0 0.0
        %2325 = vmatprep.subr.mxu0 0.0
        %2326 = vmatpush1.msra.mxu0 0.0
        %2327 = vmatprep.subr.mxu0 0.0
        %2328 = vmatpush1.msra.mxu0 0.0
        %2329 = vmatprep.subr.mxu0 0.0
        %2330 = vmatpush1.msra.mxu0 0.0
        %2331 = vmatprep.subr.mxu0 0.0
        %2332 = vmatpush1.msra.mxu0 0.0
        %2333 = vmatprep.subr.mxu0 0.0
        %2334 = vmatpush1.msra.mxu0 0.0
        %2335 = vmatprep.subr.mxu0 0.0
        %2336 = vmatpush1.msra.mxu0 0.0
        %2337 = vmatprep.subr.mxu0 0.0
        %2338 = vmatpush1.msra.mxu0 0.0
        %2339 = vmatprep.subr.mxu0 0.0
        %2340 = vmatpush1.msra.mxu0 0.0
        %2341 = vmatprep.subr.mxu0 0.0
        %2342 = vmatpush1.msra.mxu0 0.0
        %2343 = vmatprep.subr.mxu0 0.0
        %2344 = vmatpush1.msra.mxu0 0.0
        %2345 = vmatprep.subr.mxu0 0.0
        %2346 = vmatpush1.msra.mxu0 0.0
        %2347 = vmatprep.subr.mxu0 0.0
        %2348 = vmatpush1.msra.mxu0 0.0
        %2349 = vmatprep.subr.mxu0 0.0
        %2350 = vmatpush1.msra.mxu0 0.0
        %2351 = vmatprep.subr.mxu0 0.0
        %2352 = vmatpush1.msra.mxu0 0.0
        %2353 = vmatprep.subr.mxu0 0.0
        %2354 = vmatpush1.msra.mxu0 0.0
        %2355 = vmatprep.mubr.f32.mxu0 0.0
        %2356 = vmatmul.mubr.f32.gmra.mrb[0].mxu0 %v2286
        %v2357 = vpop.f32.mrb[0].mxu0
        %v2358 = vadd.f32 0.0, %v2357
        %v2359 = vpop.f32.mrb[0].mxu0
        %2360 = vmatprep.mubr.f32.mxu0 0.0
        %2361 = vmatmul.mubr.f32.gmra.mrb[0].mxu0 %v2289
        %v2362 = vpop.f32.mrb[0].mxu0
        %v2363 = vadd.f32 0.0, %v2362
        %v2364 = vpop.f32.mrb[0].mxu0
        %2365 = vdwg.mxu0
        %2366 = vrot.lane.b32.xlu0 %v1964, 112
        %v2367 = vpop.permute.xlu0 %2366
        %2368 = vrot.lane.b32.xlu0 %v1965, 112
        %v2369 = vpop.permute.xlu0 %2368
        %2370 = vrot.lane.b32.xlu0 %v1956, 80
        %v2371 = vpop.permute.xlu0 %2370
        %2372 = vrot.lane.b32.xlu0 %v1961, 80
        %v2373 = vpop.permute.xlu0 %2372
        %v2374 = vsel %vm667, %v2367, 0
        %v2376 = vsel %vm667, %v2369, 0
        %v2378 = vsel %vm667, %v2371, 0
        %v2380 = vsel %vm667, %v2373, 0
        %2382 = vmatprep.subr.mxu0 0.0
        %2383 = vmatpush1.xpose.msra.mxu0 %v2378
        %2384 = vmatprep.subr.mxu0 0.0
        %2385 = vmatpush1.xpose.msra.mxu0 %v2380
        %2386 = vmatprep.subr.mxu0 0.0
        %2387 = vmatpush1.xpose.msra.mxu0 0.0
        %2388 = vmatprep.subr.mxu0 0.0
        %2389 = vmatpush1.xpose.msra.mxu0 0.0
        %2390 = vmatprep.subr.mxu0 0.0
        %2391 = vmatpush1.xpose.msra.mxu0 0.0
        %2392 = vmatprep.subr.mxu0 0.0
        %2393 = vmatpush1.xpose.msra.mxu0 0.0
        %2394 = vmatprep.subr.mxu0 0.0
        %2395 = vmatpush1.xpose.msra.mxu0 0.0
        %2396 = vmatprep.subr.mxu0 0.0
        %2397 = vmatpush1.xpose.msra.mxu0 0.0
        %2398 = vmatprep.subr.mxu0 0.0
        %2399 = vmatpush1.xpose.msra.mxu0 0.0
        %2400 = vmatprep.subr.mxu0 0.0
        %2401 = vmatpush1.xpose.msra.mxu0 0.0
        %2402 = vmatprep.subr.mxu0 0.0
        %2403 = vmatpush1.xpose.msra.mxu0 0.0
        %2404 = vmatprep.subr.mxu0 0.0
        %2405 = vmatpush1.xpose.msra.mxu0 0.0
        %2406 = vmatprep.subr.mxu0 0.0
        %2407 = vmatpush1.xpose.msra.mxu0 0.0
        %2408 = vmatprep.subr.mxu0 0.0
        %2409 = vmatpush1.xpose.msra.mxu0 0.0
        %2410 = vmatprep.subr.mxu0 0.0
        %2411 = vmatpush1.xpose.msra.mxu0 0.0
        %2412 = vmatprep.subr.mxu0 0.0
        %2413 = vmatpush1.xpose.msra.mxu0 0.0
        %2414 = vmatprep.subr.mxu0 0.0
        %2415 = vmatpush1.xpose.msra.mxu0 0.0
        %2416 = vmatprep.subr.mxu0 0.0
        %2417 = vmatpush1.xpose.msra.mxu0 0.0
        %2418 = vmatprep.subr.mxu0 0.0
        %2419 = vmatpush1.xpose.msra.mxu0 0.0
        %2420 = vmatprep.subr.mxu0 0.0
        %2421 = vmatpush1.xpose.msra.mxu0 0.0
        %2422 = vmatprep.subr.mxu0 0.0
        %2423 = vmatpush1.xpose.msra.mxu0 0.0
        %2424 = vmatprep.subr.mxu0 0.0
        %2425 = vmatpush1.xpose.msra.mxu0 0.0
        %2426 = vmatprep.subr.mxu0 0.0
        %2427 = vmatpush1.xpose.msra.mxu0 0.0
        %2428 = vmatprep.subr.mxu0 0.0
        %2429 = vmatpush1.xpose.msra.mxu0 0.0
        %2430 = vmatprep.subr.mxu0 0.0
        %2431 = vmatpush1.xpose.msra.mxu0 0.0
        %2432 = vmatprep.subr.mxu0 0.0
        %2433 = vmatpush1.xpose.msra.mxu0 0.0
        %2434 = vmatprep.subr.mxu0 0.0
        %2435 = vmatpush1.xpose.msra.mxu0 0.0
        %2436 = vmatprep.subr.mxu0 0.0
        %2437 = vmatpush1.xpose.msra.mxu0 0.0
        %2438 = vmatprep.subr.mxu0 0.0
        %2439 = vmatpush1.xpose.msra.mxu0 0.0
        %2440 = vmatprep.subr.mxu0 0.0
        %2441 = vmatpush1.xpose.msra.mxu0 0.0
        %2442 = vmatprep.subr.mxu0 0.0
        %2443 = vmatpush1.xpose.msra.mxu0 0.0
        %2444 = vmatprep.subr.mxu0 0.0
        %2445 = vmatpush1.xpose.msra.mxu0 0.0
        %2446 = vmatprep.mubr.f32.mxu0 0.0
        %2447 = vmatmul.mubr.f32.gmra.mrb[0].mxu0 %v2374
        %v2448 = vpop.f32.mrb[0].mxu0
        %v2449 = vadd.f32 %v660, %v2448
        %v2450 = vpop.f32.mrb[0].mxu0
        %2451 = vmatprep.mubr.f32.mxu0 0.0
        %2452 = vmatmul.mubr.f32.gmra.mrb[0].mxu0 %v2376
        %v2453 = vpop.f32.mrb[0].mxu0
        %v2454 = vadd.f32 %v660, %v2453
        %v2455 = vpop.f32.mrb[0].mxu0
        %2456 = vdwg.mxu0
        %v2457 = vsel %vm449, %v2449, -inf
        %2458 = vmax.xlane.f32.xlu0 %v2457
        %v2459 = vpop.xlane.xlu0 %2458
        %v2460 = vsel %vm449, %v2454, -inf
        %2461 = vmax.xlane.f32.xlu0 %v2460
        %v2462 = vpop.xlane.xlu0 %2461
        %v2463 = vsub.f32 %v2449, %v2459
        %v2464 = vsub.f32 %v2454, %v2462
        %v2465 = vmul.f32 %v2463, 1.442695
        %v2466 = vpow.pop %v2465
        %v2467 = vmul.f32 %v2464, 1.442695
        %v2468 = vpow.pop %v2467
        %v2469 = vsel %vm449, %v2466, 0.0
        %2470 = vadd.xlane.f32.xlu0 %v2469
        %v2471 = vpop.xlane.xlu0 %2470
        %v2472 = vsel %vm449, %v2468, 0.0
        %2473 = vadd.xlane.f32.xlu0 %v2472
        %v2474 = vpop.xlane.xlu0 %2473
        %v2475 = vrcp.pop %v2471
        %v2476 = vrcp.pop %v2474
        %v2477 = vmul.f32 %v2466, %v2475
        %v2478 = vmul.f32 %v2468, %v2476
        %2479 = vrot.lane.b32.xlu0 %v1956, 48
        %v2480 = vpop.permute.xlu0 %2479
        %2481 = vrot.lane.b32.xlu0 %v1961, 48
        %v2482 = vpop.permute.xlu0 %2481
        %v2486 = vsel %vm449, %v2477, 0
        %v2489 = vsel %vm449, %v2478, 0
        %2491 = vmatprep.subr.mxu0 0.0
        %2492 = vmatpush1.msra.mxu0 %v2480
        %2493 = vmatprep.subr.mxu0 0.0
        %2494 = vmatpush1.msra.mxu0 %v2482
        %2495 = vmatprep.subr.mxu0 0.0
        %2496 = vmatpush1.msra.mxu0 0.0
        %2497 = vmatprep.subr.mxu0 0.0
        %2498 = vmatpush1.msra.mxu0 0.0
        %2499 = vmatprep.subr.mxu0 0.0
        %2500 = vmatpush1.msra.mxu0 0.0
        %2501 = vmatprep.subr.mxu0 0.0
        %2502 = vmatpush1.msra.mxu0 0.0
        %2503 = vmatprep.subr.mxu0 0.0
        %2504 = vmatpush1.msra.mxu0 0.0
        %2505 = vmatprep.subr.mxu0 0.0
        %2506 = vmatpush1.msra.mxu0 0.0
        %2507 = vmatprep.subr.mxu0 0.0
        %2508 = vmatpush1.msra.mxu0 0.0
        %2509 = vmatprep.subr.mxu0 0.0
        %2510 = vmatpush1.msra.mxu0 0.0
        %2511 = vmatprep.subr.mxu0 0.0
        %2512 = vmatpush1.msra.mxu0 0.0
        %2513 = vmatprep.subr.mxu0 0.0
        %2514 = vmatpush1.msra.mxu0 0.0
        %2515 = vmatprep.subr.mxu0 0.0
        %2516 = vmatpush1.msra.mxu0 0.0
        %2517 = vmatprep.subr.mxu0 0.0
        %2518 = vmatpush1.msra.mxu0 0.0
        %2519 = vmatprep.subr.mxu0 0.0
        %2520 = vmatpush1.msra.mxu0 0.0
        %2521 = vmatprep.subr.mxu0 0.0
        %2522 = vmatpush1.msra.mxu0 0.0
        %2523 = vmatprep.subr.mxu0 0.0
        %2524 = vmatpush1.msra.mxu0 0.0
        %2525 = vmatprep.subr.mxu0 0.0
        %2526 = vmatpush1.msra.mxu0 0.0
        %2527 = vmatprep.subr.mxu0 0.0
        %2528 = vmatpush1.msra.mxu0 0.0
        %2529 = vmatprep.subr.mxu0 0.0
        %2530 = vmatpush1.msra.mxu0 0.0
        %2531 = vmatprep.subr.mxu0 0.0
        %2532 = vmatpush1.msra.mxu0 0.0
        %2533 = vmatprep.subr.mxu0 0.0
        %2534 = vmatpush1.msra.mxu0 0.0
        %2535 = vmatprep.subr.mxu0 0.0
        %2536 = vmatpush1.msra.mxu0 0.0
        %2537 = vmatprep.subr.mxu0 0.0
        %2538 = vmatpush1.msra.mxu0 0.0
        %2539 = vmatprep.subr.mxu0 0.0
        %2540 = vmatpush1.msra.mxu0 0.0
        %2541 = vmatprep.subr.mxu0 0.0
        %2542 = vmatpush1.msra.mxu0 0.0
        %2543 = vmatprep.subr.mxu0 0.0
        %2544 = vmatpush1.msra.mxu0 0.0
        %2545 = vmatprep.subr.mxu0 0.0
        %2546 = vmatpush1.msra.mxu0 0.0
        %2547 = vmatprep.subr.mxu0 0.0
        %2548 = vmatpush1.msra.mxu0 0.0
        %2549 = vmatprep.subr.mxu0 0.0
        %2550 = vmatpush1.msra.mxu0 0.0
        %2551 = vmatprep.subr.mxu0 0.0
        %2552 = vmatpush1.msra.mxu0 0.0
        %2553 = vmatprep.subr.mxu0 0.0
        %2554 = vmatpush1.msra.mxu0 0.0
        %2555 = vmatprep.mubr.f32.mxu0 0.0
        %2556 = vmatmul.mubr.f32.gmra.mrb[0].mxu0 %v2486
        %v2557 = vpop.f32.mrb[0].mxu0
        %v2558 = vadd.f32 0.0, %v2557
        %v2559 = vpop.f32.mrb[0].mxu0
        %2560 = vmatprep.mubr.f32.mxu0 0.0
        %2561 = vmatmul.mubr.f32.gmra.mrb[0].mxu0 %v2489
        %v2562 = vpop.f32.mrb[0].mxu0
        %v2563 = vadd.f32 0.0, %v2562
        %v2564 = vpop.f32.mrb[0].mxu0
        %2565 = vdwg.mxu0
        %2566 = vrot.lane.b32.xlu0 %v1964, 104
        %v2567 = vpop.permute.xlu0 %2566
        %2568 = vrot.lane.b32.xlu0 %v1965, 104
        %v2569 = vpop.permute.xlu0 %2568
        %2570 = vrot.lane.b32.xlu0 %v1956, 72
        %v2571 = vpop.permute.xlu0 %2570
        %2572 = vrot.lane.b32.xlu0 %v1961, 72
        %v2573 = vpop.permute.xlu0 %2572
        %v2574 = vsel %vm667, %v2567, 0
        %v2576 = vsel %vm667, %v2569, 0
        %v2578 = vsel %vm667, %v2571, 0
        %v2580 = vsel %vm667, %v2573, 0
        %2582 = vmatprep.subr.mxu0 0.0
        %2583 = vmatpush1.xpose.msra.mxu0 %v2578
        %2584 = vmatprep.subr.mxu0 0.0
        %2585 = vmatpush1.xpose.msra.mxu0 %v2580
        %2586 = vmatprep.subr.mxu0 0.0
        %2587 = vmatpush1.xpose.msra.mxu0 0.0
        %2588 = vmatprep.subr.mxu0 0.0
        %2589 = vmatpush1.xpose.msra.mxu0 0.0
        %2590 = vmatprep.subr.mxu0 0.0
        %2591 = vmatpush1.xpose.msra.mxu0 0.0
        %2592 = vmatprep.subr.mxu0 0.0
        %2593 = vmatpush1.xpose.msra.mxu0 0.0
        %2594 = vmatprep.subr.mxu0 0.0
        %2595 = vmatpush1.xpose.msra.mxu0 0.0
        %2596 = vmatprep.subr.mxu0 0.0
        %2597 = vmatpush1.xpose.msra.mxu0 0.0
        %2598 = vmatprep.subr.mxu0 0.0
        %2599 = vmatpush1.xpose.msra.mxu0 0.0
        %2600 = vmatprep.subr.mxu0 0.0
        %2601 = vmatpush1.xpose.msra.mxu0 0.0
        %2602 = vmatprep.subr.mxu0 0.0
        %2603 = vmatpush1.xpose.msra.mxu0 0.0
        %2604 = vmatprep.subr.mxu0 0.0
        %2605 = vmatpush1.xpose.msra.mxu0 0.0
        %2606 = vmatprep.subr.mxu0 0.0
        %2607 = vmatpush1.xpose.msra.mxu0 0.0
        %2608 = vmatprep.subr.mxu0 0.0
        %2609 = vmatpush1.xpose.msra.mxu0 0.0
        %2610 = vmatprep.subr.mxu0 0.0
        %2611 = vmatpush1.xpose.msra.mxu0 0.0
        %2612 = vmatprep.subr.mxu0 0.0
        %2613 = vmatpush1.xpose.msra.mxu0 0.0
        %2614 = vmatprep.subr.mxu0 0.0
        %2615 = vmatpush1.xpose.msra.mxu0 0.0
        %2616 = vmatprep.subr.mxu0 0.0
        %2617 = vmatpush1.xpose.msra.mxu0 0.0
        %2618 = vmatprep.subr.mxu0 0.0
        %2619 = vmatpush1.xpose.msra.mxu0 0.0
        %2620 = vmatprep.subr.mxu0 0.0
        %2621 = vmatpush1.xpose.msra.mxu0 0.0
        %2622 = vmatprep.subr.mxu0 0.0
        %2623 = vmatpush1.xpose.msra.mxu0 0.0
        %2624 = vmatprep.subr.mxu0 0.0
        %2625 = vmatpush1.xpose.msra.mxu0 0.0
        %2626 = vmatprep.subr.mxu0 0.0
        %2627 = vmatpush1.xpose.msra.mxu0 0.0
        %2628 = vmatprep.subr.mxu0 0.0
        %2629 = vmatpush1.xpose.msra.mxu0 0.0
        %2630 = vmatprep.subr.mxu0 0.0
        %2631 = vmatpush1.xpose.msra.mxu0 0.0
        %2632 = vmatprep.subr.mxu0 0.0
        %2633 = vmatpush1.xpose.msra.mxu0 0.0
        %2634 = vmatprep.subr.mxu0 0.0
        %2635 = vmatpush1.xpose.msra.mxu0 0.0
        %2636 = vmatprep.subr.mxu0 0.0
        %2637 = vmatpush1.xpose.msra.mxu0 0.0
        %2638 = vmatprep.subr.mxu0 0.0
        %2639 = vmatpush1.xpose.msra.mxu0 0.0
        %2640 = vmatprep.subr.mxu0 0.0
        %2641 = vmatpush1.xpose.msra.mxu0 0.0
        %2642 = vmatprep.subr.mxu0 0.0
        %2643 = vmatpush1.xpose.msra.mxu0 0.0
        %2644 = vmatprep.subr.mxu0 0.0
        %2645 = vmatpush1.xpose.msra.mxu0 0.0
        %2646 = vmatprep.mubr.f32.mxu0 0.0
        %2647 = vmatmul.mubr.f32.gmra.mrb[0].mxu0 %v2574
        %v2648 = vpop.f32.mrb[0].mxu0
        %v2649 = vadd.f32 %v660, %v2648
        %v2650 = vpop.f32.mrb[0].mxu0
        %2651 = vmatprep.mubr.f32.mxu0 0.0
        %2652 = vmatmul.mubr.f32.gmra.mrb[0].mxu0 %v2576
        %v2653 = vpop.f32.mrb[0].mxu0
        %v2654 = vadd.f32 %v660, %v2653
        %v2655 = vpop.f32.mrb[0].mxu0
        %2656 = vdwg.mxu0
        %v2657 = vsel %vm449, %v2649, -inf
        %2658 = vmax.xlane.f32.xlu0 %v2657
        %v2659 = vpop.xlane.xlu0 %2658
        %v2660 = vsel %vm449, %v2654, -inf
        %2661 = vmax.xlane.f32.xlu0 %v2660
        %v2662 = vpop.xlane.xlu0 %2661
        %v2663 = vsub.f32 %v2649, %v2659
        %v2664 = vsub.f32 %v2654, %v2662
        %v2665 = vmul.f32 %v2663, 1.442695
        %v2666 = vpow.pop %v2665
        %v2667 = vmul.f32 %v2664, 1.442695
        %v2668 = vpow.pop %v2667
        %v2669 = vsel %vm449, %v2666, 0.0
        %2670 = vadd.xlane.f32.xlu0 %v2669
        %v2671 = vpop.xlane.xlu0 %2670
        %v2672 = vsel %vm449, %v2668, 0.0
        %2673 = vadd.xlane.f32.xlu0 %v2672
        %v2674 = vpop.xlane.xlu0 %2673
        %v2675 = vrcp.pop %v2671
        %v2676 = vrcp.pop %v2674
        %v2677 = vmul.f32 %v2666, %v2675
        %v2678 = vmul.f32 %v2668, %v2676
        %2679 = vrot.lane.b32.xlu0 %v1956, 40
        %v2680 = vpop.permute.xlu0 %2679
        %2681 = vrot.lane.b32.xlu0 %v1961, 40
        %v2682 = vpop.permute.xlu0 %2681
        %v2686 = vsel %vm449, %v2677, 0
        %v2689 = vsel %vm449, %v2678, 0
        %2691 = vmatprep.subr.mxu0 0.0
        %2692 = vmatpush1.msra.mxu0 %v2680
        %2693 = vmatprep.subr.mxu0 0.0
        %2694 = vmatpush1.msra.mxu0 %v2682
        %2695 = vmatprep.subr.mxu0 0.0
        %2696 = vmatpush1.msra.mxu0 0.0
        %2697 = vmatprep.subr.mxu0 0.0
        %2698 = vmatpush1.msra.mxu0 0.0
        %2699 = vmatprep.subr.mxu0 0.0
        %2700 = vmatpush1.msra.mxu0 0.0
        %2701 = vmatprep.subr.mxu0 0.0
        %2702 = vmatpush1.msra.mxu0 0.0
        %2703 = vmatprep.subr.mxu0 0.0
        %2704 = vmatpush1.msra.mxu0 0.0
        %2705 = vmatprep.subr.mxu0 0.0
        %2706 = vmatpush1.msra.mxu0 0.0
        %2707 = vmatprep.subr.mxu0 0.0
        %2708 = vmatpush1.msra.mxu0 0.0
        %2709 = vmatprep.subr.mxu0 0.0
        %2710 = vmatpush1.msra.mxu0 0.0
        %2711 = vmatprep.subr.mxu0 0.0
        %2712 = vmatpush1.msra.mxu0 0.0
        %2713 = vmatprep.subr.mxu0 0.0
        %2714 = vmatpush1.msra.mxu0 0.0
        %2715 = vmatprep.subr.mxu0 0.0
        %2716 = vmatpush1.msra.mxu0 0.0
        %2717 = vmatprep.subr.mxu0 0.0
        %2718 = vmatpush1.msra.mxu0 0.0
        %2719 = vmatprep.subr.mxu0 0.0
        %2720 = vmatpush1.msra.mxu0 0.0
        %2721 = vmatprep.subr.mxu0 0.0
        %2722 = vmatpush1.msra.mxu0 0.0
        %2723 = vmatprep.subr.mxu0 0.0
        %2724 = vmatpush1.msra.mxu0 0.0
        %2725 = vmatprep.subr.mxu0 0.0
        %2726 = vmatpush1.msra.mxu0 0.0
        %2727 = vmatprep.subr.mxu0 0.0
        %2728 = vmatpush1.msra.mxu0 0.0
        %2729 = vmatprep.subr.mxu0 0.0
        %2730 = vmatpush1.msra.mxu0 0.0
        %2731 = vmatprep.subr.mxu0 0.0
        %2732 = vmatpush1.msra.mxu0 0.0
        %2733 = vmatprep.subr.mxu0 0.0
        %2734 = vmatpush1.msra.mxu0 0.0
        %2735 = vmatprep.subr.mxu0 0.0
        %2736 = vmatpush1.msra.mxu0 0.0
        %2737 = vmatprep.subr.mxu0 0.0
        %2738 = vmatpush1.msra.mxu0 0.0
        %2739 = vmatprep.subr.mxu0 0.0
        %2740 = vmatpush1.msra.mxu0 0.0
        %2741 = vmatprep.subr.mxu0 0.0
        %2742 = vmatpush1.msra.mxu0 0.0
        %2743 = vmatprep.subr.mxu0 0.0
        %2744 = vmatpush1.msra.mxu0 0.0
        %2745 = vmatprep.subr.mxu0 0.0
        %2746 = vmatpush1.msra.mxu0 0.0
        %2747 = vmatprep.subr.mxu0 0.0
        %2748 = vmatpush1.msra.mxu0 0.0
        %2749 = vmatprep.subr.mxu0 0.0
        %2750 = vmatpush1.msra.mxu0 0.0
        %2751 = vmatprep.subr.mxu0 0.0
        %2752 = vmatpush1.msra.mxu0 0.0
        %2753 = vmatprep.subr.mxu0 0.0
        %2754 = vmatpush1.msra.mxu0 0.0
        %2755 = vmatprep.mubr.f32.mxu0 0.0
        %2756 = vmatmul.mubr.f32.gmra.mrb[0].mxu0 %v2686
        %v2757 = vpop.f32.mrb[0].mxu0
        %v2758 = vadd.f32 0.0, %v2757
        %v2759 = vpop.f32.mrb[0].mxu0
        %2760 = vmatprep.mubr.f32.mxu0 0.0
        %2761 = vmatmul.mubr.f32.gmra.mrb[0].mxu0 %v2689
        %v2762 = vpop.f32.mrb[0].mxu0
        %v2763 = vadd.f32 0.0, %v2762
        %v2764 = vpop.f32.mrb[0].mxu0
        %2765 = vdwg.mxu0
        %2768 = vrot.lane.b32.xlu0 %v2358, 8
        %v2769 = vpop.permute.xlu0 %2768
        %2770 = vrot.lane.b32.xlu0 %v2363, 8
        %v2771 = vpop.permute.xlu0 %2770
        %2776 = vrot.lane.b32.xlu0 %v2558, 16
        %v2777 = vpop.permute.xlu0 %2776
        %2778 = vrot.lane.b32.xlu0 %v2563, 16
        %v2779 = vpop.permute.xlu0 %2778
        %2784 = vrot.lane.b32.xlu0 %v2758, 24
        %v2785 = vpop.permute.xlu0 %2784
        %2786 = vrot.lane.b32.xlu0 %v2763, 24
        %v2787 = vpop.permute.xlu0 %2786
        %v2790 = vsel %vm667, %v2158, %v2769
        %v2791 = vsel %vm667, %v2163, %v2771
        %v2792 = vsel %vm449, %v2790, %v2777
        %v2793 = vsel %vm449, %v2791, %v2779
        %v2794 = vsel %vm1490, %v2792, %v2785
        %v2795 = vsel %vm1490, %v2793, %v2787
        %v2797 = vlaneseq
        %v2798 = vshrl.u32 %v2797, 7
        %v2799 = vsub.s32 0, %v2798
        %v2800 = vrot.slane %v1870, %v2799
        %v2803 = vsel %vm573, %v2794, 0
        %v2806 = vsel %vm573, %v2795, 0
        %2808 = vmatprep.subr.mxu0 0.0
        %2809 = vmatpush1.msra.mxu0 %v1851
        %2810 = vmatprep.subr.mxu0 0.0
        %2811 = vmatpush1.msra.mxu0 %v1852
        %2812 = vmatprep.subr.mxu0 0.0
        %2813 = vmatpush1.msra.mxu0 %v1853
        %2814 = vmatprep.subr.mxu0 0.0
        %2815 = vmatpush1.msra.mxu0 %v1854
        %2816 = vmatprep.subr.mxu0 0.0
        %2817 = vmatpush1.msra.mxu0 0.0
        %2818 = vmatprep.subr.mxu0 0.0
        %2819 = vmatpush1.msra.mxu0 0.0
        %2820 = vmatprep.subr.mxu0 0.0
        %2821 = vmatpush1.msra.mxu0 0.0
        %2822 = vmatprep.subr.mxu0 0.0
        %2823 = vmatpush1.msra.mxu0 0.0
        %2824 = vmatprep.subr.mxu0 0.0
        %2825 = vmatpush1.msra.mxu0 0.0
        %2826 = vmatprep.subr.mxu0 0.0
        %2827 = vmatpush1.msra.mxu0 0.0
        %2828 = vmatprep.subr.mxu0 0.0
        %2829 = vmatpush1.msra.mxu0 0.0
        %2830 = vmatprep.subr.mxu0 0.0
        %2831 = vmatpush1.msra.mxu0 0.0
        %2832 = vmatprep.subr.mxu0 0.0
        %2833 = vmatpush1.msra.mxu0 0.0
        %2834 = vmatprep.subr.mxu0 0.0
        %2835 = vmatpush1.msra.mxu0 0.0
        %2836 = vmatprep.subr.mxu0 0.0
        %2837 = vmatpush1.msra.mxu0 0.0
        %2838 = vmatprep.subr.mxu0 0.0
        %2839 = vmatpush1.msra.mxu0 0.0
        %2840 = vmatprep.subr.mxu0 0.0
        %2841 = vmatpush1.msra.mxu0 0.0
        %2842 = vmatprep.subr.mxu0 0.0
        %2843 = vmatpush1.msra.mxu0 0.0
        %2844 = vmatprep.subr.mxu0 0.0
        %2845 = vmatpush1.msra.mxu0 0.0
        %2846 = vmatprep.subr.mxu0 0.0
        %2847 = vmatpush1.msra.mxu0 0.0
        %2848 = vmatprep.subr.mxu0 0.0
        %2849 = vmatpush1.msra.mxu0 0.0
        %2850 = vmatprep.subr.mxu0 0.0
        %2851 = vmatpush1.msra.mxu0 0.0
        %2852 = vmatprep.subr.mxu0 0.0
        %2853 = vmatpush1.msra.mxu0 0.0
        %2854 = vmatprep.subr.mxu0 0.0
        %2855 = vmatpush1.msra.mxu0 0.0
        %2856 = vmatprep.subr.mxu0 0.0
        %2857 = vmatpush1.msra.mxu0 0.0
        %2858 = vmatprep.subr.mxu0 0.0
        %2859 = vmatpush1.msra.mxu0 0.0
        %2860 = vmatprep.subr.mxu0 0.0
        %2861 = vmatpush1.msra.mxu0 0.0
        %2862 = vmatprep.subr.mxu0 0.0
        %2863 = vmatpush1.msra.mxu0 0.0
        %2864 = vmatprep.subr.mxu0 0.0
        %2865 = vmatpush1.msra.mxu0 0.0
        %2866 = vmatprep.subr.mxu0 0.0
        %2867 = vmatpush1.msra.mxu0 0.0
        %2868 = vmatprep.subr.mxu0 0.0
        %2869 = vmatpush1.msra.mxu0 0.0
        %2870 = vmatprep.subr.mxu0 0.0
        %2871 = vmatpush1.msra.mxu0 0.0
        %2872 = vmatprep.mubr.f32.mxu0 0.0
        %2873 = vmatmul.mubr.f32.gmra.mrb[0].mxu0 %v2803
        %v2874 = vpop.f32.mrb[0].mxu0
        %v2875 = vadd.f32 %v2800, %v2874
        %v2876 = vpop.f32.mrb[0].mxu0
        %2877 = vmatprep.mubr.f32.mxu0 0.0
        %2878 = vmatmul.mubr.f32.gmra.mrb[0].mxu0 %v2806
        %v2879 = vpop.f32.mrb[0].mxu0
        %v2880 = vadd.f32 %v2800, %v2879
        %v2881 = vpop.f32.mrb[0].mxu0
        %2882 = vdwg.mxu0
        %v2883 = vadd.f32 %v1844, %v2875
        %v2884 = vadd.f32 %v1845, %v2880
        %v2885 = vsel %vm573, %v2883, 0.0
        %2886 = vadd.xlane.f32.xlu0 %v2885
        %v2887 = vpop.xlane.xlu0 %2886
        %v2888 = vsel %vm573, %v2884, 0.0
        %2889 = vadd.xlane.f32.xlu0 %v2888
        %v2890 = vpop.xlane.xlu0 %2889
        %v2891 = vmul.f32 %v2887, %v1588
        %v2892 = vmul.f32 %v2890, %v1588
        %v2893 = vsub.f32 %v2883, %v2891
        %v2894 = vsub.f32 %v2884, %v2892
        %v2895 = vmul.f32 %v2893, %v2893
        %v2896 = vmul.f32 %v2894, %v2894
        %v2897 = vsel %vm573, %v2895, 0.0
        %2898 = vadd.xlane.f32.xlu0 %v2897
        %v2899 = vpop.xlane.xlu0 %2898
        %v2900 = vsel %vm573, %v2896, 0.0
        %2901 = vadd.xlane.f32.xlu0 %v2900
        %v2902 = vpop.xlane.xlu0 %2901
        %v2903 = vmul.f32 %v2899, %v1588
        %v2904 = vmul.f32 %v2902, %v1588
        %v2905 = vadd.f32 %v2903, 1e-05
        %v2906 = vadd.f32 %v2904, 1e-05
        %v2907 = vrsqrt.pop %v2905
        %v2908 = vrsqrt.pop %v2906
        %v2909 = vmul.f32 %v2893, %v2907
        %v2910 = vmul.f32 %v2894, %v2908
        %v2912 = vlaneseq
        %v2913 = vshrl.u32 %v2912, 7
        %v2914 = vsub.s32 0, %v2913
        %v2915 = vrot.slane %v1873, %v2914
        %v2917 = vmul.f32 %v2909, %v2915
        %v2918 = vmul.f32 %v2910, %v2915
        %v2920 = vlaneseq
        %v2921 = vshrl.u32 %v2920, 7
        %v2922 = vsub.s32 0, %v2921
        %v2923 = vrot.slane %v1874, %v2922
        %v2925 = vadd.f32 %v2917, %v2923
        %v2926 = vadd.f32 %v2918, %v2923
        %v2928 = vlaneseq
        %v2929 = vshrl.u32 %v2928, 7
        %v2930 = vsub.s32 0, %v2929
        %v2931 = vrot.slane %v1871, %v2930
        %v2934 = vsel %vm573, %v2925, 0
        %v2937 = vsel %vm573, %v2926, 0
        %2939 = vmatprep.subr.mxu0 0.0
        %2940 = vmatpush1.msra.mxu0 %v1855
        %2941 = vmatprep.subr.mxu0 0.0
        %2942 = vmatpush1.msra.mxu0 %v1856
        %2943 = vmatprep.subr.mxu0 0.0
        %2944 = vmatpush1.msra.mxu0 %v1857
        %2945 = vmatprep.subr.mxu0 0.0
        %2946 = vmatpush1.msra.mxu0 %v1858
        %2947 = vmatprep.subr.mxu0 0.0
        %2948 = vmatpush1.msra.mxu0 0.0
        %2949 = vmatprep.subr.mxu0 0.0
        %2950 = vmatpush1.msra.mxu0 0.0
        %2951 = vmatprep.subr.mxu0 0.0
        %2952 = vmatpush1.msra.mxu0 0.0
        %2953 = vmatprep.subr.mxu0 0.0
        %2954 = vmatpush1.msra.mxu0 0.0
        %2955 = vmatprep.subr.mxu0 0.0
        %2956 = vmatpush1.msra.mxu0 0.0
        %2957 = vmatprep.subr.mxu0 0.0
        %2958 = vmatpush1.msra.mxu0 0.0
        %2959 = vmatprep.subr.mxu0 0.0
        %2960 = vmatpush1.msra.mxu0 0.0
        %2961 = vmatprep.subr.mxu0 0.0
        %2962 = vmatpush1.msra.mxu0 0.0
        %2963 = vmatprep.subr.mxu0 0.0
        %2964 = vmatpush1.msra.mxu0 0.0
        %2965 = vmatprep.subr.mxu0 0.0
        %2966 = vmatpush1.msra.mxu0 0.0
        %2967 = vmatprep.subr.mxu0 0.0
        %2968 = vmatpush1.msra.mxu0 0.0
        %2969 = vmatprep.subr.mxu0 0.0
        %2970 = vmatpush1.msra.mxu0 0.0
        %2971 = vmatprep.subr.mxu0 0.0
        %2972 = vmatpush1.msra.mxu0 0.0
        %2973 = vmatprep.subr.mxu0 0.0
        %2974 = vmatpush1.msra.mxu0 0.0
        %2975 = vmatprep.subr.mxu0 0.0
        %2976 = vmatpush1.msra.mxu0 0.0
        %2977 = vmatprep.subr.mxu0 0.0
        %2978 = vmatpush1.msra.mxu0 0.0
        %2979 = vmatprep.subr.mxu0 0.0
        %2980 = vmatpush1.msra.mxu0 0.0
        %2981 = vmatprep.subr.mxu0 0.0
        %2982 = vmatpush1.msra.mxu0 0.0
        %2983 = vmatprep.subr.mxu0 0.0
        %2984 = vmatpush1.msra.mxu0 0.0
        %2985 = vmatprep.subr.mxu0 0.0
        %2986 = vmatpush1.msra.mxu0 0.0
        %2987 = vmatprep.subr.mxu0 0.0
        %2988 = vmatpush1.msra.mxu0 0.0
        %2989 = vmatprep.subr.mxu0 0.0
        %2990 = vmatpush1.msra.mxu0 0.0
        %2991 = vmatprep.subr.mxu0 0.0
        %2992 = vmatpush1.msra.mxu0 0.0
        %2993 = vmatprep.subr.mxu0 0.0
        %2994 = vmatpush1.msra.mxu0 0.0
        %2995 = vmatprep.subr.mxu0 0.0
        %2996 = vmatpush1.msra.mxu0 0.0
        %2997 = vmatprep.subr.mxu0 0.0
        %2998 = vmatpush1.msra.mxu0 0.0
        %2999 = vmatprep.subr.mxu0 0.0
        %3000 = vmatpush1.msra.mxu0 0.0
        %3001 = vmatprep.subr.mxu0 0.0
        %3002 = vmatpush1.msra.mxu0 0.0
        %3003 = vmatprep.mubr.f32.mxu0 0.0
        %3004 = vmatmul.mubr.f32.gmra.mrb[0].mxu0 %v2934
        %v3005 = vpop.f32.mrb[0].mxu0
        %v3006 = vadd.f32 %v2931, %v3005
        %v3007 = vpop.f32.mrb[0].mxu0
        %3008 = vmatprep.mubr.f32.mxu0 0.0
        %3009 = vmatmul.mubr.f32.gmra.mrb[0].mxu0 %v2937
        %v3010 = vpop.f32.mrb[0].mxu0
        %v3011 = vadd.f32 %v2931, %v3010
        %v3012 = vpop.f32.mrb[0].mxu0
        %3013 = vdwg.mxu0
        %v3014 = vmax.f32 %v3006, 0.0
        %v3015 = vmax.f32 %v3011, 0.0
        %v3017 = vlaneseq
        %v3018 = vshrl.u32 %v3017, 7
        %v3019 = vsub.s32 0, %v3018
        %v3020 = vrot.slane %v1872, %v3019
        %v3023 = vsel %vm1720, %v3014, 0
        %v3026 = vsel %vm1720, %v3015, 0
        %3028 = vmatprep.subr.mxu0 0.0
        %3029 = vmatpush1.msra.mxu0 %v1860
        %3030 = vmatprep.subr.mxu0 0.0
        %3031 = vmatpush1.msra.mxu0 %v1861
        %3032 = vmatprep.subr.mxu0 0.0
        %3033 = vmatpush1.msra.mxu0 %v1862
        %3034 = vmatprep.subr.mxu0 0.0
        %3035 = vmatpush1.msra.mxu0 %v1863
        %3036 = vmatprep.subr.mxu0 0.0
        %3037 = vmatpush1.msra.mxu0 %v1864
        %3038 = vmatprep.subr.mxu0 0.0
        %3039 = vmatpush1.msra.mxu0 %v1865
        %3040 = vmatprep.subr.mxu0 0.0
        %3041 = vmatpush1.msra.mxu0 %v1866
        %3042 = vmatprep.subr.mxu0 0.0
        %3043 = vmatpush1.msra.mxu0 %v1867
        %3044 = vmatprep.subr.mxu0 0.0
        %3045 = vmatpush1.msra.mxu0 0.0
        %3046 = vmatprep.subr.mxu0 0.0
        %3047 = vmatpush1.msra.mxu0 0.0
        %3048 = vmatprep.subr.mxu0 0.0
        %3049 = vmatpush1.msra.mxu0 0.0
        %3050 = vmatprep.subr.mxu0 0.0
        %3051 = vmatpush1.msra.mxu0 0.0
        %3052 = vmatprep.subr.mxu0 0.0
        %3053 = vmatpush1.msra.mxu0 0.0
        %3054 = vmatprep.subr.mxu0 0.0
        %3055 = vmatpush1.msra.mxu0 0.0
        %3056 = vmatprep.subr.mxu0 0.0
        %3057 = vmatpush1.msra.mxu0 0.0
        %3058 = vmatprep.subr.mxu0 0.0
        %3059 = vmatpush1.msra.mxu0 0.0
        %3060 = vmatprep.subr.mxu0 0.0
        %3061 = vmatpush1.msra.mxu0 0.0
        %3062 = vmatprep.subr.mxu0 0.0
        %3063 = vmatpush1.msra.mxu0 0.0
        %3064 = vmatprep.subr.mxu0 0.0
        %3065 = vmatpush1.msra.mxu0 0.0
        %3066 = vmatprep.subr.mxu0 0.0
        %3067 = vmatpush1.msra.mxu0 0.0
        %3068 = vmatprep.subr.mxu0 0.0
        %3069 = vmatpush1.msra.mxu0 0.0
        %3070 = vmatprep.subr.mxu0 0.0
        %3071 = vmatpush1.msra.mxu0 0.0
        %3072 = vmatprep.subr.mxu0 0.0
        %3073 = vmatpush1.msra.mxu0 0.0
        %3074 = vmatprep.subr.mxu0 0.0
        %3075 = vmatpush1.msra.mxu0 0.0
        %3076 = vmatprep.subr.mxu0 0.0
        %3077 = vmatpush1.msra.mxu0 0.0
        %3078 = vmatprep.subr.mxu0 0.0
        %3079 = vmatpush1.msra.mxu0 0.0
        %3080 = vmatprep.subr.mxu0 0.0
        %3081 = vmatpush1.msra.mxu0 0.0
        %3082 = vmatprep.subr.mxu0 0.0
        %3083 = vmatpush1.msra.mxu0 0.0
        %3084 = vmatprep.subr.mxu0 0.0
        %3085 = vmatpush1.msra.mxu0 0.0
        %3086 = vmatprep.subr.mxu0 0.0
        %3087 = vmatpush1.msra.mxu0 0.0
        %3088 = vmatprep.subr.mxu0 0.0
        %3089 = vmatpush1.msra.mxu0 0.0
        %3090 = vmatprep.subr.mxu0 0.0
        %3091 = vmatpush1.msra.mxu0 0.0
        %3092 = vmatprep.mubr.f32.mxu0 0.0
        %3093 = vmatmul.mubr.f32.gmra.mrb[0].mxu0 %v3023
        %v3094 = vpop.f32.mrb[0].mxu0
        %v3095 = vadd.f32 %v3020, %v3094
        %v3096 = vpop.f32.mrb[0].mxu0
        %3097 = vmatprep.mubr.f32.mxu0 0.0
        %3098 = vmatmul.mubr.f32.gmra.mrb[0].mxu0 %v3026
        %v3099 = vpop.f32.mrb[0].mxu0
        %v3100 = vpop.f32.mrb[0].mxu0
        %3101 = vdwg.mxu0
        %v3102 = vadd.f32 %v2925, %v3095
        %v3103 = vsel %vm573, %v3102, 0.0
        %3104 = vadd.xlane.f32.xlu0 %v3103
        %v3105 = vpop.xlane.xlu0 %3104
        %v3106 = vmul.f32 %v3105, %v1588
        %v3107 = vsub.f32 %v3102, %v3106
        %v3108 = vmul.f32 %v3107, %v3107
        %v3109 = vsel %vm573, %v3108, 0.0
        %3110 = vadd.xlane.f32.xlu0 %v3109
        %v3111 = vpop.xlane.xlu0 %3110
        %v3112 = vmul.f32 %v3111, %v1588
        %v3113 = vadd.f32 %v3112, 1e-05
        %v3114 = vrsqrt.pop %v3113
        %v3115 = vmul.f32 %v3107, %v3114
        %v3117 = vlaneseq
        %v3118 = vshrl.u32 %v3117, 7
        %v3119 = vsub.s32 0, %v3118
        %v3120 = vrot.slane %v1875, %v3119
        %v3122 = vmul.f32 %v3115, %v3120
        %v3124 = vlaneseq
        %v3125 = vshrl.u32 %v3124, 7
        %v3126 = vsub.s32 0, %v3125
        %v3127 = vrot.slane %v1876, %v3126
        %v3129 = vadd.f32 %v3122, %v3127
        %v3130 = vsel %vm573, %v3129, 0.0
        %3131 = vst [vmem:[%s431] sm:$0x1] %v3130
        %v3132 = vld [vmem:[%s3] sm:$0xff]
        %v3133 = vadd.f32 %v3132, %v525
        %v3134 = vld [vmem:[%s9] sm:$0xff]
        %v3135 = vld [vmem:[%s9 + $0x28] sm:$0xff]
        %v3136 = vld [vmem:[%s9 + $0x50] sm:$0xff]
        %v3137 = vld [vmem:[%s9 + $0x78] sm:$0xff]
        %v3138 = vld [vmem:[%s9 + $0x8] sm:$0xff]
        %v3139 = vld [vmem:[%s9 + $0x30] sm:$0xff]
        %v3140 = vld [vmem:[%s9 + $0x58] sm:$0xff]
        %v3141 = vld [vmem:[%s9 + $0x80] sm:$0xff]
        %v3142 = vld [vmem:[%s11] sm:$0x1]
        %v3143 = vld [vmem:[%s11 + $0x1] sm:$0x1]
        %v3144 = vld [vmem:[%s10] sm:$0xff]
        %v3145 = vld [vmem:[%s10 + $0x8] sm:$0xff]
        %v3146 = vld [vmem:[%s10 + $0x10] sm:$0xff]
        %v3147 = vld [vmem:[%s10 + $0x18] sm:$0xff]
        %v3148 = vld [vmem:[%s10 + $0x20] sm:$0xff]
        %v3149 = vld [vmem:[%s10 + $0x28] sm:$0xff]
        %v3150 = vld [vmem:[%s10 + $0x30] sm:$0xff]
        %v3151 = vld [vmem:[%s10 + $0x38] sm:$0xff]
        %v3152 = vld [vmem:[%s9 + $0x10] sm:$0xff]
        %v3153 = vld [vmem:[%s9 + $0x38] sm:$0xff]
        %v3154 = vld [vmem:[%s9 + $0x60] sm:$0xff]
        %v3155 = vld [vmem:[%s9 + $0x88] sm:$0xff]
        %v3156 = vld [vmem:[%s9 + $0x18] sm:$0xff]
        %v3157 = vld [vmem:[%s9 + $0x40] sm:$0xff]
        %v3158 = vld [vmem:[%s9 + $0x68] sm:$0xff]
        %v3159 = vld [vmem:[%s9 + $0x90] sm:$0xff]
        %v3160 = vld [vmem:[%s9 + $0x20] sm:$0xff]
        %v3161 = vld [vmem:[%s9 + $0x48] sm:$0xff]
        %v3162 = vld [vmem:[%s9 + $0x70] sm:$0xff]
        %v3163 = vld [vmem:[%s9 + $0x98] sm:$0xff]
        %v3164 = vld [vmem:[%s11 + $0x2] sm:$0x1]
        %v3165 = vld [vmem:[%s11 + $0x3] sm:$0x1]
        %v3166 = vld [vmem:[%s11 + $0x4] sm:$0x1]
        %v3167 = vld [vmem:[%s11 + $0x5] sm:$0x1]
        %v3168 = vld [vmem:[%s11 + $0x6] sm:$0x1]
        %v3169 = vld [vmem:[%s11 + $0x7] sm:$0x1]
        %v3170 = vld [vmem:[%s11 + $0x8] sm:$0x1]
        %v3171 = vld [vmem:[%s11 + $0x9] sm:$0x1]
        %v3172 = vld [vmem:[%s11 + $0xa] sm:$0x1]
        %v3173 = vld [vmem:[%s11 + $0xb] sm:$0x1]
        %v3175 = vlaneseq
        %v3176 = vshrl.u32 %v3175, 7
        %v3177 = vsub.s32 0, %v3176
        %v3178 = vrot.slane %v3142, %v3177
        %v3181 = vsel %vm573, %v3133, 0
        %3183 = vmatprep.subr.mxu0 0.0
        %3184 = vmatpush1.msra.mxu0 %v3134
        %3185 = vmatprep.subr.mxu0 0.0
        %3186 = vmatpush1.msra.mxu0 %v3135
        %3187 = vmatprep.subr.mxu0 0.0
        %3188 = vmatpush1.msra.mxu0 %v3136
        %3189 = vmatprep.subr.mxu0 0.0
        %3190 = vmatpush1.msra.mxu0 %v3137
        %3191 = vmatprep.subr.mxu0 0.0
        %3192 = vmatpush1.msra.mxu0 0.0
        %3193 = vmatprep.subr.mxu0 0.0
        %3194 = vmatpush1.msra.mxu0 0.0
        %3195 = vmatprep.subr.mxu0 0.0
        %3196 = vmatpush1.msra.mxu0 0.0
        %3197 = vmatprep.subr.mxu0 0.0
        %3198 = vmatpush1.msra.mxu0 0.0
        %3199 = vmatprep.subr.mxu0 0.0
        %3200 = vmatpush1.msra.mxu0 0.0
        %3201 = vmatprep.subr.mxu0 0.0
        %3202 = vmatpush1.msra.mxu0 0.0
        %3203 = vmatprep.subr.mxu0 0.0
        %3204 = vmatpush1.msra.mxu0 0.0
        %3205 = vmatprep.subr.mxu0 0.0
        %3206 = vmatpush1.msra.mxu0 0.0
        %3207 = vmatprep.subr.mxu0 0.0
        %3208 = vmatpush1.msra.mxu0 0.0
        %3209 = vmatprep.subr.mxu0 0.0
        %3210 = vmatpush1.msra.mxu0 0.0
        %3211 = vmatprep.subr.mxu0 0.0
        %3212 = vmatpush1.msra.mxu0 0.0
        %3213 = vmatprep.subr.mxu0 0.0
        %3214 = vmatpush1.msra.mxu0 0.0
        %3215 = vmatprep.subr.mxu0 0.0
        %3216 = vmatpush1.msra.mxu0 0.0
        %3217 = vmatprep.subr.mxu0 0.0
        %3218 = vmatpush1.msra.mxu0 0.0
        %3219 = vmatprep.subr.mxu0 0.0
        %3220 = vmatpush1.msra.mxu0 0.0
        %3221 = vmatprep.subr.mxu0 0.0
        %3222 = vmatpush1.msra.mxu0 0.0
        %3223 = vmatprep.subr.mxu0 0.0
        %3224 = vmatpush1.msra.mxu0 0.0
        %3225 = vmatprep.subr.mxu0 0.0
        %3226 = vmatpush1.msra.mxu0 0.0
        %3227 = vmatprep.subr.mxu0 0.0
        %3228 = vmatpush1.msra.mxu0 0.0
        %3229 = vmatprep.subr.mxu0 0.0
        %3230 = vmatpush1.msra.mxu0 0.0
        %3231 = vmatprep.subr.mxu0 0.0
        %3232 = vmatpush1.msra.mxu0 0.0
        %3233 = vmatprep.subr.mxu0 0.0
        %3234 = vmatpush1.msra.mxu0 0.0
        %3235 = vmatprep.subr.mxu0 0.0
        %3236 = vmatpush1.msra.mxu0 0.0
        %3237 = vmatprep.subr.mxu0 0.0
        %3238 = vmatpush1.msra.mxu0 0.0
        %3239 = vmatprep.subr.mxu0 0.0
        %3240 = vmatpush1.msra.mxu0 0.0
        %3241 = vmatprep.subr.mxu0 0.0
        %3242 = vmatpush1.msra.mxu0 0.0
        %3243 = vmatprep.subr.mxu0 0.0
        %3244 = vmatpush1.msra.mxu0 0.0
        %3245 = vmatprep.subr.mxu0 0.0
        %3246 = vmatpush1.msra.mxu0 0.0
        %3247 = vmatprep.mubr.f32.mxu0 0.0
        %3248 = vmatmul.mubr.f32.gmra.mrb[0].mxu0 %v3181
        %v3249 = vpop.f32.mrb[0].mxu0
        %v3250 = vadd.f32 %v3178, %v3249
        %v3251 = vpop.f32.mrb[0].mxu0
        %3252 = vdwg.mxu0
        %v3253 = vmul.f32 %v3250, 0.35355338
        %3255 = vrot.lane.b32.xlu0 %v3250, 96
        %v3256 = vpop.permute.xlu0 %3255
        %v3258 = vsel %vm667, %v3253, 0
        %v3260 = vsel %vm667, %v3256, 0
        %3262 = vmatprep.subr.mxu0 0.0
        %3263 = vmatpush1.xpose.msra.mxu0 %v3260
        %3264 = vmatprep.subr.mxu0 0.0
        %3265 = vmatpush1.xpose.msra.mxu0 0.0
        %3266 = vmatprep.subr.mxu0 0.0
        %3267 = vmatpush1.xpose.msra.mxu0 0.0
        %3268 = vmatprep.subr.mxu0 0.0
        %3269 = vmatpush1.xpose.msra.mxu0 0.0
        %3270 = vmatprep.subr.mxu0 0.0
        %3271 = vmatpush1.xpose.msra.mxu0 0.0
        %3272 = vmatprep.subr.mxu0 0.0
        %3273 = vmatpush1.xpose.msra.mxu0 0.0
        %3274 = vmatprep.subr.mxu0 0.0
        %3275 = vmatpush1.xpose.msra.mxu0 0.0
        %3276 = vmatprep.subr.mxu0 0.0
        %3277 = vmatpush1.xpose.msra.mxu0 0.0
        %3278 = vmatprep.subr.mxu0 0.0
        %3279 = vmatpush1.xpose.msra.mxu0 0.0
        %3280 = vmatprep.subr.mxu0 0.0
        %3281 = vmatpush1.xpose.msra.mxu0 0.0
        %3282 = vmatprep.subr.mxu0 0.0
        %3283 = vmatpush1.xpose.msra.mxu0 0.0
        %3284 = vmatprep.subr.mxu0 0.0
        %3285 = vmatpush1.xpose.msra.mxu0 0.0
        %3286 = vmatprep.subr.mxu0 0.0
        %3287 = vmatpush1.xpose.msra.mxu0 0.0
        %3288 = vmatprep.subr.mxu0 0.0
        %3289 = vmatpush1.xpose.msra.mxu0 0.0
        %3290 = vmatprep.subr.mxu0 0.0
        %3291 = vmatpush1.xpose.msra.mxu0 0.0
        %3292 = vmatprep.subr.mxu0 0.0
        %3293 = vmatpush1.xpose.msra.mxu0 0.0
        %3294 = vmatprep.subr.mxu0 0.0
        %3295 = vmatpush1.xpose.msra.mxu0 0.0
        %3296 = vmatprep.subr.mxu0 0.0
        %3297 = vmatpush1.xpose.msra.mxu0 0.0
        %3298 = vmatprep.subr.mxu0 0.0
        %3299 = vmatpush1.xpose.msra.mxu0 0.0
        %3300 = vmatprep.subr.mxu0 0.0
        %3301 = vmatpush1.xpose.msra.mxu0 0.0
        %3302 = vmatprep.subr.mxu0 0.0
        %3303 = vmatpush1.xpose.msra.mxu0 0.0
        %3304 = vmatprep.subr.mxu0 0.0
        %3305 = vmatpush1.xpose.msra.mxu0 0.0
        %3306 = vmatprep.subr.mxu0 0.0
        %3307 = vmatpush1.xpose.msra.mxu0 0.0
        %3308 = vmatprep.subr.mxu0 0.0
        %3309 = vmatpush1.xpose.msra.mxu0 0.0
        %3310 = vmatprep.subr.mxu0 0.0
        %3311 = vmatpush1.xpose.msra.mxu0 0.0
        %3312 = vmatprep.subr.mxu0 0.0
        %3313 = vmatpush1.xpose.msra.mxu0 0.0
        %3314 = vmatprep.subr.mxu0 0.0
        %3315 = vmatpush1.xpose.msra.mxu0 0.0
        %3316 = vmatprep.subr.mxu0 0.0
        %3317 = vmatpush1.xpose.msra.mxu0 0.0
        %3318 = vmatprep.subr.mxu0 0.0
        %3319 = vmatpush1.xpose.msra.mxu0 0.0
        %3320 = vmatprep.subr.mxu0 0.0
        %3321 = vmatpush1.xpose.msra.mxu0 0.0
        %3322 = vmatprep.subr.mxu0 0.0
        %3323 = vmatpush1.xpose.msra.mxu0 0.0
        %3324 = vmatprep.subr.mxu0 0.0
        %3325 = vmatpush1.xpose.msra.mxu0 0.0
        %3326 = vmatprep.mubr.f32.mxu0 0.0
        %3327 = vmatmul.mubr.f32.gmra.mrb[0].mxu0 %v3258
        %v3328 = vpop.f32.mrb[0].mxu0
        %v3329 = vadd.f32 0.0, %v3328
        %v3330 = vpop.f32.mrb[0].mxu0
        %3331 = vdwg.mxu0
        %v3332 = vsel %vm667, %v3329, -inf
        %3333 = vmax.xlane.f32.xlu0 %v3332
        %v3334 = vpop.xlane.xlu0 %3333
        %v3335 = vsub.f32 %v3329, %v3334
        %v3336 = vmul.f32 %v3335, 1.442695
        %v3337 = vpow.pop %v3336
        %v3338 = vsel %vm667, %v3337, 0.0
        %3339 = vadd.xlane.f32.xlu0 %v3338
        %v3340 = vpop.xlane.xlu0 %3339
        %v3341 = vrcp.pop %v3340
        %v3342 = vmul.f32 %v3337, %v3341
        %3343 = vrot.lane.b32.xlu0 %v3250, 64
        %v3344 = vpop.permute.xlu0 %3343
        %v3347 = vsel %vm667, %v3342, 0
        %3349 = vmatprep.subr.mxu0 0.0
        %3350 = vmatpush1.msra.mxu0 %v3344
        %3351 = vmatprep.subr.mxu0 0.0
        %3352 = vmatpush1.msra.mxu0 0.0
        %3353 = vmatprep.subr.mxu0 0.0
        %3354 = vmatpush1.msra.mxu0 0.0
        %3355 = vmatprep.subr.mxu0 0.0
        %3356 = vmatpush1.msra.mxu0 0.0
        %3357 = vmatprep.subr.mxu0 0.0
        %3358 = vmatpush1.msra.mxu0 0.0
        %3359 = vmatprep.subr.mxu0 0.0
        %3360 = vmatpush1.msra.mxu0 0.0
        %3361 = vmatprep.subr.mxu0 0.0
        %3362 = vmatpush1.msra.mxu0 0.0
        %3363 = vmatprep.subr.mxu0 0.0
        %3364 = vmatpush1.msra.mxu0 0.0
        %3365 = vmatprep.subr.mxu0 0.0
        %3366 = vmatpush1.msra.mxu0 0.0
        %3367 = vmatprep.subr.mxu0 0.0
        %3368 = vmatpush1.msra.mxu0 0.0
        %3369 = vmatprep.subr.mxu0 0.0
        %3370 = vmatpush1.msra.mxu0 0.0
        %3371 = vmatprep.subr.mxu0 0.0
        %3372 = vmatpush1.msra.mxu0 0.0
        %3373 = vmatprep.subr.mxu0 0.0
        %3374 = vmatpush1.msra.mxu0 0.0
        %3375 = vmatprep.subr.mxu0 0.0
        %3376 = vmatpush1.msra.mxu0 0.0
        %3377 = vmatprep.subr.mxu0 0.0
        %3378 = vmatpush1.msra.mxu0 0.0
        %3379 = vmatprep.subr.mxu0 0.0
        %3380 = vmatpush1.msra.mxu0 0.0
        %3381 = vmatprep.subr.mxu0 0.0
        %3382 = vmatpush1.msra.mxu0 0.0
        %3383 = vmatprep.subr.mxu0 0.0
        %3384 = vmatpush1.msra.mxu0 0.0
        %3385 = vmatprep.subr.mxu0 0.0
        %3386 = vmatpush1.msra.mxu0 0.0
        %3387 = vmatprep.subr.mxu0 0.0
        %3388 = vmatpush1.msra.mxu0 0.0
        %3389 = vmatprep.subr.mxu0 0.0
        %3390 = vmatpush1.msra.mxu0 0.0
        %3391 = vmatprep.subr.mxu0 0.0
        %3392 = vmatpush1.msra.mxu0 0.0
        %3393 = vmatprep.subr.mxu0 0.0
        %3394 = vmatpush1.msra.mxu0 0.0
        %3395 = vmatprep.subr.mxu0 0.0
        %3396 = vmatpush1.msra.mxu0 0.0
        %3397 = vmatprep.subr.mxu0 0.0
        %3398 = vmatpush1.msra.mxu0 0.0
        %3399 = vmatprep.subr.mxu0 0.0
        %3400 = vmatpush1.msra.mxu0 0.0
        %3401 = vmatprep.subr.mxu0 0.0
        %3402 = vmatpush1.msra.mxu0 0.0
        %3403 = vmatprep.subr.mxu0 0.0
        %3404 = vmatpush1.msra.mxu0 0.0
        %3405 = vmatprep.subr.mxu0 0.0
        %3406 = vmatpush1.msra.mxu0 0.0
        %3407 = vmatprep.subr.mxu0 0.0
        %3408 = vmatpush1.msra.mxu0 0.0
        %3409 = vmatprep.subr.mxu0 0.0
        %3410 = vmatpush1.msra.mxu0 0.0
        %3411 = vmatprep.subr.mxu0 0.0
        %3412 = vmatpush1.msra.mxu0 0.0
        %3413 = vmatprep.mubr.f32.mxu0 0.0
        %3414 = vmatmul.mubr.f32.gmra.mrb[0].mxu0 %v3347
        %v3415 = vpop.f32.mrb[0].mxu0
        %v3416 = vadd.f32 0.0, %v3415
        %v3417 = vpop.f32.mrb[0].mxu0
        %3418 = vdwg.mxu0
        %3419 = vrot.lane.b32.xlu0 %v3253, 120
        %v3420 = vpop.permute.xlu0 %3419
        %3421 = vrot.lane.b32.xlu0 %v3250, 88
        %v3422 = vpop.permute.xlu0 %3421
        %v3423 = vsel %vm667, %v3420, 0
        %v3425 = vsel %vm667, %v3422, 0
        %3427 = vmatprep.subr.mxu0 0.0
        %3428 = vmatpush1.xpose.msra.mxu0 %v3425
        %3429 = vmatprep.subr.mxu0 0.0
        %3430 = vmatpush1.xpose.msra.mxu0 0.0
        %3431 = vmatprep.subr.mxu0 0.0
        %3432 = vmatpush1.xpose.msra.mxu0 0.0
        %3433 = vmatprep.subr.mxu0 0.0
        %3434 = vmatpush1.xpose.msra.mxu0 0.0
        %3435 = vmatprep.subr.mxu0 0.0
        %3436 = vmatpush1.xpose.msra.mxu0 0.0
        %3437 = vmatprep.subr.mxu0 0.0
        %3438 = vmatpush1.xpose.msra.mxu0 0.0
        %3439 = vmatprep.subr.mxu0 0.0
        %3440 = vmatpush1.xpose.msra.mxu0 0.0
        %3441 = vmatprep.subr.mxu0 0.0
        %3442 = vmatpush1.xpose.msra.mxu0 0.0
        %3443 = vmatprep.subr.mxu0 0.0
        %3444 = vmatpush1.xpose.msra.mxu0 0.0
        %3445 = vmatprep.subr.mxu0 0.0
        %3446 = vmatpush1.xpose.msra.mxu0 0.0
        %3447 = vmatprep.subr.mxu0 0.0
        %3448 = vmatpush1.xpose.msra.mxu0 0.0
        %3449 = vmatprep.subr.mxu0 0.0
        %3450 = vmatpush1.xpose.msra.mxu0 0.0
        %3451 = vmatprep.subr.mxu0 0.0
        %3452 = vmatpush1.xpose.msra.mxu0 0.0
        %3453 = vmatprep.subr.mxu0 0.0
        %3454 = vmatpush1.xpose.msra.mxu0 0.0
        %3455 = vmatprep.subr.mxu0 0.0
        %3456 = vmatpush1.xpose.msra.mxu0 0.0
        %3457 = vmatprep.subr.mxu0 0.0
        %3458 = vmatpush1.xpose.msra.mxu0 0.0
        %3459 = vmatprep.subr.mxu0 0.0
        %3460 = vmatpush1.xpose.msra.mxu0 0.0
        %3461 = vmatprep.subr.mxu0 0.0
        %3462 = vmatpush1.xpose.msra.mxu0 0.0
        %3463 = vmatprep.subr.mxu0 0.0
        %3464 = vmatpush1.xpose.msra.mxu0 0.0
        %3465 = vmatprep.subr.mxu0 0.0
        %3466 = vmatpush1.xpose.msra.mxu0 0.0
        %3467 = vmatprep.subr.mxu0 0.0
        %3468 = vmatpush1.xpose.msra.mxu0 0.0
        %3469 = vmatprep.subr.mxu0 0.0
        %3470 = vmatpush1.xpose.msra.mxu0 0.0
        %3471 = vmatprep.subr.mxu0 0.0
        %3472 = vmatpush1.xpose.msra.mxu0 0.0
        %3473 = vmatprep.subr.mxu0 0.0
        %3474 = vmatpush1.xpose.msra.mxu0 0.0
        %3475 = vmatprep.subr.mxu0 0.0
        %3476 = vmatpush1.xpose.msra.mxu0 0.0
        %3477 = vmatprep.subr.mxu0 0.0
        %3478 = vmatpush1.xpose.msra.mxu0 0.0
        %3479 = vmatprep.subr.mxu0 0.0
        %3480 = vmatpush1.xpose.msra.mxu0 0.0
        %3481 = vmatprep.subr.mxu0 0.0
        %3482 = vmatpush1.xpose.msra.mxu0 0.0
        %3483 = vmatprep.subr.mxu0 0.0
        %3484 = vmatpush1.xpose.msra.mxu0 0.0
        %3485 = vmatprep.subr.mxu0 0.0
        %3486 = vmatpush1.xpose.msra.mxu0 0.0
        %3487 = vmatprep.subr.mxu0 0.0
        %3488 = vmatpush1.xpose.msra.mxu0 0.0
        %3489 = vmatprep.subr.mxu0 0.0
        %3490 = vmatpush1.xpose.msra.mxu0 0.0
        %3491 = vmatprep.mubr.f32.mxu0 0.0
        %3492 = vmatmul.mubr.f32.gmra.mrb[0].mxu0 %v3423
        %v3493 = vpop.f32.mrb[0].mxu0
        %v3494 = vadd.f32 0.0, %v3493
        %v3495 = vpop.f32.mrb[0].mxu0
        %3496 = vdwg.mxu0
        %v3497 = vsel %vm667, %v3494, -inf
        %3498 = vmax.xlane.f32.xlu0 %v3497
        %v3499 = vpop.xlane.xlu0 %3498
        %v3500 = vsub.f32 %v3494, %v3499
        %v3501 = vmul.f32 %v3500, 1.442695
        %v3502 = vpow.pop %v3501
        %v3503 = vsel %vm667, %v3502, 0.0
        %3504 = vadd.xlane.f32.xlu0 %v3503
        %v3505 = vpop.xlane.xlu0 %3504
        %v3506 = vrcp.pop %v3505
        %v3507 = vmul.f32 %v3502, %v3506
        %3508 = vrot.lane.b32.xlu0 %v3250, 56
        %v3509 = vpop.permute.xlu0 %3508
        %v3512 = vsel %vm667, %v3507, 0
        %3514 = vmatprep.subr.mxu0 0.0
        %3515 = vmatpush1.msra.mxu0 %v3509
        %3516 = vmatprep.subr.mxu0 0.0
        %3517 = vmatpush1.msra.mxu0 0.0
        %3518 = vmatprep.subr.mxu0 0.0
        %3519 = vmatpush1.msra.mxu0 0.0
        %3520 = vmatprep.subr.mxu0 0.0
        %3521 = vmatpush1.msra.mxu0 0.0
        %3522 = vmatprep.subr.mxu0 0.0
        %3523 = vmatpush1.msra.mxu0 0.0
        %3524 = vmatprep.subr.mxu0 0.0
        %3525 = vmatpush1.msra.mxu0 0.0
        %3526 = vmatprep.subr.mxu0 0.0
        %3527 = vmatpush1.msra.mxu0 0.0
        %3528 = vmatprep.subr.mxu0 0.0
        %3529 = vmatpush1.msra.mxu0 0.0
        %3530 = vmatprep.subr.mxu0 0.0
        %3531 = vmatpush1.msra.mxu0 0.0
        %3532 = vmatprep.subr.mxu0 0.0
        %3533 = vmatpush1.msra.mxu0 0.0
        %3534 = vmatprep.subr.mxu0 0.0
        %3535 = vmatpush1.msra.mxu0 0.0
        %3536 = vmatprep.subr.mxu0 0.0
        %3537 = vmatpush1.msra.mxu0 0.0
        %3538 = vmatprep.subr.mxu0 0.0
        %3539 = vmatpush1.msra.mxu0 0.0
        %3540 = vmatprep.subr.mxu0 0.0
        %3541 = vmatpush1.msra.mxu0 0.0
        %3542 = vmatprep.subr.mxu0 0.0
        %3543 = vmatpush1.msra.mxu0 0.0
        %3544 = vmatprep.subr.mxu0 0.0
        %3545 = vmatpush1.msra.mxu0 0.0
        %3546 = vmatprep.subr.mxu0 0.0
        %3547 = vmatpush1.msra.mxu0 0.0
        %3548 = vmatprep.subr.mxu0 0.0
        %3549 = vmatpush1.msra.mxu0 0.0
        %3550 = vmatprep.subr.mxu0 0.0
        %3551 = vmatpush1.msra.mxu0 0.0
        %3552 = vmatprep.subr.mxu0 0.0
        %3553 = vmatpush1.msra.mxu0 0.0
        %3554 = vmatprep.subr.mxu0 0.0
        %3555 = vmatpush1.msra.mxu0 0.0
        %3556 = vmatprep.subr.mxu0 0.0
        %3557 = vmatpush1.msra.mxu0 0.0
        %3558 = vmatprep.subr.mxu0 0.0
        %3559 = vmatpush1.msra.mxu0 0.0
        %3560 = vmatprep.subr.mxu0 0.0
        %3561 = vmatpush1.msra.mxu0 0.0
        %3562 = vmatprep.subr.mxu0 0.0
        %3563 = vmatpush1.msra.mxu0 0.0
        %3564 = vmatprep.subr.mxu0 0.0
        %3565 = vmatpush1.msra.mxu0 0.0
        %3566 = vmatprep.subr.mxu0 0.0
        %3567 = vmatpush1.msra.mxu0 0.0
        %3568 = vmatprep.subr.mxu0 0.0
        %3569 = vmatpush1.msra.mxu0 0.0
        %3570 = vmatprep.subr.mxu0 0.0
        %3571 = vmatpush1.msra.mxu0 0.0
        %3572 = vmatprep.subr.mxu0 0.0
        %3573 = vmatpush1.msra.mxu0 0.0
        %3574 = vmatprep.subr.mxu0 0.0
        %3575 = vmatpush1.msra.mxu0 0.0
        %3576 = vmatprep.subr.mxu0 0.0
        %3577 = vmatpush1.msra.mxu0 0.0
        %3578 = vmatprep.mubr.f32.mxu0 0.0
        %3579 = vmatmul.mubr.f32.gmra.mrb[0].mxu0 %v3512
        %v3580 = vpop.f32.mrb[0].mxu0
        %v3581 = vadd.f32 0.0, %v3580
        %v3582 = vpop.f32.mrb[0].mxu0
        %3583 = vdwg.mxu0
        %3584 = vrot.lane.b32.xlu0 %v3253, 112
        %v3585 = vpop.permute.xlu0 %3584
        %3586 = vrot.lane.b32.xlu0 %v3250, 80
        %v3587 = vpop.permute.xlu0 %3586
        %v3588 = vsel %vm667, %v3585, 0
        %v3590 = vsel %vm667, %v3587, 0
        %3592 = vmatprep.subr.mxu0 0.0
        %3593 = vmatpush1.xpose.msra.mxu0 %v3590
        %3594 = vmatprep.subr.mxu0 0.0
        %3595 = vmatpush1.xpose.msra.mxu0 0.0
        %3596 = vmatprep.subr.mxu0 0.0
        %3597 = vmatpush1.xpose.msra.mxu0 0.0
        %3598 = vmatprep.subr.mxu0 0.0
        %3599 = vmatpush1.xpose.msra.mxu0 0.0
        %3600 = vmatprep.subr.mxu0 0.0
        %3601 = vmatpush1.xpose.msra.mxu0 0.0
        %3602 = vmatprep.subr.mxu0 0.0
        %3603 = vmatpush1.xpose.msra.mxu0 0.0
        %3604 = vmatprep.subr.mxu0 0.0
        %3605 = vmatpush1.xpose.msra.mxu0 0.0
        %3606 = vmatprep.subr.mxu0 0.0
        %3607 = vmatpush1.xpose.msra.mxu0 0.0
        %3608 = vmatprep.subr.mxu0 0.0
        %3609 = vmatpush1.xpose.msra.mxu0 0.0
        %3610 = vmatprep.subr.mxu0 0.0
        %3611 = vmatpush1.xpose.msra.mxu0 0.0
        %3612 = vmatprep.subr.mxu0 0.0
        %3613 = vmatpush1.xpose.msra.mxu0 0.0
        %3614 = vmatprep.subr.mxu0 0.0
        %3615 = vmatpush1.xpose.msra.mxu0 0.0
        %3616 = vmatprep.subr.mxu0 0.0
        %3617 = vmatpush1.xpose.msra.mxu0 0.0
        %3618 = vmatprep.subr.mxu0 0.0
        %3619 = vmatpush1.xpose.msra.mxu0 0.0
        %3620 = vmatprep.subr.mxu0 0.0
        %3621 = vmatpush1.xpose.msra.mxu0 0.0
        %3622 = vmatprep.subr.mxu0 0.0
        %3623 = vmatpush1.xpose.msra.mxu0 0.0
        %3624 = vmatprep.subr.mxu0 0.0
        %3625 = vmatpush1.xpose.msra.mxu0 0.0
        %3626 = vmatprep.subr.mxu0 0.0
        %3627 = vmatpush1.xpose.msra.mxu0 0.0
        %3628 = vmatprep.subr.mxu0 0.0
        %3629 = vmatpush1.xpose.msra.mxu0 0.0
        %3630 = vmatprep.subr.mxu0 0.0
        %3631 = vmatpush1.xpose.msra.mxu0 0.0
        %3632 = vmatprep.subr.mxu0 0.0
        %3633 = vmatpush1.xpose.msra.mxu0 0.0
        %3634 = vmatprep.subr.mxu0 0.0
        %3635 = vmatpush1.xpose.msra.mxu0 0.0
        %3636 = vmatprep.subr.mxu0 0.0
        %3637 = vmatpush1.xpose.msra.mxu0 0.0
        %3638 = vmatprep.subr.mxu0 0.0
        %3639 = vmatpush1.xpose.msra.mxu0 0.0
        %3640 = vmatprep.subr.mxu0 0.0
        %3641 = vmatpush1.xpose.msra.mxu0 0.0
        %3642 = vmatprep.subr.mxu0 0.0
        %3643 = vmatpush1.xpose.msra.mxu0 0.0
        %3644 = vmatprep.subr.mxu0 0.0
        %3645 = vmatpush1.xpose.msra.mxu0 0.0
        %3646 = vmatprep.subr.mxu0 0.0
        %3647 = vmatpush1.xpose.msra.mxu0 0.0
        %3648 = vmatprep.subr.mxu0 0.0
        %3649 = vmatpush1.xpose.msra.mxu0 0.0
        %3650 = vmatprep.subr.mxu0 0.0
        %3651 = vmatpush1.xpose.msra.mxu0 0.0
        %3652 = vmatprep.subr.mxu0 0.0
        %3653 = vmatpush1.xpose.msra.mxu0 0.0
        %3654 = vmatprep.subr.mxu0 0.0
        %3655 = vmatpush1.xpose.msra.mxu0 0.0
        %3656 = vmatprep.mubr.f32.mxu0 0.0
        %3657 = vmatmul.mubr.f32.gmra.mrb[0].mxu0 %v3588
        %v3658 = vpop.f32.mrb[0].mxu0
        %v3659 = vadd.f32 0.0, %v3658
        %v3660 = vpop.f32.mrb[0].mxu0
        %3661 = vdwg.mxu0
        %v3662 = vsel %vm667, %v3659, -inf
        %3663 = vmax.xlane.f32.xlu0 %v3662
        %v3664 = vpop.xlane.xlu0 %3663
        %v3665 = vsub.f32 %v3659, %v3664
        %v3666 = vmul.f32 %v3665, 1.442695
        %v3667 = vpow.pop %v3666
        %v3668 = vsel %vm667, %v3667, 0.0
        %3669 = vadd.xlane.f32.xlu0 %v3668
        %v3670 = vpop.xlane.xlu0 %3669
        %v3671 = vrcp.pop %v3670
        %v3672 = vmul.f32 %v3667, %v3671
        %3673 = vrot.lane.b32.xlu0 %v3250, 48
        %v3674 = vpop.permute.xlu0 %3673
        %v3677 = vsel %vm667, %v3672, 0
        %3679 = vmatprep.subr.mxu0 0.0
        %3680 = vmatpush1.msra.mxu0 %v3674
        %3681 = vmatprep.subr.mxu0 0.0
        %3682 = vmatpush1.msra.mxu0 0.0
        %3683 = vmatprep.subr.mxu0 0.0
        %3684 = vmatpush1.msra.mxu0 0.0
        %3685 = vmatprep.subr.mxu0 0.0
        %3686 = vmatpush1.msra.mxu0 0.0
        %3687 = vmatprep.subr.mxu0 0.0
        %3688 = vmatpush1.msra.mxu0 0.0
        %3689 = vmatprep.subr.mxu0 0.0
        %3690 = vmatpush1.msra.mxu0 0.0
        %3691 = vmatprep.subr.mxu0 0.0
        %3692 = vmatpush1.msra.mxu0 0.0
        %3693 = vmatprep.subr.mxu0 0.0
        %3694 = vmatpush1.msra.mxu0 0.0
        %3695 = vmatprep.subr.mxu0 0.0
        %3696 = vmatpush1.msra.mxu0 0.0
        %3697 = vmatprep.subr.mxu0 0.0
        %3698 = vmatpush1.msra.mxu0 0.0
        %3699 = vmatprep.subr.mxu0 0.0
        %3700 = vmatpush1.msra.mxu0 0.0
        %3701 = vmatprep.subr.mxu0 0.0
        %3702 = vmatpush1.msra.mxu0 0.0
        %3703 = vmatprep.subr.mxu0 0.0
        %3704 = vmatpush1.msra.mxu0 0.0
        %3705 = vmatprep.subr.mxu0 0.0
        %3706 = vmatpush1.msra.mxu0 0.0
        %3707 = vmatprep.subr.mxu0 0.0
        %3708 = vmatpush1.msra.mxu0 0.0
        %3709 = vmatprep.subr.mxu0 0.0
        %3710 = vmatpush1.msra.mxu0 0.0
        %3711 = vmatprep.subr.mxu0 0.0
        %3712 = vmatpush1.msra.mxu0 0.0
        %3713 = vmatprep.subr.mxu0 0.0
        %3714 = vmatpush1.msra.mxu0 0.0
        %3715 = vmatprep.subr.mxu0 0.0
        %3716 = vmatpush1.msra.mxu0 0.0
        %3717 = vmatprep.subr.mxu0 0.0
        %3718 = vmatpush1.msra.mxu0 0.0
        %3719 = vmatprep.subr.mxu0 0.0
        %3720 = vmatpush1.msra.mxu0 0.0
        %3721 = vmatprep.subr.mxu0 0.0
        %3722 = vmatpush1.msra.mxu0 0.0
        %3723 = vmatprep.subr.mxu0 0.0
        %3724 = vmatpush1.msra.mxu0 0.0
        %3725 = vmatprep.subr.mxu0 0.0
        %3726 = vmatpush1.msra.mxu0 0.0
        %3727 = vmatprep.subr.mxu0 0.0
        %3728 = vmatpush1.msra.mxu0 0.0
        %3729 = vmatprep.subr.mxu0 0.0
        %3730 = vmatpush1.msra.mxu0 0.0
        %3731 = vmatprep.subr.mxu0 0.0
        %3732 = vmatpush1.msra.mxu0 0.0
        %3733 = vmatprep.subr.mxu0 0.0
        %3734 = vmatpush1.msra.mxu0 0.0
        %3735 = vmatprep.subr.mxu0 0.0
        %3736 = vmatpush1.msra.mxu0 0.0
        %3737 = vmatprep.subr.mxu0 0.0
        %3738 = vmatpush1.msra.mxu0 0.0
        %3739 = vmatprep.subr.mxu0 0.0
        %3740 = vmatpush1.msra.mxu0 0.0
        %3741 = vmatprep.subr.mxu0 0.0
        %3742 = vmatpush1.msra.mxu0 0.0
        %3743 = vmatprep.mubr.f32.mxu0 0.0
        %3744 = vmatmul.mubr.f32.gmra.mrb[0].mxu0 %v3677
        %v3745 = vpop.f32.mrb[0].mxu0
        %v3746 = vadd.f32 0.0, %v3745
        %v3747 = vpop.f32.mrb[0].mxu0
        %3748 = vdwg.mxu0
        %3749 = vrot.lane.b32.xlu0 %v3253, 104
        %v3750 = vpop.permute.xlu0 %3749
        %3751 = vrot.lane.b32.xlu0 %v3250, 72
        %v3752 = vpop.permute.xlu0 %3751
        %v3753 = vsel %vm667, %v3750, 0
        %v3755 = vsel %vm667, %v3752, 0
        %3757 = vmatprep.subr.mxu0 0.0
        %3758 = vmatpush1.xpose.msra.mxu0 %v3755
        %3759 = vmatprep.subr.mxu0 0.0
        %3760 = vmatpush1.xpose.msra.mxu0 0.0
        %3761 = vmatprep.subr.mxu0 0.0
        %3762 = vmatpush1.xpose.msra.mxu0 0.0
        %3763 = vmatprep.subr.mxu0 0.0
        %3764 = vmatpush1.xpose.msra.mxu0 0.0
        %3765 = vmatprep.subr.mxu0 0.0
        %3766 = vmatpush1.xpose.msra.mxu0 0.0
        %3767 = vmatprep.subr.mxu0 0.0
        %3768 = vmatpush1.xpose.msra.mxu0 0.0
        %3769 = vmatprep.subr.mxu0 0.0
        %3770 = vmatpush1.xpose.msra.mxu0 0.0
        %3771 = vmatprep.subr.mxu0 0.0
        %3772 = vmatpush1.xpose.msra.mxu0 0.0
        %3773 = vmatprep.subr.mxu0 0.0
        %3774 = vmatpush1.xpose.msra.mxu0 0.0
        %3775 = vmatprep.subr.mxu0 0.0
        %3776 = vmatpush1.xpose.msra.mxu0 0.0
        %3777 = vmatprep.subr.mxu0 0.0
        %3778 = vmatpush1.xpose.msra.mxu0 0.0
        %3779 = vmatprep.subr.mxu0 0.0
        %3780 = vmatpush1.xpose.msra.mxu0 0.0
        %3781 = vmatprep.subr.mxu0 0.0
        %3782 = vmatpush1.xpose.msra.mxu0 0.0
        %3783 = vmatprep.subr.mxu0 0.0
        %3784 = vmatpush1.xpose.msra.mxu0 0.0
        %3785 = vmatprep.subr.mxu0 0.0
        %3786 = vmatpush1.xpose.msra.mxu0 0.0
        %3787 = vmatprep.subr.mxu0 0.0
        %3788 = vmatpush1.xpose.msra.mxu0 0.0
        %3789 = vmatprep.subr.mxu0 0.0
        %3790 = vmatpush1.xpose.msra.mxu0 0.0
        %3791 = vmatprep.subr.mxu0 0.0
        %3792 = vmatpush1.xpose.msra.mxu0 0.0
        %3793 = vmatprep.subr.mxu0 0.0
        %3794 = vmatpush1.xpose.msra.mxu0 0.0
        %3795 = vmatprep.subr.mxu0 0.0
        %3796 = vmatpush1.xpose.msra.mxu0 0.0
        %3797 = vmatprep.subr.mxu0 0.0
        %3798 = vmatpush1.xpose.msra.mxu0 0.0
        %3799 = vmatprep.subr.mxu0 0.0
        %3800 = vmatpush1.xpose.msra.mxu0 0.0
        %3801 = vmatprep.subr.mxu0 0.0
        %3802 = vmatpush1.xpose.msra.mxu0 0.0
        %3803 = vmatprep.subr.mxu0 0.0
        %3804 = vmatpush1.xpose.msra.mxu0 0.0
        %3805 = vmatprep.subr.mxu0 0.0
        %3806 = vmatpush1.xpose.msra.mxu0 0.0
        %3807 = vmatprep.subr.mxu0 0.0
        %3808 = vmatpush1.xpose.msra.mxu0 0.0
        %3809 = vmatprep.subr.mxu0 0.0
        %3810 = vmatpush1.xpose.msra.mxu0 0.0
        %3811 = vmatprep.subr.mxu0 0.0
        %3812 = vmatpush1.xpose.msra.mxu0 0.0
        %3813 = vmatprep.subr.mxu0 0.0
        %3814 = vmatpush1.xpose.msra.mxu0 0.0
        %3815 = vmatprep.subr.mxu0 0.0
        %3816 = vmatpush1.xpose.msra.mxu0 0.0
        %3817 = vmatprep.subr.mxu0 0.0
        %3818 = vmatpush1.xpose.msra.mxu0 0.0
        %3819 = vmatprep.subr.mxu0 0.0
        %3820 = vmatpush1.xpose.msra.mxu0 0.0
        %3821 = vmatprep.mubr.f32.mxu0 0.0
        %3822 = vmatmul.mubr.f32.gmra.mrb[0].mxu0 %v3753
        %v3823 = vpop.f32.mrb[0].mxu0
        %v3824 = vadd.f32 0.0, %v3823
        %v3825 = vpop.f32.mrb[0].mxu0
        %3826 = vdwg.mxu0
        %v3827 = vsel %vm667, %v3824, -inf
        %3828 = vmax.xlane.f32.xlu0 %v3827
        %v3829 = vpop.xlane.xlu0 %3828
        %v3830 = vsub.f32 %v3824, %v3829
        %v3831 = vmul.f32 %v3830, 1.442695
        %v3832 = vpow.pop %v3831
        %v3833 = vsel %vm667, %v3832, 0.0
        %3834 = vadd.xlane.f32.xlu0 %v3833
        %v3835 = vpop.xlane.xlu0 %3834
        %v3836 = vrcp.pop %v3835
        %v3837 = vmul.f32 %v3832, %v3836
        %3838 = vrot.lane.b32.xlu0 %v3250, 40
        %v3839 = vpop.permute.xlu0 %3838
        %v3842 = vsel %vm667, %v3837, 0
        %3844 = vmatprep.subr.mxu0 0.0
        %3845 = vmatpush1.msra.mxu0 %v3839
        %3846 = vmatprep.subr.mxu0 0.0
        %3847 = vmatpush1.msra.mxu0 0.0
        %3848 = vmatprep.subr.mxu0 0.0
        %3849 = vmatpush1.msra.mxu0 0.0
        %3850 = vmatprep.subr.mxu0 0.0
        %3851 = vmatpush1.msra.mxu0 0.0
        %3852 = vmatprep.subr.mxu0 0.0
        %3853 = vmatpush1.msra.mxu0 0.0
        %3854 = vmatprep.subr.mxu0 0.0
        %3855 = vmatpush1.msra.mxu0 0.0
        %3856 = vmatprep.subr.mxu0 0.0
        %3857 = vmatpush1.msra.mxu0 0.0
        %3858 = vmatprep.subr.mxu0 0.0
        %3859 = vmatpush1.msra.mxu0 0.0
        %3860 = vmatprep.subr.mxu0 0.0
        %3861 = vmatpush1.msra.mxu0 0.0
        %3862 = vmatprep.subr.mxu0 0.0
        %3863 = vmatpush1.msra.mxu0 0.0
        %3864 = vmatprep.subr.mxu0 0.0
        %3865 = vmatpush1.msra.mxu0 0.0
        %3866 = vmatprep.subr.mxu0 0.0
        %3867 = vmatpush1.msra.mxu0 0.0
        %3868 = vmatprep.subr.mxu0 0.0
        %3869 = vmatpush1.msra.mxu0 0.0
        %3870 = vmatprep.subr.mxu0 0.0
        %3871 = vmatpush1.msra.mxu0 0.0
        %3872 = vmatprep.subr.mxu0 0.0
        %3873 = vmatpush1.msra.mxu0 0.0
        %3874 = vmatprep.subr.mxu0 0.0
        %3875 = vmatpush1.msra.mxu0 0.0
        %3876 = vmatprep.subr.mxu0 0.0
        %3877 = vmatpush1.msra.mxu0 0.0
        %3878 = vmatprep.subr.mxu0 0.0
        %3879 = vmatpush1.msra.mxu0 0.0
        %3880 = vmatprep.subr.mxu0 0.0
        %3881 = vmatpush1.msra.mxu0 0.0
        %3882 = vmatprep.subr.mxu0 0.0
        %3883 = vmatpush1.msra.mxu0 0.0
        %3884 = vmatprep.subr.mxu0 0.0
        %3885 = vmatpush1.msra.mxu0 0.0
        %3886 = vmatprep.subr.mxu0 0.0
        %3887 = vmatpush1.msra.mxu0 0.0
        %3888 = vmatprep.subr.mxu0 0.0
        %3889 = vmatpush1.msra.mxu0 0.0
        %3890 = vmatprep.subr.mxu0 0.0
        %3891 = vmatpush1.msra.mxu0 0.0
        %3892 = vmatprep.subr.mxu0 0.0
        %3893 = vmatpush1.msra.mxu0 0.0
        %3894 = vmatprep.subr.mxu0 0.0
        %3895 = vmatpush1.msra.mxu0 0.0
        %3896 = vmatprep.subr.mxu0 0.0
        %3897 = vmatpush1.msra.mxu0 0.0
        %3898 = vmatprep.subr.mxu0 0.0
        %3899 = vmatpush1.msra.mxu0 0.0
        %3900 = vmatprep.subr.mxu0 0.0
        %3901 = vmatpush1.msra.mxu0 0.0
        %3902 = vmatprep.subr.mxu0 0.0
        %3903 = vmatpush1.msra.mxu0 0.0
        %3904 = vmatprep.subr.mxu0 0.0
        %3905 = vmatpush1.msra.mxu0 0.0
        %3906 = vmatprep.subr.mxu0 0.0
        %3907 = vmatpush1.msra.mxu0 0.0
        %3908 = vmatprep.mubr.f32.mxu0 0.0
        %3909 = vmatmul.mubr.f32.gmra.mrb[0].mxu0 %v3842
        %v3910 = vpop.f32.mrb[0].mxu0
        %v3911 = vadd.f32 0.0, %v3910
        %v3912 = vpop.f32.mrb[0].mxu0
        %3913 = vdwg.mxu0
        %3915 = vrot.lane.b32.xlu0 %v3581, 8
        %v3916 = vpop.permute.xlu0 %3915
        %3919 = vrot.lane.b32.xlu0 %v3746, 16
        %v3920 = vpop.permute.xlu0 %3919
        %3923 = vrot.lane.b32.xlu0 %v3911, 24
        %v3924 = vpop.permute.xlu0 %3923
        %v3926 = vsel %vm667, %v3416, %v3916
        %v3927 = vsel %vm449, %v3926, %v3920
        %v3928 = vsel %vm1490, %v3927, %v3924
        %v3930 = vlaneseq
        %v3931 = vshrl.u32 %v3930, 7
        %v3932 = vsub.s32 0, %v3931
        %v3933 = vrot.slane %v3143, %v3932
        %v3936 = vsel %vm573, %v3928, 0
        %3938 = vmatprep.subr.mxu0 0.0
        %3939 = vmatpush1.msra.mxu0 %v3138
        %3940 = vmatprep.subr.mxu0 0.0
        %3941 = vmatpush1.msra.mxu0 %v3139
        %3942 = vmatprep.subr.mxu0 0.0
        %3943 = vmatpush1.msra.mxu0 %v3140
        %3944 = vmatprep.subr.mxu0 0.0
        %3945 = vmatpush1.msra.mxu0 %v3141
        %3946 = vmatprep.subr.mxu0 0.0
        %3947 = vmatpush1.msra.mxu0 0.0
        %3948 = vmatprep.subr.mxu0 0.0
        %3949 = vmatpush1.msra.mxu0 0.0
        %3950 = vmatprep.subr.mxu0 0.0
        %3951 = vmatpush1.msra.mxu0 0.0
        %3952 = vmatprep.subr.mxu0 0.0
        %3953 = vmatpush1.msra.mxu0 0.0
        %3954 = vmatprep.subr.mxu0 0.0
        %3955 = vmatpush1.msra.mxu0 0.0
        %3956 = vmatprep.subr.mxu0 0.0
        %3957 = vmatpush1.msra.mxu0 0.0
        %3958 = vmatprep.subr.mxu0 0.0
        %3959 = vmatpush1.msra.mxu0 0.0
        %3960 = vmatprep.subr.mxu0 0.0
        %3961 = vmatpush1.msra.mxu0 0.0
        %3962 = vmatprep.subr.mxu0 0.0
        %3963 = vmatpush1.msra.mxu0 0.0
        %3964 = vmatprep.subr.mxu0 0.0
        %3965 = vmatpush1.msra.mxu0 0.0
        %3966 = vmatprep.subr.mxu0 0.0
        %3967 = vmatpush1.msra.mxu0 0.0
        %3968 = vmatprep.subr.mxu0 0.0
        %3969 = vmatpush1.msra.mxu0 0.0
        %3970 = vmatprep.subr.mxu0 0.0
        %3971 = vmatpush1.msra.mxu0 0.0
        %3972 = vmatprep.subr.mxu0 0.0
        %3973 = vmatpush1.msra.mxu0 0.0
        %3974 = vmatprep.subr.mxu0 0.0
        %3975 = vmatpush1.msra.mxu0 0.0
        %3976 = vmatprep.subr.mxu0 0.0
        %3977 = vmatpush1.msra.mxu0 0.0
        %3978 = vmatprep.subr.mxu0 0.0
        %3979 = vmatpush1.msra.mxu0 0.0
        %3980 = vmatprep.subr.mxu0 0.0
        %3981 = vmatpush1.msra.mxu0 0.0
        %3982 = vmatprep.subr.mxu0 0.0
        %3983 = vmatpush1.msra.mxu0 0.0
        %3984 = vmatprep.subr.mxu0 0.0
        %3985 = vmatpush1.msra.mxu0 0.0
        %3986 = vmatprep.subr.mxu0 0.0
        %3987 = vmatpush1.msra.mxu0 0.0
        %3988 = vmatprep.subr.mxu0 0.0
        %3989 = vmatpush1.msra.mxu0 0.0
        %3990 = vmatprep.subr.mxu0 0.0
        %3991 = vmatpush1.msra.mxu0 0.0
        %3992 = vmatprep.subr.mxu0 0.0
        %3993 = vmatpush1.msra.mxu0 0.0
        %3994 = vmatprep.subr.mxu0 0.0
        %3995 = vmatpush1.msra.mxu0 0.0
        %3996 = vmatprep.subr.mxu0 0.0
        %3997 = vmatpush1.msra.mxu0 0.0
        %3998 = vmatprep.subr.mxu0 0.0
        %3999 = vmatpush1.msra.mxu0 0.0
        %4000 = vmatprep.subr.mxu0 0.0
        %4001 = vmatpush1.msra.mxu0 0.0
        %4002 = vmatprep.mubr.f32.mxu0 0.0
        %4003 = vmatmul.mubr.f32.gmra.mrb[0].mxu0 %v3936
        %v4004 = vpop.f32.mrb[0].mxu0
        %v4005 = vadd.f32 %v3933, %v4004
        %v4006 = vpop.f32.mrb[0].mxu0
        %4007 = vdwg.mxu0
        %v4008 = vadd.f32 %v3133, %v4005
        %v4009 = vsel %vm573, %v4008, 0.0
        %4010 = vadd.xlane.f32.xlu0 %v4009
        %v4011 = vpop.xlane.xlu0 %4010
        %v4012 = vmul.f32 %v4011, %v1588
        %v4013 = vsub.f32 %v4008, %v4012
        %v4014 = vmul.f32 %v4013, %v4013
        %v4015 = vsel %vm573, %v4014, 0.0
        %4016 = vadd.xlane.f32.xlu0 %v4015
        %v4017 = vpop.xlane.xlu0 %4016
        %v4018 = vmul.f32 %v4017, %v1588
        %v4019 = vadd.f32 %v4018, 1e-05
        %v4020 = vrsqrt.pop %v4019
        %v4021 = vmul.f32 %v4013, %v4020
        %v4023 = vlaneseq
        %v4024 = vshrl.u32 %v4023, 7
        %v4025 = vsub.s32 0, %v4024
        %v4026 = vrot.slane %v3168, %v4025
        %v4028 = vmul.f32 %v4021, %v4026
        %v4030 = vlaneseq
        %v4031 = vshrl.u32 %v4030, 7
        %v4032 = vsub.s32 0, %v4031
        %v4033 = vrot.slane %v3169, %v4032
        %v4035 = vadd.f32 %v4028, %v4033
        %v4037 = vlaneseq
        %v4038 = vshrl.u32 %v4037, 7
        %v4039 = vsub.s32 0, %v4038
        %v4040 = vrot.slane %v3164, %v4039
        %v4043 = vsel %vm573, %v3129, 0
        %4045 = vmatprep.subr.mxu0 0.0
        %4046 = vmatpush1.msra.mxu0 %v3152
        %4047 = vmatprep.subr.mxu0 0.0
        %4048 = vmatpush1.msra.mxu0 %v3153
        %4049 = vmatprep.subr.mxu0 0.0
        %4050 = vmatpush1.msra.mxu0 %v3154
        %4051 = vmatprep.subr.mxu0 0.0
        %4052 = vmatpush1.msra.mxu0 %v3155
        %4053 = vmatprep.subr.mxu0 0.0
        %4054 = vmatpush1.msra.mxu0 0.0
        %4055 = vmatprep.subr.mxu0 0.0
        %4056 = vmatpush1.msra.mxu0 0.0
        %4057 = vmatprep.subr.mxu0 0.0
        %4058 = vmatpush1.msra.mxu0 0.0
        %4059 = vmatprep.subr.mxu0 0.0
        %4060 = vmatpush1.msra.mxu0 0.0
        %4061 = vmatprep.subr.mxu0 0.0
        %4062 = vmatpush1.msra.mxu0 0.0
        %4063 = vmatprep.subr.mxu0 0.0
        %4064 = vmatpush1.msra.mxu0 0.0
        %4065 = vmatprep.subr.mxu0 0.0
        %4066 = vmatpush1.msra.mxu0 0.0
        %4067 = vmatprep.subr.mxu0 0.0
        %4068 = vmatpush1.msra.mxu0 0.0
        %4069 = vmatprep.subr.mxu0 0.0
        %4070 = vmatpush1.msra.mxu0 0.0
        %4071 = vmatprep.subr.mxu0 0.0
        %4072 = vmatpush1.msra.mxu0 0.0
        %4073 = vmatprep.subr.mxu0 0.0
        %4074 = vmatpush1.msra.mxu0 0.0
        %4075 = vmatprep.subr.mxu0 0.0
        %4076 = vmatpush1.msra.mxu0 0.0
        %4077 = vmatprep.subr.mxu0 0.0
        %4078 = vmatpush1.msra.mxu0 0.0
        %4079 = vmatprep.subr.mxu0 0.0
        %4080 = vmatpush1.msra.mxu0 0.0
        %4081 = vmatprep.subr.mxu0 0.0
        %4082 = vmatpush1.msra.mxu0 0.0
        %4083 = vmatprep.subr.mxu0 0.0
        %4084 = vmatpush1.msra.mxu0 0.0
        %4085 = vmatprep.subr.mxu0 0.0
        %4086 = vmatpush1.msra.mxu0 0.0
        %4087 = vmatprep.subr.mxu0 0.0
        %4088 = vmatpush1.msra.mxu0 0.0
        %4089 = vmatprep.subr.mxu0 0.0
        %4090 = vmatpush1.msra.mxu0 0.0
        %4091 = vmatprep.subr.mxu0 0.0
        %4092 = vmatpush1.msra.mxu0 0.0
        %4093 = vmatprep.subr.mxu0 0.0
        %4094 = vmatpush1.msra.mxu0 0.0
        %4095 = vmatprep.subr.mxu0 0.0
        %4096 = vmatpush1.msra.mxu0 0.0
        %4097 = vmatprep.subr.mxu0 0.0
        %4098 = vmatpush1.msra.mxu0 0.0
        %4099 = vmatprep.subr.mxu0 0.0
        %4100 = vmatpush1.msra.mxu0 0.0
        %4101 = vmatprep.subr.mxu0 0.0
        %4102 = vmatpush1.msra.mxu0 0.0
        %4103 = vmatprep.subr.mxu0 0.0
        %4104 = vmatpush1.msra.mxu0 0.0
        %4105 = vmatprep.subr.mxu0 0.0
        %4106 = vmatpush1.msra.mxu0 0.0
        %4107 = vmatprep.subr.mxu0 0.0
        %4108 = vmatpush1.msra.mxu0 0.0
        %4109 = vmatprep.mubr.f32.mxu0 0.0
        %4110 = vmatmul.mubr.f32.gmra.mrb[0].mxu0 %v4043
        %v4111 = vpop.f32.mrb[0].mxu0
        %v4112 = vadd.f32 %v4040, %v4111
        %v4113 = vpop.f32.mrb[0].mxu0
        %4114 = vdwg.mxu0
        %v4116 = vsel %vm573, %v4112, 0
        %4118 = vmatprep.subr.mxu0 0.0
        %4119 = vmatpush1.msra.mxu0 %v3156
        %4120 = vmatprep.subr.mxu0 0.0
        %4121 = vmatpush1.msra.mxu0 %v3157
        %4122 = vmatprep.subr.mxu0 0.0
        %4123 = vmatpush1.msra.mxu0 %v3158
        %4124 = vmatprep.subr.mxu0 0.0
        %4125 = vmatpush1.msra.mxu0 %v3159
        %4126 = vmatprep.subr.mxu0 0.0
        %4127 = vmatpush1.msra.mxu0 0.0
        %4128 = vmatprep.subr.mxu0 0.0
        %4129 = vmatpush1.msra.mxu0 0.0
        %4130 = vmatprep.subr.mxu0 0.0
        %4131 = vmatpush1.msra.mxu0 0.0
        %4132 = vmatprep.subr.mxu0 0.0
        %4133 = vmatpush1.msra.mxu0 0.0
        %4134 = vmatprep.subr.mxu0 0.0
        %4135 = vmatpush1.msra.mxu0 0.0
        %4136 = vmatprep.subr.mxu0 0.0
        %4137 = vmatpush1.msra.mxu0 0.0
        %4138 = vmatprep.subr.mxu0 0.0
        %4139 = vmatpush1.msra.mxu0 0.0
        %4140 = vmatprep.subr.mxu0 0.0
        %4141 = vmatpush1.msra.mxu0 0.0
        %4142 = vmatprep.subr.mxu0 0.0
        %4143 = vmatpush1.msra.mxu0 0.0
        %4144 = vmatprep.subr.mxu0 0.0
        %4145 = vmatpush1.msra.mxu0 0.0
        %4146 = vmatprep.subr.mxu0 0.0
        %4147 = vmatpush1.msra.mxu0 0.0
        %4148 = vmatprep.subr.mxu0 0.0
        %4149 = vmatpush1.msra.mxu0 0.0
        %4150 = vmatprep.subr.mxu0 0.0
        %4151 = vmatpush1.msra.mxu0 0.0
        %4152 = vmatprep.subr.mxu0 0.0
        %4153 = vmatpush1.msra.mxu0 0.0
        %4154 = vmatprep.subr.mxu0 0.0
        %4155 = vmatpush1.msra.mxu0 0.0
        %4156 = vmatprep.subr.mxu0 0.0
        %4157 = vmatpush1.msra.mxu0 0.0
        %4158 = vmatprep.subr.mxu0 0.0
        %4159 = vmatpush1.msra.mxu0 0.0
        %4160 = vmatprep.subr.mxu0 0.0
        %4161 = vmatpush1.msra.mxu0 0.0
        %4162 = vmatprep.subr.mxu0 0.0
        %4163 = vmatpush1.msra.mxu0 0.0
        %4164 = vmatprep.subr.mxu0 0.0
        %4165 = vmatpush1.msra.mxu0 0.0
        %4166 = vmatprep.subr.mxu0 0.0
        %4167 = vmatpush1.msra.mxu0 0.0
        %4168 = vmatprep.subr.mxu0 0.0
        %4169 = vmatpush1.msra.mxu0 0.0
        %4170 = vmatprep.subr.mxu0 0.0
        %4171 = vmatpush1.msra.mxu0 0.0
        %4172 = vmatprep.subr.mxu0 0.0
        %4173 = vmatpush1.msra.mxu0 0.0
        %4174 = vmatprep.subr.mxu0 0.0
        %4175 = vmatpush1.msra.mxu0 0.0
        %4176 = vmatprep.subr.mxu0 0.0
        %4177 = vmatpush1.msra.mxu0 0.0
        %4178 = vmatprep.subr.mxu0 0.0
        %4179 = vmatpush1.msra.mxu0 0.0
        %4180 = vmatprep.subr.mxu0 0.0
        %4181 = vmatpush1.msra.mxu0 0.0
        %4182 = vmatprep.mubr.f32.mxu0 0.0
        %4183 = vmatmul.mubr.f32.gmra.mrb[0].mxu0 %v4116
        %v4184 = vpop.f32.mrb[0].mxu0
        %v4185 = vadd.f32 0.0, %v4184
        %v4186 = vpop.f32.mrb[0].mxu0
        %4187 = vdwg.mxu0
        %v4188 = vadd.f32 %v4185, %v3165
        %v4189 = vlaneseq
        %v4190 = vshrl.u32 %v4189, 7
        %v4191 = vsub.s32 0, %v4190
        %v4192 = vrot.slane %v4188, %v4191
        %v4193 = vadd.f32 %v4035, %v4192
        %v4194 = vsel %vm573, %v4193, 0.0
        %4195 = vadd.xlane.f32.xlu0 %v4194
        %v4196 = vpop.xlane.xlu0 %4195
        %v4197 = vmul.f32 %v4196, %v1588
        %v4198 = vsub.f32 %v4193, %v4197
        %v4199 = vmul.f32 %v4198, %v4198
        %v4200 = vsel %vm573, %v4199, 0.0
        %4201 = vadd.xlane.f32.xlu0 %v4200
        %v4202 = vpop.xlane.xlu0 %4201
        %v4203 = vmul.f32 %v4202, %v1588
        %v4204 = vadd.f32 %v4203, 1e-05
        %v4205 = vrsqrt.pop %v4204
        %v4206 = vmul.f32 %v4198, %v4205
        %v4208 = vlaneseq
        %v4209 = vshrl.u32 %v4208, 7
        %v4210 = vsub.s32 0, %v4209
        %v4211 = vrot.slane %v3170, %v4210
        %v4213 = vmul.f32 %v4206, %v4211
        %v4215 = vlaneseq
        %v4216 = vshrl.u32 %v4215, 7
        %v4217 = vsub.s32 0, %v4216
        %v4218 = vrot.slane %v3171, %v4217
        %v4220 = vadd.f32 %v4213, %v4218
        %v4222 = vlaneseq
        %v4223 = vshrl.u32 %v4222, 7
        %v4224 = vsub.s32 0, %v4223
        %v4225 = vrot.slane %v3166, %v4224
        %v4228 = vsel %vm573, %v4220, 0
        %4230 = vmatprep.subr.mxu0 0.0
        %4231 = vmatpush1.msra.mxu0 %v3160
        %4232 = vmatprep.subr.mxu0 0.0
        %4233 = vmatpush1.msra.mxu0 %v3161
        %4234 = vmatprep.subr.mxu0 0.0
        %4235 = vmatpush1.msra.mxu0 %v3162
        %4236 = vmatprep.subr.mxu0 0.0
        %4237 = vmatpush1.msra.mxu0 %v3163
        %4238 = vmatprep.subr.mxu0 0.0
        %4239 = vmatpush1.msra.mxu0 0.0
        %4240 = vmatprep.subr.mxu0 0.0
        %4241 = vmatpush1.msra.mxu0 0.0
        %4242 = vmatprep.subr.mxu0 0.0
        %4243 = vmatpush1.msra.mxu0 0.0
        %4244 = vmatprep.subr.mxu0 0.0
        %4245 = vmatpush1.msra.mxu0 0.0
        %4246 = vmatprep.subr.mxu0 0.0
        %4247 = vmatpush1.msra.mxu0 0.0
        %4248 = vmatprep.subr.mxu0 0.0
        %4249 = vmatpush1.msra.mxu0 0.0
        %4250 = vmatprep.subr.mxu0 0.0
        %4251 = vmatpush1.msra.mxu0 0.0
        %4252 = vmatprep.subr.mxu0 0.0
        %4253 = vmatpush1.msra.mxu0 0.0
        %4254 = vmatprep.subr.mxu0 0.0
        %4255 = vmatpush1.msra.mxu0 0.0
        %4256 = vmatprep.subr.mxu0 0.0
        %4257 = vmatpush1.msra.mxu0 0.0
        %4258 = vmatprep.subr.mxu0 0.0
        %4259 = vmatpush1.msra.mxu0 0.0
        %4260 = vmatprep.subr.mxu0 0.0
        %4261 = vmatpush1.msra.mxu0 0.0
        %4262 = vmatprep.subr.mxu0 0.0
        %4263 = vmatpush1.msra.mxu0 0.0
        %4264 = vmatprep.subr.mxu0 0.0
        %4265 = vmatpush1.msra.mxu0 0.0
        %4266 = vmatprep.subr.mxu0 0.0
        %4267 = vmatpush1.msra.mxu0 0.0
        %4268 = vmatprep.subr.mxu0 0.0
        %4269 = vmatpush1.msra.mxu0 0.0
        %4270 = vmatprep.subr.mxu0 0.0
        %4271 = vmatpush1.msra.mxu0 0.0
        %4272 = vmatprep.subr.mxu0 0.0
        %4273 = vmatpush1.msra.mxu0 0.0
        %4274 = vmatprep.subr.mxu0 0.0
        %4275 = vmatpush1.msra.mxu0 0.0
        %4276 = vmatprep.subr.mxu0 0.0
        %4277 = vmatpush1.msra.mxu0 0.0
        %4278 = vmatprep.subr.mxu0 0.0
        %4279 = vmatpush1.msra.mxu0 0.0
        %4280 = vmatprep.subr.mxu0 0.0
        %4281 = vmatpush1.msra.mxu0 0.0
        %4282 = vmatprep.subr.mxu0 0.0
        %4283 = vmatpush1.msra.mxu0 0.0
        %4284 = vmatprep.subr.mxu0 0.0
        %4285 = vmatpush1.msra.mxu0 0.0
        %4286 = vmatprep.subr.mxu0 0.0
        %4287 = vmatpush1.msra.mxu0 0.0
        %4288 = vmatprep.subr.mxu0 0.0
        %4289 = vmatpush1.msra.mxu0 0.0
        %4290 = vmatprep.subr.mxu0 0.0
        %4291 = vmatpush1.msra.mxu0 0.0
        %4292 = vmatprep.subr.mxu0 0.0
        %4293 = vmatpush1.msra.mxu0 0.0
        %4294 = vmatprep.mubr.f32.mxu0 0.0
        %4295 = vmatmul.mubr.f32.gmra.mrb[0].mxu0 %v4228
        %v4296 = vpop.f32.mrb[0].mxu0
        %v4297 = vadd.f32 %v4225, %v4296
        %v4298 = vpop.f32.mrb[0].mxu0
        %4299 = vdwg.mxu0
        %v4300 = vmax.f32 %v4297, 0.0
        %v4302 = vlaneseq
        %v4303 = vshrl.u32 %v4302, 7
        %v4304 = vsub.s32 0, %v4303
        %v4305 = vrot.slane %v3167, %v4304
        %v4308 = vsel %vm1720, %v4300, 0
        %4310 = vmatprep.subr.mxu0 0.0
        %4311 = vmatpush1.msra.mxu0 %v3144
        %4312 = vmatprep.subr.mxu0 0.0
        %4313 = vmatpush1.msra.mxu0 %v3145
        %4314 = vmatprep.subr.mxu0 0.0
        %4315 = vmatpush1.msra.mxu0 %v3146
        %4316 = vmatprep.subr.mxu0 0.0
        %4317 = vmatpush1.msra.mxu0 %v3147
        %4318 = vmatprep.subr.mxu0 0.0
        %4319 = vmatpush1.msra.mxu0 %v3148
        %4320 = vmatprep.subr.mxu0 0.0
        %4321 = vmatpush1.msra.mxu0 %v3149
        %4322 = vmatprep.subr.mxu0 0.0
        %4323 = vmatpush1.msra.mxu0 %v3150
        %4324 = vmatprep.subr.mxu0 0.0
        %4325 = vmatpush1.msra.mxu0 %v3151
        %4326 = vmatprep.subr.mxu0 0.0
        %4327 = vmatpush1.msra.mxu0 0.0
        %4328 = vmatprep.subr.mxu0 0.0
        %4329 = vmatpush1.msra.mxu0 0.0
        %4330 = vmatprep.subr.mxu0 0.0
        %4331 = vmatpush1.msra.mxu0 0.0
        %4332 = vmatprep.subr.mxu0 0.0
        %4333 = vmatpush1.msra.mxu0 0.0
        %4334 = vmatprep.subr.mxu0 0.0
        %4335 = vmatpush1.msra.mxu0 0.0
        %4336 = vmatprep.subr.mxu0 0.0
        %4337 = vmatpush1.msra.mxu0 0.0
        %4338 = vmatprep.subr.mxu0 0.0
        %4339 = vmatpush1.msra.mxu0 0.0
        %4340 = vmatprep.subr.mxu0 0.0
        %4341 = vmatpush1.msra.mxu0 0.0
        %4342 = vmatprep.subr.mxu0 0.0
        %4343 = vmatpush1.msra.mxu0 0.0
        %4344 = vmatprep.subr.mxu0 0.0
        %4345 = vmatpush1.msra.mxu0 0.0
        %4346 = vmatprep.subr.mxu0 0.0
        %4347 = vmatpush1.msra.mxu0 0.0
        %4348 = vmatprep.subr.mxu0 0.0
        %4349 = vmatpush1.msra.mxu0 0.0
        %4350 = vmatprep.subr.mxu0 0.0
        %4351 = vmatpush1.msra.mxu0 0.0
        %4352 = vmatprep.subr.mxu0 0.0
        %4353 = vmatpush1.msra.mxu0 0.0
        %4354 = vmatprep.subr.mxu0 0.0
        %4355 = vmatpush1.msra.mxu0 0.0
        %4356 = vmatprep.subr.mxu0 0.0
        %4357 = vmatpush1.msra.mxu0 0.0
        %4358 = vmatprep.subr.mxu0 0.0
        %4359 = vmatpush1.msra.mxu0 0.0
        %4360 = vmatprep.subr.mxu0 0.0
        %4361 = vmatpush1.msra.mxu0 0.0
        %4362 = vmatprep.subr.mxu0 0.0
        %4363 = vmatpush1.msra.mxu0 0.0
        %4364 = vmatprep.subr.mxu0 0.0
        %4365 = vmatpush1.msra.mxu0 0.0
        %4366 = vmatprep.subr.mxu0 0.0
        %4367 = vmatpush1.msra.mxu0 0.0
        %4368 = vmatprep.subr.mxu0 0.0
        %4369 = vmatpush1.msra.mxu0 0.0
        %4370 = vmatprep.subr.mxu0 0.0
        %4371 = vmatpush1.msra.mxu0 0.0
        %4372 = vmatprep.subr.mxu0 0.0
        %4373 = vmatpush1.msra.mxu0 0.0
        %4374 = vmatprep.mubr.f32.mxu0 0.0
        %4375 = vmatmul.mubr.f32.gmra.mrb[0].mxu0 %v4308
        %v4376 = vpop.f32.mrb[0].mxu0
        %v4377 = vadd.f32 %v4305, %v4376
        %v4378 = vpop.f32.mrb[0].mxu0
        %4379 = vdwg.mxu0
        %v4380 = vadd.f32 %v4220, %v4377
        %v4381 = vsel %vm573, %v4380, 0.0
        %4382 = vadd.xlane.f32.xlu0 %v4381
        %v4383 = vpop.xlane.xlu0 %4382
        %v4384 = vmul.f32 %v4383, %v1588
        %v4385 = vsub.f32 %v4380, %v4384
        %v4386 = vmul.f32 %v4385, %v4385
        %v4387 = vsel %vm573, %v4386, 0.0
        %4388 = vadd.xlane.f32.xlu0 %v4387
        %v4389 = vpop.xlane.xlu0 %4388
        %v4390 = vmul.f32 %v4389, %v1588
        %v4391 = vadd.f32 %v4390, 1e-05
        %v4392 = vrsqrt.pop %v4391
        %v4393 = vmul.f32 %v4385, %v4392
        %v4395 = vlaneseq
        %v4396 = vshrl.u32 %v4395, 7
        %v4397 = vsub.s32 0, %v4396
        %v4398 = vrot.slane %v3172, %v4397
        %v4400 = vmul.f32 %v4393, %v4398
        %v4402 = vlaneseq
        %v4403 = vshrl.u32 %v4402, 7
        %v4404 = vsub.s32 0, %v4403
        %v4405 = vrot.slane %v3173, %v4404
        %v4407 = vadd.f32 %v4400, %v4405
        %s4408 = scalar_lea.vmem %s9, 160
        %v4409 = vld [vmem:[%s4408] sm:$0xff]
        %v4410 = vld [vmem:[%s4408 + $0x28] sm:$0xff]
        %v4411 = vld [vmem:[%s4408 + $0x50] sm:$0xff]
        %v4412 = vld [vmem:[%s4408 + $0x78] sm:$0xff]
        %v4413 = vld [vmem:[%s4408 + $0x8] sm:$0xff]
        %v4414 = vld [vmem:[%s4408 + $0x30] sm:$0xff]
        %v4415 = vld [vmem:[%s4408 + $0x58] sm:$0xff]
        %v4416 = vld [vmem:[%s4408 + $0x80] sm:$0xff]
        %s4417 = scalar_lea.vmem %s11, 12
        %v4418 = vld [vmem:[%s4417] sm:$0x1]
        %v4419 = vld [vmem:[%s4417 + $0x1] sm:$0x1]
        %s4420 = scalar_lea.vmem %s10, 64
        %v4421 = vld [vmem:[%s4420] sm:$0xff]
        %v4422 = vld [vmem:[%s4420 + $0x8] sm:$0xff]
        %v4423 = vld [vmem:[%s4420 + $0x10] sm:$0xff]
        %v4424 = vld [vmem:[%s4420 + $0x18] sm:$0xff]
        %v4425 = vld [vmem:[%s4420 + $0x20] sm:$0xff]
        %v4426 = vld [vmem:[%s4420 + $0x28] sm:$0xff]
        %v4427 = vld [vmem:[%s4420 + $0x30] sm:$0xff]
        %v4428 = vld [vmem:[%s4420 + $0x38] sm:$0xff]
        %v4429 = vld [vmem:[%s4408 + $0x10] sm:$0xff]
        %v4430 = vld [vmem:[%s4408 + $0x38] sm:$0xff]
        %v4431 = vld [vmem:[%s4408 + $0x60] sm:$0xff]
        %v4432 = vld [vmem:[%s4408 + $0x88] sm:$0xff]
        %v4433 = vld [vmem:[%s4408 + $0x18] sm:$0xff]
        %v4434 = vld [vmem:[%s4408 + $0x40] sm:$0xff]
        %v4435 = vld [vmem:[%s4408 + $0x68] sm:$0xff]
        %v4436 = vld [vmem:[%s4408 + $0x90] sm:$0xff]
        %v4437 = vld [vmem:[%s4408 + $0x20] sm:$0xff]
        %v4438 = vld [vmem:[%s4408 + $0x48] sm:$0xff]
        %v4439 = vld [vmem:[%s4408 + $0x70] sm:$0xff]
        %v4440 = vld [vmem:[%s4408 + $0x98] sm:$0xff]
        %v4441 = vld [vmem:[%s4417 + $0x2] sm:$0x1]
        %v4442 = vld [vmem:[%s4417 + $0x3] sm:$0x1]
        %v4443 = vld [vmem:[%s4417 + $0x4] sm:$0x1]
        %v4444 = vld [vmem:[%s4417 + $0x5] sm:$0x1]
        %v4445 = vld [vmem:[%s4417 + $0x6] sm:$0x1]
        %v4446 = vld [vmem:[%s4417 + $0x7] sm:$0x1]
        %v4447 = vld [vmem:[%s4417 + $0x8] sm:$0x1]
        %v4448 = vld [vmem:[%s4417 + $0x9] sm:$0x1]
        %v4449 = vld [vmem:[%s4417 + $0xa] sm:$0x1]
        %v4450 = vld [vmem:[%s4417 + $0xb] sm:$0x1]
        %v4452 = vlaneseq
        %v4453 = vshrl.u32 %v4452, 7
        %v4454 = vsub.s32 0, %v4453
        %v4455 = vrot.slane %v4418, %v4454
        %v4458 = vsel %vm573, %v4407, 0
        %4460 = vmatprep.subr.mxu0 0.0
        %4461 = vmatpush1.msra.mxu0 %v4409
        %4462 = vmatprep.subr.mxu0 0.0
        %4463 = vmatpush1.msra.mxu0 %v4410
        %4464 = vmatprep.subr.mxu0 0.0
        %4465 = vmatpush1.msra.mxu0 %v4411
        %4466 = vmatprep.subr.mxu0 0.0
        %4467 = vmatpush1.msra.mxu0 %v4412
        %4468 = vmatprep.subr.mxu0 0.0
        %4469 = vmatpush1.msra.mxu0 0.0
        %4470 = vmatprep.subr.mxu0 0.0
        %4471 = vmatpush1.msra.mxu0 0.0
        %4472 = vmatprep.subr.mxu0 0.0
        %4473 = vmatpush1.msra.mxu0 0.0
        %4474 = vmatprep.subr.mxu0 0.0
        %4475 = vmatpush1.msra.mxu0 0.0
        %4476 = vmatprep.subr.mxu0 0.0
        %4477 = vmatpush1.msra.mxu0 0.0
        %4478 = vmatprep.subr.mxu0 0.0
        %4479 = vmatpush1.msra.mxu0 0.0
        %4480 = vmatprep.subr.mxu0 0.0
        %4481 = vmatpush1.msra.mxu0 0.0
        %4482 = vmatprep.subr.mxu0 0.0
        %4483 = vmatpush1.msra.mxu0 0.0
        %4484 = vmatprep.subr.mxu0 0.0
        %4485 = vmatpush1.msra.mxu0 0.0
        %4486 = vmatprep.subr.mxu0 0.0
        %4487 = vmatpush1.msra.mxu0 0.0
        %4488 = vmatprep.subr.mxu0 0.0
        %4489 = vmatpush1.msra.mxu0 0.0
        %4490 = vmatprep.subr.mxu0 0.0
        %4491 = vmatpush1.msra.mxu0 0.0
        %4492 = vmatprep.subr.mxu0 0.0
        %4493 = vmatpush1.msra.mxu0 0.0
        %4494 = vmatprep.subr.mxu0 0.0
        %4495 = vmatpush1.msra.mxu0 0.0
        %4496 = vmatprep.subr.mxu0 0.0
        %4497 = vmatpush1.msra.mxu0 0.0
        %4498 = vmatprep.subr.mxu0 0.0
        %4499 = vmatpush1.msra.mxu0 0.0
        %4500 = vmatprep.subr.mxu0 0.0
        %4501 = vmatpush1.msra.mxu0 0.0
        %4502 = vmatprep.subr.mxu0 0.0
        %4503 = vmatpush1.msra.mxu0 0.0
        %4504 = vmatprep.subr.mxu0 0.0
        %4505 = vmatpush1.msra.mxu0 0.0
        %4506 = vmatprep.subr.mxu0 0.0
        %4507 = vmatpush1.msra.mxu0 0.0
        %4508 = vmatprep.subr.mxu0 0.0
        %4509 = vmatpush1.msra.mxu0 0.0
        %4510 = vmatprep.subr.mxu0 0.0
        %4511 = vmatpush1.msra.mxu0 0.0
        %4512 = vmatprep.subr.mxu0 0.0
        %4513 = vmatpush1.msra.mxu0 0.0
        %4514 = vmatprep.subr.mxu0 0.0
        %4515 = vmatpush1.msra.mxu0 0.0
        %4516 = vmatprep.subr.mxu0 0.0
        %4517 = vmatpush1.msra.mxu0 0.0
        %4518 = vmatprep.subr.mxu0 0.0
        %4519 = vmatpush1.msra.mxu0 0.0
        %4520 = vmatprep.subr.mxu0 0.0
        %4521 = vmatpush1.msra.mxu0 0.0
        %4522 = vmatprep.subr.mxu0 0.0
        %4523 = vmatpush1.msra.mxu0 0.0
        %4524 = vmatprep.mubr.f32.mxu0 0.0
        %4525 = vmatmul.mubr.f32.gmra.mrb[0].mxu0 %v4458
        %v4526 = vpop.f32.mrb[0].mxu0
        %v4527 = vadd.f32 %v4455, %v4526
        %v4528 = vpop.f32.mrb[0].mxu0
        %4529 = vdwg.mxu0
        %v4530 = vmul.f32 %v4527, 0.35355338
        %4532 = vrot.lane.b32.xlu0 %v4527, 96
        %v4533 = vpop.permute.xlu0 %4532
        %v4535 = vsel %vm667, %v4530, 0
        %v4537 = vsel %vm667, %v4533, 0
        %4539 = vmatprep.subr.mxu0 0.0
        %4540 = vmatpush1.xpose.msra.mxu0 %v4537
        %4541 = vmatprep.subr.mxu0 0.0
        %4542 = vmatpush1.xpose.msra.mxu0 0.0
        %4543 = vmatprep.subr.mxu0 0.0
        %4544 = vmatpush1.xpose.msra.mxu0 0.0
        %4545 = vmatprep.subr.mxu0 0.0
        %4546 = vmatpush1.xpose.msra.mxu0 0.0
        %4547 = vmatprep.subr.mxu0 0.0
        %4548 = vmatpush1.xpose.msra.mxu0 0.0
        %4549 = vmatprep.subr.mxu0 0.0
        %4550 = vmatpush1.xpose.msra.mxu0 0.0
        %4551 = vmatprep.subr.mxu0 0.0
        %4552 = vmatpush1.xpose.msra.mxu0 0.0
        %4553 = vmatprep.subr.mxu0 0.0
        %4554 = vmatpush1.xpose.msra.mxu0 0.0
        %4555 = vmatprep.subr.mxu0 0.0
        %4556 = vmatpush1.xpose.msra.mxu0 0.0
        %4557 = vmatprep.subr.mxu0 0.0
        %4558 = vmatpush1.xpose.msra.mxu0 0.0
        %4559 = vmatprep.subr.mxu0 0.0
        %4560 = vmatpush1.xpose.msra.mxu0 0.0
        %4561 = vmatprep.subr.mxu0 0.0
        %4562 = vmatpush1.xpose.msra.mxu0 0.0
        %4563 = vmatprep.subr.mxu0 0.0
        %4564 = vmatpush1.xpose.msra.mxu0 0.0
        %4565 = vmatprep.subr.mxu0 0.0
        %4566 = vmatpush1.xpose.msra.mxu0 0.0
        %4567 = vmatprep.subr.mxu0 0.0
        %4568 = vmatpush1.xpose.msra.mxu0 0.0
        %4569 = vmatprep.subr.mxu0 0.0
        %4570 = vmatpush1.xpose.msra.mxu0 0.0
        %4571 = vmatprep.subr.mxu0 0.0
        %4572 = vmatpush1.xpose.msra.mxu0 0.0
        %4573 = vmatprep.subr.mxu0 0.0
        %4574 = vmatpush1.xpose.msra.mxu0 0.0
        %4575 = vmatprep.subr.mxu0 0.0
        %4576 = vmatpush1.xpose.msra.mxu0 0.0
        %4577 = vmatprep.subr.mxu0 0.0
        %4578 = vmatpush1.xpose.msra.mxu0 0.0
        %4579 = vmatprep.subr.mxu0 0.0
        %4580 = vmatpush1.xpose.msra.mxu0 0.0
        %4581 = vmatprep.subr.mxu0 0.0
        %4582 = vmatpush1.xpose.msra.mxu0 0.0
        %4583 = vmatprep.subr.mxu0 0.0
        %4584 = vmatpush1.xpose.msra.mxu0 0.0
        %4585 = vmatprep.subr.mxu0 0.0
        %4586 = vmatpush1.xpose.msra.mxu0 0.0
        %4587 = vmatprep.subr.mxu0 0.0
        %4588 = vmatpush1.xpose.msra.mxu0 0.0
        %4589 = vmatprep.subr.mxu0 0.0
        %4590 = vmatpush1.xpose.msra.mxu0 0.0
        %4591 = vmatprep.subr.mxu0 0.0
        %4592 = vmatpush1.xpose.msra.mxu0 0.0
        %4593 = vmatprep.subr.mxu0 0.0
        %4594 = vmatpush1.xpose.msra.mxu0 0.0
        %4595 = vmatprep.subr.mxu0 0.0
        %4596 = vmatpush1.xpose.msra.mxu0 0.0
        %4597 = vmatprep.subr.mxu0 0.0
        %4598 = vmatpush1.xpose.msra.mxu0 0.0
        %4599 = vmatprep.subr.mxu0 0.0
        %4600 = vmatpush1.xpose.msra.mxu0 0.0
        %4601 = vmatprep.subr.mxu0 0.0
        %4602 = vmatpush1.xpose.msra.mxu0 0.0
        %4603 = vmatprep.mubr.f32.mxu0 0.0
        %4604 = vmatmul.mubr.f32.gmra.mrb[0].mxu0 %v4535
        %v4605 = vpop.f32.mrb[0].mxu0
        %v4606 = vadd.f32 0.0, %v4605
        %v4607 = vpop.f32.mrb[0].mxu0
        %4608 = vdwg.mxu0
        %v4609 = vsel %vm667, %v4606, -inf
        %4610 = vmax.xlane.f32.xlu0 %v4609
        %v4611 = vpop.xlane.xlu0 %4610
        %v4612 = vsub.f32 %v4606, %v4611
        %v4613 = vmul.f32 %v4612, 1.442695
        %v4614 = vpow.pop %v4613
        %v4615 = vsel %vm667, %v4614, 0.0
        %4616 = vadd.xlane.f32.xlu0 %v4615
        %v4617 = vpop.xlane.xlu0 %4616
        %v4618 = vrcp.pop %v4617
        %v4619 = vmul.f32 %v4614, %v4618
        %4620 = vrot.lane.b32.xlu0 %v4527, 64
        %v4621 = vpop.permute.xlu0 %4620
        %v4624 = vsel %vm667, %v4619, 0
        %4626 = vmatprep.subr.mxu0 0.0
        %4627 = vmatpush1.msra.mxu0 %v4621
        %4628 = vmatprep.subr.mxu0 0.0
        %4629 = vmatpush1.msra.mxu0 0.0
        %4630 = vmatprep.subr.mxu0 0.0
        %4631 = vmatpush1.msra.mxu0 0.0
        %4632 = vmatprep.subr.mxu0 0.0
        %4633 = vmatpush1.msra.mxu0 0.0
        %4634 = vmatprep.subr.mxu0 0.0
        %4635 = vmatpush1.msra.mxu0 0.0
        %4636 = vmatprep.subr.mxu0 0.0
        %4637 = vmatpush1.msra.mxu0 0.0
        %4638 = vmatprep.subr.mxu0 0.0
        %4639 = vmatpush1.msra.mxu0 0.0
        %4640 = vmatprep.subr.mxu0 0.0
        %4641 = vmatpush1.msra.mxu0 0.0
        %4642 = vmatprep.subr.mxu0 0.0
        %4643 = vmatpush1.msra.mxu0 0.0
        %4644 = vmatprep.subr.mxu0 0.0
        %4645 = vmatpush1.msra.mxu0 0.0
        %4646 = vmatprep.subr.mxu0 0.0
        %4647 = vmatpush1.msra.mxu0 0.0
        %4648 = vmatprep.subr.mxu0 0.0
        %4649 = vmatpush1.msra.mxu0 0.0
        %4650 = vmatprep.subr.mxu0 0.0
        %4651 = vmatpush1.msra.mxu0 0.0
        %4652 = vmatprep.subr.mxu0 0.0
        %4653 = vmatpush1.msra.mxu0 0.0
        %4654 = vmatprep.subr.mxu0 0.0
        %4655 = vmatpush1.msra.mxu0 0.0
        %4656 = vmatprep.subr.mxu0 0.0
        %4657 = vmatpush1.msra.mxu0 0.0
        %4658 = vmatprep.subr.mxu0 0.0
        %4659 = vmatpush1.msra.mxu0 0.0
        %4660 = vmatprep.subr.mxu0 0.0
        %4661 = vmatpush1.msra.mxu0 0.0
        %4662 = vmatprep.subr.mxu0 0.0
        %4663 = vmatpush1.msra.mxu0 0.0
        %4664 = vmatprep.subr.mxu0 0.0
        %4665 = vmatpush1.msra.mxu0 0.0
        %4666 = vmatprep.subr.mxu0 0.0
        %4667 = vmatpush1.msra.mxu0 0.0
        %4668 = vmatprep.subr.mxu0 0.0
        %4669 = vmatpush1.msra.mxu0 0.0
        %4670 = vmatprep.subr.mxu0 0.0
        %4671 = vmatpush1.msra.mxu0 0.0
        %4672 = vmatprep.subr.mxu0 0.0
        %4673 = vmatpush1.msra.mxu0 0.0
        %4674 = vmatprep.subr.mxu0 0.0
        %4675 = vmatpush1.msra.mxu0 0.0
        %4676 = vmatprep.subr.mxu0 0.0
        %4677 = vmatpush1.msra.mxu0 0.0
        %4678 = vmatprep.subr.mxu0 0.0
        %4679 = vmatpush1.msra.mxu0 0.0
        %4680 = vmatprep.subr.mxu0 0.0
        %4681 = vmatpush1.msra.mxu0 0.0
        %4682 = vmatprep.subr.mxu0 0.0
        %4683 = vmatpush1.msra.mxu0 0.0
        %4684 = vmatprep.subr.mxu0 0.0
        %4685 = vmatpush1.msra.mxu0 0.0
        %4686 = vmatprep.subr.mxu0 0.0
        %4687 = vmatpush1.msra.mxu0 0.0
        %4688 = vmatprep.subr.mxu0 0.0
        %4689 = vmatpush1.msra.mxu0 0.0
        %4690 = vmatprep.mubr.f32.mxu0 0.0
        %4691 = vmatmul.mubr.f32.gmra.mrb[0].mxu0 %v4624
        %v4692 = vpop.f32.mrb[0].mxu0
        %v4693 = vadd.f32 0.0, %v4692
        %v4694 = vpop.f32.mrb[0].mxu0
        %4695 = vdwg.mxu0
        %4696 = vrot.lane.b32.xlu0 %v4530, 120
        %v4697 = vpop.permute.xlu0 %4696
        %4698 = vrot.lane.b32.xlu0 %v4527, 88
        %v4699 = vpop.permute.xlu0 %4698
        %v4700 = vsel %vm667, %v4697, 0
        %v4702 = vsel %vm667, %v4699, 0
        %4704 = vmatprep.subr.mxu0 0.0
        %4705 = vmatpush1.xpose.msra.mxu0 %v4702
        %4706 = vmatprep.subr.mxu0 0.0
        %4707 = vmatpush1.xpose.msra.mxu0 0.0
        %4708 = vmatprep.subr.mxu0 0.0
        %4709 = vmatpush1.xpose.msra.mxu0 0.0
        %4710 = vmatprep.subr.mxu0 0.0
        %4711 = vmatpush1.xpose.msra.mxu0 0.0
        %4712 = vmatprep.subr.mxu0 0.0
        %4713 = vmatpush1.xpose.msra.mxu0 0.0
        %4714 = vmatprep.subr.mxu0 0.0
        %4715 = vmatpush1.xpose.msra.mxu0 0.0
        %4716 = vmatprep.subr.mxu0 0.0
        %4717 = vmatpush1.xpose.msra.mxu0 0.0
        %4718 = vmatprep.subr.mxu0 0.0
        %4719 = vmatpush1.xpose.msra.mxu0 0.0
        %4720 = vmatprep.subr.mxu0 0.0
        %4721 = vmatpush1.xpose.msra.mxu0 0.0
        %4722 = vmatprep.subr.mxu0 0.0
        %4723 = vmatpush1.xpose.msra.mxu0 0.0
        %4724 = vmatprep.subr.mxu0 0.0
        %4725 = vmatpush1.xpose.msra.mxu0 0.0
        %4726 = vmatprep.subr.mxu0 0.0
        %4727 = vmatpush1.xpose.msra.mxu0 0.0
        %4728 = vmatprep.subr.mxu0 0.0
        %4729 = vmatpush1.xpose.msra.mxu0 0.0
        %4730 = vmatprep.subr.mxu0 0.0
        %4731 = vmatpush1.xpose.msra.mxu0 0.0
        %4732 = vmatprep.subr.mxu0 0.0
        %4733 = vmatpush1.xpose.msra.mxu0 0.0
        %4734 = vmatprep.subr.mxu0 0.0
        %4735 = vmatpush1.xpose.msra.mxu0 0.0
        %4736 = vmatprep.subr.mxu0 0.0
        %4737 = vmatpush1.xpose.msra.mxu0 0.0
        %4738 = vmatprep.subr.mxu0 0.0
        %4739 = vmatpush1.xpose.msra.mxu0 0.0
        %4740 = vmatprep.subr.mxu0 0.0
        %4741 = vmatpush1.xpose.msra.mxu0 0.0
        %4742 = vmatprep.subr.mxu0 0.0
        %4743 = vmatpush1.xpose.msra.mxu0 0.0
        %4744 = vmatprep.subr.mxu0 0.0
        %4745 = vmatpush1.xpose.msra.mxu0 0.0
        %4746 = vmatprep.subr.mxu0 0.0
        %4747 = vmatpush1.xpose.msra.mxu0 0.0
        %4748 = vmatprep.subr.mxu0 0.0
        %4749 = vmatpush1.xpose.msra.mxu0 0.0
        %4750 = vmatprep.subr.mxu0 0.0
        %4751 = vmatpush1.xpose.msra.mxu0 0.0
        %4752 = vmatprep.subr.mxu0 0.0
        %4753 = vmatpush1.xpose.msra.mxu0 0.0
        %4754 = vmatprep.subr.mxu0 0.0
        %4755 = vmatpush1.xpose.msra.mxu0 0.0
        %4756 = vmatprep.subr.mxu0 0.0
        %4757 = vmatpush1.xpose.msra.mxu0 0.0
        %4758 = vmatprep.subr.mxu0 0.0
        %4759 = vmatpush1.xpose.msra.mxu0 0.0
        %4760 = vmatprep.subr.mxu0 0.0
        %4761 = vmatpush1.xpose.msra.mxu0 0.0
        %4762 = vmatprep.subr.mxu0 0.0
        %4763 = vmatpush1.xpose.msra.mxu0 0.0
        %4764 = vmatprep.subr.mxu0 0.0
        %4765 = vmatpush1.xpose.msra.mxu0 0.0
        %4766 = vmatprep.subr.mxu0 0.0
        %4767 = vmatpush1.xpose.msra.mxu0 0.0
        %4768 = vmatprep.mubr.f32.mxu0 0.0
        %4769 = vmatmul.mubr.f32.gmra.mrb[0].mxu0 %v4700
        %v4770 = vpop.f32.mrb[0].mxu0
        %v4771 = vadd.f32 0.0, %v4770
        %v4772 = vpop.f32.mrb[0].mxu0
        %4773 = vdwg.mxu0
        %v4774 = vsel %vm667, %v4771, -inf
        %4775 = vmax.xlane.f32.xlu0 %v4774
        %v4776 = vpop.xlane.xlu0 %4775
        %v4777 = vsub.f32 %v4771, %v4776
        %v4778 = vmul.f32 %v4777, 1.442695
        %v4779 = vpow.pop %v4778
        %v4780 = vsel %vm667, %v4779, 0.0
        %4781 = vadd.xlane.f32.xlu0 %v4780
        %v4782 = vpop.xlane.xlu0 %4781
        %v4783 = vrcp.pop %v4782
        %v4784 = vmul.f32 %v4779, %v4783
        %4785 = vrot.lane.b32.xlu0 %v4527, 56
        %v4786 = vpop.permute.xlu0 %4785
        %v4789 = vsel %vm667, %v4784, 0
        %4791 = vmatprep.subr.mxu0 0.0
        %4792 = vmatpush1.msra.mxu0 %v4786
        %4793 = vmatprep.subr.mxu0 0.0
        %4794 = vmatpush1.msra.mxu0 0.0
        %4795 = vmatprep.subr.mxu0 0.0
        %4796 = vmatpush1.msra.mxu0 0.0
        %4797 = vmatprep.subr.mxu0 0.0
        %4798 = vmatpush1.msra.mxu0 0.0
        %4799 = vmatprep.subr.mxu0 0.0
        %4800 = vmatpush1.msra.mxu0 0.0
        %4801 = vmatprep.subr.mxu0 0.0
        %4802 = vmatpush1.msra.mxu0 0.0
        %4803 = vmatprep.subr.mxu0 0.0
        %4804 = vmatpush1.msra.mxu0 0.0
        %4805 = vmatprep.subr.mxu0 0.0
        %4806 = vmatpush1.msra.mxu0 0.0
        %4807 = vmatprep.subr.mxu0 0.0
        %4808 = vmatpush1.msra.mxu0 0.0
        %4809 = vmatprep.subr.mxu0 0.0
        %4810 = vmatpush1.msra.mxu0 0.0
        %4811 = vmatprep.subr.mxu0 0.0
        %4812 = vmatpush1.msra.mxu0 0.0
        %4813 = vmatprep.subr.mxu0 0.0
        %4814 = vmatpush1.msra.mxu0 0.0
        %4815 = vmatprep.subr.mxu0 0.0
        %4816 = vmatpush1.msra.mxu0 0.0
        %4817 = vmatprep.subr.mxu0 0.0
        %4818 = vmatpush1.msra.mxu0 0.0
        %4819 = vmatprep.subr.mxu0 0.0
        %4820 = vmatpush1.msra.mxu0 0.0
        %4821 = vmatprep.subr.mxu0 0.0
        %4822 = vmatpush1.msra.mxu0 0.0
        %4823 = vmatprep.subr.mxu0 0.0
        %4824 = vmatpush1.msra.mxu0 0.0
        %4825 = vmatprep.subr.mxu0 0.0
        %4826 = vmatpush1.msra.mxu0 0.0
        %4827 = vmatprep.subr.mxu0 0.0
        %4828 = vmatpush1.msra.mxu0 0.0
        %4829 = vmatprep.subr.mxu0 0.0
        %4830 = vmatpush1.msra.mxu0 0.0
        %4831 = vmatprep.subr.mxu0 0.0
        %4832 = vmatpush1.msra.mxu0 0.0
        %4833 = vmatprep.subr.mxu0 0.0
        %4834 = vmatpush1.msra.mxu0 0.0
        %4835 = vmatprep.subr.mxu0 0.0
        %4836 = vmatpush1.msra.mxu0 0.0
        %4837 = vmatprep.subr.mxu0 0.0
        %4838 = vmatpush1.msra.mxu0 0.0
        %4839 = vmatprep.subr.mxu0 0.0
        %4840 = vmatpush1.msra.mxu0 0.0
        %4841 = vmatprep.subr.mxu0 0.0
        %4842 = vmatpush1.msra.mxu0 0.0
        %4843 = vmatprep.subr.mxu0 0.0
        %4844 = vmatpush1.msra.mxu0 0.0
        %4845 = vmatprep.subr.mxu0 0.0
        %4846 = vmatpush1.msra.mxu0 0.0
        %4847 = vmatprep.subr.mxu0 0.0
        %4848 = vmatpush1.msra.mxu0 0.0
        %4849 = vmatprep.subr.mxu0 0.0
        %4850 = vmatpush1.msra.mxu0 0.0
        %4851 = vmatprep.subr.mxu0 0.0
        %4852 = vmatpush1.msra.mxu0 0.0
        %4853 = vmatprep.subr.mxu0 0.0
        %4854 = vmatpush1.msra.mxu0 0.0
        %4855 = vmatprep.mubr.f32.mxu0 0.0
        %4856 = vmatmul.mubr.f32.gmra.mrb[0].mxu0 %v4789
        %v4857 = vpop.f32.mrb[0].mxu0
        %v4858 = vadd.f32 0.0, %v4857
        %v4859 = vpop.f32.mrb[0].mxu0
        %4860 = vdwg.mxu0
        %4861 = vrot.lane.b32.xlu0 %v4530, 112
        %v4862 = vpop.permute.xlu0 %4861
        %4863 = vrot.lane.b32.xlu0 %v4527, 80
        %v4864 = vpop.permute.xlu0 %4863
        %v4865 = vsel %vm667, %v4862, 0
        %v4867 = vsel %vm667, %v4864, 0
        %4869 = vmatprep.subr.mxu0 0.0
        %4870 = vmatpush1.xpose.msra.mxu0 %v4867
        %4871 = vmatprep.subr.mxu0 0.0
        %4872 = vmatpush1.xpose.msra.mxu0 0.0
        %4873 = vmatprep.subr.mxu0 0.0
        %4874 = vmatpush1.xpose.msra.mxu0 0.0
        %4875 = vmatprep.subr.mxu0 0.0
        %4876 = vmatpush1.xpose.msra.mxu0 0.0
        %4877 = vmatprep.subr.mxu0 0.0
        %4878 = vmatpush1.xpose.msra.mxu0 0.0
        %4879 = vmatprep.subr.mxu0 0.0
        %4880 = vmatpush1.xpose.msra.mxu0 0.0
        %4881 = vmatprep.subr.mxu0 0.0
        %4882 = vmatpush1.xpose.msra.mxu0 0.0
        %4883 = vmatprep.subr.mxu0 0.0
        %4884 = vmatpush1.xpose.msra.mxu0 0.0
        %4885 = vmatprep.subr.mxu0 0.0
        %4886 = vmatpush1.xpose.msra.mxu0 0.0
        %4887 = vmatprep.subr.mxu0 0.0
        %4888 = vmatpush1.xpose.msra.mxu0 0.0
        %4889 = vmatprep.subr.mxu0 0.0
        %4890 = vmatpush1.xpose.msra.mxu0 0.0
        %4891 = vmatprep.subr.mxu0 0.0
        %4892 = vmatpush1.xpose.msra.mxu0 0.0
        %4893 = vmatprep.subr.mxu0 0.0
        %4894 = vmatpush1.xpose.msra.mxu0 0.0
        %4895 = vmatprep.subr.mxu0 0.0
        %4896 = vmatpush1.xpose.msra.mxu0 0.0
        %4897 = vmatprep.subr.mxu0 0.0
        %4898 = vmatpush1.xpose.msra.mxu0 0.0
        %4899 = vmatprep.subr.mxu0 0.0
        %4900 = vmatpush1.xpose.msra.mxu0 0.0
        %4901 = vmatprep.subr.mxu0 0.0
        %4902 = vmatpush1.xpose.msra.mxu0 0.0
        %4903 = vmatprep.subr.mxu0 0.0
        %4904 = vmatpush1.xpose.msra.mxu0 0.0
        %4905 = vmatprep.subr.mxu0 0.0
        %4906 = vmatpush1.xpose.msra.mxu0 0.0
        %4907 = vmatprep.subr.mxu0 0.0
        %4908 = vmatpush1.xpose.msra.mxu0 0.0
        %4909 = vmatprep.subr.mxu0 0.0
        %4910 = vmatpush1.xpose.msra.mxu0 0.0
        %4911 = vmatprep.subr.mxu0 0.0
        %4912 = vmatpush1.xpose.msra.mxu0 0.0
        %4913 = vmatprep.subr.mxu0 0.0
        %4914 = vmatpush1.xpose.msra.mxu0 0.0
        %4915 = vmatprep.subr.mxu0 0.0
        %4916 = vmatpush1.xpose.msra.mxu0 0.0
        %4917 = vmatprep.subr.mxu0 0.0
        %4918 = vmatpush1.xpose.msra.mxu0 0.0
        %4919 = vmatprep.subr.mxu0 0.0
        %4920 = vmatpush1.xpose.msra.mxu0 0.0
        %4921 = vmatprep.subr.mxu0 0.0
        %4922 = vmatpush1.xpose.msra.mxu0 0.0
        %4923 = vmatprep.subr.mxu0 0.0
        %4924 = vmatpush1.xpose.msra.mxu0 0.0
        %4925 = vmatprep.subr.mxu0 0.0
        %4926 = vmatpush1.xpose.msra.mxu0 0.0
        %4927 = vmatprep.subr.mxu0 0.0
        %4928 = vmatpush1.xpose.msra.mxu0 0.0
        %4929 = vmatprep.subr.mxu0 0.0
        %4930 = vmatpush1.xpose.msra.mxu0 0.0
        %4931 = vmatprep.subr.mxu0 0.0
        %4932 = vmatpush1.xpose.msra.mxu0 0.0
        %4933 = vmatprep.mubr.f32.mxu0 0.0
        %4934 = vmatmul.mubr.f32.gmra.mrb[0].mxu0 %v4865
        %v4935 = vpop.f32.mrb[0].mxu0
        %v4936 = vadd.f32 0.0, %v4935
        %v4937 = vpop.f32.mrb[0].mxu0
        %4938 = vdwg.mxu0
        %v4939 = vsel %vm667, %v4936, -inf
        %4940 = vmax.xlane.f32.xlu0 %v4939
        %v4941 = vpop.xlane.xlu0 %4940
        %v4942 = vsub.f32 %v4936, %v4941
        %v4943 = vmul.f32 %v4942, 1.442695
        %v4944 = vpow.pop %v4943
        %v4945 = vsel %vm667, %v4944, 0.0
        %4946 = vadd.xlane.f32.xlu0 %v4945
        %v4947 = vpop.xlane.xlu0 %4946
        %v4948 = vrcp.pop %v4947
        %v4949 = vmul.f32 %v4944, %v4948
        %4950 = vrot.lane.b32.xlu0 %v4527, 48
        %v4951 = vpop.permute.xlu0 %4950
        %v4954 = vsel %vm667, %v4949, 0
        %4956 = vmatprep.subr.mxu0 0.0
        %4957 = vmatpush1.msra.mxu0 %v4951
        %4958 = vmatprep.subr.mxu0 0.0
        %4959 = vmatpush1.msra.mxu0 0.0
        %4960 = vmatprep.subr.mxu0 0.0
        %4961 = vmatpush1.msra.mxu0 0.0
        %4962 = vmatprep.subr.mxu0 0.0
        %4963 = vmatpush1.msra.mxu0 0.0
        %4964 = vmatprep.subr.mxu0 0.0
        %4965 = vmatpush1.msra.mxu0 0.0
        %4966 = vmatprep.subr.mxu0 0.0
        %4967 = vmatpush1.msra.mxu0 0.0
        %4968 = vmatprep.subr.mxu0 0.0
        %4969 = vmatpush1.msra.mxu0 0.0
        %4970 = vmatprep.subr.mxu0 0.0
        %4971 = vmatpush1.msra.mxu0 0.0
        %4972 = vmatprep.subr.mxu0 0.0
        %4973 = vmatpush1.msra.mxu0 0.0
        %4974 = vmatprep.subr.mxu0 0.0
        %4975 = vmatpush1.msra.mxu0 0.0
        %4976 = vmatprep.subr.mxu0 0.0
        %4977 = vmatpush1.msra.mxu0 0.0
        %4978 = vmatprep.subr.mxu0 0.0
        %4979 = vmatpush1.msra.mxu0 0.0
        %4980 = vmatprep.subr.mxu0 0.0
        %4981 = vmatpush1.msra.mxu0 0.0
        %4982 = vmatprep.subr.mxu0 0.0
        %4983 = vmatpush1.msra.mxu0 0.0
        %4984 = vmatprep.subr.mxu0 0.0
        %4985 = vmatpush1.msra.mxu0 0.0
        %4986 = vmatprep.subr.mxu0 0.0
        %4987 = vmatpush1.msra.mxu0 0.0
        %4988 = vmatprep.subr.mxu0 0.0
        %4989 = vmatpush1.msra.mxu0 0.0
        %4990 = vmatprep.subr.mxu0 0.0
        %4991 = vmatpush1.msra.mxu0 0.0
        %4992 = vmatprep.subr.mxu0 0.0
        %4993 = vmatpush1.msra.mxu0 0.0
        %4994 = vmatprep.subr.mxu0 0.0
        %4995 = vmatpush1.msra.mxu0 0.0
        %4996 = vmatprep.subr.mxu0 0.0
        %4997 = vmatpush1.msra.mxu0 0.0
        %4998 = vmatprep.subr.mxu0 0.0
        %4999 = vmatpush1.msra.mxu0 0.0
        %5000 = vmatprep.subr.mxu0 0.0
        %5001 = vmatpush1.msra.mxu0 0.0
        %5002 = vmatprep.subr.mxu0 0.0
        %5003 = vmatpush1.msra.mxu0 0.0
        %5004 = vmatprep.subr.mxu0 0.0
        %5005 = vmatpush1.msra.mxu0 0.0
        %5006 = vmatprep.subr.mxu0 0.0
        %5007 = vmatpush1.msra.mxu0 0.0
        %5008 = vmatprep.subr.mxu0 0.0
        %5009 = vmatpush1.msra.mxu0 0.0
        %5010 = vmatprep.subr.mxu0 0.0
        %5011 = vmatpush1.msra.mxu0 0.0
        %5012 = vmatprep.subr.mxu0 0.0
        %5013 = vmatpush1.msra.mxu0 0.0
        %5014 = vmatprep.subr.mxu0 0.0
        %5015 = vmatpush1.msra.mxu0 0.0
        %5016 = vmatprep.subr.mxu0 0.0
        %5017 = vmatpush1.msra.mxu0 0.0
        %5018 = vmatprep.subr.mxu0 0.0
        %5019 = vmatpush1.msra.mxu0 0.0
        %5020 = vmatprep.mubr.f32.mxu0 0.0
        %5021 = vmatmul.mubr.f32.gmra.mrb[0].mxu0 %v4954
        %v5022 = vpop.f32.mrb[0].mxu0
        %v5023 = vadd.f32 0.0, %v5022
        %v5024 = vpop.f32.mrb[0].mxu0
        %5025 = vdwg.mxu0
        %5026 = vrot.lane.b32.xlu0 %v4530, 104
        %v5027 = vpop.permute.xlu0 %5026
        %5028 = vrot.lane.b32.xlu0 %v4527, 72
        %v5029 = vpop.permute.xlu0 %5028
        %v5030 = vsel %vm667, %v5027, 0
        %v5032 = vsel %vm667, %v5029, 0
        %5034 = vmatprep.subr.mxu0 0.0
        %5035 = vmatpush1.xpose.msra.mxu0 %v5032
        %5036 = vmatprep.subr.mxu0 0.0
        %5037 = vmatpush1.xpose.msra.mxu0 0.0
        %5038 = vmatprep.subr.mxu0 0.0
        %5039 = vmatpush1.xpose.msra.mxu0 0.0
        %5040 = vmatprep.subr.mxu0 0.0
        %5041 = vmatpush1.xpose.msra.mxu0 0.0
        %5042 = vmatprep.subr.mxu0 0.0
        %5043 = vmatpush1.xpose.msra.mxu0 0.0
        %5044 = vmatprep.subr.mxu0 0.0
        %5045 = vmatpush1.xpose.msra.mxu0 0.0
        %5046 = vmatprep.subr.mxu0 0.0
        %5047 = vmatpush1.xpose.msra.mxu0 0.0
        %5048 = vmatprep.subr.mxu0 0.0
        %5049 = vmatpush1.xpose.msra.mxu0 0.0
        %5050 = vmatprep.subr.mxu0 0.0
        %5051 = vmatpush1.xpose.msra.mxu0 0.0
        %5052 = vmatprep.subr.mxu0 0.0
        %5053 = vmatpush1.xpose.msra.mxu0 0.0
        %5054 = vmatprep.subr.mxu0 0.0
        %5055 = vmatpush1.xpose.msra.mxu0 0.0
        %5056 = vmatprep.subr.mxu0 0.0
        %5057 = vmatpush1.xpose.msra.mxu0 0.0
        %5058 = vmatprep.subr.mxu0 0.0
        %5059 = vmatpush1.xpose.msra.mxu0 0.0
        %5060 = vmatprep.subr.mxu0 0.0
        %5061 = vmatpush1.xpose.msra.mxu0 0.0
        %5062 = vmatprep.subr.mxu0 0.0
        %5063 = vmatpush1.xpose.msra.mxu0 0.0
        %5064 = vmatprep.subr.mxu0 0.0
        %5065 = vmatpush1.xpose.msra.mxu0 0.0
        %5066 = vmatprep.subr.mxu0 0.0
        %5067 = vmatpush1.xpose.msra.mxu0 0.0
        %5068 = vmatprep.subr.mxu0 0.0
        %5069 = vmatpush1.xpose.msra.mxu0 0.0
        %5070 = vmatprep.subr.mxu0 0.0
        %5071 = vmatpush1.xpose.msra.mxu0 0.0
        %5072 = vmatprep.subr.mxu0 0.0
        %5073 = vmatpush1.xpose.msra.mxu0 0.0
        %5074 = vmatprep.subr.mxu0 0.0
        %5075 = vmatpush1.xpose.msra.mxu0 0.0
        %5076 = vmatprep.subr.mxu0 0.0
        %5077 = vmatpush1.xpose.msra.mxu0 0.0
        %5078 = vmatprep.subr.mxu0 0.0
        %5079 = vmatpush1.xpose.msra.mxu0 0.0
        %5080 = vmatprep.subr.mxu0 0.0
        %5081 = vmatpush1.xpose.msra.mxu0 0.0
        %5082 = vmatprep.subr.mxu0 0.0
        %5083 = vmatpush1.xpose.msra.mxu0 0.0
        %5084 = vmatprep.subr.mxu0 0.0
        %5085 = vmatpush1.xpose.msra.mxu0 0.0
        %5086 = vmatprep.subr.mxu0 0.0
        %5087 = vmatpush1.xpose.msra.mxu0 0.0
        %5088 = vmatprep.subr.mxu0 0.0
        %5089 = vmatpush1.xpose.msra.mxu0 0.0
        %5090 = vmatprep.subr.mxu0 0.0
        %5091 = vmatpush1.xpose.msra.mxu0 0.0
        %5092 = vmatprep.subr.mxu0 0.0
        %5093 = vmatpush1.xpose.msra.mxu0 0.0
        %5094 = vmatprep.subr.mxu0 0.0
        %5095 = vmatpush1.xpose.msra.mxu0 0.0
        %5096 = vmatprep.subr.mxu0 0.0
        %5097 = vmatpush1.xpose.msra.mxu0 0.0
        %5098 = vmatprep.mubr.f32.mxu0 0.0
        %5099 = vmatmul.mubr.f32.gmra.mrb[0].mxu0 %v5030
        %v5100 = vpop.f32.mrb[0].mxu0
        %v5101 = vadd.f32 0.0, %v5100
        %v5102 = vpop.f32.mrb[0].mxu0
        %5103 = vdwg.mxu0
        %v5104 = vsel %vm667, %v5101, -inf
        %5105 = vmax.xlane.f32.xlu0 %v5104
        %v5106 = vpop.xlane.xlu0 %5105
        %v5107 = vsub.f32 %v5101, %v5106
        %v5108 = vmul.f32 %v5107, 1.442695
        %v5109 = vpow.pop %v5108
        %v5110 = vsel %vm667, %v5109, 0.0
        %5111 = vadd.xlane.f32.xlu0 %v5110
        %v5112 = vpop.xlane.xlu0 %5111
        %v5113 = vrcp.pop %v5112
        %v5114 = vmul.f32 %v5109, %v5113
        %5115 = vrot.lane.b32.xlu0 %v4527, 40
        %v5116 = vpop.permute.xlu0 %5115
        %v5119 = vsel %vm667, %v5114, 0
        %5121 = vmatprep.subr.mxu0 0.0
        %5122 = vmatpush1.msra.mxu0 %v5116
        %5123 = vmatprep.subr.mxu0 0.0
        %5124 = vmatpush1.msra.mxu0 0.0
        %5125 = vmatprep.subr.mxu0 0.0
        %5126 = vmatpush1.msra.mxu0 0.0
        %5127 = vmatprep.subr.mxu0 0.0
        %5128 = vmatpush1.msra.mxu0 0.0
        %5129 = vmatprep.subr.mxu0 0.0
        %5130 = vmatpush1.msra.mxu0 0.0
        %5131 = vmatprep.subr.mxu0 0.0
        %5132 = vmatpush1.msra.mxu0 0.0
        %5133 = vmatprep.subr.mxu0 0.0
        %5134 = vmatpush1.msra.mxu0 0.0
        %5135 = vmatprep.subr.mxu0 0.0
        %5136 = vmatpush1.msra.mxu0 0.0
        %5137 = vmatprep.subr.mxu0 0.0
        %5138 = vmatpush1.msra.mxu0 0.0
        %5139 = vmatprep.subr.mxu0 0.0
        %5140 = vmatpush1.msra.mxu0 0.0
        %5141 = vmatprep.subr.mxu0 0.0
        %5142 = vmatpush1.msra.mxu0 0.0
        %5143 = vmatprep.subr.mxu0 0.0
        %5144 = vmatpush1.msra.mxu0 0.0
        %5145 = vmatprep.subr.mxu0 0.0
        %5146 = vmatpush1.msra.mxu0 0.0
        %5147 = vmatprep.subr.mxu0 0.0
        %5148 = vmatpush1.msra.mxu0 0.0
        %5149 = vmatprep.subr.mxu0 0.0
        %5150 = vmatpush1.msra.mxu0 0.0
        %5151 = vmatprep.subr.mxu0 0.0
        %5152 = vmatpush1.msra.mxu0 0.0
        %5153 = vmatprep.subr.mxu0 0.0
        %5154 = vmatpush1.msra.mxu0 0.0
        %5155 = vmatprep.subr.mxu0 0.0
        %5156 = vmatpush1.msra.mxu0 0.0
        %5157 = vmatprep.subr.mxu0 0.0
        %5158 = vmatpush1.msra.mxu0 0.0
        %5159 = vmatprep.subr.mxu0 0.0
        %5160 = vmatpush1.msra.mxu0 0.0
        %5161 = vmatprep.subr.mxu0 0.0
        %5162 = vmatpush1.msra.mxu0 0.0
        %5163 = vmatprep.subr.mxu0 0.0
        %5164 = vmatpush1.msra.mxu0 0.0
        %5165 = vmatprep.subr.mxu0 0.0
        %5166 = vmatpush1.msra.mxu0 0.0
        %5167 = vmatprep.subr.mxu0 0.0
        %5168 = vmatpush1.msra.mxu0 0.0
        %5169 = vmatprep.subr.mxu0 0.0
        %5170 = vmatpush1.msra.mxu0 0.0
        %5171 = vmatprep.subr.mxu0 0.0
        %5172 = vmatpush1.msra.mxu0 0.0
        %5173 = vmatprep.subr.mxu0 0.0
        %5174 = vmatpush1.msra.mxu0 0.0
        %5175 = vmatprep.subr.mxu0 0.0
        %5176 = vmatpush1.msra.mxu0 0.0
        %5177 = vmatprep.subr.mxu0 0.0
        %5178 = vmatpush1.msra.mxu0 0.0
        %5179 = vmatprep.subr.mxu0 0.0
        %5180 = vmatpush1.msra.mxu0 0.0
        %5181 = vmatprep.subr.mxu0 0.0
        %5182 = vmatpush1.msra.mxu0 0.0
        %5183 = vmatprep.subr.mxu0 0.0
        %5184 = vmatpush1.msra.mxu0 0.0
        %5185 = vmatprep.mubr.f32.mxu0 0.0
        %5186 = vmatmul.mubr.f32.gmra.mrb[0].mxu0 %v5119
        %v5187 = vpop.f32.mrb[0].mxu0
        %v5188 = vadd.f32 0.0, %v5187
        %v5189 = vpop.f32.mrb[0].mxu0
        %5190 = vdwg.mxu0
        %5192 = vrot.lane.b32.xlu0 %v4858, 8
        %v5193 = vpop.permute.xlu0 %5192
        %5196 = vrot.lane.b32.xlu0 %v5023, 16
        %v5197 = vpop.permute.xlu0 %5196
        %5200 = vrot.lane.b32.xlu0 %v5188, 24
        %v5201 = vpop.permute.xlu0 %5200
        %v5203 = vsel %vm667, %v4693, %v5193
        %v5204 = vsel %vm449, %v5203, %v5197
        %v5205 = vsel %vm1490, %v5204, %v5201
        %v5207 = vlaneseq
        %v5208 = vshrl.u32 %v5207, 7
        %v5209 = vsub.s32 0, %v5208
        %v5210 = vrot.slane %v4419, %v5209
        %v5213 = vsel %vm573, %v5205, 0
        %5215 = vmatprep.subr.mxu0 0.0
        %5216 = vmatpush1.msra.mxu0 %v4413
        %5217 = vmatprep.subr.mxu0 0.0
        %5218 = vmatpush1.msra.mxu0 %v4414
        %5219 = vmatprep.subr.mxu0 0.0
        %5220 = vmatpush1.msra.mxu0 %v4415
        %5221 = vmatprep.subr.mxu0 0.0
        %5222 = vmatpush1.msra.mxu0 %v4416
        %5223 = vmatprep.subr.mxu0 0.0
        %5224 = vmatpush1.msra.mxu0 0.0
        %5225 = vmatprep.subr.mxu0 0.0
        %5226 = vmatpush1.msra.mxu0 0.0
        %5227 = vmatprep.subr.mxu0 0.0
        %5228 = vmatpush1.msra.mxu0 0.0
        %5229 = vmatprep.subr.mxu0 0.0
        %5230 = vmatpush1.msra.mxu0 0.0
        %5231 = vmatprep.subr.mxu0 0.0
        %5232 = vmatpush1.msra.mxu0 0.0
        %5233 = vmatprep.subr.mxu0 0.0
        %5234 = vmatpush1.msra.mxu0 0.0
        %5235 = vmatprep.subr.mxu0 0.0
        %5236 = vmatpush1.msra.mxu0 0.0
        %5237 = vmatprep.subr.mxu0 0.0
        %5238 = vmatpush1.msra.mxu0 0.0
        %5239 = vmatprep.subr.mxu0 0.0
        %5240 = vmatpush1.msra.mxu0 0.0
        %5241 = vmatprep.subr.mxu0 0.0
        %5242 = vmatpush1.msra.mxu0 0.0
        %5243 = vmatprep.subr.mxu0 0.0
        %5244 = vmatpush1.msra.mxu0 0.0
        %5245 = vmatprep.subr.mxu0 0.0
        %5246 = vmatpush1.msra.mxu0 0.0
        %5247 = vmatprep.subr.mxu0 0.0
        %5248 = vmatpush1.msra.mxu0 0.0
        %5249 = vmatprep.subr.mxu0 0.0
        %5250 = vmatpush1.msra.mxu0 0.0
        %5251 = vmatprep.subr.mxu0 0.0
        %5252 = vmatpush1.msra.mxu0 0.0
        %5253 = vmatprep.subr.mxu0 0.0
        %5254 = vmatpush1.msra.mxu0 0.0
        %5255 = vmatprep.subr.mxu0 0.0
        %5256 = vmatpush1.msra.mxu0 0.0
        %5257 = vmatprep.subr.mxu0 0.0
        %5258 = vmatpush1.msra.mxu0 0.0
        %5259 = vmatprep.subr.mxu0 0.0
        %5260 = vmatpush1.msra.mxu0 0.0
        %5261 = vmatprep.subr.mxu0 0.0
        %5262 = vmatpush1.msra.mxu0 0.0
        %5263 = vmatprep.subr.mxu0 0.0
        %5264 = vmatpush1.msra.mxu0 0.0
        %5265 = vmatprep.subr.mxu0 0.0
        %5266 = vmatpush1.msra.mxu0 0.0
        %5267 = vmatprep.subr.mxu0 0.0
        %5268 = vmatpush1.msra.mxu0 0.0
        %5269 = vmatprep.subr.mxu0 0.0
        %5270 = vmatpush1.msra.mxu0 0.0
        %5271 = vmatprep.subr.mxu0 0.0
        %5272 = vmatpush1.msra.mxu0 0.0
        %5273 = vmatprep.subr.mxu0 0.0
        %5274 = vmatpush1.msra.mxu0 0.0
        %5275 = vmatprep.subr.mxu0 0.0
        %5276 = vmatpush1.msra.mxu0 0.0
        %5277 = vmatprep.subr.mxu0 0.0
        %5278 = vmatpush1.msra.mxu0 0.0
        %5279 = vmatprep.mubr.f32.mxu0 0.0
        %5280 = vmatmul.mubr.f32.gmra.mrb[0].mxu0 %v5213
        %v5281 = vpop.f32.mrb[0].mxu0
        %v5282 = vadd.f32 %v5210, %v5281
        %v5283 = vpop.f32.mrb[0].mxu0
        %5284 = vdwg.mxu0
        %v5285 = vadd.f32 %v4407, %v5282
        %v5286 = vsel %vm573, %v5285, 0.0
        %5287 = vadd.xlane.f32.xlu0 %v5286
        %v5288 = vpop.xlane.xlu0 %5287
        %v5289 = vmul.f32 %v5288, %v1588
        %v5290 = vsub.f32 %v5285, %v5289
        %v5291 = vmul.f32 %v5290, %v5290
        %v5292 = vsel %vm573, %v5291, 0.0
        %5293 = vadd.xlane.f32.xlu0 %v5292
        %v5294 = vpop.xlane.xlu0 %5293
        %v5295 = vmul.f32 %v5294, %v1588
        %v5296 = vadd.f32 %v5295, 1e-05
        %v5297 = vrsqrt.pop %v5296
        %v5298 = vmul.f32 %v5290, %v5297
        %v5300 = vlaneseq
        %v5301 = vshrl.u32 %v5300, 7
        %v5302 = vsub.s32 0, %v5301
        %v5303 = vrot.slane %v4445, %v5302
        %v5305 = vmul.f32 %v5298, %v5303
        %v5307 = vlaneseq
        %v5308 = vshrl.u32 %v5307, 7
        %v5309 = vsub.s32 0, %v5308
        %v5310 = vrot.slane %v4446, %v5309
        %v5312 = vadd.f32 %v5305, %v5310
        %v5314 = vlaneseq
        %v5315 = vshrl.u32 %v5314, 7
        %v5316 = vsub.s32 0, %v5315
        %v5317 = vrot.slane %v4441, %v5316
        %5319 = vmatprep.subr.mxu0 0.0
        %5320 = vmatpush1.msra.mxu0 %v4429
        %5321 = vmatprep.subr.mxu0 0.0
        %5322 = vmatpush1.msra.mxu0 %v4430
        %5323 = vmatprep.subr.mxu0 0.0
        %5324 = vmatpush1.msra.mxu0 %v4431
        %5325 = vmatprep.subr.mxu0 0.0
        %5326 = vmatpush1.msra.mxu0 %v4432
        %5327 = vmatprep.subr.mxu0 0.0
        %5328 = vmatpush1.msra.mxu0 0.0
        %5329 = vmatprep.subr.mxu0 0.0
        %5330 = vmatpush1.msra.mxu0 0.0
        %5331 = vmatprep.subr.mxu0 0.0
        %5332 = vmatpush1.msra.mxu0 0.0
        %5333 = vmatprep.subr.mxu0 0.0
        %5334 = vmatpush1.msra.mxu0 0.0
        %5335 = vmatprep.subr.mxu0 0.0
        %5336 = vmatpush1.msra.mxu0 0.0
        %5337 = vmatprep.subr.mxu0 0.0
        %5338 = vmatpush1.msra.mxu0 0.0
        %5339 = vmatprep.subr.mxu0 0.0
        %5340 = vmatpush1.msra.mxu0 0.0
        %5341 = vmatprep.subr.mxu0 0.0
        %5342 = vmatpush1.msra.mxu0 0.0
        %5343 = vmatprep.subr.mxu0 0.0
        %5344 = vmatpush1.msra.mxu0 0.0
        %5345 = vmatprep.subr.mxu0 0.0
        %5346 = vmatpush1.msra.mxu0 0.0
        %5347 = vmatprep.subr.mxu0 0.0
        %5348 = vmatpush1.msra.mxu0 0.0
        %5349 = vmatprep.subr.mxu0 0.0
        %5350 = vmatpush1.msra.mxu0 0.0
        %5351 = vmatprep.subr.mxu0 0.0
        %5352 = vmatpush1.msra.mxu0 0.0
        %5353 = vmatprep.subr.mxu0 0.0
        %5354 = vmatpush1.msra.mxu0 0.0
        %5355 = vmatprep.subr.mxu0 0.0
        %5356 = vmatpush1.msra.mxu0 0.0
        %5357 = vmatprep.subr.mxu0 0.0
        %5358 = vmatpush1.msra.mxu0 0.0
        %5359 = vmatprep.subr.mxu0 0.0
        %5360 = vmatpush1.msra.mxu0 0.0
        %5361 = vmatprep.subr.mxu0 0.0
        %5362 = vmatpush1.msra.mxu0 0.0
        %5363 = vmatprep.subr.mxu0 0.0
        %5364 = vmatpush1.msra.mxu0 0.0
        %5365 = vmatprep.subr.mxu0 0.0
        %5366 = vmatpush1.msra.mxu0 0.0
        %5367 = vmatprep.subr.mxu0 0.0
        %5368 = vmatpush1.msra.mxu0 0.0
        %5369 = vmatprep.subr.mxu0 0.0
        %5370 = vmatpush1.msra.mxu0 0.0
        %5371 = vmatprep.subr.mxu0 0.0
        %5372 = vmatpush1.msra.mxu0 0.0
        %5373 = vmatprep.subr.mxu0 0.0
        %5374 = vmatpush1.msra.mxu0 0.0
        %5375 = vmatprep.subr.mxu0 0.0
        %5376 = vmatpush1.msra.mxu0 0.0
        %5377 = vmatprep.subr.mxu0 0.0
        %5378 = vmatpush1.msra.mxu0 0.0
        %5379 = vmatprep.subr.mxu0 0.0
        %5380 = vmatpush1.msra.mxu0 0.0
        %5381 = vmatprep.subr.mxu0 0.0
        %5382 = vmatpush1.msra.mxu0 0.0
        %5383 = vmatprep.mubr.f32.mxu0 0.0
        %5384 = vmatmul.mubr.f32.gmra.mrb[0].mxu0 %v4043
        %v5385 = vpop.f32.mrb[0].mxu0
        %v5386 = vadd.f32 %v5317, %v5385
        %v5387 = vpop.f32.mrb[0].mxu0
        %5388 = vdwg.mxu0
        %v5390 = vsel %vm573, %v5386, 0
        %5392 = vmatprep.subr.mxu0 0.0
        %5393 = vmatpush1.msra.mxu0 %v4433
        %5394 = vmatprep.subr.mxu0 0.0
        %5395 = vmatpush1.msra.mxu0 %v4434
        %5396 = vmatprep.subr.mxu0 0.0
        %5397 = vmatpush1.msra.mxu0 %v4435
        %5398 = vmatprep.subr.mxu0 0.0
        %5399 = vmatpush1.msra.mxu0 %v4436
        %5400 = vmatprep.subr.mxu0 0.0
        %5401 = vmatpush1.msra.mxu0 0.0
        %5402 = vmatprep.subr.mxu0 0.0
        %5403 = vmatpush1.msra.mxu0 0.0
        %5404 = vmatprep.subr.mxu0 0.0
        %5405 = vmatpush1.msra.mxu0 0.0
        %5406 = vmatprep.subr.mxu0 0.0
        %5407 = vmatpush1.msra.mxu0 0.0
        %5408 = vmatprep.subr.mxu0 0.0
        %5409 = vmatpush1.msra.mxu0 0.0
        %5410 = vmatprep.subr.mxu0 0.0
        %5411 = vmatpush1.msra.mxu0 0.0
        %5412 = vmatprep.subr.mxu0 0.0
        %5413 = vmatpush1.msra.mxu0 0.0
        %5414 = vmatprep.subr.mxu0 0.0
        %5415 = vmatpush1.msra.mxu0 0.0
        %5416 = vmatprep.subr.mxu0 0.0
        %5417 = vmatpush1.msra.mxu0 0.0
        %5418 = vmatprep.subr.mxu0 0.0
        %5419 = vmatpush1.msra.mxu0 0.0
        %5420 = vmatprep.subr.mxu0 0.0
        %5421 = vmatpush1.msra.mxu0 0.0
        %5422 = vmatprep.subr.mxu0 0.0
        %5423 = vmatpush1.msra.mxu0 0.0
        %5424 = vmatprep.subr.mxu0 0.0
        %5425 = vmatpush1.msra.mxu0 0.0
        %5426 = vmatprep.subr.mxu0 0.0
        %5427 = vmatpush1.msra.mxu0 0.0
        %5428 = vmatprep.subr.mxu0 0.0
        %5429 = vmatpush1.msra.mxu0 0.0
        %5430 = vmatprep.subr.mxu0 0.0
        %5431 = vmatpush1.msra.mxu0 0.0
        %5432 = vmatprep.subr.mxu0 0.0
        %5433 = vmatpush1.msra.mxu0 0.0
        %5434 = vmatprep.subr.mxu0 0.0
        %5435 = vmatpush1.msra.mxu0 0.0
        %5436 = vmatprep.subr.mxu0 0.0
        %5437 = vmatpush1.msra.mxu0 0.0
        %5438 = vmatprep.subr.mxu0 0.0
        %5439 = vmatpush1.msra.mxu0 0.0
        %5440 = vmatprep.subr.mxu0 0.0
        %5441 = vmatpush1.msra.mxu0 0.0
        %5442 = vmatprep.subr.mxu0 0.0
        %5443 = vmatpush1.msra.mxu0 0.0
        %5444 = vmatprep.subr.mxu0 0.0
        %5445 = vmatpush1.msra.mxu0 0.0
        %5446 = vmatprep.subr.mxu0 0.0
        %5447 = vmatpush1.msra.mxu0 0.0
        %5448 = vmatprep.subr.mxu0 0.0
        %5449 = vmatpush1.msra.mxu0 0.0
        %5450 = vmatprep.subr.mxu0 0.0
        %5451 = vmatpush1.msra.mxu0 0.0
        %5452 = vmatprep.subr.mxu0 0.0
        %5453 = vmatpush1.msra.mxu0 0.0
        %5454 = vmatprep.subr.mxu0 0.0
        %5455 = vmatpush1.msra.mxu0 0.0
        %5456 = vmatprep.mubr.f32.mxu0 0.0
        %5457 = vmatmul.mubr.f32.gmra.mrb[0].mxu0 %v5390
        %v5458 = vpop.f32.mrb[0].mxu0
        %v5459 = vadd.f32 0.0, %v5458
        %v5460 = vpop.f32.mrb[0].mxu0
        %5461 = vdwg.mxu0
        %v5462 = vadd.f32 %v5459, %v4442
        %v5463 = vlaneseq
        %v5464 = vshrl.u32 %v5463, 7
        %v5465 = vsub.s32 0, %v5464
        %v5466 = vrot.slane %v5462, %v5465
        %v5467 = vadd.f32 %v5312, %v5466
        %v5468 = vsel %vm573, %v5467, 0.0
        %5469 = vadd.xlane.f32.xlu0 %v5468
        %v5470 = vpop.xlane.xlu0 %5469
        %v5471 = vmul.f32 %v5470, %v1588
        %v5472 = vsub.f32 %v5467, %v5471
        %v5473 = vmul.f32 %v5472, %v5472
        %v5474 = vsel %vm573, %v5473, 0.0
        %5475 = vadd.xlane.f32.xlu0 %v5474
        %v5476 = vpop.xlane.xlu0 %5475
        %v5477 = vmul.f32 %v5476, %v1588
        %v5478 = vadd.f32 %v5477, 1e-05
        %v5479 = vrsqrt.pop %v5478
        %v5480 = vmul.f32 %v5472, %v5479
        %v5482 = vlaneseq
        %v5483 = vshrl.u32 %v5482, 7
        %v5484 = vsub.s32 0, %v5483
        %v5485 = vrot.slane %v4447, %v5484
        %v5487 = vmul.f32 %v5480, %v5485
        %v5489 = vlaneseq
        %v5490 = vshrl.u32 %v5489, 7
        %v5491 = vsub.s32 0, %v5490
        %v5492 = vrot.slane %v4448, %v5491
        %v5494 = vadd.f32 %v5487, %v5492
        %v5496 = vlaneseq
        %v5497 = vshrl.u32 %v5496, 7
        %v5498 = vsub.s32 0, %v5497
        %v5499 = vrot.slane %v4443, %v5498
        %v5502 = vsel %vm573, %v5494, 0
        %5504 = vmatprep.subr.mxu0 0.0
        %5505 = vmatpush1.msra.mxu0 %v4437
        %5506 = vmatprep.subr.mxu0 0.0
        %5507 = vmatpush1.msra.mxu0 %v4438
        %5508 = vmatprep.subr.mxu0 0.0
        %5509 = vmatpush1.msra.mxu0 %v4439
        %5510 = vmatprep.subr.mxu0 0.0
        %5511 = vmatpush1.msra.mxu0 %v4440
        %5512 = vmatprep.subr.mxu0 0.0
        %5513 = vmatpush1.msra.mxu0 0.0
        %5514 = vmatprep.subr.mxu0 0.0
        %5515 = vmatpush1.msra.mxu0 0.0
        %5516 = vmatprep.subr.mxu0 0.0
        %5517 = vmatpush1.msra.mxu0 0.0
        %5518 = vmatprep.subr.mxu0 0.0
        %5519 = vmatpush1.msra.mxu0 0.0
        %5520 = vmatprep.subr.mxu0 0.0
        %5521 = vmatpush1.msra.mxu0 0.0
        %5522 = vmatprep.subr.mxu0 0.0
        %5523 = vmatpush1.msra.mxu0 0.0
        %5524 = vmatprep.subr.mxu0 0.0
        %5525 = vmatpush1.msra.mxu0 0.0
        %5526 = vmatprep.subr.mxu0 0.0
        %5527 = vmatpush1.msra.mxu0 0.0
        %5528 = vmatprep.subr.mxu0 0.0
        %5529 = vmatpush1.msra.mxu0 0.0
        %5530 = vmatprep.subr.mxu0 0.0
        %5531 = vmatpush1.msra.mxu0 0.0
        %5532 = vmatprep.subr.mxu0 0.0
        %5533 = vmatpush1.msra.mxu0 0.0
        %5534 = vmatprep.subr.mxu0 0.0
        %5535 = vmatpush1.msra.mxu0 0.0
        %5536 = vmatprep.subr.mxu0 0.0
        %5537 = vmatpush1.msra.mxu0 0.0
        %5538 = vmatprep.subr.mxu0 0.0
        %5539 = vmatpush1.msra.mxu0 0.0
        %5540 = vmatprep.subr.mxu0 0.0
        %5541 = vmatpush1.msra.mxu0 0.0
        %5542 = vmatprep.subr.mxu0 0.0
        %5543 = vmatpush1.msra.mxu0 0.0
        %5544 = vmatprep.subr.mxu0 0.0
        %5545 = vmatpush1.msra.mxu0 0.0
        %5546 = vmatprep.subr.mxu0 0.0
        %5547 = vmatpush1.msra.mxu0 0.0
        %5548 = vmatprep.subr.mxu0 0.0
        %5549 = vmatpush1.msra.mxu0 0.0
        %5550 = vmatprep.subr.mxu0 0.0
        %5551 = vmatpush1.msra.mxu0 0.0
        %5552 = vmatprep.subr.mxu0 0.0
        %5553 = vmatpush1.msra.mxu0 0.0
        %5554 = vmatprep.subr.mxu0 0.0
        %5555 = vmatpush1.msra.mxu0 0.0
        %5556 = vmatprep.subr.mxu0 0.0
        %5557 = vmatpush1.msra.mxu0 0.0
        %5558 = vmatprep.subr.mxu0 0.0
        %5559 = vmatpush1.msra.mxu0 0.0
        %5560 = vmatprep.subr.mxu0 0.0
        %5561 = vmatpush1.msra.mxu0 0.0
        %5562 = vmatprep.subr.mxu0 0.0
        %5563 = vmatpush1.msra.mxu0 0.0
        %5564 = vmatprep.subr.mxu0 0.0
        %5565 = vmatpush1.msra.mxu0 0.0
        %5566 = vmatprep.subr.mxu0 0.0
        %5567 = vmatpush1.msra.mxu0 0.0
        %5568 = vmatprep.mubr.f32.mxu0 0.0
        %5569 = vmatmul.mubr.f32.gmra.mrb[0].mxu0 %v5502
        %v5570 = vpop.f32.mrb[0].mxu0
        %v5571 = vadd.f32 %v5499, %v5570
        %v5572 = vpop.f32.mrb[0].mxu0
        %5573 = vdwg.mxu0
        %v5574 = vmax.f32 %v5571, 0.0
        %v5576 = vlaneseq
        %v5577 = vshrl.u32 %v5576, 7
        %v5578 = vsub.s32 0, %v5577
        %v5579 = vrot.slane %v4444, %v5578
        %v5582 = vsel %vm1720, %v5574, 0
        %5584 = vmatprep.subr.mxu0 0.0
        %5585 = vmatpush1.msra.mxu0 %v4421
        %5586 = vmatprep.subr.mxu0 0.0
        %5587 = vmatpush1.msra.mxu0 %v4422
        %5588 = vmatprep.subr.mxu0 0.0
        %5589 = vmatpush1.msra.mxu0 %v4423
        %5590 = vmatprep.subr.mxu0 0.0
        %5591 = vmatpush1.msra.mxu0 %v4424
        %5592 = vmatprep.subr.mxu0 0.0
        %5593 = vmatpush1.msra.mxu0 %v4425
        %5594 = vmatprep.subr.mxu0 0.0
        %5595 = vmatpush1.msra.mxu0 %v4426
        %5596 = vmatprep.subr.mxu0 0.0
        %5597 = vmatpush1.msra.mxu0 %v4427
        %5598 = vmatprep.subr.mxu0 0.0
        %5599 = vmatpush1.msra.mxu0 %v4428
        %5600 = vmatprep.subr.mxu0 0.0
        %5601 = vmatpush1.msra.mxu0 0.0
        %5602 = vmatprep.subr.mxu0 0.0
        %5603 = vmatpush1.msra.mxu0 0.0
        %5604 = vmatprep.subr.mxu0 0.0
        %5605 = vmatpush1.msra.mxu0 0.0
        %5606 = vmatprep.subr.mxu0 0.0
        %5607 = vmatpush1.msra.mxu0 0.0
        %5608 = vmatprep.subr.mxu0 0.0
        %5609 = vmatpush1.msra.mxu0 0.0
        %5610 = vmatprep.subr.mxu0 0.0
        %5611 = vmatpush1.msra.mxu0 0.0
        %5612 = vmatprep.subr.mxu0 0.0
        %5613 = vmatpush1.msra.mxu0 0.0
        %5614 = vmatprep.subr.mxu0 0.0
        %5615 = vmatpush1.msra.mxu0 0.0
        %5616 = vmatprep.subr.mxu0 0.0
        %5617 = vmatpush1.msra.mxu0 0.0
        %5618 = vmatprep.subr.mxu0 0.0
        %5619 = vmatpush1.msra.mxu0 0.0
        %5620 = vmatprep.subr.mxu0 0.0
        %5621 = vmatpush1.msra.mxu0 0.0
        %5622 = vmatprep.subr.mxu0 0.0
        %5623 = vmatpush1.msra.mxu0 0.0
        %5624 = vmatprep.subr.mxu0 0.0
        %5625 = vmatpush1.msra.mxu0 0.0
        %5626 = vmatprep.subr.mxu0 0.0
        %5627 = vmatpush1.msra.mxu0 0.0
        %5628 = vmatprep.subr.mxu0 0.0
        %5629 = vmatpush1.msra.mxu0 0.0
        %5630 = vmatprep.subr.mxu0 0.0
        %5631 = vmatpush1.msra.mxu0 0.0
        %5632 = vmatprep.subr.mxu0 0.0
        %5633 = vmatpush1.msra.mxu0 0.0
        %5634 = vmatprep.subr.mxu0 0.0
        %5635 = vmatpush1.msra.mxu0 0.0
        %5636 = vmatprep.subr.mxu0 0.0
        %5637 = vmatpush1.msra.mxu0 0.0
        %5638 = vmatprep.subr.mxu0 0.0
        %5639 = vmatpush1.msra.mxu0 0.0
        %5640 = vmatprep.subr.mxu0 0.0
        %5641 = vmatpush1.msra.mxu0 0.0
        %5642 = vmatprep.subr.mxu0 0.0
        %5643 = vmatpush1.msra.mxu0 0.0
        %5644 = vmatprep.subr.mxu0 0.0
        %5645 = vmatpush1.msra.mxu0 0.0
        %5646 = vmatprep.subr.mxu0 0.0
        %5647 = vmatpush1.msra.mxu0 0.0
        %5648 = vmatprep.mubr.f32.mxu0 0.0
        %5649 = vmatmul.mubr.f32.gmra.mrb[0].mxu0 %v5582
        %v5650 = vpop.f32.mrb[0].mxu0
        %v5651 = vadd.f32 %v5579, %v5650
        %v5652 = vpop.f32.mrb[0].mxu0
        %5653 = vdwg.mxu0
        %v5654 = vadd.f32 %v5494, %v5651
        %v5655 = vsel %vm573, %v5654, 0.0
        %5656 = vadd.xlane.f32.xlu0 %v5655
        %v5657 = vpop.xlane.xlu0 %5656
        %v5658 = vmul.f32 %v5657, %v1588
        %v5659 = vsub.f32 %v5654, %v5658
        %v5660 = vmul.f32 %v5659, %v5659
        %v5661 = vsel %vm573, %v5660, 0.0
        %5662 = vadd.xlane.f32.xlu0 %v5661
        %v5663 = vpop.xlane.xlu0 %5662
        %v5664 = vmul.f32 %v5663, %v1588
        %v5665 = vadd.f32 %v5664, 1e-05
        %v5666 = vrsqrt.pop %v5665
        %v5667 = vmul.f32 %v5659, %v5666
        %v5669 = vlaneseq
        %v5670 = vshrl.u32 %v5669, 7
        %v5671 = vsub.s32 0, %v5670
        %v5672 = vrot.slane %v4449, %v5671
        %v5674 = vmul.f32 %v5667, %v5672
        %v5676 = vlaneseq
        %v5677 = vshrl.u32 %v5676, 7
        %v5678 = vsub.s32 0, %v5677
        %v5679 = vrot.slane %v4450, %v5678
        %v5681 = vadd.f32 %v5674, %v5679
        %v5682 = vld [vmem:[%s5] sm:$0xff]
        %v5683 = vld [vmem:[%s5 + $0x8] sm:$0xff]
        %v5684 = vld [vmem:[%s5 + $0x10] sm:$0xff]
        %v5685 = vld [vmem:[%s5 + $0x18] sm:$0xff]
        %v5686 = vld [vmem:[%s5 + $0x20] sm:$0x1]
        %v5687 = vlaneseq
        %v5688 = vshrl.u32 %v5687, 7
        %v5689 = vsub.s32 0, %v5688
        %v5690 = vrot.slane %v5686, %v5689
        %v5692 = vsel %vm573, %v5681, 0
        %5694 = vmatprep.subr.mxu0 0.0
        %5695 = vmatpush1.msra.mxu0 %v5682
        %5696 = vmatprep.subr.mxu0 0.0
        %5697 = vmatpush1.msra.mxu0 %v5683
        %5698 = vmatprep.subr.mxu0 0.0
        %5699 = vmatpush1.msra.mxu0 %v5684
        %5700 = vmatprep.subr.mxu0 0.0
        %5701 = vmatpush1.msra.mxu0 %v5685
        %5702 = vmatprep.subr.mxu0 0.0
        %5703 = vmatpush1.msra.mxu0 0.0
        %5704 = vmatprep.subr.mxu0 0.0
        %5705 = vmatpush1.msra.mxu0 0.0
        %5706 = vmatprep.subr.mxu0 0.0
        %5707 = vmatpush1.msra.mxu0 0.0
        %5708 = vmatprep.subr.mxu0 0.0
        %5709 = vmatpush1.msra.mxu0 0.0
        %5710 = vmatprep.subr.mxu0 0.0
        %5711 = vmatpush1.msra.mxu0 0.0
        %5712 = vmatprep.subr.mxu0 0.0
        %5713 = vmatpush1.msra.mxu0 0.0
        %5714 = vmatprep.subr.mxu0 0.0
        %5715 = vmatpush1.msra.mxu0 0.0
        %5716 = vmatprep.subr.mxu0 0.0
        %5717 = vmatpush1.msra.mxu0 0.0
        %5718 = vmatprep.subr.mxu0 0.0
        %5719 = vmatpush1.msra.mxu0 0.0
        %5720 = vmatprep.subr.mxu0 0.0
        %5721 = vmatpush1.msra.mxu0 0.0
        %5722 = vmatprep.subr.mxu0 0.0
        %5723 = vmatpush1.msra.mxu0 0.0
        %5724 = vmatprep.subr.mxu0 0.0
        %5725 = vmatpush1.msra.mxu0 0.0
        %5726 = vmatprep.subr.mxu0 0.0
        %5727 = vmatpush1.msra.mxu0 0.0
        %5728 = vmatprep.subr.mxu0 0.0
        %5729 = vmatpush1.msra.mxu0 0.0
        %5730 = vmatprep.subr.mxu0 0.0
        %5731 = vmatpush1.msra.mxu0 0.0
        %5732 = vmatprep.subr.mxu0 0.0
        %5733 = vmatpush1.msra.mxu0 0.0
        %5734 = vmatprep.subr.mxu0 0.0
        %5735 = vmatpush1.msra.mxu0 0.0
        %5736 = vmatprep.subr.mxu0 0.0
        %5737 = vmatpush1.msra.mxu0 0.0
        %5738 = vmatprep.subr.mxu0 0.0
        %5739 = vmatpush1.msra.mxu0 0.0
        %5740 = vmatprep.subr.mxu0 0.0
        %5741 = vmatpush1.msra.mxu0 0.0
        %5742 = vmatprep.subr.mxu0 0.0
        %5743 = vmatpush1.msra.mxu0 0.0
        %5744 = vmatprep.subr.mxu0 0.0
        %5745 = vmatpush1.msra.mxu0 0.0
        %5746 = vmatprep.subr.mxu0 0.0
        %5747 = vmatpush1.msra.mxu0 0.0
        %5748 = vmatprep.subr.mxu0 0.0
        %5749 = vmatpush1.msra.mxu0 0.0
        %5750 = vmatprep.subr.mxu0 0.0
        %5751 = vmatpush1.msra.mxu0 0.0
        %5752 = vmatprep.subr.mxu0 0.0
        %5753 = vmatpush1.msra.mxu0 0.0
        %5754 = vmatprep.subr.mxu0 0.0
        %5755 = vmatpush1.msra.mxu0 0.0
        %5756 = vmatprep.subr.mxu0 0.0
        %5757 = vmatpush1.msra.mxu0 0.0
        %5758 = vmatprep.mubr.f32.mxu0 0.0
        %5759 = vmatmul.mubr.f32.gmra.mrb[0].mxu0 %v5692
        %v5760 = vpop.f32.mrb[0].mxu0
        %v5761 = vadd.f32 %v5690, %v5760
        %v5762 = vpop.f32.mrb[0].mxu0
        %5763 = vdwg.mxu0
        %5764 = vst [vmem:[%s445] sm:$0xff] %v5761
        %s5765 = sand.u32 %s293, 1
        %s5766 = scalar_lea.sflag [#allocation3], %s5765
        %s5767 = sand.u32 %s293, 1
        %s5768 = scalar_lea.vmem [#allocation2], %s5767
        %p5769 = scmp.lt.s32.totalorder %s28, 1
        %s5770 = scalar_select %p5769, %s28, 1
        %s5771 = smul.addr %s5770, 8
        %s5772 = scalar_lea.vmem %s13, %s5771
        // Predicated region
        $region69: #{multi_task_autoencoder_forward.1} parent=67 // pred_check
          %p5773 = pneg %p303
        $region70: #{multi_task_autoencoder_forward.1} parent=67 // pred_check_branch
          %5775 = sbr.rel (%p5773) target = $region72
        $region71: #{multi_task_autoencoder_forward.1} parent=67 // pred_region
          %s5777 = ssub.s32 16, 16
          %5778 = vsyncadd %s5766, %s5777
          %s5779 = smul.addr %s28, 16
          %s5780 = scalar_lea.hbm %s12, %s5779
          %s5782 = sshll.u32 %s5768, 4
          %s5783 = int_to_ptr.vmem [resolvable:$true] %s5782
          %5785 = dma.vmem_to_hbm [thread:$0]  %s5783, 16, %s5780, %s5766
        $region72: #{multi_task_autoencoder_forward.1} parent=67 // pred_fallthru
          _
        // Predicated region
        $region73: #{multi_task_autoencoder_forward.1} parent=67 // pred_check
          %p5786 = pneg %p329
        $region74: #{multi_task_autoencoder_forward.1} parent=67 // pred_check_branch
          %5788 = sbr.rel (%p5786) target = $region76
        $region75: #{multi_task_autoencoder_forward.1} parent=67 // pred_region
          _
        $region76: #{multi_task_autoencoder_forward.1} parent=67 // pred_fallthru
          _
      $region68: #{multi_task_autoencoder_forward.1} parent=5 // pred_fallthru
        _
      %p5789 = scmp.le.s32.totalorder 2, %s23
      // Predicated region
      $region77: #{multi_task_autoencoder_forward.1} parent=5 // pred_check
        %p5790 = pneg %p5789
      $region78: #{multi_task_autoencoder_forward.1} parent=5 // pred_check_branch
        %5792 = sbr.rel (%p5790) target = $region80
      $region79: #{multi_task_autoencoder_forward.1} parent=5 // pred_region
        %s5793 = ssub.s32 %s23, 2
        // Predicated region
        $region81: #{multi_task_autoencoder_forward.1} parent=79 // pred_check
          %p5794 = pneg %p309
        $region82: #{multi_task_autoencoder_forward.1} parent=79 // pred_check_branch
          %5796 = sbr.rel (%p5794) target = $region84
        $region83: #{multi_task_autoencoder_forward.1} parent=79 // pred_region
          %s5797 = sand.u32 %s294, 1
          %s5798 = scalar_lea.sflag [#allocation3], %s5797
          %s5799 = sand.u32 %s294, 1
          %s5800 = scalar_lea.vmem [#allocation2], %s5799
          %5801 = dma.done %s5798, 16
        $region84: #{multi_task_autoencoder_forward.1} parent=79 // pred_fallthru
          _
        // Predicated region
        $region85: #{multi_task_autoencoder_forward.1} parent=79 // pred_check
          %p5802 = pneg %p335
        $region86: #{multi_task_autoencoder_forward.1} parent=79 // pred_check_branch
          %5804 = sbr.rel (%p5802) target = $region88
        $region87: #{multi_task_autoencoder_forward.1} parent=79 // pred_region
          %p5805 = scmp.lt.s32.totalorder %s29, 1
          %s5806 = scalar_select %p5805, %s29, 1
          %s5807 = smul.addr %s5806, 8
          %s5808 = scalar_lea.vmem %s13, %s5807
        $region88: #{multi_task_autoencoder_forward.1} parent=79 // pred_fallthru
          _
      $region80: #{multi_task_autoencoder_forward.1} parent=5 // pred_fallthru
        _
    $region6: #{multi_task_autoencoder_forward.1} parent=1 // loop_footer
      %s27 = sadd.s32 1, %s23
    $region7: #{multi_task_autoencoder_forward.1} parent=1 // loop_footer_branch
      %22 = sbr.rel target = $region3
    $region8: #{multi_task_autoencoder_forward.1} parent=1 // loop_exit
      _
    %5809 = vsyncpa [#allocation3], 1
    %s5810 = scalar_lea.sflag [#allocation3], 1
    %5811 = vsyncpa %s5810, 1

</llo_original>
